<compile_context>
chip_gen: v7x
topology: tpu7x:2x2x1
jax: 0.10.0
libtpu: 0.0.40
codegen_flags: <defaults>
</compile_context>

<pallas_src>
import jax
import jax.numpy as jnp
from jax.experimental import pallas as pl
from jax.experimental.pallas import tpu as pltpu


def _zero_halo(buf):
    """Zero only the 1-pixel border ring of a padded (Nb, H+2, W+2, C) buffer."""
    Nb, Hp, Wp, C = buf.shape
    zrow = jnp.zeros((Nb, 1, Wp, C), buf.dtype)
    zcol = jnp.zeros((Nb, Hp, 1, C), buf.dtype)
    buf[:, 0:1, :, :] = zrow
    buf[:, Hp - 1:Hp, :, :] = zrow
    buf[:, :, 0:1, :] = zcol
    buf[:, :, Wp - 1:Wp, :] = zcol


def fused_dncnn_kernel(x_ref, w0_ref, wmid_ref, wlast_ref, bh_ref, bl_ref,
                       o_ref, xpad, act, patches):
    # x_ref    : (Nb, H, W, Cin)     f32   input images for this grid step
    # w0_ref   : (9*Cin, F)          bf16  layer-0 im2col weight (BN scale folded)
    # wmid_ref : (depth-2, 9F, F)    bf16  hidden-layer weights  (BN scale folded)
    # wlast_ref: (9F, Cin)           bf16  final-layer weight
    # bh_ref   : (depth-1, F)        f32   folded BN bias for layers 0..depth-2
    # bl_ref   : (1, Cin)            f32   final-layer bias
    # o_ref    : (Nb, H, W, Cin)     f32   residual output
    # xpad     : (Nb, H+2, W+2, Cin) f32   padded input scratch
    # act      : (Nb, H+2, W+2, F)   f32   single padded activation scratch
    # patches  : (Nb*H*W, 9F)        bf16  reusable im2col scratch
    Nb, Hp, Wp, Cin = xpad.shape
    H, W = Hp - 2, Wp - 2
    F = act.shape[-1]
    n_mid = wmid_ref.shape[0]
    M = Nb * H * W

    # Only the halo ring has to be zero ("SAME" padding) -- interiors are always
    # fully overwritten.  Done unconditionally (thin strips, cheap) so it is also
    # correct under v7x megacore sharding of the parallel grid axis.
    _zero_halo(xpad)
    _zero_halo(act)

    xpad[:, 1:H + 1, 1:W + 1, :] = x_ref[...]

    # ---- Layer 0: deep-K (9*Cin) matmul; tiny, so an in-register concat is fine.
    p0 = jnp.concatenate([
        jnp.concatenate(
            [xpad[b, dy:dy + H, dx:dx + W, :].reshape(H * W, Cin)
                 .astype(jnp.bfloat16)
             for dy in range(3) for dx in range(3)], axis=-1)
        for b in range(Nb)], axis=0)                                  # (M, 9*Cin)
    acc = jnp.dot(p0, w0_ref[...], preferred_element_type=jnp.float32)
    acc = jnp.maximum(acc + bh_ref[0:1, :], 0.0)
    act[:, 1:H + 1, 1:W + 1, :] = acc.reshape(Nb, H, W, F)

    def extract_patches():
        # act (padded) -> patches scratch: 9 lane-aligned (H*W, F) slab stores
        # per image, cast to bf16 at the store.
        for b in range(Nb):
            for dy in range(3):
                for dx in range(3):
                    j = dy * 3 + dx
                    patches[b * H * W:(b + 1) * H * W, j * F:(j + 1) * F] = (
                        act[b, dy:dy + H, dx:dx + W, :]
                        .reshape(H * W, F).astype(jnp.bfloat16))

    # ---- Hidden layers 1 .. depth-2 (conv + folded-BN bias + ReLU) ------------
    # TODO(synk): for realistic DnCNN depth (17-20) switch this Python unroll to a
    #             lax.fori_loop over wmid_ref[i] / bh_ref[i] to bound live ranges.
    for i in range(n_mid):
        extract_patches()
        acc = jnp.dot(patches[...], wmid_ref[i],
                      preferred_element_type=jnp.float32)             # (M, F)
        acc = jnp.maximum(acc + bh_ref[i + 1:i + 2, :], 0.0)
        act[:, 1:H + 1, 1:W + 1, :] = acc.reshape(Nb, H, W, F)

    # ---- Final conv (no BN / no ReLU) fused with the residual subtraction -----
    extract_patches()
    conv = jnp.dot(patches[...], wlast_ref[...],
                   preferred_element_type=jnp.float32)                # (M, Cin)
    conv = conv + bl_ref[...]
    res = x_ref[...].reshape(M, Cin) - conv
    o_ref[...] = res.reshape(Nb, H, W, Cin).astype(o_ref.dtype)


def dncnn_block_forward(x_nchw, weights, scales, biases, images_per_block=None):
    """Pallas implementation of DnCNNBlock.forward.  Input/output: NCHW."""
    depth = len(weights)
    assert depth >= 3, "fused kernel expects at least 3 conv layers"
    F = weights[0].shape[-1]
    x = jnp.transpose(x_nchw, (0, 2, 3, 1)).astype(jnp.float32)       # NCHW -> NHWC
    N, H, W, Cin = x.shape

    if images_per_block is None:
        # Keep >= 2 grid steps so both v7x TensorCores get work; the rest of the
        # batch is folded into the matmul M (amortizes per-step cost on v5e/v6e).
        images_per_block = max(1, N // 2)
    Nb = images_per_block
    while N % Nb:
        Nb -= 1

    # Fold the BN scale into every conv weight; ship weights in bf16 (MXU-native).
    w0 = (weights[0] * scales[0]).reshape(9 * Cin, F).astype(jnp.bfloat16)
    w_mid = jnp.stack(
        [(weights[i] * scales[i]).reshape(9 * F, F) for i in range(1, depth - 1)],
        axis=0).astype(jnp.bfloat16)                                  # (depth-2,9F,F)
    w_last = (weights[-1] * scales[-1]).reshape(9 * F, Cin).astype(jnp.bfloat16)
    b_hidden = jnp.stack(biases[:-1], axis=0).astype(jnp.float32)     # (depth-1, F)
    b_last = biases[-1].reshape(1, Cin).astype(jnp.float32)

    flops = 2 * N * H * W * 9 * (Cin * F + F * F * (depth - 2) + F * Cin)
    bytes_accessed = (4 * (x.size + b_hidden.size + b_last.size + N * H * W * Cin)
                      + 2 * (w0.size + w_mid.size + w_last.size))

    out = pl.pallas_call(
        fused_dncnn_kernel,
        out_shape=jax.ShapeDtypeStruct((N, H, W, Cin), jnp.float32),
        grid=(N // Nb,),
        in_specs=[
            pl.BlockSpec((Nb, H, W, Cin), lambda n: (n, 0, 0, 0)),
            pl.BlockSpec((9 * Cin, F), lambda n: (0, 0)),
            pl.BlockSpec((depth - 2, 9 * F, F), lambda n: (0, 0, 0)),
            pl.BlockSpec((9 * F, Cin), lambda n: (0, 0)),
            pl.BlockSpec((depth - 1, F), lambda n: (0, 0)),
            pl.BlockSpec((1, Cin), lambda n: (0, 0)),
        ],
        out_specs=pl.BlockSpec((Nb, H, W, Cin), lambda n: (n, 0, 0, 0)),
        scratch_shapes=[
            pltpu.VMEM((Nb, H + 2, W + 2, Cin), jnp.float32),   # padded input
            pltpu.VMEM((Nb, H + 2, W + 2, F), jnp.float32),     # single activation
            pltpu.VMEM((Nb * H * W, 9 * F), jnp.bfloat16),      # im2col patches
        ],
        compiler_params=pltpu.CompilerParams(
            dimension_semantics=("parallel",)),
        cost_estimate=pl.CostEstimate(
            flops=flops, transcendentals=0, bytes_accessed=int(bytes_accessed)),
    )(x, w0, w_mid, w_last, b_hidden, b_last)

    return jnp.transpose(out, (0, 3, 1, 2))                           # NHWC -> NCHW


def init_dncnn_params(key, depth, in_channels, filters, use_bnorm=True):
    """Deterministic synthetic params. Conv weights stored HWIO (3,3,Cin,Cout)."""
    eps = 1e-4
    chans = [in_channels] + [filters] * (depth - 1) + [in_channels]
    weights, scales, biases = [], [], []
    for i in range(depth):
        cin, cout = chans[i], chans[i + 1]
        key, kw, kg, kb = jax.random.split(key, 4)
        w = 0.1 * jax.random.normal(kw, (3, 3, cin, cout), jnp.float32)
        has_bn = use_bnorm and (i < depth - 1)
        if has_bn:
            gamma = 1.0 + 0.05 * jax.random.normal(kg, (cout,), jnp.float32)
            beta = 0.05 * jax.random.normal(kb, (cout,), jnp.float32)
            running_mean = jnp.zeros((cout,), jnp.float32)
            running_var = jnp.ones((cout,), jnp.float32)
            scale = gamma / jnp.sqrt(running_var + eps)
            bias = beta - running_mean * scale
        else:
            scale = jnp.ones((cout,), jnp.float32)
            bias = jnp.zeros((cout,), jnp.float32)
        weights.append(w)
        scales.append(scale)
        biases.append(bias)
    return weights, scales, biases


def reference_forward(x_nchw, weights, scales, biases):
    """Pure-JAX reference (lax conv) for a correctness check."""
    x = jnp.transpose(x_nchw, (0, 2, 3, 1))
    h = x
    depth = len(weights)
    for i in range(depth):
        h = jax.lax.conv_general_dilated(
            h, weights[i], window_strides=(1, 1), padding="SAME",
            dimension_numbers=("NHWC", "HWIO", "NHWC"))
        h = h * scales[i] + biases[i]
        if i < depth - 1:
            h = jnp.maximum(h, 0.0)
    return jnp.transpose(x - h, (0, 3, 1, 2))


if __name__ == "__main__":
    depth = 4
    in_channels = 4
    filters = 32
    N, H, W = 2, 16, 16

    key = jax.random.PRNGKey(0)
    key, kx = jax.random.split(key)
    x = jax.random.normal(kx, (N, in_channels, H, W), jnp.float32)

    weights, scales, biases = init_dncnn_params(key, depth, in_channels, filters)

    out = dncnn_block_forward(x, weights, scales, biases)
    out = jax.block_until_ready(out)

    ref = reference_forward(x, weights, scales, biases)
    assert out.shape == (N, in_channels, H, W)
    # bf16 MXU inputs (f32 accumulation): tolerance loosened vs the f32 reference.
    assert jnp.allclose(out, ref, atol=5e-2, rtol=5e-2), "mismatch vs JAX reference"

    print("KERNEL_OK")
</pallas_src>

<mosaic_0001>
module attributes {stable_mosaic.version = 11 : i64} {
  func.func @fused_dncnn_kernel(%arg0: i32, %arg1: memref<1x16x16x4xf32, #tpu.memory_space<vmem>>, %arg2: memref<36x32xbf16, #tpu.memory_space<vmem>>, %arg3: memref<2x288x32xbf16, #tpu.memory_space<vmem>>, %arg4: memref<288x4xbf16, #tpu.memory_space<vmem>>, %arg5: memref<3x32xf32, #tpu.memory_space<vmem>>, %arg6: memref<1x4xf32, #tpu.memory_space<vmem>>, %arg7: memref<1x16x16x4xf32, #tpu.memory_space<vmem>>, %arg8: memref<1x18x18x4xf32, #tpu.memory_space<vmem>>, %arg9: memref<1x18x18x32xf32, #tpu.memory_space<vmem>>, %arg10: memref<256x288xbf16, #tpu.memory_space<vmem>>) attributes {dimension_semantics = [#tpu.dimension_semantics<parallel>], iteration_bounds = array<i64: 2>, scalar_prefetch = 0 : i64, scratch_operands = 3 : i64, tpu.core_type = #tpu.core_type<tc>, window_params = [{transform_indices = @transform_0, window_bounds = array<i64: 1, 16, 16, 4>}, {pipeline_mode = #tpu.pipeline_mode<synchronous>, transform_indices = @transform_1, window_bounds = array<i64: 36, 32>}, {pipeline_mode = #tpu.pipeline_mode<synchronous>, transform_indices = @transform_2, window_bounds = array<i64: 2, 288, 32>}, {pipeline_mode = #tpu.pipeline_mode<synchronous>, transform_indices = @transform_3, window_bounds = array<i64: 288, 4>}, {pipeline_mode = #tpu.pipeline_mode<synchronous>, transform_indices = @transform_4, window_bounds = array<i64: 3, 32>}, {pipeline_mode = #tpu.pipeline_mode<synchronous>, transform_indices = @transform_5, window_bounds = array<i64: 1, 4>}, {transform_indices = @transform_6, window_bounds = array<i64: 1, 16, 16, 4>}]} {
    %cst = arith.constant 0.000000e+00 : f32
    %0 = vector.broadcast %cst : f32 to vector<1x1x18x4xf32>
    %cst_0 = arith.constant 0.000000e+00 : f32
    %1 = vector.broadcast %cst_0 : f32 to vector<1x18x1x4xf32>
    %c0 = arith.constant 0 : index
    %c0_1 = arith.constant 0 : index
    %c0_2 = arith.constant 0 : index
    %c0_3 = arith.constant 0 : index
    %2 = vector.load %arg8[%c0, %c0_1, %c0_2, %c0_3] : memref<1x18x18x4xf32, #tpu.memory_space<vmem>>, vector<1x1x18x4xf32>
    tpu.vector_store %arg8[%c0, %c0_1, %c0_2, %c0_3], %0 {strides = array<i32>} : memref<1x18x18x4xf32, #tpu.memory_space<vmem>>, vector<1x1x18x4xf32>,
    %c0_4 = arith.constant 0 : index
    %c17 = arith.constant 17 : index
    %c0_5 = arith.constant 0 : index
    %c0_6 = arith.constant 0 : index
    %3 = vector.load %arg8[%c0_4, %c17, %c0_5, %c0_6] : memref<1x18x18x4xf32, #tpu.memory_space<vmem>>, vector<1x1x18x4xf32>
    tpu.vector_store %arg8[%c0_4, %c17, %c0_5, %c0_6], %0 {strides = array<i32>} : memref<1x18x18x4xf32, #tpu.memory_space<vmem>>, vector<1x1x18x4xf32>,
    %c0_7 = arith.constant 0 : index
    %c0_8 = arith.constant 0 : index
    %c0_9 = arith.constant 0 : index
    %c0_10 = arith.constant 0 : index
    %4 = vector.load %arg8[%c0_7, %c0_8, %c0_9, %c0_10] : memref<1x18x18x4xf32, #tpu.memory_space<vmem>>, vector<1x18x1x4xf32>
    tpu.vector_store %arg8[%c0_7, %c0_8, %c0_9, %c0_10], %1 {strides = array<i32>} : memref<1x18x18x4xf32, #tpu.memory_space<vmem>>, vector<1x18x1x4xf32>,
    %c0_11 = arith.constant 0 : index
    %c0_12 = arith.constant 0 : index
    %c17_13 = arith.constant 17 : index
    %c0_14 = arith.constant 0 : index
    %5 = vector.load %arg8[%c0_11, %c0_12, %c17_13, %c0_14] : memref<1x18x18x4xf32, #tpu.memory_space<vmem>>, vector<1x18x1x4xf32>
    tpu.vector_store %arg8[%c0_11, %c0_12, %c17_13, %c0_14], %1 {strides = array<i32>} : memref<1x18x18x4xf32, #tpu.memory_space<vmem>>, vector<1x18x1x4xf32>,
    %cst_15 = arith.constant 0.000000e+00 : f32
    %6 = vector.broadcast %cst_15 : f32 to vector<1x1x18x32xf32>
    %cst_16 = arith.constant 0.000000e+00 : f32
    %7 = vector.broadcast %cst_16 : f32 to vector<1x18x1x32xf32>
    %c0_17 = arith.constant 0 : index
    %c0_18 = arith.constant 0 : index
    %c0_19 = arith.constant 0 : index
    %c0_20 = arith.constant 0 : index
    %8 = vector.load %arg9[%c0_17, %c0_18, %c0_19, %c0_20] : memref<1x18x18x32xf32, #tpu.memory_space<vmem>>, vector<1x1x18x32xf32>
    tpu.vector_store %arg9[%c0_17, %c0_18, %c0_19, %c0_20], %6 {strides = array<i32>} : memref<1x18x18x32xf32, #tpu.memory_space<vmem>>, vector<1x1x18x32xf32>,
    %c0_21 = arith.constant 0 : index
    %c17_22 = arith.constant 17 : index
    %c0_23 = arith.constant 0 : index
    %c0_24 = arith.constant 0 : index
    %9 = vector.load %arg9[%c0_21, %c17_22, %c0_23, %c0_24] : memref<1x18x18x32xf32, #tpu.memory_space<vmem>>, vector<1x1x18x32xf32>
    tpu.vector_store %arg9[%c0_21, %c17_22, %c0_23, %c0_24], %6 {strides = array<i32>} : memref<1x18x18x32xf32, #tpu.memory_space<vmem>>, vector<1x1x18x32xf32>,
    %c0_25 = arith.constant 0 : index
    %c0_26 = arith.constant 0 : index
    %c0_27 = arith.constant 0 : index
    %c0_28 = arith.constant 0 : index
    %10 = vector.load %arg9[%c0_25, %c0_26, %c0_27, %c0_28] : memref<1x18x18x32xf32, #tpu.memory_space<vmem>>, vector<1x18x1x32xf32>
    tpu.vector_store %arg9[%c0_25, %c0_26, %c0_27, %c0_28], %7 {strides = array<i32>} : memref<1x18x18x32xf32, #tpu.memory_space<vmem>>, vector<1x18x1x32xf32>,
    %c0_29 = arith.constant 0 : index
    %c0_30 = arith.constant 0 : index
    %c17_31 = arith.constant 17 : index
    %c0_32 = arith.constant 0 : index
    %11 = vector.load %arg9[%c0_29, %c0_30, %c17_31, %c0_32] : memref<1x18x18x32xf32, #tpu.memory_space<vmem>>, vector<1x18x1x32xf32>
    tpu.vector_store %arg9[%c0_29, %c0_30, %c17_31, %c0_32], %7 {strides = array<i32>} : memref<1x18x18x32xf32, #tpu.memory_space<vmem>>, vector<1x18x1x32xf32>,
    %c0_33 = arith.constant 0 : index
    %c0_34 = arith.constant 0 : index
    %c0_35 = arith.constant 0 : index
    %c0_36 = arith.constant 0 : index
    %12 = vector.load %arg1[%c0_33, %c0_34, %c0_35, %c0_36] : memref<1x16x16x4xf32, #tpu.memory_space<vmem>>, vector<1x16x16x4xf32>
    %c0_37 = arith.constant 0 : index
    %c1 = arith.constant 1 : index
    %c1_38 = arith.constant 1 : index
    %c0_39 = arith.constant 0 : index
    %13 = vector.load %arg8[%c0_37, %c1, %c1_38, %c0_39] : memref<1x18x18x4xf32, #tpu.memory_space<vmem>>, vector<1x16x16x4xf32>
    tpu.vector_store %arg8[%c0_37, %c1, %c1_38, %c0_39], %12 {strides = array<i32>} : memref<1x18x18x4xf32, #tpu.memory_space<vmem>>, vector<1x16x16x4xf32>,
    %c0_40 = arith.constant 0 : index
    %c0_41 = arith.constant 0 : index
    %c0_42 = arith.constant 0 : index
    %c0_43 = arith.constant 0 : index
    %14 = vector.load %arg8[%c0_40, %c0_41, %c0_42, %c0_43] : memref<1x18x18x4xf32, #tpu.memory_space<vmem>>, vector<1x16x16x4xf32>
    %15 = vector.shape_cast %14 : vector<1x16x16x4xf32> to vector<16x16x4xf32>
    %16 = vector.shape_cast %15 : vector<16x16x4xf32> to vector<256x4xf32>
    %17 = arith.truncf %16 : vector<256x4xf32> to vector<256x4xbf16>
    %c0_44 = arith.constant 0 : index
    %c0_45 = arith.constant 0 : index
    %c1_46 = arith.constant 1 : index
    %c0_47 = arith.constant 0 : index
    %18 = vector.load %arg8[%c0_44, %c0_45, %c1_46, %c0_47] : memref<1x18x18x4xf32, #tpu.memory_space<vmem>>, vector<1x16x16x4xf32>
    %19 = vector.shape_cast %18 : vector<1x16x16x4xf32> to vector<16x16x4xf32>
    %20 = vector.shape_cast %19 : vector<16x16x4xf32> to vector<256x4xf32>
    %21 = arith.truncf %20 : vector<256x4xf32> to vector<256x4xbf16>
    %c0_48 = arith.constant 0 : index
    %c0_49 = arith.constant 0 : index
    %c2 = arith.constant 2 : index
    %c0_50 = arith.constant 0 : index
    %22 = vector.load %arg8[%c0_48, %c0_49, %c2, %c0_50] : memref<1x18x18x4xf32, #tpu.memory_space<vmem>>, vector<1x16x16x4xf32>
    %23 = vector.shape_cast %22 : vector<1x16x16x4xf32> to vector<16x16x4xf32>
    %24 = vector.shape_cast %23 : vector<16x16x4xf32> to vector<256x4xf32>
    %25 = arith.truncf %24 : vector<256x4xf32> to vector<256x4xbf16>
    %c0_51 = arith.constant 0 : index
    %c1_52 = arith.constant 1 : index
    %c0_53 = arith.constant 0 : index
    %c0_54 = arith.constant 0 : index
    %26 = vector.load %arg8[%c0_51, %c1_52, %c0_53, %c0_54] : memref<1x18x18x4xf32, #tpu.memory_space<vmem>>, vector<1x16x16x4xf32>
    %27 = vector.shape_cast %26 : vector<1x16x16x4xf32> to vector<16x16x4xf32>
    %28 = vector.shape_cast %27 : vector<16x16x4xf32> to vector<256x4xf32>
    %29 = arith.truncf %28 : vector<256x4xf32> to vector<256x4xbf16>
    %c0_55 = arith.constant 0 : index
    %c1_56 = arith.constant 1 : index
    %c1_57 = arith.constant 1 : index
    %c0_58 = arith.constant 0 : index
    %30 = vector.load %arg8[%c0_55, %c1_56, %c1_57, %c0_58] : memref<1x18x18x4xf32, #tpu.memory_space<vmem>>, vector<1x16x16x4xf32>
    %31 = vector.shape_cast %30 : vector<1x16x16x4xf32> to vector<16x16x4xf32>
    %32 = vector.shape_cast %31 : vector<16x16x4xf32> to vector<256x4xf32>
    %33 = arith.truncf %32 : vector<256x4xf32> to vector<256x4xbf16>
    %c0_59 = arith.constant 0 : index
    %c1_60 = arith.constant 1 : index
    %c2_61 = arith.constant 2 : index
    %c0_62 = arith.constant 0 : index
    %34 = vector.load %arg8[%c0_59, %c1_60, %c2_61, %c0_62] : memref<1x18x18x4xf32, #tpu.memory_space<vmem>>, vector<1x16x16x4xf32>
    %35 = vector.shape_cast %34 : vector<1x16x16x4xf32> to vector<16x16x4xf32>
    %36 = vector.shape_cast %35 : vector<16x16x4xf32> to vector<256x4xf32>
    %37 = arith.truncf %36 : vector<256x4xf32> to vector<256x4xbf16>
    %c0_63 = arith.constant 0 : index
    %c2_64 = arith.constant 2 : index
    %c0_65 = arith.constant 0 : index
    %c0_66 = arith.constant 0 : index
    %38 = vector.load %arg8[%c0_63, %c2_64, %c0_65, %c0_66] : memref<1x18x18x4xf32, #tpu.memory_space<vmem>>, vector<1x16x16x4xf32>
    %39 = vector.shape_cast %38 : vector<1x16x16x4xf32> to vector<16x16x4xf32>
    %40 = vector.shape_cast %39 : vector<16x16x4xf32> to vector<256x4xf32>
    %41 = arith.truncf %40 : vector<256x4xf32> to vector<256x4xbf16>
    %c0_67 = arith.constant 0 : index
    %c2_68 = arith.constant 2 : index
    %c1_69 = arith.constant 1 : index
    %c0_70 = arith.constant 0 : index
    %42 = vector.load %arg8[%c0_67, %c2_68, %c1_69, %c0_70] : memref<1x18x18x4xf32, #tpu.memory_space<vmem>>, vector<1x16x16x4xf32>
    %43 = vector.shape_cast %42 : vector<1x16x16x4xf32> to vector<16x16x4xf32>
    %44 = vector.shape_cast %43 : vector<16x16x4xf32> to vector<256x4xf32>
    %45 = arith.truncf %44 : vector<256x4xf32> to vector<256x4xbf16>
    %c0_71 = arith.constant 0 : index
    %c2_72 = arith.constant 2 : index
    %c2_73 = arith.constant 2 : index
    %c0_74 = arith.constant 0 : index
    %46 = vector.load %arg8[%c0_71, %c2_72, %c2_73, %c0_74] : memref<1x18x18x4xf32, #tpu.memory_space<vmem>>, vector<1x16x16x4xf32>
    %47 = vector.shape_cast %46 : vector<1x16x16x4xf32> to vector<16x16x4xf32>
    %48 = vector.shape_cast %47 : vector<16x16x4xf32> to vector<256x4xf32>
    %49 = arith.truncf %48 : vector<256x4xf32> to vector<256x4xbf16>
    %50 = tpu.concatenate %17, %21, %25, %29, %33, %37, %41, %45, %49 in 1 : vector<256x4xbf16>, vector<256x4xbf16>, vector<256x4xbf16>, vector<256x4xbf16>, vector<256x4xbf16>, vector<256x4xbf16>, vector<256x4xbf16>, vector<256x4xbf16>, vector<256x4xbf16> -> vector<256x36xbf16>
    %c0_75 = arith.constant 0 : index
    %c0_76 = arith.constant 0 : index
    %51 = vector.load %arg2[%c0_75, %c0_76] : memref<36x32xbf16, #tpu.memory_space<vmem>>, vector<36x32xbf16>
    %cst_77 = arith.constant dense<0.000000e+00> : vector<256x32xf32>
    %52 = tpu.matmul %50, %51, %cst_77 {dimension_numbers = #tpu.dot_dimension_numbers<[1], [0], [0], [1], [0, 0, 1, 1], [], []>} : vector<256x36xbf16>, vector<36x32xbf16>, vector<256x32xf32> -> vector<256x32xf32>
    %c0_78 = arith.constant 0 : index
    %c0_79 = arith.constant 0 : index
    %53 = vector.load %arg5[%c0_78, %c0_79] : memref<3x32xf32, #tpu.memory_space<vmem>>, vector<1x32xf32>
    %54 = vector.broadcast %53 : vector<1x32xf32> to vector<256x32xf32>
    %55 = arith.addf %52, %54 : vector<256x32xf32>
    %cst_80 = arith.constant 0.000000e+00 : f32
    %56 = vector.broadcast %cst_80 : f32 to vector<256x32xf32>
    %57 = arith.maximumf %55, %56 : vector<256x32xf32>
    %58 = vector.shape_cast %57 : vector<256x32xf32> to vector<1x16x16x32xf32>
    %c0_81 = arith.constant 0 : index
    %c1_82 = arith.constant 1 : index
    %c1_83 = arith.constant 1 : index
    %c0_84 = arith.constant 0 : index
    %59 = vector.load %arg9[%c0_81, %c1_82, %c1_83, %c0_84] : memref<1x18x18x32xf32, #tpu.memory_space<vmem>>, vector<1x16x16x32xf32>
    tpu.vector_store %arg9[%c0_81, %c1_82, %c1_83, %c0_84], %58 {strides = array<i32>} : memref<1x18x18x32xf32, #tpu.memory_space<vmem>>, vector<1x16x16x32xf32>,
    %c0_85 = arith.constant 0 : index
    %c0_86 = arith.constant 0 : index
    %c0_87 = arith.constant 0 : index
    %c0_88 = arith.constant 0 : index
    %60 = vector.load %arg9[%c0_85, %c0_86, %c0_87, %c0_88] : memref<1x18x18x32xf32, #tpu.memory_space<vmem>>, vector<1x16x16x32xf32>
    %61 = vector.shape_cast %60 : vector<1x16x16x32xf32> to vector<16x16x32xf32>
    %62 = vector.shape_cast %61 : vector<16x16x32xf32> to vector<256x32xf32>
    %63 = arith.truncf %62 : vector<256x32xf32> to vector<256x32xbf16>
    %c0_89 = arith.constant 0 : index
    %c0_90 = arith.constant 0 : index
    %64 = vector.load %arg10[%c0_89, %c0_90] : memref<256x288xbf16, #tpu.memory_space<vmem>>, vector<256x32xbf16>
    tpu.vector_store %arg10[%c0_89, %c0_90], %63 {strides = array<i32>} : memref<256x288xbf16, #tpu.memory_space<vmem>>, vector<256x32xbf16>,
    %c0_91 = arith.constant 0 : index
    %c0_92 = arith.constant 0 : index
    %c1_93 = arith.constant 1 : index
    %c0_94 = arith.constant 0 : index
    %65 = vector.load %arg9[%c0_91, %c0_92, %c1_93, %c0_94] : memref<1x18x18x32xf32, #tpu.memory_space<vmem>>, vector<1x16x16x32xf32>
    %66 = vector.shape_cast %65 : vector<1x16x16x32xf32> to vector<16x16x32xf32>
    %67 = vector.shape_cast %66 : vector<16x16x32xf32> to vector<256x32xf32>
    %68 = arith.truncf %67 : vector<256x32xf32> to vector<256x32xbf16>
    %c0_95 = arith.constant 0 : index
    %c32 = arith.constant 32 : index
    %69 = vector.load %arg10[%c0_95, %c32] : memref<256x288xbf16, #tpu.memory_space<vmem>>, vector<256x32xbf16>
    tpu.vector_store %arg10[%c0_95, %c32], %68 {strides = array<i32>} : memref<256x288xbf16, #tpu.memory_space<vmem>>, vector<256x32xbf16>,
    %c0_96 = arith.constant 0 : index
    %c0_97 = arith.constant 0 : index
    %c2_98 = arith.constant 2 : index
    %c0_99 = arith.constant 0 : index
    %70 = vector.load %arg9[%c0_96, %c0_97, %c2_98, %c0_99] : memref<1x18x18x32xf32, #tpu.memory_space<vmem>>, vector<1x16x16x32xf32>
    %71 = vector.shape_cast %70 : vector<1x16x16x32xf32> to vector<16x16x32xf32>
    %72 = vector.shape_cast %71 : vector<16x16x32xf32> to vector<256x32xf32>
    %73 = arith.truncf %72 : vector<256x32xf32> to vector<256x32xbf16>
    %c0_100 = arith.constant 0 : index
    %c64 = arith.constant 64 : index
    %74 = vector.load %arg10[%c0_100, %c64] : memref<256x288xbf16, #tpu.memory_space<vmem>>, vector<256x32xbf16>
    tpu.vector_store %arg10[%c0_100, %c64], %73 {strides = array<i32>} : memref<256x288xbf16, #tpu.memory_space<vmem>>, vector<256x32xbf16>,
    %c0_101 = arith.constant 0 : index
    %c1_102 = arith.constant 1 : index
    %c0_103 = arith.constant 0 : index
    %c0_104 = arith.constant 0 : index
    %75 = vector.load %arg9[%c0_101, %c1_102, %c0_103, %c0_104] : memref<1x18x18x32xf32, #tpu.memory_space<vmem>>, vector<1x16x16x32xf32>
    %76 = vector.shape_cast %75 : vector<1x16x16x32xf32> to vector<16x16x32xf32>
    %77 = vector.shape_cast %76 : vector<16x16x32xf32> to vector<256x32xf32>
    %78 = arith.truncf %77 : vector<256x32xf32> to vector<256x32xbf16>
    %c0_105 = arith.constant 0 : index
    %c96 = arith.constant 96 : index
    %79 = vector.load %arg10[%c0_105, %c96] : memref<256x288xbf16, #tpu.memory_space<vmem>>, vector<256x32xbf16>
    tpu.vector_store %arg10[%c0_105, %c96], %78 {strides = array<i32>} : memref<256x288xbf16, #tpu.memory_space<vmem>>, vector<256x32xbf16>,
    %c0_106 = arith.constant 0 : index
    %c1_107 = arith.constant 1 : index
    %c1_108 = arith.constant 1 : index
    %c0_109 = arith.constant 0 : index
    %80 = vector.load %arg9[%c0_106, %c1_107, %c1_108, %c0_109] : memref<1x18x18x32xf32, #tpu.memory_space<vmem>>, vector<1x16x16x32xf32>
    %81 = vector.shape_cast %80 : vector<1x16x16x32xf32> to vector<16x16x32xf32>
    %82 = vector.shape_cast %81 : vector<16x16x32xf32> to vector<256x32xf32>
    %83 = arith.truncf %82 : vector<256x32xf32> to vector<256x32xbf16>
    %c0_110 = arith.constant 0 : index
    %c128 = arith.constant 128 : index
    %84 = vector.load %arg10[%c0_110, %c128] : memref<256x288xbf16, #tpu.memory_space<vmem>>, vector<256x32xbf16>
    tpu.vector_store %arg10[%c0_110, %c128], %83 {strides = array<i32>} : memref<256x288xbf16, #tpu.memory_space<vmem>>, vector<256x32xbf16>,
    %c0_111 = arith.constant 0 : index
    %c1_112 = arith.constant 1 : index
    %c2_113 = arith.constant 2 : index
    %c0_114 = arith.constant 0 : index
    %85 = vector.load %arg9[%c0_111, %c1_112, %c2_113, %c0_114] : memref<1x18x18x32xf32, #tpu.memory_space<vmem>>, vector<1x16x16x32xf32>
    %86 = vector.shape_cast %85 : vector<1x16x16x32xf32> to vector<16x16x32xf32>
    %87 = vector.shape_cast %86 : vector<16x16x32xf32> to vector<256x32xf32>
    %88 = arith.truncf %87 : vector<256x32xf32> to vector<256x32xbf16>
    %c0_115 = arith.constant 0 : index
    %c160 = arith.constant 160 : index
    %89 = vector.load %arg10[%c0_115, %c160] : memref<256x288xbf16, #tpu.memory_space<vmem>>, vector<256x32xbf16>
    tpu.vector_store %arg10[%c0_115, %c160], %88 {strides = array<i32>} : memref<256x288xbf16, #tpu.memory_space<vmem>>, vector<256x32xbf16>,
    %c0_116 = arith.constant 0 : index
    %c2_117 = arith.constant 2 : index
    %c0_118 = arith.constant 0 : index
    %c0_119 = arith.constant 0 : index
    %90 = vector.load %arg9[%c0_116, %c2_117, %c0_118, %c0_119] : memref<1x18x18x32xf32, #tpu.memory_space<vmem>>, vector<1x16x16x32xf32>
    %91 = vector.shape_cast %90 : vector<1x16x16x32xf32> to vector<16x16x32xf32>
    %92 = vector.shape_cast %91 : vector<16x16x32xf32> to vector<256x32xf32>
    %93 = arith.truncf %92 : vector<256x32xf32> to vector<256x32xbf16>
    %c0_120 = arith.constant 0 : index
    %c192 = arith.constant 192 : index
    %94 = vector.load %arg10[%c0_120, %c192] : memref<256x288xbf16, #tpu.memory_space<vmem>>, vector<256x32xbf16>
    tpu.vector_store %arg10[%c0_120, %c192], %93 {strides = array<i32>} : memref<256x288xbf16, #tpu.memory_space<vmem>>, vector<256x32xbf16>,
    %c0_121 = arith.constant 0 : index
    %c2_122 = arith.constant 2 : index
    %c1_123 = arith.constant 1 : index
    %c0_124 = arith.constant 0 : index
    %95 = vector.load %arg9[%c0_121, %c2_122, %c1_123, %c0_124] : memref<1x18x18x32xf32, #tpu.memory_space<vmem>>, vector<1x16x16x32xf32>
    %96 = vector.shape_cast %95 : vector<1x16x16x32xf32> to vector<16x16x32xf32>
    %97 = vector.shape_cast %96 : vector<16x16x32xf32> to vector<256x32xf32>
    %98 = arith.truncf %97 : vector<256x32xf32> to vector<256x32xbf16>
    %c0_125 = arith.constant 0 : index
    %c224 = arith.constant 224 : index
    %99 = vector.load %arg10[%c0_125, %c224] : memref<256x288xbf16, #tpu.memory_space<vmem>>, vector<256x32xbf16>
    tpu.vector_store %arg10[%c0_125, %c224], %98 {strides = array<i32>} : memref<256x288xbf16, #tpu.memory_space<vmem>>, vector<256x32xbf16>,
    %c0_126 = arith.constant 0 : index
    %c2_127 = arith.constant 2 : index
    %c2_128 = arith.constant 2 : index
    %c0_129 = arith.constant 0 : index
    %100 = vector.load %arg9[%c0_126, %c2_127, %c2_128, %c0_129] : memref<1x18x18x32xf32, #tpu.memory_space<vmem>>, vector<1x16x16x32xf32>
    %101 = vector.shape_cast %100 : vector<1x16x16x32xf32> to vector<16x16x32xf32>
    %102 = vector.shape_cast %101 : vector<16x16x32xf32> to vector<256x32xf32>
    %103 = arith.truncf %102 : vector<256x32xf32> to vector<256x32xbf16>
    %c0_130 = arith.constant 0 : index
    %c256 = arith.constant 256 : index
    %104 = vector.load %arg10[%c0_130, %c256] : memref<256x288xbf16, #tpu.memory_space<vmem>>, vector<256x32xbf16>
    tpu.vector_store %arg10[%c0_130, %c256], %103 {strides = array<i32>} : memref<256x288xbf16, #tpu.memory_space<vmem>>, vector<256x32xbf16>,
    %c0_131 = arith.constant 0 : index
    %c0_132 = arith.constant 0 : index
    %105 = vector.load %arg10[%c0_131, %c0_132] : memref<256x288xbf16, #tpu.memory_space<vmem>>, vector<256x288xbf16>
    %c0_133 = arith.constant 0 : index
    %c0_134 = arith.constant 0 : index
    %c0_135 = arith.constant 0 : index
    %106 = vector.load %arg3[%c0_133, %c0_134, %c0_135] : memref<2x288x32xbf16, #tpu.memory_space<vmem>>, vector<1x288x32xbf16>
    %107 = vector.shape_cast %106 : vector<1x288x32xbf16> to vector<288x32xbf16>
    %cst_136 = arith.constant dense<0.000000e+00> : vector<256x32xf32>
    %108 = tpu.matmul %105, %107, %cst_136 {dimension_numbers = #tpu.dot_dimension_numbers<[1], [0], [0], [1], [0, 0, 1, 1], [], []>} : vector<256x288xbf16>, vector<288x32xbf16>, vector<256x32xf32> -> vector<256x32xf32>
    %c1_137 = arith.constant 1 : index
    %c0_138 = arith.constant 0 : index
    %109 = vector.load %arg5[%c1_137, %c0_138] : memref<3x32xf32, #tpu.memory_space<vmem>>, vector<1x32xf32>
    %110 = vector.broadcast %109 : vector<1x32xf32> to vector<256x32xf32>
    %111 = arith.addf %108, %110 : vector<256x32xf32>
    %cst_139 = arith.constant 0.000000e+00 : f32
    %112 = vector.broadcast %cst_139 : f32 to vector<256x32xf32>
    %113 = arith.maximumf %111, %112 : vector<256x32xf32>
    %114 = vector.shape_cast %113 : vector<256x32xf32> to vector<1x16x16x32xf32>
    %c0_140 = arith.constant 0 : index
    %c1_141 = arith.constant 1 : index
    %c1_142 = arith.constant 1 : index
    %c0_143 = arith.constant 0 : index
    %115 = vector.load %arg9[%c0_140, %c1_141, %c1_142, %c0_143] : memref<1x18x18x32xf32, #tpu.memory_space<vmem>>, vector<1x16x16x32xf32>
    tpu.vector_store %arg9[%c0_140, %c1_141, %c1_142, %c0_143], %114 {strides = array<i32>} : memref<1x18x18x32xf32, #tpu.memory_space<vmem>>, vector<1x16x16x32xf32>,
    %c0_144 = arith.constant 0 : index
    %c0_145 = arith.constant 0 : index
    %c0_146 = arith.constant 0 : index
    %c0_147 = arith.constant 0 : index
    %116 = vector.load %arg9[%c0_144, %c0_145, %c0_146, %c0_147] : memref<1x18x18x32xf32, #tpu.memory_space<vmem>>, vector<1x16x16x32xf32>
    %117 = vector.shape_cast %116 : vector<1x16x16x32xf32> to vector<16x16x32xf32>
    %118 = vector.shape_cast %117 : vector<16x16x32xf32> to vector<256x32xf32>
    %119 = arith.truncf %118 : vector<256x32xf32> to vector<256x32xbf16>
    %c0_148 = arith.constant 0 : index
    %c0_149 = arith.constant 0 : index
    %120 = vector.load %arg10[%c0_148, %c0_149] : memref<256x288xbf16, #tpu.memory_space<vmem>>, vector<256x32xbf16>
    tpu.vector_store %arg10[%c0_148, %c0_149], %119 {strides = array<i32>} : memref<256x288xbf16, #tpu.memory_space<vmem>>, vector<256x32xbf16>,
    %c0_150 = arith.constant 0 : index
    %c0_151 = arith.constant 0 : index
    %c1_152 = arith.constant 1 : index
    %c0_153 = arith.constant 0 : index
    %121 = vector.load %arg9[%c0_150, %c0_151, %c1_152, %c0_153] : memref<1x18x18x32xf32, #tpu.memory_space<vmem>>, vector<1x16x16x32xf32>
    %122 = vector.shape_cast %121 : vector<1x16x16x32xf32> to vector<16x16x32xf32>
    %123 = vector.shape_cast %122 : vector<16x16x32xf32> to vector<256x32xf32>
    %124 = arith.truncf %123 : vector<256x32xf32> to vector<256x32xbf16>
    %c0_154 = arith.constant 0 : index
    %c32_155 = arith.constant 32 : index
    %125 = vector.load %arg10[%c0_154, %c32_155] : memref<256x288xbf16, #tpu.memory_space<vmem>>, vector<256x32xbf16>
    tpu.vector_store %arg10[%c0_154, %c32_155], %124 {strides = array<i32>} : memref<256x288xbf16, #tpu.memory_space<vmem>>, vector<256x32xbf16>,
    %c0_156 = arith.constant 0 : index
    %c0_157 = arith.constant 0 : index
    %c2_158 = arith.constant 2 : index
    %c0_159 = arith.constant 0 : index
    %126 = vector.load %arg9[%c0_156, %c0_157, %c2_158, %c0_159] : memref<1x18x18x32xf32, #tpu.memory_space<vmem>>, vector<1x16x16x32xf32>
    %127 = vector.shape_cast %126 : vector<1x16x16x32xf32> to vector<16x16x32xf32>
    %128 = vector.shape_cast %127 : vector<16x16x32xf32> to vector<256x32xf32>
    %129 = arith.truncf %128 : vector<256x32xf32> to vector<256x32xbf16>
    %c0_160 = arith.constant 0 : index
    %c64_161 = arith.constant 64 : index
    %130 = vector.load %arg10[%c0_160, %c64_161] : memref<256x288xbf16, #tpu.memory_space<vmem>>, vector<256x32xbf16>
    tpu.vector_store %arg10[%c0_160, %c64_161], %129 {strides = array<i32>} : memref<256x288xbf16, #tpu.memory_space<vmem>>, vector<256x32xbf16>,
    %c0_162 = arith.constant 0 : index
    %c1_163 = arith.constant 1 : index
    %c0_164 = arith.constant 0 : index
    %c0_165 = arith.constant 0 : index
    %131 = vector.load %arg9[%c0_162, %c1_163, %c0_164, %c0_165] : memref<1x18x18x32xf32, #tpu.memory_space<vmem>>, vector<1x16x16x32xf32>
    %132 = vector.shape_cast %131 : vector<1x16x16x32xf32> to vector<16x16x32xf32>
    %133 = vector.shape_cast %132 : vector<16x16x32xf32> to vector<256x32xf32>
    %134 = arith.truncf %133 : vector<256x32xf32> to vector<256x32xbf16>
    %c0_166 = arith.constant 0 : index
    %c96_167 = arith.constant 96 : index
    %135 = vector.load %arg10[%c0_166, %c96_167] : memref<256x288xbf16, #tpu.memory_space<vmem>>, vector<256x32xbf16>
    tpu.vector_store %arg10[%c0_166, %c96_167], %134 {strides = array<i32>} : memref<256x288xbf16, #tpu.memory_space<vmem>>, vector<256x32xbf16>,
    %c0_168 = arith.constant 0 : index
    %c1_169 = arith.constant 1 : index
    %c1_170 = arith.constant 1 : index
    %c0_171 = arith.constant 0 : index
    %136 = vector.load %arg9[%c0_168, %c1_169, %c1_170, %c0_171] : memref<1x18x18x32xf32, #tpu.memory_space<vmem>>, vector<1x16x16x32xf32>
    %137 = vector.shape_cast %136 : vector<1x16x16x32xf32> to vector<16x16x32xf32>
    %138 = vector.shape_cast %137 : vector<16x16x32xf32> to vector<256x32xf32>
    %139 = arith.truncf %138 : vector<256x32xf32> to vector<256x32xbf16>
    %c0_172 = arith.constant 0 : index
    %c128_173 = arith.constant 128 : index
    %140 = vector.load %arg10[%c0_172, %c128_173] : memref<256x288xbf16, #tpu.memory_space<vmem>>, vector<256x32xbf16>
    tpu.vector_store %arg10[%c0_172, %c128_173], %139 {strides = array<i32>} : memref<256x288xbf16, #tpu.memory_space<vmem>>, vector<256x32xbf16>,
    %c0_174 = arith.constant 0 : index
    %c1_175 = arith.constant 1 : index
    %c2_176 = arith.constant 2 : index
    %c0_177 = arith.constant 0 : index
    %141 = vector.load %arg9[%c0_174, %c1_175, %c2_176, %c0_177] : memref<1x18x18x32xf32, #tpu.memory_space<vmem>>, vector<1x16x16x32xf32>
    %142 = vector.shape_cast %141 : vector<1x16x16x32xf32> to vector<16x16x32xf32>
    %143 = vector.shape_cast %142 : vector<16x16x32xf32> to vector<256x32xf32>
    %144 = arith.truncf %143 : vector<256x32xf32> to vector<256x32xbf16>
    %c0_178 = arith.constant 0 : index
    %c160_179 = arith.constant 160 : index
    %145 = vector.load %arg10[%c0_178, %c160_179] : memref<256x288xbf16, #tpu.memory_space<vmem>>, vector<256x32xbf16>
    tpu.vector_store %arg10[%c0_178, %c160_179], %144 {strides = array<i32>} : memref<256x288xbf16, #tpu.memory_space<vmem>>, vector<256x32xbf16>,
    %c0_180 = arith.constant 0 : index
    %c2_181 = arith.constant 2 : index
    %c0_182 = arith.constant 0 : index
    %c0_183 = arith.constant 0 : index
    %146 = vector.load %arg9[%c0_180, %c2_181, %c0_182, %c0_183] : memref<1x18x18x32xf32, #tpu.memory_space<vmem>>, vector<1x16x16x32xf32>
    %147 = vector.shape_cast %146 : vector<1x16x16x32xf32> to vector<16x16x32xf32>
    %148 = vector.shape_cast %147 : vector<16x16x32xf32> to vector<256x32xf32>
    %149 = arith.truncf %148 : vector<256x32xf32> to vector<256x32xbf16>
    %c0_184 = arith.constant 0 : index
    %c192_185 = arith.constant 192 : index
    %150 = vector.load %arg10[%c0_184, %c192_185] : memref<256x288xbf16, #tpu.memory_space<vmem>>, vector<256x32xbf16>
    tpu.vector_store %arg10[%c0_184, %c192_185], %149 {strides = array<i32>} : memref<256x288xbf16, #tpu.memory_space<vmem>>, vector<256x32xbf16>,
    %c0_186 = arith.constant 0 : index
    %c2_187 = arith.constant 2 : index
    %c1_188 = arith.constant 1 : index
    %c0_189 = arith.constant 0 : index
    %151 = vector.load %arg9[%c0_186, %c2_187, %c1_188, %c0_189] : memref<1x18x18x32xf32, #tpu.memory_space<vmem>>, vector<1x16x16x32xf32>
    %152 = vector.shape_cast %151 : vector<1x16x16x32xf32> to vector<16x16x32xf32>
    %153 = vector.shape_cast %152 : vector<16x16x32xf32> to vector<256x32xf32>
    %154 = arith.truncf %153 : vector<256x32xf32> to vector<256x32xbf16>
    %c0_190 = arith.constant 0 : index
    %c224_191 = arith.constant 224 : index
    %155 = vector.load %arg10[%c0_190, %c224_191] : memref<256x288xbf16, #tpu.memory_space<vmem>>, vector<256x32xbf16>
    tpu.vector_store %arg10[%c0_190, %c224_191], %154 {strides = array<i32>} : memref<256x288xbf16, #tpu.memory_space<vmem>>, vector<256x32xbf16>,
    %c0_192 = arith.constant 0 : index
    %c2_193 = arith.constant 2 : index
    %c2_194 = arith.constant 2 : index
    %c0_195 = arith.constant 0 : index
    %156 = vector.load %arg9[%c0_192, %c2_193, %c2_194, %c0_195] : memref<1x18x18x32xf32, #tpu.memory_space<vmem>>, vector<1x16x16x32xf32>
    %157 = vector.shape_cast %156 : vector<1x16x16x32xf32> to vector<16x16x32xf32>
    %158 = vector.shape_cast %157 : vector<16x16x32xf32> to vector<256x32xf32>
    %159 = arith.truncf %158 : vector<256x32xf32> to vector<256x32xbf16>
    %c0_196 = arith.constant 0 : index
    %c256_197 = arith.constant 256 : index
    %160 = vector.load %arg10[%c0_196, %c256_197] : memref<256x288xbf16, #tpu.memory_space<vmem>>, vector<256x32xbf16>
    tpu.vector_store %arg10[%c0_196, %c256_197], %159 {strides = array<i32>} : memref<256x288xbf16, #tpu.memory_space<vmem>>, vector<256x32xbf16>,
    %c0_198 = arith.constant 0 : index
    %c0_199 = arith.constant 0 : index
    %161 = vector.load %arg10[%c0_198, %c0_199] : memref<256x288xbf16, #tpu.memory_space<vmem>>, vector<256x288xbf16>
    %c1_200 = arith.constant 1 : index
    %c0_201 = arith.constant 0 : index
    %c0_202 = arith.constant 0 : index
    %162 = vector.load %arg3[%c1_200, %c0_201, %c0_202] : memref<2x288x32xbf16, #tpu.memory_space<vmem>>, vector<1x288x32xbf16>
    %163 = vector.shape_cast %162 : vector<1x288x32xbf16> to vector<288x32xbf16>
    %cst_203 = arith.constant dense<0.000000e+00> : vector<256x32xf32>
    %164 = tpu.matmul %161, %163, %cst_203 {dimension_numbers = #tpu.dot_dimension_numbers<[1], [0], [0], [1], [0, 0, 1, 1], [], []>} : vector<256x288xbf16>, vector<288x32xbf16>, vector<256x32xf32> -> vector<256x32xf32>
    %c2_204 = arith.constant 2 : index
    %c0_205 = arith.constant 0 : index
    %165 = vector.load %arg5[%c2_204, %c0_205] : memref<3x32xf32, #tpu.memory_space<vmem>>, vector<1x32xf32>
    %166 = vector.broadcast %165 : vector<1x32xf32> to vector<256x32xf32>
    %167 = arith.addf %164, %166 : vector<256x32xf32>
    %cst_206 = arith.constant 0.000000e+00 : f32
    %168 = vector.broadcast %cst_206 : f32 to vector<256x32xf32>
    %169 = arith.maximumf %167, %168 : vector<256x32xf32>
    %170 = vector.shape_cast %169 : vector<256x32xf32> to vector<1x16x16x32xf32>
    %c0_207 = arith.constant 0 : index
    %c1_208 = arith.constant 1 : index
    %c1_209 = arith.constant 1 : index
    %c0_210 = arith.constant 0 : index
    %171 = vector.load %arg9[%c0_207, %c1_208, %c1_209, %c0_210] : memref<1x18x18x32xf32, #tpu.memory_space<vmem>>, vector<1x16x16x32xf32>
    tpu.vector_store %arg9[%c0_207, %c1_208, %c1_209, %c0_210], %170 {strides = array<i32>} : memref<1x18x18x32xf32, #tpu.memory_space<vmem>>, vector<1x16x16x32xf32>,
    %c0_211 = arith.constant 0 : index
    %c0_212 = arith.constant 0 : index
    %c0_213 = arith.constant 0 : index
    %c0_214 = arith.constant 0 : index
    %172 = vector.load %arg9[%c0_211, %c0_212, %c0_213, %c0_214] : memref<1x18x18x32xf32, #tpu.memory_space<vmem>>, vector<1x16x16x32xf32>
    %173 = vector.shape_cast %172 : vector<1x16x16x32xf32> to vector<16x16x32xf32>
    %174 = vector.shape_cast %173 : vector<16x16x32xf32> to vector<256x32xf32>
    %175 = arith.truncf %174 : vector<256x32xf32> to vector<256x32xbf16>
    %c0_215 = arith.constant 0 : index
    %c0_216 = arith.constant 0 : index
    %176 = vector.load %arg10[%c0_215, %c0_216] : memref<256x288xbf16, #tpu.memory_space<vmem>>, vector<256x32xbf16>
    tpu.vector_store %arg10[%c0_215, %c0_216], %175 {strides = array<i32>} : memref<256x288xbf16, #tpu.memory_space<vmem>>, vector<256x32xbf16>,
    %c0_217 = arith.constant 0 : index
    %c0_218 = arith.constant 0 : index
    %c1_219 = arith.constant 1 : index
    %c0_220 = arith.constant 0 : index
    %177 = vector.load %arg9[%c0_217, %c0_218, %c1_219, %c0_220] : memref<1x18x18x32xf32, #tpu.memory_space<vmem>>, vector<1x16x16x32xf32>
    %178 = vector.shape_cast %177 : vector<1x16x16x32xf32> to vector<16x16x32xf32>
    %179 = vector.shape_cast %178 : vector<16x16x32xf32> to vector<256x32xf32>
    %180 = arith.truncf %179 : vector<256x32xf32> to vector<256x32xbf16>
    %c0_221 = arith.constant 0 : index
    %c32_222 = arith.constant 32 : index
    %181 = vector.load %arg10[%c0_221, %c32_222] : memref<256x288xbf16, #tpu.memory_space<vmem>>, vector<256x32xbf16>
    tpu.vector_store %arg10[%c0_221, %c32_222], %180 {strides = array<i32>} : memref<256x288xbf16, #tpu.memory_space<vmem>>, vector<256x32xbf16>,
    %c0_223 = arith.constant 0 : index
    %c0_224 = arith.constant 0 : index
    %c2_225 = arith.constant 2 : index
    %c0_226 = arith.constant 0 : index
    %182 = vector.load %arg9[%c0_223, %c0_224, %c2_225, %c0_226] : memref<1x18x18x32xf32, #tpu.memory_space<vmem>>, vector<1x16x16x32xf32>
    %183 = vector.shape_cast %182 : vector<1x16x16x32xf32> to vector<16x16x32xf32>
    %184 = vector.shape_cast %183 : vector<16x16x32xf32> to vector<256x32xf32>
    %185 = arith.truncf %184 : vector<256x32xf32> to vector<256x32xbf16>
    %c0_227 = arith.constant 0 : index
    %c64_228 = arith.constant 64 : index
    %186 = vector.load %arg10[%c0_227, %c64_228] : memref<256x288xbf16, #tpu.memory_space<vmem>>, vector<256x32xbf16>
    tpu.vector_store %arg10[%c0_227, %c64_228], %185 {strides = array<i32>} : memref<256x288xbf16, #tpu.memory_space<vmem>>, vector<256x32xbf16>,
    %c0_229 = arith.constant 0 : index
    %c1_230 = arith.constant 1 : index
    %c0_231 = arith.constant 0 : index
    %c0_232 = arith.constant 0 : index
    %187 = vector.load %arg9[%c0_229, %c1_230, %c0_231, %c0_232] : memref<1x18x18x32xf32, #tpu.memory_space<vmem>>, vector<1x16x16x32xf32>
    %188 = vector.shape_cast %187 : vector<1x16x16x32xf32> to vector<16x16x32xf32>
    %189 = vector.shape_cast %188 : vector<16x16x32xf32> to vector<256x32xf32>
    %190 = arith.truncf %189 : vector<256x32xf32> to vector<256x32xbf16>
    %c0_233 = arith.constant 0 : index
    %c96_234 = arith.constant 96 : index
    %191 = vector.load %arg10[%c0_233, %c96_234] : memref<256x288xbf16, #tpu.memory_space<vmem>>, vector<256x32xbf16>
    tpu.vector_store %arg10[%c0_233, %c96_234], %190 {strides = array<i32>} : memref<256x288xbf16, #tpu.memory_space<vmem>>, vector<256x32xbf16>,
    %c0_235 = arith.constant 0 : index
    %c1_236 = arith.constant 1 : index
    %c1_237 = arith.constant 1 : index
    %c0_238 = arith.constant 0 : index
    %192 = vector.load %arg9[%c0_235, %c1_236, %c1_237, %c0_238] : memref<1x18x18x32xf32, #tpu.memory_space<vmem>>, vector<1x16x16x32xf32>
    %193 = vector.shape_cast %192 : vector<1x16x16x32xf32> to vector<16x16x32xf32>
    %194 = vector.shape_cast %193 : vector<16x16x32xf32> to vector<256x32xf32>
    %195 = arith.truncf %194 : vector<256x32xf32> to vector<256x32xbf16>
    %c0_239 = arith.constant 0 : index
    %c128_240 = arith.constant 128 : index
    %196 = vector.load %arg10[%c0_239, %c128_240] : memref<256x288xbf16, #tpu.memory_space<vmem>>, vector<256x32xbf16>
    tpu.vector_store %arg10[%c0_239, %c128_240], %195 {strides = array<i32>} : memref<256x288xbf16, #tpu.memory_space<vmem>>, vector<256x32xbf16>,
    %c0_241 = arith.constant 0 : index
    %c1_242 = arith.constant 1 : index
    %c2_243 = arith.constant 2 : index
    %c0_244 = arith.constant 0 : index
    %197 = vector.load %arg9[%c0_241, %c1_242, %c2_243, %c0_244] : memref<1x18x18x32xf32, #tpu.memory_space<vmem>>, vector<1x16x16x32xf32>
    %198 = vector.shape_cast %197 : vector<1x16x16x32xf32> to vector<16x16x32xf32>
    %199 = vector.shape_cast %198 : vector<16x16x32xf32> to vector<256x32xf32>
    %200 = arith.truncf %199 : vector<256x32xf32> to vector<256x32xbf16>
    %c0_245 = arith.constant 0 : index
    %c160_246 = arith.constant 160 : index
    %201 = vector.load %arg10[%c0_245, %c160_246] : memref<256x288xbf16, #tpu.memory_space<vmem>>, vector<256x32xbf16>
    tpu.vector_store %arg10[%c0_245, %c160_246], %200 {strides = array<i32>} : memref<256x288xbf16, #tpu.memory_space<vmem>>, vector<256x32xbf16>,
    %c0_247 = arith.constant 0 : index
    %c2_248 = arith.constant 2 : index
    %c0_249 = arith.constant 0 : index
    %c0_250 = arith.constant 0 : index
    %202 = vector.load %arg9[%c0_247, %c2_248, %c0_249, %c0_250] : memref<1x18x18x32xf32, #tpu.memory_space<vmem>>, vector<1x16x16x32xf32>
    %203 = vector.shape_cast %202 : vector<1x16x16x32xf32> to vector<16x16x32xf32>
    %204 = vector.shape_cast %203 : vector<16x16x32xf32> to vector<256x32xf32>
    %205 = arith.truncf %204 : vector<256x32xf32> to vector<256x32xbf16>
    %c0_251 = arith.constant 0 : index
    %c192_252 = arith.constant 192 : index
    %206 = vector.load %arg10[%c0_251, %c192_252] : memref<256x288xbf16, #tpu.memory_space<vmem>>, vector<256x32xbf16>
    tpu.vector_store %arg10[%c0_251, %c192_252], %205 {strides = array<i32>} : memref<256x288xbf16, #tpu.memory_space<vmem>>, vector<256x32xbf16>,
    %c0_253 = arith.constant 0 : index
    %c2_254 = arith.constant 2 : index
    %c1_255 = arith.constant 1 : index
    %c0_256 = arith.constant 0 : index
    %207 = vector.load %arg9[%c0_253, %c2_254, %c1_255, %c0_256] : memref<1x18x18x32xf32, #tpu.memory_space<vmem>>, vector<1x16x16x32xf32>
    %208 = vector.shape_cast %207 : vector<1x16x16x32xf32> to vector<16x16x32xf32>
    %209 = vector.shape_cast %208 : vector<16x16x32xf32> to vector<256x32xf32>
    %210 = arith.truncf %209 : vector<256x32xf32> to vector<256x32xbf16>
    %c0_257 = arith.constant 0 : index
    %c224_258 = arith.constant 224 : index
    %211 = vector.load %arg10[%c0_257, %c224_258] : memref<256x288xbf16, #tpu.memory_space<vmem>>, vector<256x32xbf16>
    tpu.vector_store %arg10[%c0_257, %c224_258], %210 {strides = array<i32>} : memref<256x288xbf16, #tpu.memory_space<vmem>>, vector<256x32xbf16>,
    %c0_259 = arith.constant 0 : index
    %c2_260 = arith.constant 2 : index
    %c2_261 = arith.constant 2 : index
    %c0_262 = arith.constant 0 : index
    %212 = vector.load %arg9[%c0_259, %c2_260, %c2_261, %c0_262] : memref<1x18x18x32xf32, #tpu.memory_space<vmem>>, vector<1x16x16x32xf32>
    %213 = vector.shape_cast %212 : vector<1x16x16x32xf32> to vector<16x16x32xf32>
    %214 = vector.shape_cast %213 : vector<16x16x32xf32> to vector<256x32xf32>
    %215 = arith.truncf %214 : vector<256x32xf32> to vector<256x32xbf16>
    %c0_263 = arith.constant 0 : index
    %c256_264 = arith.constant 256 : index
    %216 = vector.load %arg10[%c0_263, %c256_264] : memref<256x288xbf16, #tpu.memory_space<vmem>>, vector<256x32xbf16>
    tpu.vector_store %arg10[%c0_263, %c256_264], %215 {strides = array<i32>} : memref<256x288xbf16, #tpu.memory_space<vmem>>, vector<256x32xbf16>,
    %c0_265 = arith.constant 0 : index
    %c0_266 = arith.constant 0 : index
    %217 = vector.load %arg10[%c0_265, %c0_266] : memref<256x288xbf16, #tpu.memory_space<vmem>>, vector<256x288xbf16>
    %c0_267 = arith.constant 0 : index
    %c0_268 = arith.constant 0 : index
    %218 = vector.load %arg4[%c0_267, %c0_268] : memref<288x4xbf16, #tpu.memory_space<vmem>>, vector<288x4xbf16>
    %cst_269 = arith.constant dense<0.000000e+00> : vector<256x4xf32>
    %219 = tpu.matmul %217, %218, %cst_269 {dimension_numbers = #tpu.dot_dimension_numbers<[1], [0], [0], [1], [0, 0, 1, 1], [], []>} : vector<256x288xbf16>, vector<288x4xbf16>, vector<256x4xf32> -> vector<256x4xf32>
    %c0_270 = arith.constant 0 : index
    %c0_271 = arith.constant 0 : index
    %220 = vector.load %arg6[%c0_270, %c0_271] : memref<1x4xf32, #tpu.memory_space<vmem>>, vector<1x4xf32>
    %221 = vector.broadcast %220 : vector<1x4xf32> to vector<256x4xf32>
    %222 = arith.addf %219, %221 : vector<256x4xf32>
    %c0_272 = arith.constant 0 : index
    %c0_273 = arith.constant 0 : index
    %c0_274 = arith.constant 0 : index
    %c0_275 = arith.constant 0 : index
    %223 = vector.load %arg1[%c0_272, %c0_273, %c0_274, %c0_275] : memref<1x16x16x4xf32, #tpu.memory_space<vmem>>, vector<1x16x16x4xf32>
    %224 = vector.shape_cast %223 : vector<1x16x16x4xf32> to vector<256x4xf32>
    %225 = arith.subf %224, %222 : vector<256x4xf32>
    %226 = vector.shape_cast %225 : vector<256x4xf32> to vector<1x16x16x4xf32>
    %c0_276 = arith.constant 0 : index
    %c0_277 = arith.constant 0 : index
    %c0_278 = arith.constant 0 : index
    %c0_279 = arith.constant 0 : index
    %227 = vector.load %arg7[%c0_276, %c0_277, %c0_278, %c0_279] : memref<1x16x16x4xf32, #tpu.memory_space<vmem>>, vector<1x16x16x4xf32>
    tpu.vector_store %arg7[%c0_276, %c0_277, %c0_278, %c0_279], %226 {strides = array<i32>} : memref<1x16x16x4xf32, #tpu.memory_space<vmem>>, vector<1x16x16x4xf32>,
    return
  }
  func.func @transform_0(%arg0: i32) -> (i32, i32, i32, i32) {
    %c0_i32 = arith.constant 0 : i32
    %c0_i32_0 = arith.constant 0 : i32
    %c0_i32_1 = arith.constant 0 : i32
    %c0_i32_2 = arith.constant 0 : i32
    return %arg0, %c0_i32, %c0_i32_0, %c0_i32_1 : i32, i32, i32, i32
  }
  func.func @transform_1(%arg0: i32) -> (i32, i32) {
    %c0_i32 = arith.constant 0 : i32
    %c0_i32_0 = arith.constant 0 : i32
    %c0_i32_1 = arith.constant 0 : i32
    return %c0_i32, %c0_i32_0 : i32, i32
  }
  func.func @transform_2(%arg0: i32) -> (i32, i32, i32) {
    %c0_i32 = arith.constant 0 : i32
    %c0_i32_0 = arith.constant 0 : i32
    %c0_i32_1 = arith.constant 0 : i32
    %c0_i32_2 = arith.constant 0 : i32
    return %c0_i32, %c0_i32_0, %c0_i32_1 : i32, i32, i32
  }
  func.func @transform_3(%arg0: i32) -> (i32, i32) {
    %c0_i32 = arith.constant 0 : i32
    %c0_i32_0 = arith.constant 0 : i32
    %c0_i32_1 = arith.constant 0 : i32
    return %c0_i32, %c0_i32_0 : i32, i32
  }
  func.func @transform_4(%arg0: i32) -> (i32, i32) {
    %c0_i32 = arith.constant 0 : i32
    %c0_i32_0 = arith.constant 0 : i32
    %c0_i32_1 = arith.constant 0 : i32
    return %c0_i32, %c0_i32_0 : i32, i32
  }
  func.func @transform_5(%arg0: i32) -> (i32, i32) {
    %c0_i32 = arith.constant 0 : i32
    %c0_i32_0 = arith.constant 0 : i32
    %c0_i32_1 = arith.constant 0 : i32
    return %c0_i32, %c0_i32_0 : i32, i32
  }
  func.func @transform_6(%arg0: i32) -> (i32, i32, i32, i32) {
    %c0_i32 = arith.constant 0 : i32
    %c0_i32_0 = arith.constant 0 : i32
    %c0_i32_1 = arith.constant 0 : i32
    %c0_i32_2 = arith.constant 0 : i32
    return %arg0, %c0_i32, %c0_i32_0, %c0_i32_1 : i32, i32, i32, i32
  }
}

</mosaic_0001>

<llo_original>
// kernel: tpu_custom_call.1
$region0: #{tpu_custom_call.1}
  #allocation0 [shape = 'u32[]', space=smem, size = 0x4, offset = 0x4, fixed_abs, tag = 'smem constant byte address 0x4 - core index']
  #allocation1 [shape = 'u32[144,128]{1,0:T(1,128)}', space=vmem, size = 0x12000, scoped, tag = 'internal scratch']
  #allocation2 [shape = 'f32[1,18,18,4]{3,2,1,0:T(8,128)}', space=vmem, size = 0x36000, scoped, tag = 'scratch operand']
  #allocation3 [shape = 'f32[1,18,18,32]{3,2,1,0:T(8,128)}', space=vmem, size = 0x36000, scoped, tag = 'scratch operand']
  #allocation4 [shape = 'bf16[256,288]{1,0:T(16,128)(2,1)}', space=vmem, size = 0x30000, scoped, tag = 'scratch operand']
  %s0 = inlined_call_operand.vmem [shape: f32[2,16,16,4], index: 0, kind: input, shape index: {}]
  %s1 = inlined_call_operand.vmem [shape: bf16[36,32], index: 1, kind: input, shape index: {}]
  %s2 = inlined_call_operand.vmem [shape: bf16[2,288,32], index: 2, kind: input, shape index: {}]
  %s3 = inlined_call_operand.vmem [shape: bf16[288,4], index: 3, kind: input, shape index: {}]
  %s4 = inlined_call_operand.vmem [shape: f32[3,32], index: 4, kind: input, shape index: {}]
  %s5 = inlined_call_operand.vmem [shape: f32[1,4], index: 5, kind: input, shape index: {}]
  %s6 = inlined_call_operand.vmem [shape: f32[2,16,16,4], index: 6, kind: output, shape index: {}]
  %s7 = sld [smem:[#allocation0]]
  $region57: #{tpu_custom_call.1} parent=0
    _
  %s9 = ssub.s32 1, %s7
  %s10 = scalar_select 0, %s9, %s7
  loop: start=0, step=1, limit=4
  $region2: #{tpu_custom_call.1} parent=0 // loop_pre_header
    _
  $region3: #{tpu_custom_call.1} parent=0 // loop_header
    %s12 = sphi 0, %s16
    %p13 = scmp.ge.s32.totalorder %s12, 4
    %s22 = sphi 0, %s24
    %s25 = sphi 0, %s22
    %s26 = sphi 0, %s25
    %s42 = sphi 0, %s26
    %s46 = sphi 0, %s46
    %s48 = sphi 0, %s46
    %s49 = sphi 0, %s48
    %s63 = sphi 0, %s49
    %s67 = sphi 0, %s67
    %s69 = sphi 0, %s67
    %s70 = sphi 0, %s69
    %s84 = sphi 0, %s70
    %s88 = sphi 0, %s88
    %s90 = sphi 0, %s88
    %s91 = sphi 0, %s90
    %s105 = sphi 0, %s91
    %s109 = sphi 0, %s109
    %s111 = sphi 0, %s109
    %s112 = sphi 0, %s111
    %s126 = sphi 0, %s112
    %s130 = sphi 0, %s130
    %s132 = sphi 0, %s130
    %s133 = sphi 0, %s132
    %s147 = sphi 0, %s133
    %s153 = sphi 0, %s155
    %s156 = sphi 0, %s153
    %s157 = sphi 0, %s156
    %s173 = sphi 0, %s157
  $region4: #{tpu_custom_call.1} parent=0 // loop_header_branch
    %15 = sbr.rel (%p13) target = $region8
  $region5: #{tpu_custom_call.1} parent=0 // loop_body
    %s17 = ssub.s32 %s12, 1
    %s18 = ssub.s32 %s12, 2
    %s19 = sadd.s32 %s12, 1
    %s20 = ssub.s32 %s12, %s19
    %p21 = scmp.eq.s32.totalorder %s20, 0
    %s23 = sadd.s32 %s22, 1
    %s24 = scalar_select %p21, %s22, %s23
    %p27 = pneg %p21
    %p28 = scmp.eq.s32.totalorder %s12, 1
    %p29 = por %p27, %p28
    %p30 = scmp.ne.s32.totalorder %s22, %s25
    %p31 = scmp.eq.s32.totalorder %s12, 0
    %p32 = por %p30, %p31
    %p33 = scmp.ne.s32.totalorder %s22, %s25
    %p34 = scmp.eq.s32.totalorder %s17, 1
    %p35 = por %p33, %p34
    %p36 = scmp.ne.s32.totalorder %s25, %s26
    %p37 = scmp.eq.s32.totalorder %s17, 0
    %p38 = por %p36, %p37
    %p39 = scmp.ne.s32.totalorder %s25, %s26
    %p40 = scmp.eq.s32.totalorder %s18, 1
    %p41 = por %p39, %p40
    %p43 = scmp.ne.s32.totalorder %s26, %s42
    %p44 = scmp.eq.s32.totalorder %s18, 0
    %p45 = por %p43, %p44
    %s47 = sadd.s32 %s46, 1
    %p50 = scmp.eq.s32.totalorder %s12, 1
    %p51 = scmp.ne.s32.totalorder %s46, %s48
    %p52 = scmp.eq.s32.totalorder %s12, 0
    %p53 = por %p51, %p52
    %p54 = scmp.ne.s32.totalorder %s46, %s48
    %p55 = scmp.eq.s32.totalorder %s17, 1
    %p56 = por %p54, %p55
    %p57 = scmp.ne.s32.totalorder %s48, %s49
    %p58 = scmp.eq.s32.totalorder %s17, 0
    %p59 = por %p57, %p58
    %p60 = scmp.ne.s32.totalorder %s48, %s49
    %p61 = scmp.eq.s32.totalorder %s18, 1
    %p62 = por %p60, %p61
    %p64 = scmp.ne.s32.totalorder %s49, %s63
    %p65 = scmp.eq.s32.totalorder %s18, 0
    %p66 = por %p64, %p65
    %s68 = sadd.s32 %s67, 1
    %p71 = scmp.eq.s32.totalorder %s12, 1
    %p72 = scmp.ne.s32.totalorder %s67, %s69
    %p73 = scmp.eq.s32.totalorder %s12, 0
    %p74 = por %p72, %p73
    %p75 = scmp.ne.s32.totalorder %s67, %s69
    %p76 = scmp.eq.s32.totalorder %s17, 1
    %p77 = por %p75, %p76
    %p78 = scmp.ne.s32.totalorder %s69, %s70
    %p79 = scmp.eq.s32.totalorder %s17, 0
    %p80 = por %p78, %p79
    %p81 = scmp.ne.s32.totalorder %s69, %s70
    %p82 = scmp.eq.s32.totalorder %s18, 1
    %p83 = por %p81, %p82
    %p85 = scmp.ne.s32.totalorder %s70, %s84
    %p86 = scmp.eq.s32.totalorder %s18, 0
    %p87 = por %p85, %p86
    %s89 = sadd.s32 %s88, 1
    %p92 = scmp.eq.s32.totalorder %s12, 1
    %p93 = scmp.ne.s32.totalorder %s88, %s90
    %p94 = scmp.eq.s32.totalorder %s12, 0
    %p95 = por %p93, %p94
    %p96 = scmp.ne.s32.totalorder %s88, %s90
    %p97 = scmp.eq.s32.totalorder %s17, 1
    %p98 = por %p96, %p97
    %p99 = scmp.ne.s32.totalorder %s90, %s91
    %p100 = scmp.eq.s32.totalorder %s17, 0
    %p101 = por %p99, %p100
    %p102 = scmp.ne.s32.totalorder %s90, %s91
    %p103 = scmp.eq.s32.totalorder %s18, 1
    %p104 = por %p102, %p103
    %p106 = scmp.ne.s32.totalorder %s91, %s105
    %p107 = scmp.eq.s32.totalorder %s18, 0
    %p108 = por %p106, %p107
    %s110 = sadd.s32 %s109, 1
    %p113 = scmp.eq.s32.totalorder %s12, 1
    %p114 = scmp.ne.s32.totalorder %s109, %s111
    %p115 = scmp.eq.s32.totalorder %s12, 0
    %p116 = por %p114, %p115
    %p117 = scmp.ne.s32.totalorder %s109, %s111
    %p118 = scmp.eq.s32.totalorder %s17, 1
    %p119 = por %p117, %p118
    %p120 = scmp.ne.s32.totalorder %s111, %s112
    %p121 = scmp.eq.s32.totalorder %s17, 0
    %p122 = por %p120, %p121
    %p123 = scmp.ne.s32.totalorder %s111, %s112
    %p124 = scmp.eq.s32.totalorder %s18, 1
    %p125 = por %p123, %p124
    %p127 = scmp.ne.s32.totalorder %s112, %s126
    %p128 = scmp.eq.s32.totalorder %s18, 0
    %p129 = por %p127, %p128
    %s131 = sadd.s32 %s130, 1
    %p134 = scmp.eq.s32.totalorder %s12, 1
    %p135 = scmp.ne.s32.totalorder %s130, %s132
    %p136 = scmp.eq.s32.totalorder %s12, 0
    %p137 = por %p135, %p136
    %p138 = scmp.ne.s32.totalorder %s130, %s132
    %p139 = scmp.eq.s32.totalorder %s17, 1
    %p140 = por %p138, %p139
    %p141 = scmp.ne.s32.totalorder %s132, %s133
    %p142 = scmp.eq.s32.totalorder %s17, 0
    %p143 = por %p141, %p142
    %p144 = scmp.ne.s32.totalorder %s132, %s133
    %p145 = scmp.eq.s32.totalorder %s18, 1
    %p146 = por %p144, %p145
    %p148 = scmp.ne.s32.totalorder %s133, %s147
    %p149 = scmp.eq.s32.totalorder %s18, 0
    %p150 = por %p148, %p149
    %s151 = ssub.s32 %s12, %s19
    %p152 = scmp.eq.s32.totalorder %s151, 0
    %s154 = sadd.s32 %s153, 1
    %s155 = scalar_select %p152, %s153, %s154
    %p158 = pneg %p152
    %p159 = scmp.eq.s32.totalorder %s12, 1
    %p160 = por %p158, %p159
    %p161 = scmp.ne.s32.totalorder %s153, %s156
    %p162 = scmp.eq.s32.totalorder %s12, 0
    %p163 = por %p161, %p162
    %p164 = scmp.ne.s32.totalorder %s153, %s156
    %p165 = scmp.eq.s32.totalorder %s17, 1
    %p166 = por %p164, %p165
    %p167 = scmp.ne.s32.totalorder %s156, %s157
    %p168 = scmp.eq.s32.totalorder %s17, 0
    %p169 = por %p167, %p168
    %p170 = scmp.ne.s32.totalorder %s156, %s157
    %p171 = scmp.eq.s32.totalorder %s18, 1
    %p172 = por %p170, %p171
    %p174 = scmp.ne.s32.totalorder %s157, %s173
    %p175 = scmp.eq.s32.totalorder %s18, 0
    %p176 = por %p174, %p175
    %p177 = scmp.le.s32.totalorder 1, %s12
    %p178 = scmp.lt.s32.totalorder %s12, 3
    %p179 = pnand %p177, %p178
    %p180 = pneg %p179
    // Predicated region
    $region9: #{tpu_custom_call.1} parent=5 // pred_check
      _
    $region10: #{tpu_custom_call.1} parent=5 // pred_check_branch
      %182 = sbr.rel (%p179) target = $region12
    $region11: #{tpu_custom_call.1} parent=5 // pred_region
      %s183 = ssub.s32 %s12, 1
      // Predicated region
      $region13: #{tpu_custom_call.1} parent=11 // pred_check
        %p184 = pneg %p59
      $region14: #{tpu_custom_call.1} parent=11 // pred_check_branch
        %186 = sbr.rel (%p184) target = $region16
      $region15: #{tpu_custom_call.1} parent=11 // pred_region
        _
      $region16: #{tpu_custom_call.1} parent=11 // pred_fallthru
        _
      // Predicated region
      $region17: #{tpu_custom_call.1} parent=11 // pred_check
        %p187 = pneg %p80
      $region18: #{tpu_custom_call.1} parent=11 // pred_check_branch
        %189 = sbr.rel (%p187) target = $region20
      $region19: #{tpu_custom_call.1} parent=11 // pred_region
        _
      $region20: #{tpu_custom_call.1} parent=11 // pred_fallthru
        _
      // Predicated region
      $region21: #{tpu_custom_call.1} parent=11 // pred_check
        %p190 = pneg %p101
      $region22: #{tpu_custom_call.1} parent=11 // pred_check_branch
        %192 = sbr.rel (%p190) target = $region24
      $region23: #{tpu_custom_call.1} parent=11 // pred_region
        _
      $region24: #{tpu_custom_call.1} parent=11 // pred_fallthru
        _
      // Predicated region
      $region25: #{tpu_custom_call.1} parent=11 // pred_check
        %p193 = pneg %p122
      $region26: #{tpu_custom_call.1} parent=11 // pred_check_branch
        %195 = sbr.rel (%p193) target = $region28
      $region27: #{tpu_custom_call.1} parent=11 // pred_region
        _
      $region28: #{tpu_custom_call.1} parent=11 // pred_fallthru
        _
      // Predicated region
      $region29: #{tpu_custom_call.1} parent=11 // pred_check
        %p196 = pneg %p143
      $region30: #{tpu_custom_call.1} parent=11 // pred_check_branch
        %198 = sbr.rel (%p196) target = $region32
      $region31: #{tpu_custom_call.1} parent=11 // pred_region
        _
      $region32: #{tpu_custom_call.1} parent=11 // pred_fallthru
        _
    $region12: #{tpu_custom_call.1} parent=5 // pred_fallthru
      _
    %p199 = scmp.lt.s32.totalorder %s12, 2
    // Predicated region
    $region33: #{tpu_custom_call.1} parent=5 // pred_check
      %p200 = pneg %p199
    $region34: #{tpu_custom_call.1} parent=5 // pred_check_branch
      %202 = sbr.rel (%p200) target = $region36
    $region35: #{tpu_custom_call.1} parent=5 // pred_region
      // Predicated region
      $region37: #{tpu_custom_call.1} parent=35 // pred_check
        %p203 = pneg %p32
      $region38: #{tpu_custom_call.1} parent=35 // pred_check_branch
        %205 = sbr.rel (%p203) target = $region40
      $region39: #{tpu_custom_call.1} parent=35 // pred_region
        %p206 = scmp.lt.s32.totalorder %s12, 1
        %s207 = scalar_select %p206, %s12, 1
        %s208 = smul.addr %s207, 32
        %s209 = smul.addr %s208, 8
        %s210 = scalar_lea.vmem %s0, %s209
      $region40: #{tpu_custom_call.1} parent=35 // pred_fallthru
        _
    $region36: #{tpu_custom_call.1} parent=5 // pred_fallthru
      _
    %p211 = scmp.le.s32.totalorder 1, %s12
    %p212 = scmp.lt.s32.totalorder %s12, 3
    %p213 = pnand %p211, %p212
    %p214 = pneg %p213
    // Predicated region
    $region41: #{tpu_custom_call.1} parent=5 // pred_check
      _
    $region42: #{tpu_custom_call.1} parent=5 // pred_check_branch
      %216 = sbr.rel (%p213) target = $region44
    $region43: #{tpu_custom_call.1} parent=5 // pred_region
      %s217 = ssub.s32 %s12, 1
      %p218 = scmp.lt.s32.totalorder %s17, 1
      %s219 = scalar_select %p218, %s17, 1
      %s220 = smul.addr %s219, 32
      %s221 = smul.addr %s220, 8
      %s222 = scalar_lea.vmem %s0, %s221
      %p223 = pneg %p38
      %p224 = pneg %p35
      %p225 = pneg %p59
      %p226 = pneg %p56
      %p227 = pneg %p80
      %p228 = pneg %p77
      %p229 = pneg %p101
      %p230 = pneg %p98
      %p231 = pneg %p122
      %p232 = pneg %p119
      %p233 = pneg %p143
      %p234 = pneg %p140
      %p235 = pneg %p169
      %p236 = pneg %p166
      %p237 = scmp.lt.s32.totalorder %s17, 1
      %s238 = scalar_select %p237, %s17, 1
      %s239 = smul.addr %s238, 32
      %s240 = smul.addr %s239, 8
      %s241 = scalar_lea.vmem %s6, %s240
      %p242 = scmp.lt.s32.totalorder %s17, 1
      %s243 = scalar_select %p242, %s17, 1
      %s244 = smul.addr %s243, 32
      %s245 = smul.addr %s244, 8
      %s246 = scalar_lea.vmem %s0, %s245
      %p247 = scmp.lt.s32.totalorder %s17, 1
      %s248 = scalar_select %p247, %s17, 1
      %s249 = smul.addr %s248, 32
      %s250 = smul.addr %s249, 8
      %s251 = scalar_lea.vmem %s6, %s250
      %vm253 = vcmask 31744
      %254 = vst.msk [vmem:[#allocation2] sm:$0xff] %vm253, 0.0
      %255 = vst.msk [vmem:[#allocation2 + $0x8] sm:$0xff] %vm253, 0.0
      %vm256 = vcmask 25600
      %257 = vst.msk [vmem:[#allocation2 + $0x10] sm:$0x3] %vm256, 0.0
      %s258 = scalar_lea.vmem [#allocation2], 408
      %259 = vst.msk [vmem:[%s258] sm:$0xff] %vm253, 0.0
      %260 = vst.msk [vmem:[%s258 + $0x8] sm:$0xff] %vm253, 0.0
      %261 = vst.msk [vmem:[%s258 + $0x10] sm:$0x3] %vm256, 0.0
      %vm262 = vcmask 24576
      %263 = vst.msk [vmem:[#allocation2] sm:$0x1] %vm262, 0.0
      %264 = vst.msk [vmem:[#allocation2 + $0x18] sm:$0x1] %vm262, 0.0
      %265 = vst.msk [vmem:[#allocation2 + $0x30] sm:$0x1] %vm262, 0.0
      %266 = vst.msk [vmem:[#allocation2 + $0x48] sm:$0x1] %vm262, 0.0
      %267 = vst.msk [vmem:[#allocation2 + $0x60] sm:$0x1] %vm262, 0.0
      %268 = vst.msk [vmem:[#allocation2 + $0x78] sm:$0x1] %vm262, 0.0
      %269 = vst.msk [vmem:[#allocation2 + $0x90] sm:$0x1] %vm262, 0.0
      %270 = vst.msk [vmem:[#allocation2 + $0xa8] sm:$0x1] %vm262, 0.0
      %271 = vst.msk [vmem:[#allocation2 + $0xc0] sm:$0x1] %vm262, 0.0
      %272 = vst.msk [vmem:[#allocation2 + $0xd8] sm:$0x1] %vm262, 0.0
      %273 = vst.msk [vmem:[#allocation2 + $0xf0] sm:$0x1] %vm262, 0.0
      %274 = vst.msk [vmem:[#allocation2 + $0x108] sm:$0x1] %vm262, 0.0
      %275 = vst.msk [vmem:[#allocation2 + $0x120] sm:$0x1] %vm262, 0.0
      %276 = vst.msk [vmem:[#allocation2 + $0x138] sm:$0x1] %vm262, 0.0
      %277 = vst.msk [vmem:[#allocation2 + $0x150] sm:$0x1] %vm262, 0.0
      %278 = vst.msk [vmem:[#allocation2 + $0x168] sm:$0x1] %vm262, 0.0
      %279 = vst.msk [vmem:[#allocation2 + $0x180] sm:$0x1] %vm262, 0.0
      %280 = vst.msk [vmem:[#allocation2 + $0x198] sm:$0x1] %vm262, 0.0
      %281 = vst.msk [vmem:[#allocation2 + $0x11] sm:$0x1] %vm262, 0.0
      %282 = vst.msk [vmem:[#allocation2 + $0x29] sm:$0x1] %vm262, 0.0
      %283 = vst.msk [vmem:[#allocation2 + $0x41] sm:$0x1] %vm262, 0.0
      %284 = vst.msk [vmem:[#allocation2 + $0x59] sm:$0x1] %vm262, 0.0
      %285 = vst.msk [vmem:[#allocation2 + $0x71] sm:$0x1] %vm262, 0.0
      %286 = vst.msk [vmem:[#allocation2 + $0x89] sm:$0x1] %vm262, 0.0
      %287 = vst.msk [vmem:[#allocation2 + $0xa1] sm:$0x1] %vm262, 0.0
      %288 = vst.msk [vmem:[#allocation2 + $0xb9] sm:$0x1] %vm262, 0.0
      %289 = vst.msk [vmem:[#allocation2 + $0xd1] sm:$0x1] %vm262, 0.0
      %290 = vst.msk [vmem:[#allocation2 + $0xe9] sm:$0x1] %vm262, 0.0
      %291 = vst.msk [vmem:[#allocation2 + $0x101] sm:$0x1] %vm262, 0.0
      %292 = vst.msk [vmem:[#allocation2 + $0x119] sm:$0x1] %vm262, 0.0
      %293 = vst.msk [vmem:[#allocation2 + $0x131] sm:$0x1] %vm262, 0.0
      %294 = vst.msk [vmem:[#allocation2 + $0x149] sm:$0x1] %vm262, 0.0
      %295 = vst.msk [vmem:[#allocation2 + $0x161] sm:$0x1] %vm262, 0.0
      %296 = vst.msk [vmem:[#allocation2 + $0x179] sm:$0x1] %vm262, 0.0
      %297 = vst.msk [vmem:[#allocation2 + $0x191] sm:$0x1] %vm262, 0.0
      %298 = vst.msk [vmem:[#allocation2 + $0x1a9] sm:$0x1] %vm262, 0.0
      %vm299 = vcmask 261120
      %300 = vst.msk [vmem:[#allocation3] sm:$0xff] %vm299, 0.0
      %301 = vst.msk [vmem:[#allocation3 + $0x8] sm:$0xff] %vm299, 0.0
      %vm302 = vcmask 254976
      %303 = vst.msk [vmem:[#allocation3 + $0x10] sm:$0x3] %vm302, 0.0
      %s304 = scalar_lea.vmem [#allocation3], 408
      %305 = vst.msk [vmem:[%s304] sm:$0xff] %vm299, 0.0
      %306 = vst.msk [vmem:[%s304 + $0x8] sm:$0xff] %vm299, 0.0
      %307 = vst.msk [vmem:[%s304 + $0x10] sm:$0x3] %vm302, 0.0
      %vm308 = vcmask 253952
      %309 = vst.msk [vmem:[#allocation3] sm:$0x1] %vm308, 0.0
      %310 = vst.msk [vmem:[#allocation3 + $0x18] sm:$0x1] %vm308, 0.0
      %311 = vst.msk [vmem:[#allocation3 + $0x30] sm:$0x1] %vm308, 0.0
      %312 = vst.msk [vmem:[#allocation3 + $0x48] sm:$0x1] %vm308, 0.0
      %313 = vst.msk [vmem:[#allocation3 + $0x60] sm:$0x1] %vm308, 0.0
      %314 = vst.msk [vmem:[#allocation3 + $0x78] sm:$0x1] %vm308, 0.0
      %315 = vst.msk [vmem:[#allocation3 + $0x90] sm:$0x1] %vm308, 0.0
      %316 = vst.msk [vmem:[#allocation3 + $0xa8] sm:$0x1] %vm308, 0.0
      %317 = vst.msk [vmem:[#allocation3 + $0xc0] sm:$0x1] %vm308, 0.0
      %318 = vst.msk [vmem:[#allocation3 + $0xd8] sm:$0x1] %vm308, 0.0
      %319 = vst.msk [vmem:[#allocation3 + $0xf0] sm:$0x1] %vm308, 0.0
      %320 = vst.msk [vmem:[#allocation3 + $0x108] sm:$0x1] %vm308, 0.0
      %321 = vst.msk [vmem:[#allocation3 + $0x120] sm:$0x1] %vm308, 0.0
      %322 = vst.msk [vmem:[#allocation3 + $0x138] sm:$0x1] %vm308, 0.0
      %323 = vst.msk [vmem:[#allocation3 + $0x150] sm:$0x1] %vm308, 0.0
      %324 = vst.msk [vmem:[#allocation3 + $0x168] sm:$0x1] %vm308, 0.0
      %325 = vst.msk [vmem:[#allocation3 + $0x180] sm:$0x1] %vm308, 0.0
      %326 = vst.msk [vmem:[#allocation3 + $0x198] sm:$0x1] %vm308, 0.0
      %327 = vst.msk [vmem:[#allocation3 + $0x11] sm:$0x1] %vm308, 0.0
      %328 = vst.msk [vmem:[#allocation3 + $0x29] sm:$0x1] %vm308, 0.0
      %329 = vst.msk [vmem:[#allocation3 + $0x41] sm:$0x1] %vm308, 0.0
      %330 = vst.msk [vmem:[#allocation3 + $0x59] sm:$0x1] %vm308, 0.0
      %331 = vst.msk [vmem:[#allocation3 + $0x71] sm:$0x1] %vm308, 0.0
      %332 = vst.msk [vmem:[#allocation3 + $0x89] sm:$0x1] %vm308, 0.0
      %333 = vst.msk [vmem:[#allocation3 + $0xa1] sm:$0x1] %vm308, 0.0
      %334 = vst.msk [vmem:[#allocation3 + $0xb9] sm:$0x1] %vm308, 0.0
      %335 = vst.msk [vmem:[#allocation3 + $0xd1] sm:$0x1] %vm308, 0.0
      %336 = vst.msk [vmem:[#allocation3 + $0xe9] sm:$0x1] %vm308, 0.0
      %337 = vst.msk [vmem:[#allocation3 + $0x101] sm:$0x1] %vm308, 0.0
      %338 = vst.msk [vmem:[#allocation3 + $0x119] sm:$0x1] %vm308, 0.0
      %339 = vst.msk [vmem:[#allocation3 + $0x131] sm:$0x1] %vm308, 0.0
      %340 = vst.msk [vmem:[#allocation3 + $0x149] sm:$0x1] %vm308, 0.0
      %341 = vst.msk [vmem:[#allocation3 + $0x161] sm:$0x1] %vm308, 0.0
      %342 = vst.msk [vmem:[#allocation3 + $0x179] sm:$0x1] %vm308, 0.0
      %343 = vst.msk [vmem:[#allocation3 + $0x191] sm:$0x1] %vm308, 0.0
      %344 = vst.msk [vmem:[#allocation3 + $0x1a9] sm:$0x1] %vm308, 0.0
      %v345 = vld [vmem:[%s246] sm:$0xff]
      %v346 = vld [vmem:[%s246 + $0x8] sm:$0xff]
      %v347 = vld [vmem:[%s246 + $0x10] sm:$0xff]
      %v348 = vld [vmem:[%s246 + $0x18] sm:$0xff]
      %v349 = vld [vmem:[%s246 + $0x20] sm:$0xff]
      %v350 = vld [vmem:[%s246 + $0x28] sm:$0xff]
      %v351 = vld [vmem:[%s246 + $0x30] sm:$0xff]
      %v352 = vld [vmem:[%s246 + $0x38] sm:$0xff]
      %v353 = vld [vmem:[%s246 + $0x40] sm:$0xff]
      %v354 = vld [vmem:[%s246 + $0x48] sm:$0xff]
      %v355 = vld [vmem:[%s246 + $0x50] sm:$0xff]
      %v356 = vld [vmem:[%s246 + $0x58] sm:$0xff]
      %v357 = vld [vmem:[%s246 + $0x60] sm:$0xff]
      %v358 = vld [vmem:[%s246 + $0x68] sm:$0xff]
      %v359 = vld [vmem:[%s246 + $0x70] sm:$0xff]
      %v360 = vld [vmem:[%s246 + $0x78] sm:$0xff]
      %v361 = vld [vmem:[%s246 + $0x80] sm:$0xff]
      %v362 = vld [vmem:[%s246 + $0x88] sm:$0xff]
      %v363 = vld [vmem:[%s246 + $0x90] sm:$0xff]
      %v364 = vld [vmem:[%s246 + $0x98] sm:$0xff]
      %v365 = vld [vmem:[%s246 + $0xa0] sm:$0xff]
      %v366 = vld [vmem:[%s246 + $0xa8] sm:$0xff]
      %v367 = vld [vmem:[%s246 + $0xb0] sm:$0xff]
      %v368 = vld [vmem:[%s246 + $0xb8] sm:$0xff]
      %v369 = vld [vmem:[%s246 + $0xc0] sm:$0xff]
      %v370 = vld [vmem:[%s246 + $0xc8] sm:$0xff]
      %v371 = vld [vmem:[%s246 + $0xd0] sm:$0xff]
      %v372 = vld [vmem:[%s246 + $0xd8] sm:$0xff]
      %v373 = vld [vmem:[%s246 + $0xe0] sm:$0xff]
      %v374 = vld [vmem:[%s246 + $0xe8] sm:$0xff]
      %v375 = vld [vmem:[%s246 + $0xf0] sm:$0xff]
      %v376 = vld [vmem:[%s246 + $0xf8] sm:$0xff]
      %s377 = scalar_lea.vmem [#allocation2], 24
      %378 = vst.msk [vmem:[%s377 + $0x1] sm:$0xff] %vm253, %v345
      %379 = vst.msk [vmem:[%s377 + $0x9] sm:$0xff] %vm253, %v346
      %380 = vst.msk [vmem:[%s377 + $0x19] sm:$0xff] %vm253, %v347
      %381 = vst.msk [vmem:[%s377 + $0x21] sm:$0xff] %vm253, %v348
      %382 = vst.msk [vmem:[%s377 + $0x31] sm:$0xff] %vm253, %v349
      %383 = vst.msk [vmem:[%s377 + $0x39] sm:$0xff] %vm253, %v350
      %384 = vst.msk [vmem:[%s377 + $0x49] sm:$0xff] %vm253, %v351
      %385 = vst.msk [vmem:[%s377 + $0x51] sm:$0xff] %vm253, %v352
      %386 = vst.msk [vmem:[%s377 + $0x61] sm:$0xff] %vm253, %v353
      %387 = vst.msk [vmem:[%s377 + $0x69] sm:$0xff] %vm253, %v354
      %388 = vst.msk [vmem:[%s377 + $0x79] sm:$0xff] %vm253, %v355
      %389 = vst.msk [vmem:[%s377 + $0x81] sm:$0xff] %vm253, %v356
      %390 = vst.msk [vmem:[%s377 + $0x91] sm:$0xff] %vm253, %v357
      %391 = vst.msk [vmem:[%s377 + $0x99] sm:$0xff] %vm253, %v358
      %392 = vst.msk [vmem:[%s377 + $0xa9] sm:$0xff] %vm253, %v359
      %393 = vst.msk [vmem:[%s377 + $0xb1] sm:$0xff] %vm253, %v360
      %394 = vst.msk [vmem:[%s377 + $0xc1] sm:$0xff] %vm253, %v361
      %395 = vst.msk [vmem:[%s377 + $0xc9] sm:$0xff] %vm253, %v362
      %396 = vst.msk [vmem:[%s377 + $0xd9] sm:$0xff] %vm253, %v363
      %397 = vst.msk [vmem:[%s377 + $0xe1] sm:$0xff] %vm253, %v364
      %398 = vst.msk [vmem:[%s377 + $0xf1] sm:$0xff] %vm253, %v365
      %399 = vst.msk [vmem:[%s377 + $0xf9] sm:$0xff] %vm253, %v366
      %400 = vst.msk [vmem:[%s377 + $0x109] sm:$0xff] %vm253, %v367
      %401 = vst.msk [vmem:[%s377 + $0x111] sm:$0xff] %vm253, %v368
      %402 = vst.msk [vmem:[%s377 + $0x121] sm:$0xff] %vm253, %v369
      %403 = vst.msk [vmem:[%s377 + $0x129] sm:$0xff] %vm253, %v370
      %404 = vst.msk [vmem:[%s377 + $0x139] sm:$0xff] %vm253, %v371
      %405 = vst.msk [vmem:[%s377 + $0x141] sm:$0xff] %vm253, %v372
      %406 = vst.msk [vmem:[%s377 + $0x151] sm:$0xff] %vm253, %v373
      %407 = vst.msk [vmem:[%s377 + $0x159] sm:$0xff] %vm253, %v374
      %408 = vst.msk [vmem:[%s377 + $0x169] sm:$0xff] %vm253, %v375
      %409 = vst.msk [vmem:[%s377 + $0x171] sm:$0xff] %vm253, %v376
      %v410 = vld [vmem:[#allocation2] sm:$0xff]
      %v411 = vld [vmem:[#allocation2 + $0x8] sm:$0xff]
      %v412 = vld [vmem:[#allocation2 + $0x18] sm:$0xff]
      %v413 = vld [vmem:[#allocation2 + $0x20] sm:$0xff]
      %v414 = vld [vmem:[#allocation2 + $0x30] sm:$0xff]
      %v415 = vld [vmem:[#allocation2 + $0x38] sm:$0xff]
      %v416 = vld [vmem:[#allocation2 + $0x48] sm:$0xff]
      %v417 = vld [vmem:[#allocation2 + $0x50] sm:$0xff]
      %v418 = vld [vmem:[#allocation2 + $0x60] sm:$0xff]
      %v419 = vld [vmem:[#allocation2 + $0x68] sm:$0xff]
      %v420 = vld [vmem:[#allocation2 + $0x78] sm:$0xff]
      %v421 = vld [vmem:[#allocation2 + $0x80] sm:$0xff]
      %v422 = vld [vmem:[#allocation2 + $0x90] sm:$0xff]
      %v423 = vld [vmem:[#allocation2 + $0x98] sm:$0xff]
      %v424 = vld [vmem:[#allocation2 + $0xa8] sm:$0xff]
      %v425 = vld [vmem:[#allocation2 + $0xb0] sm:$0xff]
      %v426 = vld [vmem:[#allocation2 + $0xc0] sm:$0xff]
      %v427 = vld [vmem:[#allocation2 + $0xc8] sm:$0xff]
      %v428 = vld [vmem:[#allocation2 + $0xd8] sm:$0xff]
      %v429 = vld [vmem:[#allocation2 + $0xe0] sm:$0xff]
      %v430 = vld [vmem:[#allocation2 + $0xf0] sm:$0xff]
      %v431 = vld [vmem:[#allocation2 + $0xf8] sm:$0xff]
      %v432 = vld [vmem:[#allocation2 + $0x108] sm:$0xff]
      %v433 = vld [vmem:[#allocation2 + $0x110] sm:$0xff]
      %v434 = vld [vmem:[#allocation2 + $0x120] sm:$0xff]
      %v435 = vld [vmem:[#allocation2 + $0x128] sm:$0xff]
      %v436 = vld [vmem:[#allocation2 + $0x138] sm:$0xff]
      %v437 = vld [vmem:[#allocation2 + $0x140] sm:$0xff]
      %v438 = vld [vmem:[#allocation2 + $0x150] sm:$0xff]
      %v439 = vld [vmem:[#allocation2 + $0x158] sm:$0xff]
      %v440 = vld [vmem:[#allocation2 + $0x168] sm:$0xff]
      %v441 = vld [vmem:[#allocation2 + $0x170] sm:$0xff]
      %v442 = vpack.c.bf16 %v411, %v410
      %v443 = vpack.c.bf16 %v413, %v412
      %v444 = vpack.c.bf16 %v415, %v414
      %v445 = vpack.c.bf16 %v417, %v416
      %v446 = vpack.c.bf16 %v419, %v418
      %v447 = vpack.c.bf16 %v421, %v420
      %v448 = vpack.c.bf16 %v423, %v422
      %v449 = vpack.c.bf16 %v425, %v424
      %v450 = vpack.c.bf16 %v427, %v426
      %v451 = vpack.c.bf16 %v429, %v428
      %v452 = vpack.c.bf16 %v431, %v430
      %v453 = vpack.c.bf16 %v433, %v432
      %v454 = vpack.c.bf16 %v435, %v434
      %v455 = vpack.c.bf16 %v437, %v436
      %v456 = vpack.c.bf16 %v439, %v438
      %v457 = vpack.c.bf16 %v441, %v440
      %v458 = vld [vmem:[#allocation2 + $0x1] sm:$0xff]
      %v459 = vld [vmem:[#allocation2 + $0x9] sm:$0xff]
      %v460 = vld [vmem:[#allocation2 + $0x19] sm:$0xff]
      %v461 = vld [vmem:[#allocation2 + $0x21] sm:$0xff]
      %v462 = vld [vmem:[#allocation2 + $0x31] sm:$0xff]
      %v463 = vld [vmem:[#allocation2 + $0x39] sm:$0xff]
      %v464 = vld [vmem:[#allocation2 + $0x49] sm:$0xff]
      %v465 = vld [vmem:[#allocation2 + $0x51] sm:$0xff]
      %v466 = vld [vmem:[#allocation2 + $0x61] sm:$0xff]
      %v467 = vld [vmem:[#allocation2 + $0x69] sm:$0xff]
      %v468 = vld [vmem:[#allocation2 + $0x79] sm:$0xff]
      %v469 = vld [vmem:[#allocation2 + $0x81] sm:$0xff]
      %v470 = vld [vmem:[#allocation2 + $0x91] sm:$0xff]
      %v471 = vld [vmem:[#allocation2 + $0x99] sm:$0xff]
      %v472 = vld [vmem:[#allocation2 + $0xa9] sm:$0xff]
      %v473 = vld [vmem:[#allocation2 + $0xb1] sm:$0xff]
      %v474 = vld [vmem:[#allocation2 + $0xc1] sm:$0xff]
      %v475 = vld [vmem:[#allocation2 + $0xc9] sm:$0xff]
      %v476 = vld [vmem:[#allocation2 + $0xd9] sm:$0xff]
      %v477 = vld [vmem:[#allocation2 + $0xe1] sm:$0xff]
      %v478 = vld [vmem:[#allocation2 + $0xf1] sm:$0xff]
      %v479 = vld [vmem:[#allocation2 + $0xf9] sm:$0xff]
      %v480 = vld [vmem:[#allocation2 + $0x109] sm:$0xff]
      %v481 = vld [vmem:[#allocation2 + $0x111] sm:$0xff]
      %v482 = vld [vmem:[#allocation2 + $0x121] sm:$0xff]
      %v483 = vld [vmem:[#allocation2 + $0x129] sm:$0xff]
      %v484 = vld [vmem:[#allocation2 + $0x139] sm:$0xff]
      %v485 = vld [vmem:[#allocation2 + $0x141] sm:$0xff]
      %v486 = vld [vmem:[#allocation2 + $0x151] sm:$0xff]
      %v487 = vld [vmem:[#allocation2 + $0x159] sm:$0xff]
      %v488 = vld [vmem:[#allocation2 + $0x169] sm:$0xff]
      %v489 = vld [vmem:[#allocation2 + $0x171] sm:$0xff]
      %v490 = vpack.c.bf16 %v459, %v458
      %v491 = vpack.c.bf16 %v461, %v460
      %v492 = vpack.c.bf16 %v463, %v462
      %v493 = vpack.c.bf16 %v465, %v464
      %v494 = vpack.c.bf16 %v467, %v466
      %v495 = vpack.c.bf16 %v469, %v468
      %v496 = vpack.c.bf16 %v471, %v470
      %v497 = vpack.c.bf16 %v473, %v472
      %v498 = vpack.c.bf16 %v475, %v474
      %v499 = vpack.c.bf16 %v477, %v476
      %v500 = vpack.c.bf16 %v479, %v478
      %v501 = vpack.c.bf16 %v481, %v480
      %v502 = vpack.c.bf16 %v483, %v482
      %v503 = vpack.c.bf16 %v485, %v484
      %v504 = vpack.c.bf16 %v487, %v486
      %v505 = vpack.c.bf16 %v489, %v488
      %v506 = vld [vmem:[#allocation2 + $0x2] sm:$0xff]
      %v507 = vld [vmem:[#allocation2 + $0xa] sm:$0xff]
      %v508 = vld [vmem:[#allocation2 + $0x1a] sm:$0xff]
      %v509 = vld [vmem:[#allocation2 + $0x22] sm:$0xff]
      %v510 = vld [vmem:[#allocation2 + $0x32] sm:$0xff]
      %v511 = vld [vmem:[#allocation2 + $0x3a] sm:$0xff]
      %v512 = vld [vmem:[#allocation2 + $0x4a] sm:$0xff]
      %v513 = vld [vmem:[#allocation2 + $0x52] sm:$0xff]
      %v514 = vld [vmem:[#allocation2 + $0x62] sm:$0xff]
      %v515 = vld [vmem:[#allocation2 + $0x6a] sm:$0xff]
      %v516 = vld [vmem:[#allocation2 + $0x7a] sm:$0xff]
      %v517 = vld [vmem:[#allocation2 + $0x82] sm:$0xff]
      %v518 = vld [vmem:[#allocation2 + $0x92] sm:$0xff]
      %v519 = vld [vmem:[#allocation2 + $0x9a] sm:$0xff]
      %v520 = vld [vmem:[#allocation2 + $0xaa] sm:$0xff]
      %v521 = vld [vmem:[#allocation2 + $0xb2] sm:$0xff]
      %v522 = vld [vmem:[#allocation2 + $0xc2] sm:$0xff]
      %v523 = vld [vmem:[#allocation2 + $0xca] sm:$0xff]
      %v524 = vld [vmem:[#allocation2 + $0xda] sm:$0xff]
      %v525 = vld [vmem:[#allocation2 + $0xe2] sm:$0xff]
      %v526 = vld [vmem:[#allocation2 + $0xf2] sm:$0xff]
      %v527 = vld [vmem:[#allocation2 + $0xfa] sm:$0xff]
      %v528 = vld [vmem:[#allocation2 + $0x10a] sm:$0xff]
      %v529 = vld [vmem:[#allocation2 + $0x112] sm:$0xff]
      %v530 = vld [vmem:[#allocation2 + $0x122] sm:$0xff]
      %v531 = vld [vmem:[#allocation2 + $0x12a] sm:$0xff]
      %v532 = vld [vmem:[#allocation2 + $0x13a] sm:$0xff]
      %v533 = vld [vmem:[#allocation2 + $0x142] sm:$0xff]
      %v534 = vld [vmem:[#allocation2 + $0x152] sm:$0xff]
      %v535 = vld [vmem:[#allocation2 + $0x15a] sm:$0xff]
      %v536 = vld [vmem:[#allocation2 + $0x16a] sm:$0xff]
      %v537 = vld [vmem:[#allocation2 + $0x172] sm:$0xff]
      %v538 = vpack.c.bf16 %v507, %v506
      %v539 = vpack.c.bf16 %v509, %v508
      %v540 = vpack.c.bf16 %v511, %v510
      %v541 = vpack.c.bf16 %v513, %v512
      %v542 = vpack.c.bf16 %v515, %v514
      %v543 = vpack.c.bf16 %v517, %v516
      %v544 = vpack.c.bf16 %v519, %v518
      %v545 = vpack.c.bf16 %v521, %v520
      %v546 = vpack.c.bf16 %v523, %v522
      %v547 = vpack.c.bf16 %v525, %v524
      %v548 = vpack.c.bf16 %v527, %v526
      %v549 = vpack.c.bf16 %v529, %v528
      %v550 = vpack.c.bf16 %v531, %v530
      %v551 = vpack.c.bf16 %v533, %v532
      %v552 = vpack.c.bf16 %v535, %v534
      %v553 = vpack.c.bf16 %v537, %v536
      %v554 = vld [vmem:[%s377] sm:$0xff]
      %v555 = vld [vmem:[%s377 + $0x8] sm:$0xff]
      %v556 = vld [vmem:[%s377 + $0x18] sm:$0xff]
      %v557 = vld [vmem:[%s377 + $0x20] sm:$0xff]
      %v558 = vld [vmem:[%s377 + $0x30] sm:$0xff]
      %v559 = vld [vmem:[%s377 + $0x38] sm:$0xff]
      %v560 = vld [vmem:[%s377 + $0x48] sm:$0xff]
      %v561 = vld [vmem:[%s377 + $0x50] sm:$0xff]
      %v562 = vld [vmem:[%s377 + $0x60] sm:$0xff]
      %v563 = vld [vmem:[%s377 + $0x68] sm:$0xff]
      %v564 = vld [vmem:[%s377 + $0x78] sm:$0xff]
      %v565 = vld [vmem:[%s377 + $0x80] sm:$0xff]
      %v566 = vld [vmem:[%s377 + $0x90] sm:$0xff]
      %v567 = vld [vmem:[%s377 + $0x98] sm:$0xff]
      %v568 = vld [vmem:[%s377 + $0xa8] sm:$0xff]
      %v569 = vld [vmem:[%s377 + $0xb0] sm:$0xff]
      %v570 = vld [vmem:[%s377 + $0xc0] sm:$0xff]
      %v571 = vld [vmem:[%s377 + $0xc8] sm:$0xff]
      %v572 = vld [vmem:[%s377 + $0xd8] sm:$0xff]
      %v573 = vld [vmem:[%s377 + $0xe0] sm:$0xff]
      %v574 = vld [vmem:[%s377 + $0xf0] sm:$0xff]
      %v575 = vld [vmem:[%s377 + $0xf8] sm:$0xff]
      %v576 = vld [vmem:[%s377 + $0x108] sm:$0xff]
      %v577 = vld [vmem:[%s377 + $0x110] sm:$0xff]
      %v578 = vld [vmem:[%s377 + $0x120] sm:$0xff]
      %v579 = vld [vmem:[%s377 + $0x128] sm:$0xff]
      %v580 = vld [vmem:[%s377 + $0x138] sm:$0xff]
      %v581 = vld [vmem:[%s377 + $0x140] sm:$0xff]
      %v582 = vld [vmem:[%s377 + $0x150] sm:$0xff]
      %v583 = vld [vmem:[%s377 + $0x158] sm:$0xff]
      %v584 = vld [vmem:[%s377 + $0x168] sm:$0xff]
      %v585 = vld [vmem:[%s377 + $0x170] sm:$0xff]
      %v586 = vpack.c.bf16 %v555, %v554
      %v587 = vpack.c.bf16 %v557, %v556
      %v588 = vpack.c.bf16 %v559, %v558
      %v589 = vpack.c.bf16 %v561, %v560
      %v590 = vpack.c.bf16 %v563, %v562
      %v591 = vpack.c.bf16 %v565, %v564
      %v592 = vpack.c.bf16 %v567, %v566
      %v593 = vpack.c.bf16 %v569, %v568
      %v594 = vpack.c.bf16 %v571, %v570
      %v595 = vpack.c.bf16 %v573, %v572
      %v596 = vpack.c.bf16 %v575, %v574
      %v597 = vpack.c.bf16 %v577, %v576
      %v598 = vpack.c.bf16 %v579, %v578
      %v599 = vpack.c.bf16 %v581, %v580
      %v600 = vpack.c.bf16 %v583, %v582
      %v601 = vpack.c.bf16 %v585, %v584
      %v602 = vld [vmem:[%s377 + $0x1] sm:$0xff]
      %v603 = vld [vmem:[%s377 + $0x9] sm:$0xff]
      %v604 = vld [vmem:[%s377 + $0x19] sm:$0xff]
      %v605 = vld [vmem:[%s377 + $0x21] sm:$0xff]
      %v606 = vld [vmem:[%s377 + $0x31] sm:$0xff]
      %v607 = vld [vmem:[%s377 + $0x39] sm:$0xff]
      %v608 = vld [vmem:[%s377 + $0x49] sm:$0xff]
      %v609 = vld [vmem:[%s377 + $0x51] sm:$0xff]
      %v610 = vld [vmem:[%s377 + $0x61] sm:$0xff]
      %v611 = vld [vmem:[%s377 + $0x69] sm:$0xff]
      %v612 = vld [vmem:[%s377 + $0x79] sm:$0xff]
      %v613 = vld [vmem:[%s377 + $0x81] sm:$0xff]
      %v614 = vld [vmem:[%s377 + $0x91] sm:$0xff]
      %v615 = vld [vmem:[%s377 + $0x99] sm:$0xff]
      %v616 = vld [vmem:[%s377 + $0xa9] sm:$0xff]
      %v617 = vld [vmem:[%s377 + $0xb1] sm:$0xff]
      %v618 = vld [vmem:[%s377 + $0xc1] sm:$0xff]
      %v619 = vld [vmem:[%s377 + $0xc9] sm:$0xff]
      %v620 = vld [vmem:[%s377 + $0xd9] sm:$0xff]
      %v621 = vld [vmem:[%s377 + $0xe1] sm:$0xff]
      %v622 = vld [vmem:[%s377 + $0xf1] sm:$0xff]
      %v623 = vld [vmem:[%s377 + $0xf9] sm:$0xff]
      %v624 = vld [vmem:[%s377 + $0x109] sm:$0xff]
      %v625 = vld [vmem:[%s377 + $0x111] sm:$0xff]
      %v626 = vld [vmem:[%s377 + $0x121] sm:$0xff]
      %v627 = vld [vmem:[%s377 + $0x129] sm:$0xff]
      %v628 = vld [vmem:[%s377 + $0x139] sm:$0xff]
      %v629 = vld [vmem:[%s377 + $0x141] sm:$0xff]
      %v630 = vld [vmem:[%s377 + $0x151] sm:$0xff]
      %v631 = vld [vmem:[%s377 + $0x159] sm:$0xff]
      %v632 = vld [vmem:[%s377 + $0x169] sm:$0xff]
      %v633 = vld [vmem:[%s377 + $0x171] sm:$0xff]
      %v634 = vpack.c.bf16 %v603, %v602
      %v635 = vpack.c.bf16 %v605, %v604
      %v636 = vpack.c.bf16 %v607, %v606
      %v637 = vpack.c.bf16 %v609, %v608
      %v638 = vpack.c.bf16 %v611, %v610
      %v639 = vpack.c.bf16 %v613, %v612
      %v640 = vpack.c.bf16 %v615, %v614
      %v641 = vpack.c.bf16 %v617, %v616
      %v642 = vpack.c.bf16 %v619, %v618
      %v643 = vpack.c.bf16 %v621, %v620
      %v644 = vpack.c.bf16 %v623, %v622
      %v645 = vpack.c.bf16 %v625, %v624
      %v646 = vpack.c.bf16 %v627, %v626
      %v647 = vpack.c.bf16 %v629, %v628
      %v648 = vpack.c.bf16 %v631, %v630
      %v649 = vpack.c.bf16 %v633, %v632
      %v650 = vld [vmem:[%s377 + $0x2] sm:$0xff]
      %v651 = vld [vmem:[%s377 + $0xa] sm:$0xff]
      %v652 = vld [vmem:[%s377 + $0x1a] sm:$0xff]
      %v653 = vld [vmem:[%s377 + $0x22] sm:$0xff]
      %v654 = vld [vmem:[%s377 + $0x32] sm:$0xff]
      %v655 = vld [vmem:[%s377 + $0x3a] sm:$0xff]
      %v656 = vld [vmem:[%s377 + $0x4a] sm:$0xff]
      %v657 = vld [vmem:[%s377 + $0x52] sm:$0xff]
      %v658 = vld [vmem:[%s377 + $0x62] sm:$0xff]
      %v659 = vld [vmem:[%s377 + $0x6a] sm:$0xff]
      %v660 = vld [vmem:[%s377 + $0x7a] sm:$0xff]
      %v661 = vld [vmem:[%s377 + $0x82] sm:$0xff]
      %v662 = vld [vmem:[%s377 + $0x92] sm:$0xff]
      %v663 = vld [vmem:[%s377 + $0x9a] sm:$0xff]
      %v664 = vld [vmem:[%s377 + $0xaa] sm:$0xff]
      %v665 = vld [vmem:[%s377 + $0xb2] sm:$0xff]
      %v666 = vld [vmem:[%s377 + $0xc2] sm:$0xff]
      %v667 = vld [vmem:[%s377 + $0xca] sm:$0xff]
      %v668 = vld [vmem:[%s377 + $0xda] sm:$0xff]
      %v669 = vld [vmem:[%s377 + $0xe2] sm:$0xff]
      %v670 = vld [vmem:[%s377 + $0xf2] sm:$0xff]
      %v671 = vld [vmem:[%s377 + $0xfa] sm:$0xff]
      %v672 = vld [vmem:[%s377 + $0x10a] sm:$0xff]
      %v673 = vld [vmem:[%s377 + $0x112] sm:$0xff]
      %v674 = vld [vmem:[%s377 + $0x122] sm:$0xff]
      %v675 = vld [vmem:[%s377 + $0x12a] sm:$0xff]
      %v676 = vld [vmem:[%s377 + $0x13a] sm:$0xff]
      %v677 = vld [vmem:[%s377 + $0x142] sm:$0xff]
      %v678 = vld [vmem:[%s377 + $0x152] sm:$0xff]
      %v679 = vld [vmem:[%s377 + $0x15a] sm:$0xff]
      %v680 = vld [vmem:[%s377 + $0x16a] sm:$0xff]
      %v681 = vld [vmem:[%s377 + $0x172] sm:$0xff]
      %v682 = vpack.c.bf16 %v651, %v650
      %v683 = vpack.c.bf16 %v653, %v652
      %v684 = vpack.c.bf16 %v655, %v654
      %v685 = vpack.c.bf16 %v657, %v656
      %v686 = vpack.c.bf16 %v659, %v658
      %v687 = vpack.c.bf16 %v661, %v660
      %v688 = vpack.c.bf16 %v663, %v662
      %v689 = vpack.c.bf16 %v665, %v664
      %v690 = vpack.c.bf16 %v667, %v666
      %v691 = vpack.c.bf16 %v669, %v668
      %v692 = vpack.c.bf16 %v671, %v670
      %v693 = vpack.c.bf16 %v673, %v672
      %v694 = vpack.c.bf16 %v675, %v674
      %v695 = vpack.c.bf16 %v677, %v676
      %v696 = vpack.c.bf16 %v679, %v678
      %v697 = vpack.c.bf16 %v681, %v680
      %s698 = scalar_lea.vmem [#allocation2], 48
      %v699 = vld [vmem:[%s698] sm:$0xff]
      %v700 = vld [vmem:[%s698 + $0x8] sm:$0xff]
      %v701 = vld [vmem:[%s698 + $0x18] sm:$0xff]
      %v702 = vld [vmem:[%s698 + $0x20] sm:$0xff]
      %v703 = vld [vmem:[%s698 + $0x30] sm:$0xff]
      %v704 = vld [vmem:[%s698 + $0x38] sm:$0xff]
      %v705 = vld [vmem:[%s698 + $0x48] sm:$0xff]
      %v706 = vld [vmem:[%s698 + $0x50] sm:$0xff]
      %v707 = vld [vmem:[%s698 + $0x60] sm:$0xff]
      %v708 = vld [vmem:[%s698 + $0x68] sm:$0xff]
      %v709 = vld [vmem:[%s698 + $0x78] sm:$0xff]
      %v710 = vld [vmem:[%s698 + $0x80] sm:$0xff]
      %v711 = vld [vmem:[%s698 + $0x90] sm:$0xff]
      %v712 = vld [vmem:[%s698 + $0x98] sm:$0xff]
      %v713 = vld [vmem:[%s698 + $0xa8] sm:$0xff]
      %v714 = vld [vmem:[%s698 + $0xb0] sm:$0xff]
      %v715 = vld [vmem:[%s698 + $0xc0] sm:$0xff]
      %v716 = vld [vmem:[%s698 + $0xc8] sm:$0xff]
      %v717 = vld [vmem:[%s698 + $0xd8] sm:$0xff]
      %v718 = vld [vmem:[%s698 + $0xe0] sm:$0xff]
      %v719 = vld [vmem:[%s698 + $0xf0] sm:$0xff]
      %v720 = vld [vmem:[%s698 + $0xf8] sm:$0xff]
      %v721 = vld [vmem:[%s698 + $0x108] sm:$0xff]
      %v722 = vld [vmem:[%s698 + $0x110] sm:$0xff]
      %v723 = vld [vmem:[%s698 + $0x120] sm:$0xff]
      %v724 = vld [vmem:[%s698 + $0x128] sm:$0xff]
      %v725 = vld [vmem:[%s698 + $0x138] sm:$0xff]
      %v726 = vld [vmem:[%s698 + $0x140] sm:$0xff]
      %v727 = vld [vmem:[%s698 + $0x150] sm:$0xff]
      %v728 = vld [vmem:[%s698 + $0x158] sm:$0xff]
      %v729 = vld [vmem:[%s698 + $0x168] sm:$0xff]
      %v730 = vld [vmem:[%s698 + $0x170] sm:$0xff]
      %v731 = vpack.c.bf16 %v700, %v699
      %v732 = vpack.c.bf16 %v702, %v701
      %v733 = vpack.c.bf16 %v704, %v703
      %v734 = vpack.c.bf16 %v706, %v705
      %v735 = vpack.c.bf16 %v708, %v707
      %v736 = vpack.c.bf16 %v710, %v709
      %v737 = vpack.c.bf16 %v712, %v711
      %v738 = vpack.c.bf16 %v714, %v713
      %v739 = vpack.c.bf16 %v716, %v715
      %v740 = vpack.c.bf16 %v718, %v717
      %v741 = vpack.c.bf16 %v720, %v719
      %v742 = vpack.c.bf16 %v722, %v721
      %v743 = vpack.c.bf16 %v724, %v723
      %v744 = vpack.c.bf16 %v726, %v725
      %v745 = vpack.c.bf16 %v728, %v727
      %v746 = vpack.c.bf16 %v730, %v729
      %v747 = vld [vmem:[%s698 + $0x1] sm:$0xff]
      %v748 = vld [vmem:[%s698 + $0x9] sm:$0xff]
      %v749 = vld [vmem:[%s698 + $0x19] sm:$0xff]
      %v750 = vld [vmem:[%s698 + $0x21] sm:$0xff]
      %v751 = vld [vmem:[%s698 + $0x31] sm:$0xff]
      %v752 = vld [vmem:[%s698 + $0x39] sm:$0xff]
      %v753 = vld [vmem:[%s698 + $0x49] sm:$0xff]
      %v754 = vld [vmem:[%s698 + $0x51] sm:$0xff]
      %v755 = vld [vmem:[%s698 + $0x61] sm:$0xff]
      %v756 = vld [vmem:[%s698 + $0x69] sm:$0xff]
      %v757 = vld [vmem:[%s698 + $0x79] sm:$0xff]
      %v758 = vld [vmem:[%s698 + $0x81] sm:$0xff]
      %v759 = vld [vmem:[%s698 + $0x91] sm:$0xff]
      %v760 = vld [vmem:[%s698 + $0x99] sm:$0xff]
      %v761 = vld [vmem:[%s698 + $0xa9] sm:$0xff]
      %v762 = vld [vmem:[%s698 + $0xb1] sm:$0xff]
      %v763 = vld [vmem:[%s698 + $0xc1] sm:$0xff]
      %v764 = vld [vmem:[%s698 + $0xc9] sm:$0xff]
      %v765 = vld [vmem:[%s698 + $0xd9] sm:$0xff]
      %v766 = vld [vmem:[%s698 + $0xe1] sm:$0xff]
      %v767 = vld [vmem:[%s698 + $0xf1] sm:$0xff]
      %v768 = vld [vmem:[%s698 + $0xf9] sm:$0xff]
      %v769 = vld [vmem:[%s698 + $0x109] sm:$0xff]
      %v770 = vld [vmem:[%s698 + $0x111] sm:$0xff]
      %v771 = vld [vmem:[%s698 + $0x121] sm:$0xff]
      %v772 = vld [vmem:[%s698 + $0x129] sm:$0xff]
      %v773 = vld [vmem:[%s698 + $0x139] sm:$0xff]
      %v774 = vld [vmem:[%s698 + $0x141] sm:$0xff]
      %v775 = vld [vmem:[%s698 + $0x151] sm:$0xff]
      %v776 = vld [vmem:[%s698 + $0x159] sm:$0xff]
      %v777 = vld [vmem:[%s698 + $0x169] sm:$0xff]
      %v778 = vld [vmem:[%s698 + $0x171] sm:$0xff]
      %v779 = vpack.c.bf16 %v748, %v747
      %v780 = vpack.c.bf16 %v750, %v749
      %v781 = vpack.c.bf16 %v752, %v751
      %v782 = vpack.c.bf16 %v754, %v753
      %v783 = vpack.c.bf16 %v756, %v755
      %v784 = vpack.c.bf16 %v758, %v757
      %v785 = vpack.c.bf16 %v760, %v759
      %v786 = vpack.c.bf16 %v762, %v761
      %v787 = vpack.c.bf16 %v764, %v763
      %v788 = vpack.c.bf16 %v766, %v765
      %v789 = vpack.c.bf16 %v768, %v767
      %v790 = vpack.c.bf16 %v770, %v769
      %v791 = vpack.c.bf16 %v772, %v771
      %v792 = vpack.c.bf16 %v774, %v773
      %v793 = vpack.c.bf16 %v776, %v775
      %v794 = vpack.c.bf16 %v778, %v777
      %v795 = vld [vmem:[%s698 + $0x2] sm:$0xff]
      %v796 = vld [vmem:[%s698 + $0xa] sm:$0xff]
      %v797 = vld [vmem:[%s698 + $0x1a] sm:$0xff]
      %v798 = vld [vmem:[%s698 + $0x22] sm:$0xff]
      %v799 = vld [vmem:[%s698 + $0x32] sm:$0xff]
      %v800 = vld [vmem:[%s698 + $0x3a] sm:$0xff]
      %v801 = vld [vmem:[%s698 + $0x4a] sm:$0xff]
      %v802 = vld [vmem:[%s698 + $0x52] sm:$0xff]
      %v803 = vld [vmem:[%s698 + $0x62] sm:$0xff]
      %v804 = vld [vmem:[%s698 + $0x6a] sm:$0xff]
      %v805 = vld [vmem:[%s698 + $0x7a] sm:$0xff]
      %v806 = vld [vmem:[%s698 + $0x82] sm:$0xff]
      %v807 = vld [vmem:[%s698 + $0x92] sm:$0xff]
      %v808 = vld [vmem:[%s698 + $0x9a] sm:$0xff]
      %v809 = vld [vmem:[%s698 + $0xaa] sm:$0xff]
      %v810 = vld [vmem:[%s698 + $0xb2] sm:$0xff]
      %v811 = vld [vmem:[%s698 + $0xc2] sm:$0xff]
      %v812 = vld [vmem:[%s698 + $0xca] sm:$0xff]
      %v813 = vld [vmem:[%s698 + $0xda] sm:$0xff]
      %v814 = vld [vmem:[%s698 + $0xe2] sm:$0xff]
      %v815 = vld [vmem:[%s698 + $0xf2] sm:$0xff]
      %v816 = vld [vmem:[%s698 + $0xfa] sm:$0xff]
      %v817 = vld [vmem:[%s698 + $0x10a] sm:$0xff]
      %v818 = vld [vmem:[%s698 + $0x112] sm:$0xff]
      %v819 = vld [vmem:[%s698 + $0x122] sm:$0xff]
      %v820 = vld [vmem:[%s698 + $0x12a] sm:$0xff]
      %v821 = vld [vmem:[%s698 + $0x13a] sm:$0xff]
      %v822 = vld [vmem:[%s698 + $0x142] sm:$0xff]
      %v823 = vld [vmem:[%s698 + $0x152] sm:$0xff]
      %v824 = vld [vmem:[%s698 + $0x15a] sm:$0xff]
      %v825 = vld [vmem:[%s698 + $0x16a] sm:$0xff]
      %v826 = vld [vmem:[%s698 + $0x172] sm:$0xff]
      %v827 = vpack.c.bf16 %v796, %v795
      %v828 = vpack.c.bf16 %v798, %v797
      %v829 = vpack.c.bf16 %v800, %v799
      %v830 = vpack.c.bf16 %v802, %v801
      %v831 = vpack.c.bf16 %v804, %v803
      %v832 = vpack.c.bf16 %v806, %v805
      %v833 = vpack.c.bf16 %v808, %v807
      %v834 = vpack.c.bf16 %v810, %v809
      %v835 = vpack.c.bf16 %v812, %v811
      %v836 = vpack.c.bf16 %v814, %v813
      %v837 = vpack.c.bf16 %v816, %v815
      %v838 = vpack.c.bf16 %v818, %v817
      %v839 = vpack.c.bf16 %v820, %v819
      %v840 = vpack.c.bf16 %v822, %v821
      %v841 = vpack.c.bf16 %v824, %v823
      %v842 = vpack.c.bf16 %v826, %v825
      %859 = vrot.lane.b32.xlu0 %v490, 4
      %v860 = vpop.permute.xlu0 %859
      %861 = vrot.lane.b32.xlu0 %v491, 4
      %v862 = vpop.permute.xlu0 %861
      %863 = vrot.lane.b32.xlu0 %v492, 4
      %v864 = vpop.permute.xlu0 %863
      %865 = vrot.lane.b32.xlu0 %v493, 4
      %v866 = vpop.permute.xlu0 %865
      %867 = vrot.lane.b32.xlu0 %v494, 4
      %v868 = vpop.permute.xlu0 %867
      %869 = vrot.lane.b32.xlu0 %v495, 4
      %v870 = vpop.permute.xlu0 %869
      %871 = vrot.lane.b32.xlu0 %v496, 4
      %v872 = vpop.permute.xlu0 %871
      %873 = vrot.lane.b32.xlu0 %v497, 4
      %v874 = vpop.permute.xlu0 %873
      %875 = vrot.lane.b32.xlu0 %v498, 4
      %v876 = vpop.permute.xlu0 %875
      %877 = vrot.lane.b32.xlu0 %v499, 4
      %v878 = vpop.permute.xlu0 %877
      %879 = vrot.lane.b32.xlu0 %v500, 4
      %v880 = vpop.permute.xlu0 %879
      %881 = vrot.lane.b32.xlu0 %v501, 4
      %v882 = vpop.permute.xlu0 %881
      %883 = vrot.lane.b32.xlu0 %v502, 4
      %v884 = vpop.permute.xlu0 %883
      %885 = vrot.lane.b32.xlu0 %v503, 4
      %v886 = vpop.permute.xlu0 %885
      %887 = vrot.lane.b32.xlu0 %v504, 4
      %v888 = vpop.permute.xlu0 %887
      %889 = vrot.lane.b32.xlu0 %v505, 4
      %v890 = vpop.permute.xlu0 %889
      %907 = vrot.lane.b32.xlu0 %v538, 8
      %v908 = vpop.permute.xlu0 %907
      %909 = vrot.lane.b32.xlu0 %v539, 8
      %v910 = vpop.permute.xlu0 %909
      %911 = vrot.lane.b32.xlu0 %v540, 8
      %v912 = vpop.permute.xlu0 %911
      %913 = vrot.lane.b32.xlu0 %v541, 8
      %v914 = vpop.permute.xlu0 %913
      %915 = vrot.lane.b32.xlu0 %v542, 8
      %v916 = vpop.permute.xlu0 %915
      %917 = vrot.lane.b32.xlu0 %v543, 8
      %v918 = vpop.permute.xlu0 %917
      %919 = vrot.lane.b32.xlu0 %v544, 8
      %v920 = vpop.permute.xlu0 %919
      %921 = vrot.lane.b32.xlu0 %v545, 8
      %v922 = vpop.permute.xlu0 %921
      %923 = vrot.lane.b32.xlu0 %v546, 8
      %v924 = vpop.permute.xlu0 %923
      %925 = vrot.lane.b32.xlu0 %v547, 8
      %v926 = vpop.permute.xlu0 %925
      %927 = vrot.lane.b32.xlu0 %v548, 8
      %v928 = vpop.permute.xlu0 %927
      %929 = vrot.lane.b32.xlu0 %v549, 8
      %v930 = vpop.permute.xlu0 %929
      %931 = vrot.lane.b32.xlu0 %v550, 8
      %v932 = vpop.permute.xlu0 %931
      %933 = vrot.lane.b32.xlu0 %v551, 8
      %v934 = vpop.permute.xlu0 %933
      %935 = vrot.lane.b32.xlu0 %v552, 8
      %v936 = vpop.permute.xlu0 %935
      %937 = vrot.lane.b32.xlu0 %v553, 8
      %v938 = vpop.permute.xlu0 %937
      %955 = vrot.lane.b32.xlu0 %v586, 12
      %v956 = vpop.permute.xlu0 %955
      %957 = vrot.lane.b32.xlu0 %v587, 12
      %v958 = vpop.permute.xlu0 %957
      %959 = vrot.lane.b32.xlu0 %v588, 12
      %v960 = vpop.permute.xlu0 %959
      %961 = vrot.lane.b32.xlu0 %v589, 12
      %v962 = vpop.permute.xlu0 %961
      %963 = vrot.lane.b32.xlu0 %v590, 12
      %v964 = vpop.permute.xlu0 %963
      %965 = vrot.lane.b32.xlu0 %v591, 12
      %v966 = vpop.permute.xlu0 %965
      %967 = vrot.lane.b32.xlu0 %v592, 12
      %v968 = vpop.permute.xlu0 %967
      %969 = vrot.lane.b32.xlu0 %v593, 12
      %v970 = vpop.permute.xlu0 %969
      %971 = vrot.lane.b32.xlu0 %v594, 12
      %v972 = vpop.permute.xlu0 %971
      %973 = vrot.lane.b32.xlu0 %v595, 12
      %v974 = vpop.permute.xlu0 %973
      %975 = vrot.lane.b32.xlu0 %v596, 12
      %v976 = vpop.permute.xlu0 %975
      %977 = vrot.lane.b32.xlu0 %v597, 12
      %v978 = vpop.permute.xlu0 %977
      %979 = vrot.lane.b32.xlu0 %v598, 12
      %v980 = vpop.permute.xlu0 %979
      %981 = vrot.lane.b32.xlu0 %v599, 12
      %v982 = vpop.permute.xlu0 %981
      %983 = vrot.lane.b32.xlu0 %v600, 12
      %v984 = vpop.permute.xlu0 %983
      %985 = vrot.lane.b32.xlu0 %v601, 12
      %v986 = vpop.permute.xlu0 %985
      %1003 = vrot.lane.b32.xlu0 %v634, 16
      %v1004 = vpop.permute.xlu0 %1003
      %1005 = vrot.lane.b32.xlu0 %v635, 16
      %v1006 = vpop.permute.xlu0 %1005
      %1007 = vrot.lane.b32.xlu0 %v636, 16
      %v1008 = vpop.permute.xlu0 %1007
      %1009 = vrot.lane.b32.xlu0 %v637, 16
      %v1010 = vpop.permute.xlu0 %1009
      %1011 = vrot.lane.b32.xlu0 %v638, 16
      %v1012 = vpop.permute.xlu0 %1011
      %1013 = vrot.lane.b32.xlu0 %v639, 16
      %v1014 = vpop.permute.xlu0 %1013
      %1015 = vrot.lane.b32.xlu0 %v640, 16
      %v1016 = vpop.permute.xlu0 %1015
      %1017 = vrot.lane.b32.xlu0 %v641, 16
      %v1018 = vpop.permute.xlu0 %1017
      %1019 = vrot.lane.b32.xlu0 %v642, 16
      %v1020 = vpop.permute.xlu0 %1019
      %1021 = vrot.lane.b32.xlu0 %v643, 16
      %v1022 = vpop.permute.xlu0 %1021
      %1023 = vrot.lane.b32.xlu0 %v644, 16
      %v1024 = vpop.permute.xlu0 %1023
      %1025 = vrot.lane.b32.xlu0 %v645, 16
      %v1026 = vpop.permute.xlu0 %1025
      %1027 = vrot.lane.b32.xlu0 %v646, 16
      %v1028 = vpop.permute.xlu0 %1027
      %1029 = vrot.lane.b32.xlu0 %v647, 16
      %v1030 = vpop.permute.xlu0 %1029
      %1031 = vrot.lane.b32.xlu0 %v648, 16
      %v1032 = vpop.permute.xlu0 %1031
      %1033 = vrot.lane.b32.xlu0 %v649, 16
      %v1034 = vpop.permute.xlu0 %1033
      %1051 = vrot.lane.b32.xlu0 %v682, 20
      %v1052 = vpop.permute.xlu0 %1051
      %1053 = vrot.lane.b32.xlu0 %v683, 20
      %v1054 = vpop.permute.xlu0 %1053
      %1055 = vrot.lane.b32.xlu0 %v684, 20
      %v1056 = vpop.permute.xlu0 %1055
      %1057 = vrot.lane.b32.xlu0 %v685, 20
      %v1058 = vpop.permute.xlu0 %1057
      %1059 = vrot.lane.b32.xlu0 %v686, 20
      %v1060 = vpop.permute.xlu0 %1059
      %1061 = vrot.lane.b32.xlu0 %v687, 20
      %v1062 = vpop.permute.xlu0 %1061
      %1063 = vrot.lane.b32.xlu0 %v688, 20
      %v1064 = vpop.permute.xlu0 %1063
      %1065 = vrot.lane.b32.xlu0 %v689, 20
      %v1066 = vpop.permute.xlu0 %1065
      %1067 = vrot.lane.b32.xlu0 %v690, 20
      %v1068 = vpop.permute.xlu0 %1067
      %1069 = vrot.lane.b32.xlu0 %v691, 20
      %v1070 = vpop.permute.xlu0 %1069
      %1071 = vrot.lane.b32.xlu0 %v692, 20
      %v1072 = vpop.permute.xlu0 %1071
      %1073 = vrot.lane.b32.xlu0 %v693, 20
      %v1074 = vpop.permute.xlu0 %1073
      %1075 = vrot.lane.b32.xlu0 %v694, 20
      %v1076 = vpop.permute.xlu0 %1075
      %1077 = vrot.lane.b32.xlu0 %v695, 20
      %v1078 = vpop.permute.xlu0 %1077
      %1079 = vrot.lane.b32.xlu0 %v696, 20
      %v1080 = vpop.permute.xlu0 %1079
      %1081 = vrot.lane.b32.xlu0 %v697, 20
      %v1082 = vpop.permute.xlu0 %1081
      %1099 = vrot.lane.b32.xlu0 %v731, 24
      %v1100 = vpop.permute.xlu0 %1099
      %1101 = vrot.lane.b32.xlu0 %v732, 24
      %v1102 = vpop.permute.xlu0 %1101
      %1103 = vrot.lane.b32.xlu0 %v733, 24
      %v1104 = vpop.permute.xlu0 %1103
      %1105 = vrot.lane.b32.xlu0 %v734, 24
      %v1106 = vpop.permute.xlu0 %1105
      %1107 = vrot.lane.b32.xlu0 %v735, 24
      %v1108 = vpop.permute.xlu0 %1107
      %1109 = vrot.lane.b32.xlu0 %v736, 24
      %v1110 = vpop.permute.xlu0 %1109
      %1111 = vrot.lane.b32.xlu0 %v737, 24
      %v1112 = vpop.permute.xlu0 %1111
      %1113 = vrot.lane.b32.xlu0 %v738, 24
      %v1114 = vpop.permute.xlu0 %1113
      %1115 = vrot.lane.b32.xlu0 %v739, 24
      %v1116 = vpop.permute.xlu0 %1115
      %1117 = vrot.lane.b32.xlu0 %v740, 24
      %v1118 = vpop.permute.xlu0 %1117
      %1119 = vrot.lane.b32.xlu0 %v741, 24
      %v1120 = vpop.permute.xlu0 %1119
      %1121 = vrot.lane.b32.xlu0 %v742, 24
      %v1122 = vpop.permute.xlu0 %1121
      %1123 = vrot.lane.b32.xlu0 %v743, 24
      %v1124 = vpop.permute.xlu0 %1123
      %1125 = vrot.lane.b32.xlu0 %v744, 24
      %v1126 = vpop.permute.xlu0 %1125
      %1127 = vrot.lane.b32.xlu0 %v745, 24
      %v1128 = vpop.permute.xlu0 %1127
      %1129 = vrot.lane.b32.xlu0 %v746, 24
      %v1130 = vpop.permute.xlu0 %1129
      %1147 = vrot.lane.b32.xlu0 %v779, 28
      %v1148 = vpop.permute.xlu0 %1147
      %1149 = vrot.lane.b32.xlu0 %v780, 28
      %v1150 = vpop.permute.xlu0 %1149
      %1151 = vrot.lane.b32.xlu0 %v781, 28
      %v1152 = vpop.permute.xlu0 %1151
      %1153 = vrot.lane.b32.xlu0 %v782, 28
      %v1154 = vpop.permute.xlu0 %1153
      %1155 = vrot.lane.b32.xlu0 %v783, 28
      %v1156 = vpop.permute.xlu0 %1155
      %1157 = vrot.lane.b32.xlu0 %v784, 28
      %v1158 = vpop.permute.xlu0 %1157
      %1159 = vrot.lane.b32.xlu0 %v785, 28
      %v1160 = vpop.permute.xlu0 %1159
      %1161 = vrot.lane.b32.xlu0 %v786, 28
      %v1162 = vpop.permute.xlu0 %1161
      %1163 = vrot.lane.b32.xlu0 %v787, 28
      %v1164 = vpop.permute.xlu0 %1163
      %1165 = vrot.lane.b32.xlu0 %v788, 28
      %v1166 = vpop.permute.xlu0 %1165
      %1167 = vrot.lane.b32.xlu0 %v789, 28
      %v1168 = vpop.permute.xlu0 %1167
      %1169 = vrot.lane.b32.xlu0 %v790, 28
      %v1170 = vpop.permute.xlu0 %1169
      %1171 = vrot.lane.b32.xlu0 %v791, 28
      %v1172 = vpop.permute.xlu0 %1171
      %1173 = vrot.lane.b32.xlu0 %v792, 28
      %v1174 = vpop.permute.xlu0 %1173
      %1175 = vrot.lane.b32.xlu0 %v793, 28
      %v1176 = vpop.permute.xlu0 %1175
      %1177 = vrot.lane.b32.xlu0 %v794, 28
      %v1178 = vpop.permute.xlu0 %1177
      %1195 = vrot.lane.b32.xlu0 %v827, 32
      %v1196 = vpop.permute.xlu0 %1195
      %1197 = vrot.lane.b32.xlu0 %v828, 32
      %v1198 = vpop.permute.xlu0 %1197
      %1199 = vrot.lane.b32.xlu0 %v829, 32
      %v1200 = vpop.permute.xlu0 %1199
      %1201 = vrot.lane.b32.xlu0 %v830, 32
      %v1202 = vpop.permute.xlu0 %1201
      %1203 = vrot.lane.b32.xlu0 %v831, 32
      %v1204 = vpop.permute.xlu0 %1203
      %1205 = vrot.lane.b32.xlu0 %v832, 32
      %v1206 = vpop.permute.xlu0 %1205
      %1207 = vrot.lane.b32.xlu0 %v833, 32
      %v1208 = vpop.permute.xlu0 %1207
      %1209 = vrot.lane.b32.xlu0 %v834, 32
      %v1210 = vpop.permute.xlu0 %1209
      %1211 = vrot.lane.b32.xlu0 %v835, 32
      %v1212 = vpop.permute.xlu0 %1211
      %1213 = vrot.lane.b32.xlu0 %v836, 32
      %v1214 = vpop.permute.xlu0 %1213
      %1215 = vrot.lane.b32.xlu0 %v837, 32
      %v1216 = vpop.permute.xlu0 %1215
      %1217 = vrot.lane.b32.xlu0 %v838, 32
      %v1218 = vpop.permute.xlu0 %1217
      %1219 = vrot.lane.b32.xlu0 %v839, 32
      %v1220 = vpop.permute.xlu0 %1219
      %1221 = vrot.lane.b32.xlu0 %v840, 32
      %v1222 = vpop.permute.xlu0 %1221
      %1223 = vrot.lane.b32.xlu0 %v841, 32
      %v1224 = vpop.permute.xlu0 %1223
      %1225 = vrot.lane.b32.xlu0 %v842, 32
      %v1226 = vpop.permute.xlu0 %1225
      %v1229 = vsel %vm253, %v442, %v860
      %v1232 = vsel %vm253, %v443, %v862
      %v1235 = vsel %vm253, %v444, %v864
      %v1238 = vsel %vm253, %v445, %v866
      %v1241 = vsel %vm253, %v446, %v868
      %v1244 = vsel %vm253, %v447, %v870
      %v1247 = vsel %vm253, %v448, %v872
      %v1250 = vsel %vm253, %v449, %v874
      %v1253 = vsel %vm253, %v450, %v876
      %v1256 = vsel %vm253, %v451, %v878
      %v1259 = vsel %vm253, %v452, %v880
      %v1262 = vsel %vm253, %v453, %v882
      %v1265 = vsel %vm253, %v454, %v884
      %v1268 = vsel %vm253, %v455, %v886
      %v1271 = vsel %vm253, %v456, %v888
      %v1274 = vsel %vm253, %v457, %v890
      %vm1275 = vcmask 64512
      %v1277 = vsel %vm1275, %v1229, %v908
      %v1279 = vsel %vm1275, %v1232, %v910
      %v1281 = vsel %vm1275, %v1235, %v912
      %v1283 = vsel %vm1275, %v1238, %v914
      %v1285 = vsel %vm1275, %v1241, %v916
      %v1287 = vsel %vm1275, %v1244, %v918
      %v1289 = vsel %vm1275, %v1247, %v920
      %v1291 = vsel %vm1275, %v1250, %v922
      %v1293 = vsel %vm1275, %v1253, %v924
      %v1295 = vsel %vm1275, %v1256, %v926
      %v1297 = vsel %vm1275, %v1259, %v928
      %v1299 = vsel %vm1275, %v1262, %v930
      %v1301 = vsel %vm1275, %v1265, %v932
      %v1303 = vsel %vm1275, %v1268, %v934
      %v1305 = vsel %vm1275, %v1271, %v936
      %v1307 = vsel %vm1275, %v1274, %v938
      %vm1308 = vcmask 97280
      %v1310 = vsel %vm1308, %v1277, %v956
      %v1312 = vsel %vm1308, %v1279, %v958
      %v1314 = vsel %vm1308, %v1281, %v960
      %v1316 = vsel %vm1308, %v1283, %v962
      %v1318 = vsel %vm1308, %v1285, %v964
      %v1320 = vsel %vm1308, %v1287, %v966
      %v1322 = vsel %vm1308, %v1289, %v968
      %v1324 = vsel %vm1308, %v1291, %v970
      %v1326 = vsel %vm1308, %v1293, %v972
      %v1328 = vsel %vm1308, %v1295, %v974
      %v1330 = vsel %vm1308, %v1297, %v976
      %v1332 = vsel %vm1308, %v1299, %v978
      %v1334 = vsel %vm1308, %v1301, %v980
      %v1336 = vsel %vm1308, %v1303, %v982
      %v1338 = vsel %vm1308, %v1305, %v984
      %v1340 = vsel %vm1308, %v1307, %v986
      %vm1341 = vcmask 130048
      %v1343 = vsel %vm1341, %v1310, %v1004
      %v1345 = vsel %vm1341, %v1312, %v1006
      %v1347 = vsel %vm1341, %v1314, %v1008
      %v1349 = vsel %vm1341, %v1316, %v1010
      %v1351 = vsel %vm1341, %v1318, %v1012
      %v1353 = vsel %vm1341, %v1320, %v1014
      %v1355 = vsel %vm1341, %v1322, %v1016
      %v1357 = vsel %vm1341, %v1324, %v1018
      %v1359 = vsel %vm1341, %v1326, %v1020
      %v1361 = vsel %vm1341, %v1328, %v1022
      %v1363 = vsel %vm1341, %v1330, %v1024
      %v1365 = vsel %vm1341, %v1332, %v1026
      %v1367 = vsel %vm1341, %v1334, %v1028
      %v1369 = vsel %vm1341, %v1336, %v1030
      %v1371 = vsel %vm1341, %v1338, %v1032
      %v1373 = vsel %vm1341, %v1340, %v1034
      %vm1374 = vcmask 162816
      %v1376 = vsel %vm1374, %v1343, %v1052
      %v1378 = vsel %vm1374, %v1345, %v1054
      %v1380 = vsel %vm1374, %v1347, %v1056
      %v1382 = vsel %vm1374, %v1349, %v1058
      %v1384 = vsel %vm1374, %v1351, %v1060
      %v1386 = vsel %vm1374, %v1353, %v1062
      %v1388 = vsel %vm1374, %v1355, %v1064
      %v1390 = vsel %vm1374, %v1357, %v1066
      %v1392 = vsel %vm1374, %v1359, %v1068
      %v1394 = vsel %vm1374, %v1361, %v1070
      %v1396 = vsel %vm1374, %v1363, %v1072
      %v1398 = vsel %vm1374, %v1365, %v1074
      %v1400 = vsel %vm1374, %v1367, %v1076
      %v1402 = vsel %vm1374, %v1369, %v1078
      %v1404 = vsel %vm1374, %v1371, %v1080
      %v1406 = vsel %vm1374, %v1373, %v1082
      %vm1407 = vcmask 195584
      %v1409 = vsel %vm1407, %v1376, %v1100
      %v1411 = vsel %vm1407, %v1378, %v1102
      %v1413 = vsel %vm1407, %v1380, %v1104
      %v1415 = vsel %vm1407, %v1382, %v1106
      %v1417 = vsel %vm1407, %v1384, %v1108
      %v1419 = vsel %vm1407, %v1386, %v1110
      %v1421 = vsel %vm1407, %v1388, %v1112
      %v1423 = vsel %vm1407, %v1390, %v1114
      %v1425 = vsel %vm1407, %v1392, %v1116
      %v1427 = vsel %vm1407, %v1394, %v1118
      %v1429 = vsel %vm1407, %v1396, %v1120
      %v1431 = vsel %vm1407, %v1398, %v1122
      %v1433 = vsel %vm1407, %v1400, %v1124
      %v1435 = vsel %vm1407, %v1402, %v1126
      %v1437 = vsel %vm1407, %v1404, %v1128
      %v1439 = vsel %vm1407, %v1406, %v1130
      %vm1440 = vcmask 228352
      %v1442 = vsel %vm1440, %v1409, %v1148
      %v1444 = vsel %vm1440, %v1411, %v1150
      %v1446 = vsel %vm1440, %v1413, %v1152
      %v1448 = vsel %vm1440, %v1415, %v1154
      %v1450 = vsel %vm1440, %v1417, %v1156
      %v1452 = vsel %vm1440, %v1419, %v1158
      %v1454 = vsel %vm1440, %v1421, %v1160
      %v1456 = vsel %vm1440, %v1423, %v1162
      %v1458 = vsel %vm1440, %v1425, %v1164
      %v1460 = vsel %vm1440, %v1427, %v1166
      %v1462 = vsel %vm1440, %v1429, %v1168
      %v1464 = vsel %vm1440, %v1431, %v1170
      %v1466 = vsel %vm1440, %v1433, %v1172
      %v1468 = vsel %vm1440, %v1435, %v1174
      %v1470 = vsel %vm1440, %v1437, %v1176
      %v1472 = vsel %vm1440, %v1439, %v1178
      %v1474 = vsel %vm299, %v1442, %v1196
      %v1476 = vsel %vm299, %v1444, %v1198
      %v1478 = vsel %vm299, %v1446, %v1200
      %v1480 = vsel %vm299, %v1448, %v1202
      %v1482 = vsel %vm299, %v1450, %v1204
      %v1484 = vsel %vm299, %v1452, %v1206
      %v1486 = vsel %vm299, %v1454, %v1208
      %v1488 = vsel %vm299, %v1456, %v1210
      %v1490 = vsel %vm299, %v1458, %v1212
      %v1492 = vsel %vm299, %v1460, %v1214
      %v1494 = vsel %vm299, %v1462, %v1216
      %v1496 = vsel %vm299, %v1464, %v1218
      %v1498 = vsel %vm299, %v1466, %v1220
      %v1500 = vsel %vm299, %v1468, %v1222
      %v1502 = vsel %vm299, %v1470, %v1224
      %v1504 = vsel %vm299, %v1472, %v1226
      %v1505 = vld [vmem:[%s1] sm:$0xf]
      %v1506 = vld [vmem:[%s1 + $0x4] sm:$0xf]
      %v1507 = vld [vmem:[%s1 + $0x8] sm:$0xf]
      %v1508 = vld [vmem:[%s1 + $0xc] sm:$0xf]
      %v1509 = vld [vmem:[%s1 + $0x10] sm:$0x3]
      %v1510 = vld [vmem:[%s4] sm:$0x1]
      %v1511 = vlaneseq
      %v1512 = vshrl.u32 %v1511, 7
      %v1513 = vsub.s32 0, %v1512
      %v1514 = vrot.slane %v1510, %v1513
      %v1520 = vunpack.c.l.b16 %v1505
      %v1521 = vunpack.c.l.b16 %v1506
      %v1522 = vunpack.c.l.b16 %v1507
      %v1523 = vunpack.c.l.b16 %v1508
      %v1524 = vunpack.c.l.b16 %v1509
      %v1525 = vpack.c.b16 %v1521, %v1520
      %v1526 = vpack.c.b16 %v1523, %v1522
      %v1527 = vpack.c.b16 %v1524, %v1524
      %vm1530 = vcmask 293888
      %v1531 = vsel %vm1530, %v1474, 0
      %v1533 = vsel %vm1530, %v1476, 0
      %v1535 = vsel %vm1530, %v1478, 0
      %v1537 = vsel %vm1530, %v1480, 0
      %v1539 = vsel %vm1530, %v1482, 0
      %v1541 = vsel %vm1530, %v1484, 0
      %v1543 = vsel %vm1530, %v1486, 0
      %v1545 = vsel %vm1530, %v1488, 0
      %v1547 = vsel %vm1530, %v1490, 0
      %v1549 = vsel %vm1530, %v1492, 0
      %v1551 = vsel %vm1530, %v1494, 0
      %v1553 = vsel %vm1530, %v1496, 0
      %v1555 = vsel %vm1530, %v1498, 0
      %v1557 = vsel %vm1530, %v1500, 0
      %v1559 = vsel %vm1530, %v1502, 0
      %v1561 = vsel %vm1530, %v1504, 0
      %vm1563 = vcmask 1041408
      %v1565 = vsel %vm1563, %v1527, 0
      %1567 = vmatprep.subr.bf16.mxu0 0
      %1568 = vmatpush1.bf16.msra.mxu0 %v1525
      %1569 = vmatprep.subr.bf16.mxu0 0
      %1570 = vmatpush1.bf16.msra.mxu0 %v1526
      %1571 = vmatprep.subr.bf16.mxu0 0
      %1572 = vmatpush1.bf16.msra.mxu0 %v1565
      %1573 = vmatprep.subr.bf16.mxu0 0
      %1574 = vmatpush1.bf16.msra.mxu0 0
      %1575 = vmatprep.subr.bf16.mxu0 0
      %1576 = vmatpush1.bf16.msra.mxu0 0
      %1577 = vmatprep.subr.bf16.mxu0 0
      %1578 = vmatpush1.bf16.msra.mxu0 0
      %1579 = vmatprep.subr.bf16.mxu0 0
      %1580 = vmatpush1.bf16.msra.mxu0 0
      %1581 = vmatprep.subr.bf16.mxu0 0
      %1582 = vmatpush1.bf16.msra.mxu0 0
      %1583 = vmatprep.subr.bf16.mxu0 0
      %1584 = vmatpush1.bf16.msra.mxu0 0
      %1585 = vmatprep.subr.bf16.mxu0 0
      %1586 = vmatpush1.bf16.msra.mxu0 0
      %1587 = vmatprep.subr.bf16.mxu0 0
      %1588 = vmatpush1.bf16.msra.mxu0 0
      %1589 = vmatprep.subr.bf16.mxu0 0
      %1590 = vmatpush1.bf16.msra.mxu0 0
      %1591 = vmatprep.subr.bf16.mxu0 0
      %1592 = vmatpush1.bf16.msra.mxu0 0
      %1593 = vmatprep.subr.bf16.mxu0 0
      %1594 = vmatpush1.bf16.msra.mxu0 0
      %1595 = vmatprep.subr.bf16.mxu0 0
      %1596 = vmatpush1.bf16.msra.mxu0 0
      %1597 = vmatprep.subr.bf16.mxu0 0
      %1598 = vmatpush1.bf16.msra.mxu0 0
      %1599 = vmatprep.mubr.bf16.mxu0 0
      %1600 = vmatmul.mubr.bf16.gmra.mrb[0].mxu0 %v1531
      %v1601 = vpop.f32.mrb[0].mxu0
      %v1602 = vadd.f32 %v1514, %v1601
      %v1603 = vpop.f32.mrb[0].mxu0
      %v1604 = vpop.f32.mrb[0].mxu0
      %v1605 = vadd.f32 %v1514, %v1604
      %v1606 = vpop.f32.mrb[0].mxu0
      %1607 = vmatprep.mubr.bf16.mxu0 0
      %1608 = vmatmul.mubr.bf16.gmra.mrb[0].mxu0 %v1533
      %v1609 = vpop.f32.mrb[0].mxu0
      %v1610 = vadd.f32 %v1514, %v1609
      %v1611 = vpop.f32.mrb[0].mxu0
      %v1612 = vpop.f32.mrb[0].mxu0
      %v1613 = vadd.f32 %v1514, %v1612
      %v1614 = vpop.f32.mrb[0].mxu0
      %1615 = vmatprep.mubr.bf16.mxu0 0
      %1616 = vmatmul.mubr.bf16.gmra.mrb[0].mxu0 %v1535
      %v1617 = vpop.f32.mrb[0].mxu0
      %v1618 = vadd.f32 %v1514, %v1617
      %v1619 = vpop.f32.mrb[0].mxu0
      %v1620 = vpop.f32.mrb[0].mxu0
      %v1621 = vadd.f32 %v1514, %v1620
      %v1622 = vpop.f32.mrb[0].mxu0
      %1623 = vmatprep.mubr.bf16.mxu0 0
      %1624 = vmatmul.mubr.bf16.gmra.mrb[0].mxu0 %v1537
      %v1625 = vpop.f32.mrb[0].mxu0
      %v1626 = vadd.f32 %v1514, %v1625
      %v1627 = vpop.f32.mrb[0].mxu0
      %v1628 = vpop.f32.mrb[0].mxu0
      %v1629 = vadd.f32 %v1514, %v1628
      %v1630 = vpop.f32.mrb[0].mxu0
      %1631 = vmatprep.mubr.bf16.mxu0 0
      %1632 = vmatmul.mubr.bf16.gmra.mrb[0].mxu0 %v1539
      %v1633 = vpop.f32.mrb[0].mxu0
      %v1634 = vadd.f32 %v1514, %v1633
      %v1635 = vpop.f32.mrb[0].mxu0
      %v1636 = vpop.f32.mrb[0].mxu0
      %v1637 = vadd.f32 %v1514, %v1636
      %v1638 = vpop.f32.mrb[0].mxu0
      %1639 = vmatprep.mubr.bf16.mxu0 0
      %1640 = vmatmul.mubr.bf16.gmra.mrb[0].mxu0 %v1541
      %v1641 = vpop.f32.mrb[0].mxu0
      %v1642 = vadd.f32 %v1514, %v1641
      %v1643 = vpop.f32.mrb[0].mxu0
      %v1644 = vpop.f32.mrb[0].mxu0
      %v1645 = vadd.f32 %v1514, %v1644
      %v1646 = vpop.f32.mrb[0].mxu0
      %1647 = vmatprep.mubr.bf16.mxu0 0
      %1648 = vmatmul.mubr.bf16.gmra.mrb[0].mxu0 %v1543
      %v1649 = vpop.f32.mrb[0].mxu0
      %v1650 = vadd.f32 %v1514, %v1649
      %v1651 = vpop.f32.mrb[0].mxu0
      %v1652 = vpop.f32.mrb[0].mxu0
      %v1653 = vadd.f32 %v1514, %v1652
      %v1654 = vpop.f32.mrb[0].mxu0
      %1655 = vmatprep.mubr.bf16.mxu0 0
      %1656 = vmatmul.mubr.bf16.gmra.mrb[0].mxu0 %v1545
      %v1657 = vpop.f32.mrb[0].mxu0
      %v1658 = vadd.f32 %v1514, %v1657
      %v1659 = vpop.f32.mrb[0].mxu0
      %v1660 = vpop.f32.mrb[0].mxu0
      %v1661 = vadd.f32 %v1514, %v1660
      %v1662 = vpop.f32.mrb[0].mxu0
      %1663 = vmatprep.mubr.bf16.mxu0 0
      %1664 = vmatmul.mubr.bf16.gmra.mrb[0].mxu0 %v1547
      %v1665 = vpop.f32.mrb[0].mxu0
      %v1666 = vadd.f32 %v1514, %v1665
      %v1667 = vpop.f32.mrb[0].mxu0
      %v1668 = vpop.f32.mrb[0].mxu0
      %v1669 = vadd.f32 %v1514, %v1668
      %v1670 = vpop.f32.mrb[0].mxu0
      %1671 = vmatprep.mubr.bf16.mxu0 0
      %1672 = vmatmul.mubr.bf16.gmra.mrb[0].mxu0 %v1549
      %v1673 = vpop.f32.mrb[0].mxu0
      %v1674 = vadd.f32 %v1514, %v1673
      %v1675 = vpop.f32.mrb[0].mxu0
      %v1676 = vpop.f32.mrb[0].mxu0
      %v1677 = vadd.f32 %v1514, %v1676
      %v1678 = vpop.f32.mrb[0].mxu0
      %1679 = vmatprep.mubr.bf16.mxu0 0
      %1680 = vmatmul.mubr.bf16.gmra.mrb[0].mxu0 %v1551
      %v1681 = vpop.f32.mrb[0].mxu0
      %v1682 = vadd.f32 %v1514, %v1681
      %v1683 = vpop.f32.mrb[0].mxu0
      %v1684 = vpop.f32.mrb[0].mxu0
      %v1685 = vadd.f32 %v1514, %v1684
      %v1686 = vpop.f32.mrb[0].mxu0
      %1687 = vmatprep.mubr.bf16.mxu0 0
      %1688 = vmatmul.mubr.bf16.gmra.mrb[0].mxu0 %v1553
      %v1689 = vpop.f32.mrb[0].mxu0
      %v1690 = vadd.f32 %v1514, %v1689
      %v1691 = vpop.f32.mrb[0].mxu0
      %v1692 = vpop.f32.mrb[0].mxu0
      %v1693 = vadd.f32 %v1514, %v1692
      %v1694 = vpop.f32.mrb[0].mxu0
      %1695 = vmatprep.mubr.bf16.mxu0 0
      %1696 = vmatmul.mubr.bf16.gmra.mrb[0].mxu0 %v1555
      %v1697 = vpop.f32.mrb[0].mxu0
      %v1698 = vadd.f32 %v1514, %v1697
      %v1699 = vpop.f32.mrb[0].mxu0
      %v1700 = vpop.f32.mrb[0].mxu0
      %v1701 = vadd.f32 %v1514, %v1700
      %v1702 = vpop.f32.mrb[0].mxu0
      %1703 = vmatprep.mubr.bf16.mxu0 0
      %1704 = vmatmul.mubr.bf16.gmra.mrb[0].mxu0 %v1557
      %v1705 = vpop.f32.mrb[0].mxu0
      %v1706 = vadd.f32 %v1514, %v1705
      %v1707 = vpop.f32.mrb[0].mxu0
      %v1708 = vpop.f32.mrb[0].mxu0
      %v1709 = vadd.f32 %v1514, %v1708
      %v1710 = vpop.f32.mrb[0].mxu0
      %1711 = vmatprep.mubr.bf16.mxu0 0
      %1712 = vmatmul.mubr.bf16.gmra.mrb[0].mxu0 %v1559
      %v1713 = vpop.f32.mrb[0].mxu0
      %v1714 = vadd.f32 %v1514, %v1713
      %v1715 = vpop.f32.mrb[0].mxu0
      %v1716 = vpop.f32.mrb[0].mxu0
      %v1717 = vadd.f32 %v1514, %v1716
      %v1718 = vpop.f32.mrb[0].mxu0
      %1719 = vmatprep.mubr.bf16.mxu0 0
      %1720 = vmatmul.mubr.bf16.gmra.mrb[0].mxu0 %v1561
      %v1721 = vpop.f32.mrb[0].mxu0
      %v1722 = vadd.f32 %v1514, %v1721
      %v1723 = vpop.f32.mrb[0].mxu0
      %v1724 = vpop.f32.mrb[0].mxu0
      %v1725 = vadd.f32 %v1514, %v1724
      %v1726 = vpop.f32.mrb[0].mxu0
      %1727 = vdwg.mxu0
      %v1728 = vmax.f32 %v1602, 0.0
      %v1729 = vmax.f32 %v1605, 0.0
      %v1730 = vmax.f32 %v1610, 0.0
      %v1731 = vmax.f32 %v1613, 0.0
      %v1732 = vmax.f32 %v1618, 0.0
      %v1733 = vmax.f32 %v1621, 0.0
      %v1734 = vmax.f32 %v1626, 0.0
      %v1735 = vmax.f32 %v1629, 0.0
      %v1736 = vmax.f32 %v1634, 0.0
      %v1737 = vmax.f32 %v1637, 0.0
      %v1738 = vmax.f32 %v1642, 0.0
      %v1739 = vmax.f32 %v1645, 0.0
      %v1740 = vmax.f32 %v1650, 0.0
      %v1741 = vmax.f32 %v1653, 0.0
      %v1742 = vmax.f32 %v1658, 0.0
      %v1743 = vmax.f32 %v1661, 0.0
      %v1744 = vmax.f32 %v1666, 0.0
      %v1745 = vmax.f32 %v1669, 0.0
      %v1746 = vmax.f32 %v1674, 0.0
      %v1747 = vmax.f32 %v1677, 0.0
      %v1748 = vmax.f32 %v1682, 0.0
      %v1749 = vmax.f32 %v1685, 0.0
      %v1750 = vmax.f32 %v1690, 0.0
      %v1751 = vmax.f32 %v1693, 0.0
      %v1752 = vmax.f32 %v1698, 0.0
      %v1753 = vmax.f32 %v1701, 0.0
      %v1754 = vmax.f32 %v1706, 0.0
      %v1755 = vmax.f32 %v1709, 0.0
      %v1756 = vmax.f32 %v1714, 0.0
      %v1757 = vmax.f32 %v1717, 0.0
      %v1758 = vmax.f32 %v1722, 0.0
      %v1759 = vmax.f32 %v1725, 0.0
      %s1760 = scalar_lea.vmem [#allocation3], 24
      %1761 = vst.msk [vmem:[%s1760 + $0x1] sm:$0xff] %vm299, %v1728
      %1762 = vst.msk [vmem:[%s1760 + $0x9] sm:$0xff] %vm299, %v1729
      %1763 = vst.msk [vmem:[%s1760 + $0x19] sm:$0xff] %vm299, %v1730
      %1764 = vst.msk [vmem:[%s1760 + $0x21] sm:$0xff] %vm299, %v1731
      %1765 = vst.msk [vmem:[%s1760 + $0x31] sm:$0xff] %vm299, %v1732
      %1766 = vst.msk [vmem:[%s1760 + $0x39] sm:$0xff] %vm299, %v1733
      %1767 = vst.msk [vmem:[%s1760 + $0x49] sm:$0xff] %vm299, %v1734
      %1768 = vst.msk [vmem:[%s1760 + $0x51] sm:$0xff] %vm299, %v1735
      %1769 = vst.msk [vmem:[%s1760 + $0x61] sm:$0xff] %vm299, %v1736
      %1770 = vst.msk [vmem:[%s1760 + $0x69] sm:$0xff] %vm299, %v1737
      %1771 = vst.msk [vmem:[%s1760 + $0x79] sm:$0xff] %vm299, %v1738
      %1772 = vst.msk [vmem:[%s1760 + $0x81] sm:$0xff] %vm299, %v1739
      %1773 = vst.msk [vmem:[%s1760 + $0x91] sm:$0xff] %vm299, %v1740
      %1774 = vst.msk [vmem:[%s1760 + $0x99] sm:$0xff] %vm299, %v1741
      %1775 = vst.msk [vmem:[%s1760 + $0xa9] sm:$0xff] %vm299, %v1742
      %1776 = vst.msk [vmem:[%s1760 + $0xb1] sm:$0xff] %vm299, %v1743
      %1777 = vst.msk [vmem:[%s1760 + $0xc1] sm:$0xff] %vm299, %v1744
      %1778 = vst.msk [vmem:[%s1760 + $0xc9] sm:$0xff] %vm299, %v1745
      %1779 = vst.msk [vmem:[%s1760 + $0xd9] sm:$0xff] %vm299, %v1746
      %1780 = vst.msk [vmem:[%s1760 + $0xe1] sm:$0xff] %vm299, %v1747
      %1781 = vst.msk [vmem:[%s1760 + $0xf1] sm:$0xff] %vm299, %v1748
      %1782 = vst.msk [vmem:[%s1760 + $0xf9] sm:$0xff] %vm299, %v1749
      %1783 = vst.msk [vmem:[%s1760 + $0x109] sm:$0xff] %vm299, %v1750
      %1784 = vst.msk [vmem:[%s1760 + $0x111] sm:$0xff] %vm299, %v1751
      %1785 = vst.msk [vmem:[%s1760 + $0x121] sm:$0xff] %vm299, %v1752
      %1786 = vst.msk [vmem:[%s1760 + $0x129] sm:$0xff] %vm299, %v1753
      %1787 = vst.msk [vmem:[%s1760 + $0x139] sm:$0xff] %vm299, %v1754
      %1788 = vst.msk [vmem:[%s1760 + $0x141] sm:$0xff] %vm299, %v1755
      %1789 = vst.msk [vmem:[%s1760 + $0x151] sm:$0xff] %vm299, %v1756
      %1790 = vst.msk [vmem:[%s1760 + $0x159] sm:$0xff] %vm299, %v1757
      %1791 = vst.msk [vmem:[%s1760 + $0x169] sm:$0xff] %vm299, %v1758
      %1792 = vst.msk [vmem:[%s1760 + $0x171] sm:$0xff] %vm299, %v1759
      %v1793 = vld [vmem:[#allocation3] sm:$0xff]
      %v1794 = vld [vmem:[#allocation3 + $0x8] sm:$0xff]
      %v1795 = vld [vmem:[#allocation3 + $0x18] sm:$0xff]
      %v1796 = vld [vmem:[#allocation3 + $0x20] sm:$0xff]
      %v1797 = vld [vmem:[#allocation3 + $0x30] sm:$0xff]
      %v1798 = vld [vmem:[#allocation3 + $0x38] sm:$0xff]
      %v1799 = vld [vmem:[#allocation3 + $0x48] sm:$0xff]
      %v1800 = vld [vmem:[#allocation3 + $0x50] sm:$0xff]
      %v1801 = vld [vmem:[#allocation3 + $0x60] sm:$0xff]
      %v1802 = vld [vmem:[#allocation3 + $0x68] sm:$0xff]
      %v1803 = vld [vmem:[#allocation3 + $0x78] sm:$0xff]
      %v1804 = vld [vmem:[#allocation3 + $0x80] sm:$0xff]
      %v1805 = vld [vmem:[#allocation3 + $0x90] sm:$0xff]
      %v1806 = vld [vmem:[#allocation3 + $0x98] sm:$0xff]
      %v1807 = vld [vmem:[#allocation3 + $0xa8] sm:$0xff]
      %v1808 = vld [vmem:[#allocation3 + $0xb0] sm:$0xff]
      %v1809 = vld [vmem:[#allocation3 + $0xc0] sm:$0xff]
      %v1810 = vld [vmem:[#allocation3 + $0xc8] sm:$0xff]
      %v1811 = vld [vmem:[#allocation3 + $0xd8] sm:$0xff]
      %v1812 = vld [vmem:[#allocation3 + $0xe0] sm:$0xff]
      %v1813 = vld [vmem:[#allocation3 + $0xf0] sm:$0xff]
      %v1814 = vld [vmem:[#allocation3 + $0xf8] sm:$0xff]
      %v1815 = vld [vmem:[#allocation3 + $0x108] sm:$0xff]
      %v1816 = vld [vmem:[#allocation3 + $0x110] sm:$0xff]
      %v1817 = vld [vmem:[#allocation3 + $0x120] sm:$0xff]
      %v1818 = vld [vmem:[#allocation3 + $0x128] sm:$0xff]
      %v1819 = vld [vmem:[#allocation3 + $0x138] sm:$0xff]
      %v1820 = vld [vmem:[#allocation3 + $0x140] sm:$0xff]
      %v1821 = vld [vmem:[#allocation3 + $0x150] sm:$0xff]
      %v1822 = vld [vmem:[#allocation3 + $0x158] sm:$0xff]
      %v1823 = vld [vmem:[#allocation3 + $0x168] sm:$0xff]
      %v1824 = vld [vmem:[#allocation3 + $0x170] sm:$0xff]
      %v1825 = vpack.c.bf16 %v1794, %v1793
      %v1826 = vpack.c.bf16 %v1796, %v1795
      %v1827 = vpack.c.bf16 %v1798, %v1797
      %v1828 = vpack.c.bf16 %v1800, %v1799
      %v1829 = vpack.c.bf16 %v1802, %v1801
      %v1830 = vpack.c.bf16 %v1804, %v1803
      %v1831 = vpack.c.bf16 %v1806, %v1805
      %v1832 = vpack.c.bf16 %v1808, %v1807
      %v1833 = vpack.c.bf16 %v1810, %v1809
      %v1834 = vpack.c.bf16 %v1812, %v1811
      %v1835 = vpack.c.bf16 %v1814, %v1813
      %v1836 = vpack.c.bf16 %v1816, %v1815
      %v1837 = vpack.c.bf16 %v1818, %v1817
      %v1838 = vpack.c.bf16 %v1820, %v1819
      %v1839 = vpack.c.bf16 %v1822, %v1821
      %v1840 = vpack.c.bf16 %v1824, %v1823
      %1841 = vst.msk [vmem:[#allocation4] sm:$0xff] %vm299, %v1825
      %1842 = vst.msk [vmem:[#allocation4 + $0x18] sm:$0xff] %vm299, %v1826
      %1843 = vst.msk [vmem:[#allocation4 + $0x30] sm:$0xff] %vm299, %v1827
      %1844 = vst.msk [vmem:[#allocation4 + $0x48] sm:$0xff] %vm299, %v1828
      %1845 = vst.msk [vmem:[#allocation4 + $0x60] sm:$0xff] %vm299, %v1829
      %1846 = vst.msk [vmem:[#allocation4 + $0x78] sm:$0xff] %vm299, %v1830
      %1847 = vst.msk [vmem:[#allocation4 + $0x90] sm:$0xff] %vm299, %v1831
      %1848 = vst.msk [vmem:[#allocation4 + $0xa8] sm:$0xff] %vm299, %v1832
      %1849 = vst.msk [vmem:[#allocation4 + $0xc0] sm:$0xff] %vm299, %v1833
      %1850 = vst.msk [vmem:[#allocation4 + $0xd8] sm:$0xff] %vm299, %v1834
      %1851 = vst.msk [vmem:[#allocation4 + $0xf0] sm:$0xff] %vm299, %v1835
      %1852 = vst.msk [vmem:[#allocation4 + $0x108] sm:$0xff] %vm299, %v1836
      %1853 = vst.msk [vmem:[#allocation4 + $0x120] sm:$0xff] %vm299, %v1837
      %1854 = vst.msk [vmem:[#allocation4 + $0x138] sm:$0xff] %vm299, %v1838
      %1855 = vst.msk [vmem:[#allocation4 + $0x150] sm:$0xff] %vm299, %v1839
      %1856 = vst.msk [vmem:[#allocation4 + $0x168] sm:$0xff] %vm299, %v1840
      %v1857 = vld [vmem:[#allocation3 + $0x1] sm:$0xff]
      %v1858 = vld [vmem:[#allocation3 + $0x9] sm:$0xff]
      %v1859 = vld [vmem:[#allocation3 + $0x19] sm:$0xff]
      %v1860 = vld [vmem:[#allocation3 + $0x21] sm:$0xff]
      %v1861 = vld [vmem:[#allocation3 + $0x31] sm:$0xff]
      %v1862 = vld [vmem:[#allocation3 + $0x39] sm:$0xff]
      %v1863 = vld [vmem:[#allocation3 + $0x49] sm:$0xff]
      %v1864 = vld [vmem:[#allocation3 + $0x51] sm:$0xff]
      %v1865 = vld [vmem:[#allocation3 + $0x61] sm:$0xff]
      %v1866 = vld [vmem:[#allocation3 + $0x69] sm:$0xff]
      %v1867 = vld [vmem:[#allocation3 + $0x79] sm:$0xff]
      %v1868 = vld [vmem:[#allocation3 + $0x81] sm:$0xff]
      %v1869 = vld [vmem:[#allocation3 + $0x91] sm:$0xff]
      %v1870 = vld [vmem:[#allocation3 + $0x99] sm:$0xff]
      %v1871 = vld [vmem:[#allocation3 + $0xa9] sm:$0xff]
      %v1872 = vld [vmem:[#allocation3 + $0xb1] sm:$0xff]
      %v1873 = vld [vmem:[#allocation3 + $0xc1] sm:$0xff]
      %v1874 = vld [vmem:[#allocation3 + $0xc9] sm:$0xff]
      %v1875 = vld [vmem:[#allocation3 + $0xd9] sm:$0xff]
      %v1876 = vld [vmem:[#allocation3 + $0xe1] sm:$0xff]
      %v1877 = vld [vmem:[#allocation3 + $0xf1] sm:$0xff]
      %v1878 = vld [vmem:[#allocation3 + $0xf9] sm:$0xff]
      %v1879 = vld [vmem:[#allocation3 + $0x109] sm:$0xff]
      %v1880 = vld [vmem:[#allocation3 + $0x111] sm:$0xff]
      %v1881 = vld [vmem:[#allocation3 + $0x121] sm:$0xff]
      %v1882 = vld [vmem:[#allocation3 + $0x129] sm:$0xff]
      %v1883 = vld [vmem:[#allocation3 + $0x139] sm:$0xff]
      %v1884 = vld [vmem:[#allocation3 + $0x141] sm:$0xff]
      %v1885 = vld [vmem:[#allocation3 + $0x151] sm:$0xff]
      %v1886 = vld [vmem:[#allocation3 + $0x159] sm:$0xff]
      %v1887 = vld [vmem:[#allocation3 + $0x169] sm:$0xff]
      %v1888 = vld [vmem:[#allocation3 + $0x171] sm:$0xff]
      %v1889 = vpack.c.bf16 %v1858, %v1857
      %v1890 = vpack.c.bf16 %v1860, %v1859
      %v1891 = vpack.c.bf16 %v1862, %v1861
      %v1892 = vpack.c.bf16 %v1864, %v1863
      %v1893 = vpack.c.bf16 %v1866, %v1865
      %v1894 = vpack.c.bf16 %v1868, %v1867
      %v1895 = vpack.c.bf16 %v1870, %v1869
      %v1896 = vpack.c.bf16 %v1872, %v1871
      %v1897 = vpack.c.bf16 %v1874, %v1873
      %v1898 = vpack.c.bf16 %v1876, %v1875
      %v1899 = vpack.c.bf16 %v1878, %v1877
      %v1900 = vpack.c.bf16 %v1880, %v1879
      %v1901 = vpack.c.bf16 %v1882, %v1881
      %v1902 = vpack.c.bf16 %v1884, %v1883
      %v1903 = vpack.c.bf16 %v1886, %v1885
      %v1904 = vpack.c.bf16 %v1888, %v1887
      %1921 = vrot.lane.b32.xlu0 %v1889, 32
      %v1922 = vpop.permute.xlu0 %1921
      %1923 = vrot.lane.b32.xlu0 %v1890, 32
      %v1924 = vpop.permute.xlu0 %1923
      %1925 = vrot.lane.b32.xlu0 %v1891, 32
      %v1926 = vpop.permute.xlu0 %1925
      %1927 = vrot.lane.b32.xlu0 %v1892, 32
      %v1928 = vpop.permute.xlu0 %1927
      %1929 = vrot.lane.b32.xlu0 %v1893, 32
      %v1930 = vpop.permute.xlu0 %1929
      %1931 = vrot.lane.b32.xlu0 %v1894, 32
      %v1932 = vpop.permute.xlu0 %1931
      %1933 = vrot.lane.b32.xlu0 %v1895, 32
      %v1934 = vpop.permute.xlu0 %1933
      %1935 = vrot.lane.b32.xlu0 %v1896, 32
      %v1936 = vpop.permute.xlu0 %1935
      %1937 = vrot.lane.b32.xlu0 %v1897, 32
      %v1938 = vpop.permute.xlu0 %1937
      %1939 = vrot.lane.b32.xlu0 %v1898, 32
      %v1940 = vpop.permute.xlu0 %1939
      %1941 = vrot.lane.b32.xlu0 %v1899, 32
      %v1942 = vpop.permute.xlu0 %1941
      %1943 = vrot.lane.b32.xlu0 %v1900, 32
      %v1944 = vpop.permute.xlu0 %1943
      %1945 = vrot.lane.b32.xlu0 %v1901, 32
      %v1946 = vpop.permute.xlu0 %1945
      %1947 = vrot.lane.b32.xlu0 %v1902, 32
      %v1948 = vpop.permute.xlu0 %1947
      %1949 = vrot.lane.b32.xlu0 %v1903, 32
      %v1950 = vpop.permute.xlu0 %1949
      %1951 = vrot.lane.b32.xlu0 %v1904, 32
      %v1952 = vpop.permute.xlu0 %1951
      %vm1969 = vcmask 523520
      %1970 = vst.msk [vmem:[#allocation4] sm:$0xff] %vm1969, %v1922
      %1971 = vst.msk [vmem:[#allocation4 + $0x18] sm:$0xff] %vm1969, %v1924
      %1972 = vst.msk [vmem:[#allocation4 + $0x30] sm:$0xff] %vm1969, %v1926
      %1973 = vst.msk [vmem:[#allocation4 + $0x48] sm:$0xff] %vm1969, %v1928
      %1974 = vst.msk [vmem:[#allocation4 + $0x60] sm:$0xff] %vm1969, %v1930
      %1975 = vst.msk [vmem:[#allocation4 + $0x78] sm:$0xff] %vm1969, %v1932
      %1976 = vst.msk [vmem:[#allocation4 + $0x90] sm:$0xff] %vm1969, %v1934
      %1977 = vst.msk [vmem:[#allocation4 + $0xa8] sm:$0xff] %vm1969, %v1936
      %1978 = vst.msk [vmem:[#allocation4 + $0xc0] sm:$0xff] %vm1969, %v1938
      %1979 = vst.msk [vmem:[#allocation4 + $0xd8] sm:$0xff] %vm1969, %v1940
      %1980 = vst.msk [vmem:[#allocation4 + $0xf0] sm:$0xff] %vm1969, %v1942
      %1981 = vst.msk [vmem:[#allocation4 + $0x108] sm:$0xff] %vm1969, %v1944
      %1982 = vst.msk [vmem:[#allocation4 + $0x120] sm:$0xff] %vm1969, %v1946
      %1983 = vst.msk [vmem:[#allocation4 + $0x138] sm:$0xff] %vm1969, %v1948
      %1984 = vst.msk [vmem:[#allocation4 + $0x150] sm:$0xff] %vm1969, %v1950
      %1985 = vst.msk [vmem:[#allocation4 + $0x168] sm:$0xff] %vm1969, %v1952
      %v1986 = vld [vmem:[#allocation3 + $0x2] sm:$0xff]
      %v1987 = vld [vmem:[#allocation3 + $0xa] sm:$0xff]
      %v1988 = vld [vmem:[#allocation3 + $0x1a] sm:$0xff]
      %v1989 = vld [vmem:[#allocation3 + $0x22] sm:$0xff]
      %v1990 = vld [vmem:[#allocation3 + $0x32] sm:$0xff]
      %v1991 = vld [vmem:[#allocation3 + $0x3a] sm:$0xff]
      %v1992 = vld [vmem:[#allocation3 + $0x4a] sm:$0xff]
      %v1993 = vld [vmem:[#allocation3 + $0x52] sm:$0xff]
      %v1994 = vld [vmem:[#allocation3 + $0x62] sm:$0xff]
      %v1995 = vld [vmem:[#allocation3 + $0x6a] sm:$0xff]
      %v1996 = vld [vmem:[#allocation3 + $0x7a] sm:$0xff]
      %v1997 = vld [vmem:[#allocation3 + $0x82] sm:$0xff]
      %v1998 = vld [vmem:[#allocation3 + $0x92] sm:$0xff]
      %v1999 = vld [vmem:[#allocation3 + $0x9a] sm:$0xff]
      %v2000 = vld [vmem:[#allocation3 + $0xaa] sm:$0xff]
      %v2001 = vld [vmem:[#allocation3 + $0xb2] sm:$0xff]
      %v2002 = vld [vmem:[#allocation3 + $0xc2] sm:$0xff]
      %v2003 = vld [vmem:[#allocation3 + $0xca] sm:$0xff]
      %v2004 = vld [vmem:[#allocation3 + $0xda] sm:$0xff]
      %v2005 = vld [vmem:[#allocation3 + $0xe2] sm:$0xff]
      %v2006 = vld [vmem:[#allocation3 + $0xf2] sm:$0xff]
      %v2007 = vld [vmem:[#allocation3 + $0xfa] sm:$0xff]
      %v2008 = vld [vmem:[#allocation3 + $0x10a] sm:$0xff]
      %v2009 = vld [vmem:[#allocation3 + $0x112] sm:$0xff]
      %v2010 = vld [vmem:[#allocation3 + $0x122] sm:$0xff]
      %v2011 = vld [vmem:[#allocation3 + $0x12a] sm:$0xff]
      %v2012 = vld [vmem:[#allocation3 + $0x13a] sm:$0xff]
      %v2013 = vld [vmem:[#allocation3 + $0x142] sm:$0xff]
      %v2014 = vld [vmem:[#allocation3 + $0x152] sm:$0xff]
      %v2015 = vld [vmem:[#allocation3 + $0x15a] sm:$0xff]
      %v2016 = vld [vmem:[#allocation3 + $0x16a] sm:$0xff]
      %v2017 = vld [vmem:[#allocation3 + $0x172] sm:$0xff]
      %v2018 = vpack.c.bf16 %v1987, %v1986
      %v2019 = vpack.c.bf16 %v1989, %v1988
      %v2020 = vpack.c.bf16 %v1991, %v1990
      %v2021 = vpack.c.bf16 %v1993, %v1992
      %v2022 = vpack.c.bf16 %v1995, %v1994
      %v2023 = vpack.c.bf16 %v1997, %v1996
      %v2024 = vpack.c.bf16 %v1999, %v1998
      %v2025 = vpack.c.bf16 %v2001, %v2000
      %v2026 = vpack.c.bf16 %v2003, %v2002
      %v2027 = vpack.c.bf16 %v2005, %v2004
      %v2028 = vpack.c.bf16 %v2007, %v2006
      %v2029 = vpack.c.bf16 %v2009, %v2008
      %v2030 = vpack.c.bf16 %v2011, %v2010
      %v2031 = vpack.c.bf16 %v2013, %v2012
      %v2032 = vpack.c.bf16 %v2015, %v2014
      %v2033 = vpack.c.bf16 %v2017, %v2016
      %2050 = vrot.lane.b32.xlu0 %v2018, 64
      %v2051 = vpop.permute.xlu0 %2050
      %2052 = vrot.lane.b32.xlu0 %v2019, 64
      %v2053 = vpop.permute.xlu0 %2052
      %2054 = vrot.lane.b32.xlu0 %v2020, 64
      %v2055 = vpop.permute.xlu0 %2054
      %2056 = vrot.lane.b32.xlu0 %v2021, 64
      %v2057 = vpop.permute.xlu0 %2056
      %2058 = vrot.lane.b32.xlu0 %v2022, 64
      %v2059 = vpop.permute.xlu0 %2058
      %2060 = vrot.lane.b32.xlu0 %v2023, 64
      %v2061 = vpop.permute.xlu0 %2060
      %2062 = vrot.lane.b32.xlu0 %v2024, 64
      %v2063 = vpop.permute.xlu0 %2062
      %2064 = vrot.lane.b32.xlu0 %v2025, 64
      %v2065 = vpop.permute.xlu0 %2064
      %2066 = vrot.lane.b32.xlu0 %v2026, 64
      %v2067 = vpop.permute.xlu0 %2066
      %2068 = vrot.lane.b32.xlu0 %v2027, 64
      %v2069 = vpop.permute.xlu0 %2068
      %2070 = vrot.lane.b32.xlu0 %v2028, 64
      %v2071 = vpop.permute.xlu0 %2070
      %2072 = vrot.lane.b32.xlu0 %v2029, 64
      %v2073 = vpop.permute.xlu0 %2072
      %2074 = vrot.lane.b32.xlu0 %v2030, 64
      %v2075 = vpop.permute.xlu0 %2074
      %2076 = vrot.lane.b32.xlu0 %v2031, 64
      %v2077 = vpop.permute.xlu0 %2076
      %2078 = vrot.lane.b32.xlu0 %v2032, 64
      %v2079 = vpop.permute.xlu0 %2078
      %2080 = vrot.lane.b32.xlu0 %v2033, 64
      %v2081 = vpop.permute.xlu0 %2080
      %vm2098 = vcmask 785920
      %2099 = vst.msk [vmem:[#allocation4] sm:$0xff] %vm2098, %v2051
      %2100 = vst.msk [vmem:[#allocation4 + $0x18] sm:$0xff] %vm2098, %v2053
      %2101 = vst.msk [vmem:[#allocation4 + $0x30] sm:$0xff] %vm2098, %v2055
      %2102 = vst.msk [vmem:[#allocation4 + $0x48] sm:$0xff] %vm2098, %v2057
      %2103 = vst.msk [vmem:[#allocation4 + $0x60] sm:$0xff] %vm2098, %v2059
      %2104 = vst.msk [vmem:[#allocation4 + $0x78] sm:$0xff] %vm2098, %v2061
      %2105 = vst.msk [vmem:[#allocation4 + $0x90] sm:$0xff] %vm2098, %v2063
      %2106 = vst.msk [vmem:[#allocation4 + $0xa8] sm:$0xff] %vm2098, %v2065
      %2107 = vst.msk [vmem:[#allocation4 + $0xc0] sm:$0xff] %vm2098, %v2067
      %2108 = vst.msk [vmem:[#allocation4 + $0xd8] sm:$0xff] %vm2098, %v2069
      %2109 = vst.msk [vmem:[#allocation4 + $0xf0] sm:$0xff] %vm2098, %v2071
      %2110 = vst.msk [vmem:[#allocation4 + $0x108] sm:$0xff] %vm2098, %v2073
      %2111 = vst.msk [vmem:[#allocation4 + $0x120] sm:$0xff] %vm2098, %v2075
      %2112 = vst.msk [vmem:[#allocation4 + $0x138] sm:$0xff] %vm2098, %v2077
      %2113 = vst.msk [vmem:[#allocation4 + $0x150] sm:$0xff] %vm2098, %v2079
      %2114 = vst.msk [vmem:[#allocation4 + $0x168] sm:$0xff] %vm2098, %v2081
      %v2115 = vld [vmem:[%s1760] sm:$0xff]
      %v2116 = vld [vmem:[%s1760 + $0x8] sm:$0xff]
      %v2117 = vld [vmem:[%s1760 + $0x18] sm:$0xff]
      %v2118 = vld [vmem:[%s1760 + $0x20] sm:$0xff]
      %v2119 = vld [vmem:[%s1760 + $0x30] sm:$0xff]
      %v2120 = vld [vmem:[%s1760 + $0x38] sm:$0xff]
      %v2121 = vld [vmem:[%s1760 + $0x48] sm:$0xff]
      %v2122 = vld [vmem:[%s1760 + $0x50] sm:$0xff]
      %v2123 = vld [vmem:[%s1760 + $0x60] sm:$0xff]
      %v2124 = vld [vmem:[%s1760 + $0x68] sm:$0xff]
      %v2125 = vld [vmem:[%s1760 + $0x78] sm:$0xff]
      %v2126 = vld [vmem:[%s1760 + $0x80] sm:$0xff]
      %v2127 = vld [vmem:[%s1760 + $0x90] sm:$0xff]
      %v2128 = vld [vmem:[%s1760 + $0x98] sm:$0xff]
      %v2129 = vld [vmem:[%s1760 + $0xa8] sm:$0xff]
      %v2130 = vld [vmem:[%s1760 + $0xb0] sm:$0xff]
      %v2131 = vld [vmem:[%s1760 + $0xc0] sm:$0xff]
      %v2132 = vld [vmem:[%s1760 + $0xc8] sm:$0xff]
      %v2133 = vld [vmem:[%s1760 + $0xd8] sm:$0xff]
      %v2134 = vld [vmem:[%s1760 + $0xe0] sm:$0xff]
      %v2135 = vld [vmem:[%s1760 + $0xf0] sm:$0xff]
      %v2136 = vld [vmem:[%s1760 + $0xf8] sm:$0xff]
      %v2137 = vld [vmem:[%s1760 + $0x108] sm:$0xff]
      %v2138 = vld [vmem:[%s1760 + $0x110] sm:$0xff]
      %v2139 = vld [vmem:[%s1760 + $0x120] sm:$0xff]
      %v2140 = vld [vmem:[%s1760 + $0x128] sm:$0xff]
      %v2141 = vld [vmem:[%s1760 + $0x138] sm:$0xff]
      %v2142 = vld [vmem:[%s1760 + $0x140] sm:$0xff]
      %v2143 = vld [vmem:[%s1760 + $0x150] sm:$0xff]
      %v2144 = vld [vmem:[%s1760 + $0x158] sm:$0xff]
      %v2145 = vld [vmem:[%s1760 + $0x168] sm:$0xff]
      %v2146 = vld [vmem:[%s1760 + $0x170] sm:$0xff]
      %v2147 = vpack.c.bf16 %v2116, %v2115
      %v2148 = vpack.c.bf16 %v2118, %v2117
      %v2149 = vpack.c.bf16 %v2120, %v2119
      %v2150 = vpack.c.bf16 %v2122, %v2121
      %v2151 = vpack.c.bf16 %v2124, %v2123
      %v2152 = vpack.c.bf16 %v2126, %v2125
      %v2153 = vpack.c.bf16 %v2128, %v2127
      %v2154 = vpack.c.bf16 %v2130, %v2129
      %v2155 = vpack.c.bf16 %v2132, %v2131
      %v2156 = vpack.c.bf16 %v2134, %v2133
      %v2157 = vpack.c.bf16 %v2136, %v2135
      %v2158 = vpack.c.bf16 %v2138, %v2137
      %v2159 = vpack.c.bf16 %v2140, %v2139
      %v2160 = vpack.c.bf16 %v2142, %v2141
      %v2161 = vpack.c.bf16 %v2144, %v2143
      %v2162 = vpack.c.bf16 %v2146, %v2145
      %2179 = vrot.lane.b32.xlu0 %v2147, 96
      %v2180 = vpop.permute.xlu0 %2179
      %2181 = vrot.lane.b32.xlu0 %v2148, 96
      %v2182 = vpop.permute.xlu0 %2181
      %2183 = vrot.lane.b32.xlu0 %v2149, 96
      %v2184 = vpop.permute.xlu0 %2183
      %2185 = vrot.lane.b32.xlu0 %v2150, 96
      %v2186 = vpop.permute.xlu0 %2185
      %2187 = vrot.lane.b32.xlu0 %v2151, 96
      %v2188 = vpop.permute.xlu0 %2187
      %2189 = vrot.lane.b32.xlu0 %v2152, 96
      %v2190 = vpop.permute.xlu0 %2189
      %2191 = vrot.lane.b32.xlu0 %v2153, 96
      %v2192 = vpop.permute.xlu0 %2191
      %2193 = vrot.lane.b32.xlu0 %v2154, 96
      %v2194 = vpop.permute.xlu0 %2193
      %2195 = vrot.lane.b32.xlu0 %v2155, 96
      %v2196 = vpop.permute.xlu0 %2195
      %2197 = vrot.lane.b32.xlu0 %v2156, 96
      %v2198 = vpop.permute.xlu0 %2197
      %2199 = vrot.lane.b32.xlu0 %v2157, 96
      %v2200 = vpop.permute.xlu0 %2199
      %2201 = vrot.lane.b32.xlu0 %v2158, 96
      %v2202 = vpop.permute.xlu0 %2201
      %2203 = vrot.lane.b32.xlu0 %v2159, 96
      %v2204 = vpop.permute.xlu0 %2203
      %2205 = vrot.lane.b32.xlu0 %v2160, 96
      %v2206 = vpop.permute.xlu0 %2205
      %2207 = vrot.lane.b32.xlu0 %v2161, 96
      %v2208 = vpop.permute.xlu0 %2207
      %2209 = vrot.lane.b32.xlu0 %v2162, 96
      %v2210 = vpop.permute.xlu0 %2209
      %vm2227 = vcmask 1048320
      %2228 = vst.msk [vmem:[#allocation4] sm:$0xff] %vm2227, %v2180
      %2229 = vst.msk [vmem:[#allocation4 + $0x18] sm:$0xff] %vm2227, %v2182
      %2230 = vst.msk [vmem:[#allocation4 + $0x30] sm:$0xff] %vm2227, %v2184
      %2231 = vst.msk [vmem:[#allocation4 + $0x48] sm:$0xff] %vm2227, %v2186
      %2232 = vst.msk [vmem:[#allocation4 + $0x60] sm:$0xff] %vm2227, %v2188
      %2233 = vst.msk [vmem:[#allocation4 + $0x78] sm:$0xff] %vm2227, %v2190
      %2234 = vst.msk [vmem:[#allocation4 + $0x90] sm:$0xff] %vm2227, %v2192
      %2235 = vst.msk [vmem:[#allocation4 + $0xa8] sm:$0xff] %vm2227, %v2194
      %2236 = vst.msk [vmem:[#allocation4 + $0xc0] sm:$0xff] %vm2227, %v2196
      %2237 = vst.msk [vmem:[#allocation4 + $0xd8] sm:$0xff] %vm2227, %v2198
      %2238 = vst.msk [vmem:[#allocation4 + $0xf0] sm:$0xff] %vm2227, %v2200
      %2239 = vst.msk [vmem:[#allocation4 + $0x108] sm:$0xff] %vm2227, %v2202
      %2240 = vst.msk [vmem:[#allocation4 + $0x120] sm:$0xff] %vm2227, %v2204
      %2241 = vst.msk [vmem:[#allocation4 + $0x138] sm:$0xff] %vm2227, %v2206
      %2242 = vst.msk [vmem:[#allocation4 + $0x150] sm:$0xff] %vm2227, %v2208
      %2243 = vst.msk [vmem:[#allocation4 + $0x168] sm:$0xff] %vm2227, %v2210
      %v2244 = vld [vmem:[%s1760 + $0x1] sm:$0xff]
      %v2245 = vld [vmem:[%s1760 + $0x9] sm:$0xff]
      %v2246 = vld [vmem:[%s1760 + $0x19] sm:$0xff]
      %v2247 = vld [vmem:[%s1760 + $0x21] sm:$0xff]
      %v2248 = vld [vmem:[%s1760 + $0x31] sm:$0xff]
      %v2249 = vld [vmem:[%s1760 + $0x39] sm:$0xff]
      %v2250 = vld [vmem:[%s1760 + $0x49] sm:$0xff]
      %v2251 = vld [vmem:[%s1760 + $0x51] sm:$0xff]
      %v2252 = vld [vmem:[%s1760 + $0x61] sm:$0xff]
      %v2253 = vld [vmem:[%s1760 + $0x69] sm:$0xff]
      %v2254 = vld [vmem:[%s1760 + $0x79] sm:$0xff]
      %v2255 = vld [vmem:[%s1760 + $0x81] sm:$0xff]
      %v2256 = vld [vmem:[%s1760 + $0x91] sm:$0xff]
      %v2257 = vld [vmem:[%s1760 + $0x99] sm:$0xff]
      %v2258 = vld [vmem:[%s1760 + $0xa9] sm:$0xff]
      %v2259 = vld [vmem:[%s1760 + $0xb1] sm:$0xff]
      %v2260 = vld [vmem:[%s1760 + $0xc1] sm:$0xff]
      %v2261 = vld [vmem:[%s1760 + $0xc9] sm:$0xff]
      %v2262 = vld [vmem:[%s1760 + $0xd9] sm:$0xff]
      %v2263 = vld [vmem:[%s1760 + $0xe1] sm:$0xff]
      %v2264 = vld [vmem:[%s1760 + $0xf1] sm:$0xff]
      %v2265 = vld [vmem:[%s1760 + $0xf9] sm:$0xff]
      %v2266 = vld [vmem:[%s1760 + $0x109] sm:$0xff]
      %v2267 = vld [vmem:[%s1760 + $0x111] sm:$0xff]
      %v2268 = vld [vmem:[%s1760 + $0x121] sm:$0xff]
      %v2269 = vld [vmem:[%s1760 + $0x129] sm:$0xff]
      %v2270 = vld [vmem:[%s1760 + $0x139] sm:$0xff]
      %v2271 = vld [vmem:[%s1760 + $0x141] sm:$0xff]
      %v2272 = vld [vmem:[%s1760 + $0x151] sm:$0xff]
      %v2273 = vld [vmem:[%s1760 + $0x159] sm:$0xff]
      %v2274 = vld [vmem:[%s1760 + $0x169] sm:$0xff]
      %v2275 = vld [vmem:[%s1760 + $0x171] sm:$0xff]
      %v2276 = vpack.c.bf16 %v2245, %v2244
      %v2277 = vpack.c.bf16 %v2247, %v2246
      %v2278 = vpack.c.bf16 %v2249, %v2248
      %v2279 = vpack.c.bf16 %v2251, %v2250
      %v2280 = vpack.c.bf16 %v2253, %v2252
      %v2281 = vpack.c.bf16 %v2255, %v2254
      %v2282 = vpack.c.bf16 %v2257, %v2256
      %v2283 = vpack.c.bf16 %v2259, %v2258
      %v2284 = vpack.c.bf16 %v2261, %v2260
      %v2285 = vpack.c.bf16 %v2263, %v2262
      %v2286 = vpack.c.bf16 %v2265, %v2264
      %v2287 = vpack.c.bf16 %v2267, %v2266
      %v2288 = vpack.c.bf16 %v2269, %v2268
      %v2289 = vpack.c.bf16 %v2271, %v2270
      %v2290 = vpack.c.bf16 %v2273, %v2272
      %v2291 = vpack.c.bf16 %v2275, %v2274
      %2292 = vst.msk [vmem:[#allocation4 + $0x8] sm:$0xff] %vm299, %v2276
      %2293 = vst.msk [vmem:[#allocation4 + $0x20] sm:$0xff] %vm299, %v2277
      %2294 = vst.msk [vmem:[#allocation4 + $0x38] sm:$0xff] %vm299, %v2278
      %2295 = vst.msk [vmem:[#allocation4 + $0x50] sm:$0xff] %vm299, %v2279
      %2296 = vst.msk [vmem:[#allocation4 + $0x68] sm:$0xff] %vm299, %v2280
      %2297 = vst.msk [vmem:[#allocation4 + $0x80] sm:$0xff] %vm299, %v2281
      %2298 = vst.msk [vmem:[#allocation4 + $0x98] sm:$0xff] %vm299, %v2282
      %2299 = vst.msk [vmem:[#allocation4 + $0xb0] sm:$0xff] %vm299, %v2283
      %2300 = vst.msk [vmem:[#allocation4 + $0xc8] sm:$0xff] %vm299, %v2284
      %2301 = vst.msk [vmem:[#allocation4 + $0xe0] sm:$0xff] %vm299, %v2285
      %2302 = vst.msk [vmem:[#allocation4 + $0xf8] sm:$0xff] %vm299, %v2286
      %2303 = vst.msk [vmem:[#allocation4 + $0x110] sm:$0xff] %vm299, %v2287
      %2304 = vst.msk [vmem:[#allocation4 + $0x128] sm:$0xff] %vm299, %v2288
      %2305 = vst.msk [vmem:[#allocation4 + $0x140] sm:$0xff] %vm299, %v2289
      %2306 = vst.msk [vmem:[#allocation4 + $0x158] sm:$0xff] %vm299, %v2290
      %2307 = vst.msk [vmem:[#allocation4 + $0x170] sm:$0xff] %vm299, %v2291
      %v2308 = vld [vmem:[%s1760 + $0x2] sm:$0xff]
      %v2309 = vld [vmem:[%s1760 + $0xa] sm:$0xff]
      %v2310 = vld [vmem:[%s1760 + $0x1a] sm:$0xff]
      %v2311 = vld [vmem:[%s1760 + $0x22] sm:$0xff]
      %v2312 = vld [vmem:[%s1760 + $0x32] sm:$0xff]
      %v2313 = vld [vmem:[%s1760 + $0x3a] sm:$0xff]
      %v2314 = vld [vmem:[%s1760 + $0x4a] sm:$0xff]
      %v2315 = vld [vmem:[%s1760 + $0x52] sm:$0xff]
      %v2316 = vld [vmem:[%s1760 + $0x62] sm:$0xff]
      %v2317 = vld [vmem:[%s1760 + $0x6a] sm:$0xff]
      %v2318 = vld [vmem:[%s1760 + $0x7a] sm:$0xff]
      %v2319 = vld [vmem:[%s1760 + $0x82] sm:$0xff]
      %v2320 = vld [vmem:[%s1760 + $0x92] sm:$0xff]
      %v2321 = vld [vmem:[%s1760 + $0x9a] sm:$0xff]
      %v2322 = vld [vmem:[%s1760 + $0xaa] sm:$0xff]
      %v2323 = vld [vmem:[%s1760 + $0xb2] sm:$0xff]
      %v2324 = vld [vmem:[%s1760 + $0xc2] sm:$0xff]
      %v2325 = vld [vmem:[%s1760 + $0xca] sm:$0xff]
      %v2326 = vld [vmem:[%s1760 + $0xda] sm:$0xff]
      %v2327 = vld [vmem:[%s1760 + $0xe2] sm:$0xff]
      %v2328 = vld [vmem:[%s1760 + $0xf2] sm:$0xff]
      %v2329 = vld [vmem:[%s1760 + $0xfa] sm:$0xff]
      %v2330 = vld [vmem:[%s1760 + $0x10a] sm:$0xff]
      %v2331 = vld [vmem:[%s1760 + $0x112] sm:$0xff]
      %v2332 = vld [vmem:[%s1760 + $0x122] sm:$0xff]
      %v2333 = vld [vmem:[%s1760 + $0x12a] sm:$0xff]
      %v2334 = vld [vmem:[%s1760 + $0x13a] sm:$0xff]
      %v2335 = vld [vmem:[%s1760 + $0x142] sm:$0xff]
      %v2336 = vld [vmem:[%s1760 + $0x152] sm:$0xff]
      %v2337 = vld [vmem:[%s1760 + $0x15a] sm:$0xff]
      %v2338 = vld [vmem:[%s1760 + $0x16a] sm:$0xff]
      %v2339 = vld [vmem:[%s1760 + $0x172] sm:$0xff]
      %v2340 = vpack.c.bf16 %v2309, %v2308
      %v2341 = vpack.c.bf16 %v2311, %v2310
      %v2342 = vpack.c.bf16 %v2313, %v2312
      %v2343 = vpack.c.bf16 %v2315, %v2314
      %v2344 = vpack.c.bf16 %v2317, %v2316
      %v2345 = vpack.c.bf16 %v2319, %v2318
      %v2346 = vpack.c.bf16 %v2321, %v2320
      %v2347 = vpack.c.bf16 %v2323, %v2322
      %v2348 = vpack.c.bf16 %v2325, %v2324
      %v2349 = vpack.c.bf16 %v2327, %v2326
      %v2350 = vpack.c.bf16 %v2329, %v2328
      %v2351 = vpack.c.bf16 %v2331, %v2330
      %v2352 = vpack.c.bf16 %v2333, %v2332
      %v2353 = vpack.c.bf16 %v2335, %v2334
      %v2354 = vpack.c.bf16 %v2337, %v2336
      %v2355 = vpack.c.bf16 %v2339, %v2338
      %2372 = vrot.lane.b32.xlu0 %v2340, 32
      %v2373 = vpop.permute.xlu0 %2372
      %2374 = vrot.lane.b32.xlu0 %v2341, 32
      %v2375 = vpop.permute.xlu0 %2374
      %2376 = vrot.lane.b32.xlu0 %v2342, 32
      %v2377 = vpop.permute.xlu0 %2376
      %2378 = vrot.lane.b32.xlu0 %v2343, 32
      %v2379 = vpop.permute.xlu0 %2378
      %2380 = vrot.lane.b32.xlu0 %v2344, 32
      %v2381 = vpop.permute.xlu0 %2380
      %2382 = vrot.lane.b32.xlu0 %v2345, 32
      %v2383 = vpop.permute.xlu0 %2382
      %2384 = vrot.lane.b32.xlu0 %v2346, 32
      %v2385 = vpop.permute.xlu0 %2384
      %2386 = vrot.lane.b32.xlu0 %v2347, 32
      %v2387 = vpop.permute.xlu0 %2386
      %2388 = vrot.lane.b32.xlu0 %v2348, 32
      %v2389 = vpop.permute.xlu0 %2388
      %2390 = vrot.lane.b32.xlu0 %v2349, 32
      %v2391 = vpop.permute.xlu0 %2390
      %2392 = vrot.lane.b32.xlu0 %v2350, 32
      %v2393 = vpop.permute.xlu0 %2392
      %2394 = vrot.lane.b32.xlu0 %v2351, 32
      %v2395 = vpop.permute.xlu0 %2394
      %2396 = vrot.lane.b32.xlu0 %v2352, 32
      %v2397 = vpop.permute.xlu0 %2396
      %2398 = vrot.lane.b32.xlu0 %v2353, 32
      %v2399 = vpop.permute.xlu0 %2398
      %2400 = vrot.lane.b32.xlu0 %v2354, 32
      %v2401 = vpop.permute.xlu0 %2400
      %2402 = vrot.lane.b32.xlu0 %v2355, 32
      %v2403 = vpop.permute.xlu0 %2402
      %2420 = vst.msk [vmem:[#allocation4 + $0x8] sm:$0xff] %vm1969, %v2373
      %2421 = vst.msk [vmem:[#allocation4 + $0x20] sm:$0xff] %vm1969, %v2375
      %2422 = vst.msk [vmem:[#allocation4 + $0x38] sm:$0xff] %vm1969, %v2377
      %2423 = vst.msk [vmem:[#allocation4 + $0x50] sm:$0xff] %vm1969, %v2379
      %2424 = vst.msk [vmem:[#allocation4 + $0x68] sm:$0xff] %vm1969, %v2381
      %2425 = vst.msk [vmem:[#allocation4 + $0x80] sm:$0xff] %vm1969, %v2383
      %2426 = vst.msk [vmem:[#allocation4 + $0x98] sm:$0xff] %vm1969, %v2385
      %2427 = vst.msk [vmem:[#allocation4 + $0xb0] sm:$0xff] %vm1969, %v2387
      %2428 = vst.msk [vmem:[#allocation4 + $0xc8] sm:$0xff] %vm1969, %v2389
      %2429 = vst.msk [vmem:[#allocation4 + $0xe0] sm:$0xff] %vm1969, %v2391
      %2430 = vst.msk [vmem:[#allocation4 + $0xf8] sm:$0xff] %vm1969, %v2393
      %2431 = vst.msk [vmem:[#allocation4 + $0x110] sm:$0xff] %vm1969, %v2395
      %2432 = vst.msk [vmem:[#allocation4 + $0x128] sm:$0xff] %vm1969, %v2397
      %2433 = vst.msk [vmem:[#allocation4 + $0x140] sm:$0xff] %vm1969, %v2399
      %2434 = vst.msk [vmem:[#allocation4 + $0x158] sm:$0xff] %vm1969, %v2401
      %2435 = vst.msk [vmem:[#allocation4 + $0x170] sm:$0xff] %vm1969, %v2403
      %s2436 = scalar_lea.vmem [#allocation3], 48
      %v2437 = vld [vmem:[%s2436] sm:$0xff]
      %v2438 = vld [vmem:[%s2436 + $0x8] sm:$0xff]
      %v2439 = vld [vmem:[%s2436 + $0x18] sm:$0xff]
      %v2440 = vld [vmem:[%s2436 + $0x20] sm:$0xff]
      %v2441 = vld [vmem:[%s2436 + $0x30] sm:$0xff]
      %v2442 = vld [vmem:[%s2436 + $0x38] sm:$0xff]
      %v2443 = vld [vmem:[%s2436 + $0x48] sm:$0xff]
      %v2444 = vld [vmem:[%s2436 + $0x50] sm:$0xff]
      %v2445 = vld [vmem:[%s2436 + $0x60] sm:$0xff]
      %v2446 = vld [vmem:[%s2436 + $0x68] sm:$0xff]
      %v2447 = vld [vmem:[%s2436 + $0x78] sm:$0xff]
      %v2448 = vld [vmem:[%s2436 + $0x80] sm:$0xff]
      %v2449 = vld [vmem:[%s2436 + $0x90] sm:$0xff]
      %v2450 = vld [vmem:[%s2436 + $0x98] sm:$0xff]
      %v2451 = vld [vmem:[%s2436 + $0xa8] sm:$0xff]
      %v2452 = vld [vmem:[%s2436 + $0xb0] sm:$0xff]
      %v2453 = vld [vmem:[%s2436 + $0xc0] sm:$0xff]
      %v2454 = vld [vmem:[%s2436 + $0xc8] sm:$0xff]
      %v2455 = vld [vmem:[%s2436 + $0xd8] sm:$0xff]
      %v2456 = vld [vmem:[%s2436 + $0xe0] sm:$0xff]
      %v2457 = vld [vmem:[%s2436 + $0xf0] sm:$0xff]
      %v2458 = vld [vmem:[%s2436 + $0xf8] sm:$0xff]
      %v2459 = vld [vmem:[%s2436 + $0x108] sm:$0xff]
      %v2460 = vld [vmem:[%s2436 + $0x110] sm:$0xff]
      %v2461 = vld [vmem:[%s2436 + $0x120] sm:$0xff]
      %v2462 = vld [vmem:[%s2436 + $0x128] sm:$0xff]
      %v2463 = vld [vmem:[%s2436 + $0x138] sm:$0xff]
      %v2464 = vld [vmem:[%s2436 + $0x140] sm:$0xff]
      %v2465 = vld [vmem:[%s2436 + $0x150] sm:$0xff]
      %v2466 = vld [vmem:[%s2436 + $0x158] sm:$0xff]
      %v2467 = vld [vmem:[%s2436 + $0x168] sm:$0xff]
      %v2468 = vld [vmem:[%s2436 + $0x170] sm:$0xff]
      %v2469 = vpack.c.bf16 %v2438, %v2437
      %v2470 = vpack.c.bf16 %v2440, %v2439
      %v2471 = vpack.c.bf16 %v2442, %v2441
      %v2472 = vpack.c.bf16 %v2444, %v2443
      %v2473 = vpack.c.bf16 %v2446, %v2445
      %v2474 = vpack.c.bf16 %v2448, %v2447
      %v2475 = vpack.c.bf16 %v2450, %v2449
      %v2476 = vpack.c.bf16 %v2452, %v2451
      %v2477 = vpack.c.bf16 %v2454, %v2453
      %v2478 = vpack.c.bf16 %v2456, %v2455
      %v2479 = vpack.c.bf16 %v2458, %v2457
      %v2480 = vpack.c.bf16 %v2460, %v2459
      %v2481 = vpack.c.bf16 %v2462, %v2461
      %v2482 = vpack.c.bf16 %v2464, %v2463
      %v2483 = vpack.c.bf16 %v2466, %v2465
      %v2484 = vpack.c.bf16 %v2468, %v2467
      %2501 = vrot.lane.b32.xlu0 %v2469, 64
      %v2502 = vpop.permute.xlu0 %2501
      %2503 = vrot.lane.b32.xlu0 %v2470, 64
      %v2504 = vpop.permute.xlu0 %2503
      %2505 = vrot.lane.b32.xlu0 %v2471, 64
      %v2506 = vpop.permute.xlu0 %2505
      %2507 = vrot.lane.b32.xlu0 %v2472, 64
      %v2508 = vpop.permute.xlu0 %2507
      %2509 = vrot.lane.b32.xlu0 %v2473, 64
      %v2510 = vpop.permute.xlu0 %2509
      %2511 = vrot.lane.b32.xlu0 %v2474, 64
      %v2512 = vpop.permute.xlu0 %2511
      %2513 = vrot.lane.b32.xlu0 %v2475, 64
      %v2514 = vpop.permute.xlu0 %2513
      %2515 = vrot.lane.b32.xlu0 %v2476, 64
      %v2516 = vpop.permute.xlu0 %2515
      %2517 = vrot.lane.b32.xlu0 %v2477, 64
      %v2518 = vpop.permute.xlu0 %2517
      %2519 = vrot.lane.b32.xlu0 %v2478, 64
      %v2520 = vpop.permute.xlu0 %2519
      %2521 = vrot.lane.b32.xlu0 %v2479, 64
      %v2522 = vpop.permute.xlu0 %2521
      %2523 = vrot.lane.b32.xlu0 %v2480, 64
      %v2524 = vpop.permute.xlu0 %2523
      %2525 = vrot.lane.b32.xlu0 %v2481, 64
      %v2526 = vpop.permute.xlu0 %2525
      %2527 = vrot.lane.b32.xlu0 %v2482, 64
      %v2528 = vpop.permute.xlu0 %2527
      %2529 = vrot.lane.b32.xlu0 %v2483, 64
      %v2530 = vpop.permute.xlu0 %2529
      %2531 = vrot.lane.b32.xlu0 %v2484, 64
      %v2532 = vpop.permute.xlu0 %2531
      %2549 = vst.msk [vmem:[#allocation4 + $0x8] sm:$0xff] %vm2098, %v2502
      %2550 = vst.msk [vmem:[#allocation4 + $0x20] sm:$0xff] %vm2098, %v2504
      %2551 = vst.msk [vmem:[#allocation4 + $0x38] sm:$0xff] %vm2098, %v2506
      %2552 = vst.msk [vmem:[#allocation4 + $0x50] sm:$0xff] %vm2098, %v2508
      %2553 = vst.msk [vmem:[#allocation4 + $0x68] sm:$0xff] %vm2098, %v2510
      %2554 = vst.msk [vmem:[#allocation4 + $0x80] sm:$0xff] %vm2098, %v2512
      %2555 = vst.msk [vmem:[#allocation4 + $0x98] sm:$0xff] %vm2098, %v2514
      %2556 = vst.msk [vmem:[#allocation4 + $0xb0] sm:$0xff] %vm2098, %v2516
      %2557 = vst.msk [vmem:[#allocation4 + $0xc8] sm:$0xff] %vm2098, %v2518
      %2558 = vst.msk [vmem:[#allocation4 + $0xe0] sm:$0xff] %vm2098, %v2520
      %2559 = vst.msk [vmem:[#allocation4 + $0xf8] sm:$0xff] %vm2098, %v2522
      %2560 = vst.msk [vmem:[#allocation4 + $0x110] sm:$0xff] %vm2098, %v2524
      %2561 = vst.msk [vmem:[#allocation4 + $0x128] sm:$0xff] %vm2098, %v2526
      %2562 = vst.msk [vmem:[#allocation4 + $0x140] sm:$0xff] %vm2098, %v2528
      %2563 = vst.msk [vmem:[#allocation4 + $0x158] sm:$0xff] %vm2098, %v2530
      %2564 = vst.msk [vmem:[#allocation4 + $0x170] sm:$0xff] %vm2098, %v2532
      %v2565 = vld [vmem:[%s2436 + $0x1] sm:$0xff]
      %v2566 = vld [vmem:[%s2436 + $0x9] sm:$0xff]
      %v2567 = vld [vmem:[%s2436 + $0x19] sm:$0xff]
      %v2568 = vld [vmem:[%s2436 + $0x21] sm:$0xff]
      %v2569 = vld [vmem:[%s2436 + $0x31] sm:$0xff]
      %v2570 = vld [vmem:[%s2436 + $0x39] sm:$0xff]
      %v2571 = vld [vmem:[%s2436 + $0x49] sm:$0xff]
      %v2572 = vld [vmem:[%s2436 + $0x51] sm:$0xff]
      %v2573 = vld [vmem:[%s2436 + $0x61] sm:$0xff]
      %v2574 = vld [vmem:[%s2436 + $0x69] sm:$0xff]
      %v2575 = vld [vmem:[%s2436 + $0x79] sm:$0xff]
      %v2576 = vld [vmem:[%s2436 + $0x81] sm:$0xff]
      %v2577 = vld [vmem:[%s2436 + $0x91] sm:$0xff]
      %v2578 = vld [vmem:[%s2436 + $0x99] sm:$0xff]
      %v2579 = vld [vmem:[%s2436 + $0xa9] sm:$0xff]
      %v2580 = vld [vmem:[%s2436 + $0xb1] sm:$0xff]
      %v2581 = vld [vmem:[%s2436 + $0xc1] sm:$0xff]
      %v2582 = vld [vmem:[%s2436 + $0xc9] sm:$0xff]
      %v2583 = vld [vmem:[%s2436 + $0xd9] sm:$0xff]
      %v2584 = vld [vmem:[%s2436 + $0xe1] sm:$0xff]
      %v2585 = vld [vmem:[%s2436 + $0xf1] sm:$0xff]
      %v2586 = vld [vmem:[%s2436 + $0xf9] sm:$0xff]
      %v2587 = vld [vmem:[%s2436 + $0x109] sm:$0xff]
      %v2588 = vld [vmem:[%s2436 + $0x111] sm:$0xff]
      %v2589 = vld [vmem:[%s2436 + $0x121] sm:$0xff]
      %v2590 = vld [vmem:[%s2436 + $0x129] sm:$0xff]
      %v2591 = vld [vmem:[%s2436 + $0x139] sm:$0xff]
      %v2592 = vld [vmem:[%s2436 + $0x141] sm:$0xff]
      %v2593 = vld [vmem:[%s2436 + $0x151] sm:$0xff]
      %v2594 = vld [vmem:[%s2436 + $0x159] sm:$0xff]
      %v2595 = vld [vmem:[%s2436 + $0x169] sm:$0xff]
      %v2596 = vld [vmem:[%s2436 + $0x171] sm:$0xff]
      %v2597 = vpack.c.bf16 %v2566, %v2565
      %v2598 = vpack.c.bf16 %v2568, %v2567
      %v2599 = vpack.c.bf16 %v2570, %v2569
      %v2600 = vpack.c.bf16 %v2572, %v2571
      %v2601 = vpack.c.bf16 %v2574, %v2573
      %v2602 = vpack.c.bf16 %v2576, %v2575
      %v2603 = vpack.c.bf16 %v2578, %v2577
      %v2604 = vpack.c.bf16 %v2580, %v2579
      %v2605 = vpack.c.bf16 %v2582, %v2581
      %v2606 = vpack.c.bf16 %v2584, %v2583
      %v2607 = vpack.c.bf16 %v2586, %v2585
      %v2608 = vpack.c.bf16 %v2588, %v2587
      %v2609 = vpack.c.bf16 %v2590, %v2589
      %v2610 = vpack.c.bf16 %v2592, %v2591
      %v2611 = vpack.c.bf16 %v2594, %v2593
      %v2612 = vpack.c.bf16 %v2596, %v2595
      %2629 = vrot.lane.b32.xlu0 %v2597, 96
      %v2630 = vpop.permute.xlu0 %2629
      %2631 = vrot.lane.b32.xlu0 %v2598, 96
      %v2632 = vpop.permute.xlu0 %2631
      %2633 = vrot.lane.b32.xlu0 %v2599, 96
      %v2634 = vpop.permute.xlu0 %2633
      %2635 = vrot.lane.b32.xlu0 %v2600, 96
      %v2636 = vpop.permute.xlu0 %2635
      %2637 = vrot.lane.b32.xlu0 %v2601, 96
      %v2638 = vpop.permute.xlu0 %2637
      %2639 = vrot.lane.b32.xlu0 %v2602, 96
      %v2640 = vpop.permute.xlu0 %2639
      %2641 = vrot.lane.b32.xlu0 %v2603, 96
      %v2642 = vpop.permute.xlu0 %2641
      %2643 = vrot.lane.b32.xlu0 %v2604, 96
      %v2644 = vpop.permute.xlu0 %2643
      %2645 = vrot.lane.b32.xlu0 %v2605, 96
      %v2646 = vpop.permute.xlu0 %2645
      %2647 = vrot.lane.b32.xlu0 %v2606, 96
      %v2648 = vpop.permute.xlu0 %2647
      %2649 = vrot.lane.b32.xlu0 %v2607, 96
      %v2650 = vpop.permute.xlu0 %2649
      %2651 = vrot.lane.b32.xlu0 %v2608, 96
      %v2652 = vpop.permute.xlu0 %2651
      %2653 = vrot.lane.b32.xlu0 %v2609, 96
      %v2654 = vpop.permute.xlu0 %2653
      %2655 = vrot.lane.b32.xlu0 %v2610, 96
      %v2656 = vpop.permute.xlu0 %2655
      %2657 = vrot.lane.b32.xlu0 %v2611, 96
      %v2658 = vpop.permute.xlu0 %2657
      %2659 = vrot.lane.b32.xlu0 %v2612, 96
      %v2660 = vpop.permute.xlu0 %2659
      %2677 = vst.msk [vmem:[#allocation4 + $0x8] sm:$0xff] %vm2227, %v2630
      %2678 = vst.msk [vmem:[#allocation4 + $0x20] sm:$0xff] %vm2227, %v2632
      %2679 = vst.msk [vmem:[#allocation4 + $0x38] sm:$0xff] %vm2227, %v2634
      %2680 = vst.msk [vmem:[#allocation4 + $0x50] sm:$0xff] %vm2227, %v2636
      %2681 = vst.msk [vmem:[#allocation4 + $0x68] sm:$0xff] %vm2227, %v2638
      %2682 = vst.msk [vmem:[#allocation4 + $0x80] sm:$0xff] %vm2227, %v2640
      %2683 = vst.msk [vmem:[#allocation4 + $0x98] sm:$0xff] %vm2227, %v2642
      %2684 = vst.msk [vmem:[#allocation4 + $0xb0] sm:$0xff] %vm2227, %v2644
      %2685 = vst.msk [vmem:[#allocation4 + $0xc8] sm:$0xff] %vm2227, %v2646
      %2686 = vst.msk [vmem:[#allocation4 + $0xe0] sm:$0xff] %vm2227, %v2648
      %2687 = vst.msk [vmem:[#allocation4 + $0xf8] sm:$0xff] %vm2227, %v2650
      %2688 = vst.msk [vmem:[#allocation4 + $0x110] sm:$0xff] %vm2227, %v2652
      %2689 = vst.msk [vmem:[#allocation4 + $0x128] sm:$0xff] %vm2227, %v2654
      %2690 = vst.msk [vmem:[#allocation4 + $0x140] sm:$0xff] %vm2227, %v2656
      %2691 = vst.msk [vmem:[#allocation4 + $0x158] sm:$0xff] %vm2227, %v2658
      %2692 = vst.msk [vmem:[#allocation4 + $0x170] sm:$0xff] %vm2227, %v2660
      %v2693 = vld [vmem:[%s2436 + $0x2] sm:$0xff]
      %v2694 = vld [vmem:[%s2436 + $0xa] sm:$0xff]
      %v2695 = vld [vmem:[%s2436 + $0x1a] sm:$0xff]
      %v2696 = vld [vmem:[%s2436 + $0x22] sm:$0xff]
      %v2697 = vld [vmem:[%s2436 + $0x32] sm:$0xff]
      %v2698 = vld [vmem:[%s2436 + $0x3a] sm:$0xff]
      %v2699 = vld [vmem:[%s2436 + $0x4a] sm:$0xff]
      %v2700 = vld [vmem:[%s2436 + $0x52] sm:$0xff]
      %v2701 = vld [vmem:[%s2436 + $0x62] sm:$0xff]
      %v2702 = vld [vmem:[%s2436 + $0x6a] sm:$0xff]
      %v2703 = vld [vmem:[%s2436 + $0x7a] sm:$0xff]
      %v2704 = vld [vmem:[%s2436 + $0x82] sm:$0xff]
      %v2705 = vld [vmem:[%s2436 + $0x92] sm:$0xff]
      %v2706 = vld [vmem:[%s2436 + $0x9a] sm:$0xff]
      %v2707 = vld [vmem:[%s2436 + $0xaa] sm:$0xff]
      %v2708 = vld [vmem:[%s2436 + $0xb2] sm:$0xff]
      %v2709 = vld [vmem:[%s2436 + $0xc2] sm:$0xff]
      %v2710 = vld [vmem:[%s2436 + $0xca] sm:$0xff]
      %v2711 = vld [vmem:[%s2436 + $0xda] sm:$0xff]
      %v2712 = vld [vmem:[%s2436 + $0xe2] sm:$0xff]
      %v2713 = vld [vmem:[%s2436 + $0xf2] sm:$0xff]
      %v2714 = vld [vmem:[%s2436 + $0xfa] sm:$0xff]
      %v2715 = vld [vmem:[%s2436 + $0x10a] sm:$0xff]
      %v2716 = vld [vmem:[%s2436 + $0x112] sm:$0xff]
      %v2717 = vld [vmem:[%s2436 + $0x122] sm:$0xff]
      %v2718 = vld [vmem:[%s2436 + $0x12a] sm:$0xff]
      %v2719 = vld [vmem:[%s2436 + $0x13a] sm:$0xff]
      %v2720 = vld [vmem:[%s2436 + $0x142] sm:$0xff]
      %v2721 = vld [vmem:[%s2436 + $0x152] sm:$0xff]
      %v2722 = vld [vmem:[%s2436 + $0x15a] sm:$0xff]
      %v2723 = vld [vmem:[%s2436 + $0x16a] sm:$0xff]
      %v2724 = vld [vmem:[%s2436 + $0x172] sm:$0xff]
      %v2725 = vpack.c.bf16 %v2694, %v2693
      %v2726 = vpack.c.bf16 %v2696, %v2695
      %v2727 = vpack.c.bf16 %v2698, %v2697
      %v2728 = vpack.c.bf16 %v2700, %v2699
      %v2729 = vpack.c.bf16 %v2702, %v2701
      %v2730 = vpack.c.bf16 %v2704, %v2703
      %v2731 = vpack.c.bf16 %v2706, %v2705
      %v2732 = vpack.c.bf16 %v2708, %v2707
      %v2733 = vpack.c.bf16 %v2710, %v2709
      %v2734 = vpack.c.bf16 %v2712, %v2711
      %v2735 = vpack.c.bf16 %v2714, %v2713
      %v2736 = vpack.c.bf16 %v2716, %v2715
      %v2737 = vpack.c.bf16 %v2718, %v2717
      %v2738 = vpack.c.bf16 %v2720, %v2719
      %v2739 = vpack.c.bf16 %v2722, %v2721
      %v2740 = vpack.c.bf16 %v2724, %v2723
      %2741 = vst.msk [vmem:[#allocation4 + $0x10] sm:$0xff] %vm299, %v2725
      %2742 = vst.msk [vmem:[#allocation4 + $0x28] sm:$0xff] %vm299, %v2726
      %2743 = vst.msk [vmem:[#allocation4 + $0x40] sm:$0xff] %vm299, %v2727
      %2744 = vst.msk [vmem:[#allocation4 + $0x58] sm:$0xff] %vm299, %v2728
      %2745 = vst.msk [vmem:[#allocation4 + $0x70] sm:$0xff] %vm299, %v2729
      %2746 = vst.msk [vmem:[#allocation4 + $0x88] sm:$0xff] %vm299, %v2730
      %2747 = vst.msk [vmem:[#allocation4 + $0xa0] sm:$0xff] %vm299, %v2731
      %2748 = vst.msk [vmem:[#allocation4 + $0xb8] sm:$0xff] %vm299, %v2732
      %2749 = vst.msk [vmem:[#allocation4 + $0xd0] sm:$0xff] %vm299, %v2733
      %2750 = vst.msk [vmem:[#allocation4 + $0xe8] sm:$0xff] %vm299, %v2734
      %2751 = vst.msk [vmem:[#allocation4 + $0x100] sm:$0xff] %vm299, %v2735
      %2752 = vst.msk [vmem:[#allocation4 + $0x118] sm:$0xff] %vm299, %v2736
      %2753 = vst.msk [vmem:[#allocation4 + $0x130] sm:$0xff] %vm299, %v2737
      %2754 = vst.msk [vmem:[#allocation4 + $0x148] sm:$0xff] %vm299, %v2738
      %2755 = vst.msk [vmem:[#allocation4 + $0x160] sm:$0xff] %vm299, %v2739
      %2756 = vst.msk [vmem:[#allocation4 + $0x178] sm:$0xff] %vm299, %v2740
      %v2757 = vld [vmem:[#allocation4] sm:$0xff]
      %v2758 = vld [vmem:[#allocation4 + $0x8] sm:$0xff]
      %v2759 = vld [vmem:[#allocation4 + $0x10] sm:$0xff]
      %v2760 = vld [vmem:[#allocation4 + $0x18] sm:$0xff]
      %v2761 = vld [vmem:[#allocation4 + $0x20] sm:$0xff]
      %v2762 = vld [vmem:[#allocation4 + $0x28] sm:$0xff]
      %v2763 = vld [vmem:[#allocation4 + $0x30] sm:$0xff]
      %v2764 = vld [vmem:[#allocation4 + $0x38] sm:$0xff]
      %v2765 = vld [vmem:[#allocation4 + $0x40] sm:$0xff]
      %v2766 = vld [vmem:[#allocation4 + $0x48] sm:$0xff]
      %v2767 = vld [vmem:[#allocation4 + $0x50] sm:$0xff]
      %v2768 = vld [vmem:[#allocation4 + $0x58] sm:$0xff]
      %v2769 = vld [vmem:[#allocation4 + $0x60] sm:$0xff]
      %v2770 = vld [vmem:[#allocation4 + $0x68] sm:$0xff]
      %v2771 = vld [vmem:[#allocation4 + $0x70] sm:$0xff]
      %v2772 = vld [vmem:[#allocation4 + $0x78] sm:$0xff]
      %v2773 = vld [vmem:[#allocation4 + $0x80] sm:$0xff]
      %v2774 = vld [vmem:[#allocation4 + $0x88] sm:$0xff]
      %v2775 = vld [vmem:[#allocation4 + $0x90] sm:$0xff]
      %v2776 = vld [vmem:[#allocation4 + $0x98] sm:$0xff]
      %v2777 = vld [vmem:[#allocation4 + $0xa0] sm:$0xff]
      %v2778 = vld [vmem:[#allocation4 + $0xa8] sm:$0xff]
      %v2779 = vld [vmem:[#allocation4 + $0xb0] sm:$0xff]
      %v2780 = vld [vmem:[#allocation4 + $0xb8] sm:$0xff]
      %v2781 = vld [vmem:[#allocation4 + $0xc0] sm:$0xff]
      %v2782 = vld [vmem:[#allocation4 + $0xc8] sm:$0xff]
      %v2783 = vld [vmem:[#allocation4 + $0xd0] sm:$0xff]
      %v2784 = vld [vmem:[#allocation4 + $0xd8] sm:$0xff]
      %v2785 = vld [vmem:[#allocation4 + $0xe0] sm:$0xff]
      %v2786 = vld [vmem:[#allocation4 + $0xe8] sm:$0xff]
      %v2787 = vld [vmem:[#allocation4 + $0xf0] sm:$0xff]
      %v2788 = vld [vmem:[#allocation4 + $0xf8] sm:$0xff]
      %v2789 = vld [vmem:[#allocation4 + $0x100] sm:$0xff]
      %v2790 = vld [vmem:[#allocation4 + $0x108] sm:$0xff]
      %v2791 = vld [vmem:[#allocation4 + $0x110] sm:$0xff]
      %v2792 = vld [vmem:[#allocation4 + $0x118] sm:$0xff]
      %v2793 = vld [vmem:[#allocation4 + $0x120] sm:$0xff]
      %v2794 = vld [vmem:[#allocation4 + $0x128] sm:$0xff]
      %v2795 = vld [vmem:[#allocation4 + $0x130] sm:$0xff]
      %v2796 = vld [vmem:[#allocation4 + $0x138] sm:$0xff]
      %v2797 = vld [vmem:[#allocation4 + $0x140] sm:$0xff]
      %v2798 = vld [vmem:[#allocation4 + $0x148] sm:$0xff]
      %v2799 = vld [vmem:[#allocation4 + $0x150] sm:$0xff]
      %v2800 = vld [vmem:[#allocation4 + $0x158] sm:$0xff]
      %v2801 = vld [vmem:[#allocation4 + $0x160] sm:$0xff]
      %v2802 = vld [vmem:[#allocation4 + $0x168] sm:$0xff]
      %v2803 = vld [vmem:[#allocation4 + $0x170] sm:$0xff]
      %v2804 = vld [vmem:[#allocation4 + $0x178] sm:$0xff]
      %v2805 = vld [vmem:[%s2] sm:$0xf]
      %v2806 = vld [vmem:[%s2 + $0x4] sm:$0xf]
      %v2807 = vld [vmem:[%s2 + $0x8] sm:$0xf]
      %v2808 = vld [vmem:[%s2 + $0xc] sm:$0xf]
      %v2809 = vld [vmem:[%s2 + $0x10] sm:$0xf]
      %v2810 = vld [vmem:[%s2 + $0x14] sm:$0xf]
      %v2811 = vld [vmem:[%s2 + $0x18] sm:$0xf]
      %v2812 = vld [vmem:[%s2 + $0x1c] sm:$0xf]
      %v2813 = vld [vmem:[%s2 + $0x20] sm:$0xf]
      %v2814 = vld [vmem:[%s2 + $0x24] sm:$0xf]
      %v2815 = vld [vmem:[%s2 + $0x28] sm:$0xf]
      %v2816 = vld [vmem:[%s2 + $0x2c] sm:$0xf]
      %v2817 = vld [vmem:[%s2 + $0x30] sm:$0xf]
      %v2818 = vld [vmem:[%s2 + $0x34] sm:$0xf]
      %v2819 = vld [vmem:[%s2 + $0x38] sm:$0xf]
      %v2820 = vld [vmem:[%s2 + $0x3c] sm:$0xf]
      %v2821 = vld [vmem:[%s2 + $0x40] sm:$0xf]
      %v2822 = vld [vmem:[%s2 + $0x44] sm:$0xf]
      %v2823 = vld [vmem:[%s2 + $0x48] sm:$0xf]
      %v2824 = vld [vmem:[%s2 + $0x4c] sm:$0xf]
      %v2825 = vld [vmem:[%s2 + $0x50] sm:$0xf]
      %v2826 = vld [vmem:[%s2 + $0x54] sm:$0xf]
      %v2827 = vld [vmem:[%s2 + $0x58] sm:$0xf]
      %v2828 = vld [vmem:[%s2 + $0x5c] sm:$0xf]
      %v2829 = vld [vmem:[%s2 + $0x60] sm:$0xf]
      %v2830 = vld [vmem:[%s2 + $0x64] sm:$0xf]
      %v2831 = vld [vmem:[%s2 + $0x68] sm:$0xf]
      %v2832 = vld [vmem:[%s2 + $0x6c] sm:$0xf]
      %v2833 = vld [vmem:[%s2 + $0x70] sm:$0xf]
      %v2834 = vld [vmem:[%s2 + $0x74] sm:$0xf]
      %v2835 = vld [vmem:[%s2 + $0x78] sm:$0xf]
      %v2836 = vld [vmem:[%s2 + $0x7c] sm:$0xf]
      %v2837 = vld [vmem:[%s2 + $0x80] sm:$0xf]
      %v2838 = vld [vmem:[%s2 + $0x84] sm:$0xf]
      %v2839 = vld [vmem:[%s2 + $0x88] sm:$0xf]
      %v2840 = vld [vmem:[%s2 + $0x8c] sm:$0xf]
      %v2841 = vld [vmem:[%s4 + $0x1] sm:$0x1]
      %v2842 = vlaneseq
      %v2843 = vshrl.u32 %v2842, 7
      %v2844 = vsub.s32 0, %v2843
      %v2845 = vrot.slane %v2841, %v2844
      %v2882 = vunpack.c.l.b16 %v2805
      %v2883 = vunpack.c.l.b16 %v2806
      %v2884 = vunpack.c.l.b16 %v2807
      %v2885 = vunpack.c.l.b16 %v2808
      %v2886 = vunpack.c.l.b16 %v2809
      %v2887 = vunpack.c.l.b16 %v2810
      %v2888 = vunpack.c.l.b16 %v2811
      %v2889 = vunpack.c.l.b16 %v2812
      %v2890 = vunpack.c.l.b16 %v2813
      %v2891 = vunpack.c.l.b16 %v2814
      %v2892 = vunpack.c.l.b16 %v2815
      %v2893 = vunpack.c.l.b16 %v2816
      %v2894 = vunpack.c.l.b16 %v2817
      %v2895 = vunpack.c.l.b16 %v2818
      %v2896 = vunpack.c.l.b16 %v2819
      %v2897 = vunpack.c.l.b16 %v2820
      %v2898 = vunpack.c.l.b16 %v2821
      %v2899 = vunpack.c.l.b16 %v2822
      %v2900 = vunpack.c.l.b16 %v2823
      %v2901 = vunpack.c.l.b16 %v2824
      %v2902 = vunpack.c.l.b16 %v2825
      %v2903 = vunpack.c.l.b16 %v2826
      %v2904 = vunpack.c.l.b16 %v2827
      %v2905 = vunpack.c.l.b16 %v2828
      %v2906 = vunpack.c.l.b16 %v2829
      %v2907 = vunpack.c.l.b16 %v2830
      %v2908 = vunpack.c.l.b16 %v2831
      %v2909 = vunpack.c.l.b16 %v2832
      %v2910 = vunpack.c.l.b16 %v2833
      %v2911 = vunpack.c.l.b16 %v2834
      %v2912 = vunpack.c.l.b16 %v2835
      %v2913 = vunpack.c.l.b16 %v2836
      %v2914 = vunpack.c.l.b16 %v2837
      %v2915 = vunpack.c.l.b16 %v2838
      %v2916 = vunpack.c.l.b16 %v2839
      %v2917 = vunpack.c.l.b16 %v2840
      %v2918 = vpack.c.b16 %v2883, %v2882
      %v2919 = vpack.c.b16 %v2885, %v2884
      %v2920 = vpack.c.b16 %v2887, %v2886
      %v2921 = vpack.c.b16 %v2889, %v2888
      %v2922 = vpack.c.b16 %v2891, %v2890
      %v2923 = vpack.c.b16 %v2893, %v2892
      %v2924 = vpack.c.b16 %v2895, %v2894
      %v2925 = vpack.c.b16 %v2897, %v2896
      %v2926 = vpack.c.b16 %v2899, %v2898
      %v2927 = vpack.c.b16 %v2901, %v2900
      %v2928 = vpack.c.b16 %v2903, %v2902
      %v2929 = vpack.c.b16 %v2905, %v2904
      %v2930 = vpack.c.b16 %v2907, %v2906
      %v2931 = vpack.c.b16 %v2909, %v2908
      %v2932 = vpack.c.b16 %v2911, %v2910
      %v2933 = vpack.c.b16 %v2913, %v2912
      %v2934 = vpack.c.b16 %v2915, %v2914
      %v2935 = vpack.c.b16 %v2917, %v2916
      %v2955 = vsel %vm299, %v2759, 0
      %v2958 = vsel %vm299, %v2762, 0
      %v2961 = vsel %vm299, %v2765, 0
      %v2964 = vsel %vm299, %v2768, 0
      %v2967 = vsel %vm299, %v2771, 0
      %v2970 = vsel %vm299, %v2774, 0
      %v2973 = vsel %vm299, %v2777, 0
      %v2976 = vsel %vm299, %v2780, 0
      %v2979 = vsel %vm299, %v2783, 0
      %v2982 = vsel %vm299, %v2786, 0
      %v2985 = vsel %vm299, %v2789, 0
      %v2988 = vsel %vm299, %v2792, 0
      %v2991 = vsel %vm299, %v2795, 0
      %v2994 = vsel %vm299, %v2798, 0
      %v2997 = vsel %vm299, %v2801, 0
      %v3000 = vsel %vm299, %v2804, 0
      %3002 = vmatprep.subr.bf16.mxu0 0
      %3003 = vmatpush1.bf16.msra.mxu0 %v2918
      %3004 = vmatprep.subr.bf16.mxu0 0
      %3005 = vmatpush1.bf16.msra.mxu0 %v2919
      %3006 = vmatprep.subr.bf16.mxu0 0
      %3007 = vmatpush1.bf16.msra.mxu0 %v2920
      %3008 = vmatprep.subr.bf16.mxu0 0
      %3009 = vmatpush1.bf16.msra.mxu0 %v2921
      %3010 = vmatprep.subr.bf16.mxu0 0
      %3011 = vmatpush1.bf16.msra.mxu0 %v2922
      %3012 = vmatprep.subr.bf16.mxu0 0
      %3013 = vmatpush1.bf16.msra.mxu0 %v2923
      %3014 = vmatprep.subr.bf16.mxu0 0
      %3015 = vmatpush1.bf16.msra.mxu0 %v2924
      %3016 = vmatprep.subr.bf16.mxu0 0
      %3017 = vmatpush1.bf16.msra.mxu0 %v2925
      %3018 = vmatprep.subr.bf16.mxu0 0
      %3019 = vmatpush1.bf16.msra.mxu0 %v2926
      %3020 = vmatprep.subr.bf16.mxu0 0
      %3021 = vmatpush1.bf16.msra.mxu0 %v2927
      %3022 = vmatprep.subr.bf16.mxu0 0
      %3023 = vmatpush1.bf16.msra.mxu0 %v2928
      %3024 = vmatprep.subr.bf16.mxu0 0
      %3025 = vmatpush1.bf16.msra.mxu0 %v2929
      %3026 = vmatprep.subr.bf16.mxu0 0
      %3027 = vmatpush1.bf16.msra.mxu0 %v2930
      %3028 = vmatprep.subr.bf16.mxu0 0
      %3029 = vmatpush1.bf16.msra.mxu0 %v2931
      %3030 = vmatprep.subr.bf16.mxu0 0
      %3031 = vmatpush1.bf16.msra.mxu0 %v2932
      %3032 = vmatprep.subr.bf16.mxu0 0
      %3033 = vmatpush1.bf16.msra.mxu0 %v2933
      %3034 = vmatprep.mubr.bf16.mxu0 %v2758
      %3035 = vmatmul.mubr.bf16.gmra.mrb[0].mxu0 %v2757
      %v3036 = vpop.f32.mrb[0].mxu0
      %v3037 = vadd.f32 %v2845, %v3036
      %v3038 = vpop.f32.mrb[0].mxu0
      %v3039 = vpop.f32.mrb[0].mxu0
      %v3040 = vadd.f32 %v2845, %v3039
      %v3041 = vpop.f32.mrb[0].mxu0
      %3042 = vmatprep.mubr.bf16.mxu0 %v2761
      %3043 = vmatmul.mubr.bf16.gmra.mrb[0].mxu0 %v2760
      %v3044 = vpop.f32.mrb[0].mxu0
      %v3045 = vadd.f32 %v2845, %v3044
      %v3046 = vpop.f32.mrb[0].mxu0
      %v3047 = vpop.f32.mrb[0].mxu0
      %v3048 = vadd.f32 %v2845, %v3047
      %v3049 = vpop.f32.mrb[0].mxu0
      %3050 = vmatprep.mubr.bf16.mxu0 %v2764
      %3051 = vmatmul.mubr.bf16.gmra.mrb[0].mxu0 %v2763
      %v3052 = vpop.f32.mrb[0].mxu0
      %v3053 = vadd.f32 %v2845, %v3052
      %v3054 = vpop.f32.mrb[0].mxu0
      %v3055 = vpop.f32.mrb[0].mxu0
      %v3056 = vadd.f32 %v2845, %v3055
      %v3057 = vpop.f32.mrb[0].mxu0
      %3058 = vmatprep.mubr.bf16.mxu0 %v2767
      %3059 = vmatmul.mubr.bf16.gmra.mrb[0].mxu0 %v2766
      %v3060 = vpop.f32.mrb[0].mxu0
      %v3061 = vadd.f32 %v2845, %v3060
      %v3062 = vpop.f32.mrb[0].mxu0
      %v3063 = vpop.f32.mrb[0].mxu0
      %v3064 = vadd.f32 %v2845, %v3063
      %v3065 = vpop.f32.mrb[0].mxu0
      %3066 = vmatprep.mubr.bf16.mxu0 %v2770
      %3067 = vmatmul.mubr.bf16.gmra.mrb[0].mxu0 %v2769
      %v3068 = vpop.f32.mrb[0].mxu0
      %v3069 = vadd.f32 %v2845, %v3068
      %v3070 = vpop.f32.mrb[0].mxu0
      %v3071 = vpop.f32.mrb[0].mxu0
      %v3072 = vadd.f32 %v2845, %v3071
      %v3073 = vpop.f32.mrb[0].mxu0
      %3074 = vmatprep.mubr.bf16.mxu0 %v2773
      %3075 = vmatmul.mubr.bf16.gmra.mrb[0].mxu0 %v2772
      %v3076 = vpop.f32.mrb[0].mxu0
      %v3077 = vadd.f32 %v2845, %v3076
      %v3078 = vpop.f32.mrb[0].mxu0
      %v3079 = vpop.f32.mrb[0].mxu0
      %v3080 = vadd.f32 %v2845, %v3079
      %v3081 = vpop.f32.mrb[0].mxu0
      %3082 = vmatprep.mubr.bf16.mxu0 %v2776
      %3083 = vmatmul.mubr.bf16.gmra.mrb[0].mxu0 %v2775
      %v3084 = vpop.f32.mrb[0].mxu0
      %v3085 = vadd.f32 %v2845, %v3084
      %v3086 = vpop.f32.mrb[0].mxu0
      %v3087 = vpop.f32.mrb[0].mxu0
      %v3088 = vadd.f32 %v2845, %v3087
      %v3089 = vpop.f32.mrb[0].mxu0
      %3090 = vmatprep.mubr.bf16.mxu0 %v2779
      %3091 = vmatmul.mubr.bf16.gmra.mrb[0].mxu0 %v2778
      %v3092 = vpop.f32.mrb[0].mxu0
      %v3093 = vadd.f32 %v2845, %v3092
      %v3094 = vpop.f32.mrb[0].mxu0
      %v3095 = vpop.f32.mrb[0].mxu0
      %v3096 = vadd.f32 %v2845, %v3095
      %v3097 = vpop.f32.mrb[0].mxu0
      %3098 = vmatprep.mubr.bf16.mxu0 %v2782
      %3099 = vmatmul.mubr.bf16.gmra.mrb[0].mxu0 %v2781
      %v3100 = vpop.f32.mrb[0].mxu0
      %v3101 = vadd.f32 %v2845, %v3100
      %v3102 = vpop.f32.mrb[0].mxu0
      %v3103 = vpop.f32.mrb[0].mxu0
      %v3104 = vadd.f32 %v2845, %v3103
      %v3105 = vpop.f32.mrb[0].mxu0
      %3106 = vmatprep.mubr.bf16.mxu0 %v2785
      %3107 = vmatmul.mubr.bf16.gmra.mrb[0].mxu0 %v2784
      %v3108 = vpop.f32.mrb[0].mxu0
      %v3109 = vadd.f32 %v2845, %v3108
      %v3110 = vpop.f32.mrb[0].mxu0
      %v3111 = vpop.f32.mrb[0].mxu0
      %v3112 = vadd.f32 %v2845, %v3111
      %v3113 = vpop.f32.mrb[0].mxu0
      %3114 = vmatprep.mubr.bf16.mxu0 %v2788
      %3115 = vmatmul.mubr.bf16.gmra.mrb[0].mxu0 %v2787
      %v3116 = vpop.f32.mrb[0].mxu0
      %v3117 = vadd.f32 %v2845, %v3116
      %v3118 = vpop.f32.mrb[0].mxu0
      %v3119 = vpop.f32.mrb[0].mxu0
      %v3120 = vadd.f32 %v2845, %v3119
      %v3121 = vpop.f32.mrb[0].mxu0
      %3122 = vmatprep.mubr.bf16.mxu0 %v2791
      %3123 = vmatmul.mubr.bf16.gmra.mrb[0].mxu0 %v2790
      %v3124 = vpop.f32.mrb[0].mxu0
      %v3125 = vadd.f32 %v2845, %v3124
      %v3126 = vpop.f32.mrb[0].mxu0
      %v3127 = vpop.f32.mrb[0].mxu0
      %v3128 = vadd.f32 %v2845, %v3127
      %v3129 = vpop.f32.mrb[0].mxu0
      %3130 = vmatprep.mubr.bf16.mxu0 %v2794
      %3131 = vmatmul.mubr.bf16.gmra.mrb[0].mxu0 %v2793
      %v3132 = vpop.f32.mrb[0].mxu0
      %v3133 = vadd.f32 %v2845, %v3132
      %v3134 = vpop.f32.mrb[0].mxu0
      %v3135 = vpop.f32.mrb[0].mxu0
      %v3136 = vadd.f32 %v2845, %v3135
      %v3137 = vpop.f32.mrb[0].mxu0
      %3138 = vmatprep.mubr.bf16.mxu0 %v2797
      %3139 = vmatmul.mubr.bf16.gmra.mrb[0].mxu0 %v2796
      %v3140 = vpop.f32.mrb[0].mxu0
      %v3141 = vadd.f32 %v2845, %v3140
      %v3142 = vpop.f32.mrb[0].mxu0
      %v3143 = vpop.f32.mrb[0].mxu0
      %v3144 = vadd.f32 %v2845, %v3143
      %v3145 = vpop.f32.mrb[0].mxu0
      %3146 = vmatprep.mubr.bf16.mxu0 %v2800
      %3147 = vmatmul.mubr.bf16.gmra.mrb[0].mxu0 %v2799
      %v3148 = vpop.f32.mrb[0].mxu0
      %v3149 = vadd.f32 %v2845, %v3148
      %v3150 = vpop.f32.mrb[0].mxu0
      %v3151 = vpop.f32.mrb[0].mxu0
      %v3152 = vadd.f32 %v2845, %v3151
      %v3153 = vpop.f32.mrb[0].mxu0
      %3154 = vmatprep.mubr.bf16.mxu0 %v2803
      %3155 = vmatmul.mubr.bf16.gmra.mrb[0].mxu0 %v2802
      %v3156 = vpop.f32.mrb[0].mxu0
      %v3157 = vadd.f32 %v2845, %v3156
      %v3158 = vpop.f32.mrb[0].mxu0
      %v3159 = vpop.f32.mrb[0].mxu0
      %v3160 = vadd.f32 %v2845, %v3159
      %v3161 = vpop.f32.mrb[0].mxu0
      %3162 = vdwg.mxu0
      %3163 = vmatprep.subr.bf16.mxu0 0
      %3164 = vmatpush1.bf16.msra.mxu0 %v2934
      %3165 = vmatprep.subr.bf16.mxu0 0
      %3166 = vmatpush1.bf16.msra.mxu0 %v2935
      %3167 = vmatprep.subr.bf16.mxu0 0
      %3168 = vmatpush1.bf16.msra.mxu0 0
      %3169 = vmatprep.subr.bf16.mxu0 0
      %3170 = vmatpush1.bf16.msra.mxu0 0
      %3171 = vmatprep.subr.bf16.mxu0 0
      %3172 = vmatpush1.bf16.msra.mxu0 0
      %3173 = vmatprep.subr.bf16.mxu0 0
      %3174 = vmatpush1.bf16.msra.mxu0 0
      %3175 = vmatprep.subr.bf16.mxu0 0
      %3176 = vmatpush1.bf16.msra.mxu0 0
      %3177 = vmatprep.subr.bf16.mxu0 0
      %3178 = vmatpush1.bf16.msra.mxu0 0
      %3179 = vmatprep.subr.bf16.mxu0 0
      %3180 = vmatpush1.bf16.msra.mxu0 0
      %3181 = vmatprep.subr.bf16.mxu0 0
      %3182 = vmatpush1.bf16.msra.mxu0 0
      %3183 = vmatprep.subr.bf16.mxu0 0
      %3184 = vmatpush1.bf16.msra.mxu0 0
      %3185 = vmatprep.subr.bf16.mxu0 0
      %3186 = vmatpush1.bf16.msra.mxu0 0
      %3187 = vmatprep.subr.bf16.mxu0 0
      %3188 = vmatpush1.bf16.msra.mxu0 0
      %3189 = vmatprep.subr.bf16.mxu0 0
      %3190 = vmatpush1.bf16.msra.mxu0 0
      %3191 = vmatprep.subr.bf16.mxu0 0
      %3192 = vmatpush1.bf16.msra.mxu0 0
      %3193 = vmatprep.subr.bf16.mxu0 0
      %3194 = vmatpush1.bf16.msra.mxu0 0
      %3195 = vmatprep.mubr.bf16.mxu0 0
      %3196 = vmatmul.mubr.bf16.gmra.mrb[0].mxu0 %v2955
      %v3197 = vpop.f32.mrb[0].mxu0
      %v3198 = vadd.f32 %v3037, %v3197
      %v3199 = vpop.f32.mrb[0].mxu0
      %v3200 = vpop.f32.mrb[0].mxu0
      %v3201 = vadd.f32 %v3040, %v3200
      %v3202 = vpop.f32.mrb[0].mxu0
      %3203 = vmatprep.mubr.bf16.mxu0 0
      %3204 = vmatmul.mubr.bf16.gmra.mrb[0].mxu0 %v2958
      %v3205 = vpop.f32.mrb[0].mxu0
      %v3206 = vadd.f32 %v3045, %v3205
      %v3207 = vpop.f32.mrb[0].mxu0
      %v3208 = vpop.f32.mrb[0].mxu0
      %v3209 = vadd.f32 %v3048, %v3208
      %v3210 = vpop.f32.mrb[0].mxu0
      %3211 = vmatprep.mubr.bf16.mxu0 0
      %3212 = vmatmul.mubr.bf16.gmra.mrb[0].mxu0 %v2961
      %v3213 = vpop.f32.mrb[0].mxu0
      %v3214 = vadd.f32 %v3053, %v3213
      %v3215 = vpop.f32.mrb[0].mxu0
      %v3216 = vpop.f32.mrb[0].mxu0
      %v3217 = vadd.f32 %v3056, %v3216
      %v3218 = vpop.f32.mrb[0].mxu0
      %3219 = vmatprep.mubr.bf16.mxu0 0
      %3220 = vmatmul.mubr.bf16.gmra.mrb[0].mxu0 %v2964
      %v3221 = vpop.f32.mrb[0].mxu0
      %v3222 = vadd.f32 %v3061, %v3221
      %v3223 = vpop.f32.mrb[0].mxu0
      %v3224 = vpop.f32.mrb[0].mxu0
      %v3225 = vadd.f32 %v3064, %v3224
      %v3226 = vpop.f32.mrb[0].mxu0
      %3227 = vmatprep.mubr.bf16.mxu0 0
      %3228 = vmatmul.mubr.bf16.gmra.mrb[0].mxu0 %v2967
      %v3229 = vpop.f32.mrb[0].mxu0
      %v3230 = vadd.f32 %v3069, %v3229
      %v3231 = vpop.f32.mrb[0].mxu0
      %v3232 = vpop.f32.mrb[0].mxu0
      %v3233 = vadd.f32 %v3072, %v3232
      %v3234 = vpop.f32.mrb[0].mxu0
      %3235 = vmatprep.mubr.bf16.mxu0 0
      %3236 = vmatmul.mubr.bf16.gmra.mrb[0].mxu0 %v2970
      %v3237 = vpop.f32.mrb[0].mxu0
      %v3238 = vadd.f32 %v3077, %v3237
      %v3239 = vpop.f32.mrb[0].mxu0
      %v3240 = vpop.f32.mrb[0].mxu0
      %v3241 = vadd.f32 %v3080, %v3240
      %v3242 = vpop.f32.mrb[0].mxu0
      %3243 = vmatprep.mubr.bf16.mxu0 0
      %3244 = vmatmul.mubr.bf16.gmra.mrb[0].mxu0 %v2973
      %v3245 = vpop.f32.mrb[0].mxu0
      %v3246 = vadd.f32 %v3085, %v3245
      %v3247 = vpop.f32.mrb[0].mxu0
      %v3248 = vpop.f32.mrb[0].mxu0
      %v3249 = vadd.f32 %v3088, %v3248
      %v3250 = vpop.f32.mrb[0].mxu0
      %3251 = vmatprep.mubr.bf16.mxu0 0
      %3252 = vmatmul.mubr.bf16.gmra.mrb[0].mxu0 %v2976
      %v3253 = vpop.f32.mrb[0].mxu0
      %v3254 = vadd.f32 %v3093, %v3253
      %v3255 = vpop.f32.mrb[0].mxu0
      %v3256 = vpop.f32.mrb[0].mxu0
      %v3257 = vadd.f32 %v3096, %v3256
      %v3258 = vpop.f32.mrb[0].mxu0
      %3259 = vmatprep.mubr.bf16.mxu0 0
      %3260 = vmatmul.mubr.bf16.gmra.mrb[0].mxu0 %v2979
      %v3261 = vpop.f32.mrb[0].mxu0
      %v3262 = vadd.f32 %v3101, %v3261
      %v3263 = vpop.f32.mrb[0].mxu0
      %v3264 = vpop.f32.mrb[0].mxu0
      %v3265 = vadd.f32 %v3104, %v3264
      %v3266 = vpop.f32.mrb[0].mxu0
      %3267 = vmatprep.mubr.bf16.mxu0 0
      %3268 = vmatmul.mubr.bf16.gmra.mrb[0].mxu0 %v2982
      %v3269 = vpop.f32.mrb[0].mxu0
      %v3270 = vadd.f32 %v3109, %v3269
      %v3271 = vpop.f32.mrb[0].mxu0
      %v3272 = vpop.f32.mrb[0].mxu0
      %v3273 = vadd.f32 %v3112, %v3272
      %v3274 = vpop.f32.mrb[0].mxu0
      %3275 = vmatprep.mubr.bf16.mxu0 0
      %3276 = vmatmul.mubr.bf16.gmra.mrb[0].mxu0 %v2985
      %v3277 = vpop.f32.mrb[0].mxu0
      %v3278 = vadd.f32 %v3117, %v3277
      %v3279 = vpop.f32.mrb[0].mxu0
      %v3280 = vpop.f32.mrb[0].mxu0
      %v3281 = vadd.f32 %v3120, %v3280
      %v3282 = vpop.f32.mrb[0].mxu0
      %3283 = vmatprep.mubr.bf16.mxu0 0
      %3284 = vmatmul.mubr.bf16.gmra.mrb[0].mxu0 %v2988
      %v3285 = vpop.f32.mrb[0].mxu0
      %v3286 = vadd.f32 %v3125, %v3285
      %v3287 = vpop.f32.mrb[0].mxu0
      %v3288 = vpop.f32.mrb[0].mxu0
      %v3289 = vadd.f32 %v3128, %v3288
      %v3290 = vpop.f32.mrb[0].mxu0
      %3291 = vmatprep.mubr.bf16.mxu0 0
      %3292 = vmatmul.mubr.bf16.gmra.mrb[0].mxu0 %v2991
      %v3293 = vpop.f32.mrb[0].mxu0
      %v3294 = vadd.f32 %v3133, %v3293
      %v3295 = vpop.f32.mrb[0].mxu0
      %v3296 = vpop.f32.mrb[0].mxu0
      %v3297 = vadd.f32 %v3136, %v3296
      %v3298 = vpop.f32.mrb[0].mxu0
      %3299 = vmatprep.mubr.bf16.mxu0 0
      %3300 = vmatmul.mubr.bf16.gmra.mrb[0].mxu0 %v2994
      %v3301 = vpop.f32.mrb[0].mxu0
      %v3302 = vadd.f32 %v3141, %v3301
      %v3303 = vpop.f32.mrb[0].mxu0
      %v3304 = vpop.f32.mrb[0].mxu0
      %v3305 = vadd.f32 %v3144, %v3304
      %v3306 = vpop.f32.mrb[0].mxu0
      %3307 = vmatprep.mubr.bf16.mxu0 0
      %3308 = vmatmul.mubr.bf16.gmra.mrb[0].mxu0 %v2997
      %v3309 = vpop.f32.mrb[0].mxu0
      %v3310 = vadd.f32 %v3149, %v3309
      %v3311 = vpop.f32.mrb[0].mxu0
      %v3312 = vpop.f32.mrb[0].mxu0
      %v3313 = vadd.f32 %v3152, %v3312
      %v3314 = vpop.f32.mrb[0].mxu0
      %3315 = vmatprep.mubr.bf16.mxu0 0
      %3316 = vmatmul.mubr.bf16.gmra.mrb[0].mxu0 %v3000
      %v3317 = vpop.f32.mrb[0].mxu0
      %v3318 = vadd.f32 %v3157, %v3317
      %v3319 = vpop.f32.mrb[0].mxu0
      %v3320 = vpop.f32.mrb[0].mxu0
      %v3321 = vadd.f32 %v3160, %v3320
      %v3322 = vpop.f32.mrb[0].mxu0
      %3323 = vdwg.mxu0
      %v3324 = vmax.f32 %v3198, 0.0
      %v3325 = vmax.f32 %v3201, 0.0
      %v3326 = vmax.f32 %v3206, 0.0
      %v3327 = vmax.f32 %v3209, 0.0
      %v3328 = vmax.f32 %v3214, 0.0
      %v3329 = vmax.f32 %v3217, 0.0
      %v3330 = vmax.f32 %v3222, 0.0
      %v3331 = vmax.f32 %v3225, 0.0
      %v3332 = vmax.f32 %v3230, 0.0
      %v3333 = vmax.f32 %v3233, 0.0
      %v3334 = vmax.f32 %v3238, 0.0
      %v3335 = vmax.f32 %v3241, 0.0
      %v3336 = vmax.f32 %v3246, 0.0
      %v3337 = vmax.f32 %v3249, 0.0
      %v3338 = vmax.f32 %v3254, 0.0
      %v3339 = vmax.f32 %v3257, 0.0
      %v3340 = vmax.f32 %v3262, 0.0
      %v3341 = vmax.f32 %v3265, 0.0
      %v3342 = vmax.f32 %v3270, 0.0
      %v3343 = vmax.f32 %v3273, 0.0
      %v3344 = vmax.f32 %v3278, 0.0
      %v3345 = vmax.f32 %v3281, 0.0
      %v3346 = vmax.f32 %v3286, 0.0
      %v3347 = vmax.f32 %v3289, 0.0
      %v3348 = vmax.f32 %v3294, 0.0
      %v3349 = vmax.f32 %v3297, 0.0
      %v3350 = vmax.f32 %v3302, 0.0
      %v3351 = vmax.f32 %v3305, 0.0
      %v3352 = vmax.f32 %v3310, 0.0
      %v3353 = vmax.f32 %v3313, 0.0
      %v3354 = vmax.f32 %v3318, 0.0
      %v3355 = vmax.f32 %v3321, 0.0
      %3356 = vst.msk [vmem:[%s1760 + $0x1] sm:$0xff] %vm299, %v3324
      %3357 = vst.msk [vmem:[%s1760 + $0x9] sm:$0xff] %vm299, %v3325
      %3358 = vst.msk [vmem:[%s1760 + $0x19] sm:$0xff] %vm299, %v3326
      %3359 = vst.msk [vmem:[%s1760 + $0x21] sm:$0xff] %vm299, %v3327
      %3360 = vst.msk [vmem:[%s1760 + $0x31] sm:$0xff] %vm299, %v3328
      %3361 = vst.msk [vmem:[%s1760 + $0x39] sm:$0xff] %vm299, %v3329
      %3362 = vst.msk [vmem:[%s1760 + $0x49] sm:$0xff] %vm299, %v3330
      %3363 = vst.msk [vmem:[%s1760 + $0x51] sm:$0xff] %vm299, %v3331
      %3364 = vst.msk [vmem:[%s1760 + $0x61] sm:$0xff] %vm299, %v3332
      %3365 = vst.msk [vmem:[%s1760 + $0x69] sm:$0xff] %vm299, %v3333
      %3366 = vst.msk [vmem:[%s1760 + $0x79] sm:$0xff] %vm299, %v3334
      %3367 = vst.msk [vmem:[%s1760 + $0x81] sm:$0xff] %vm299, %v3335
      %3368 = vst.msk [vmem:[%s1760 + $0x91] sm:$0xff] %vm299, %v3336
      %3369 = vst.msk [vmem:[%s1760 + $0x99] sm:$0xff] %vm299, %v3337
      %3370 = vst.msk [vmem:[%s1760 + $0xa9] sm:$0xff] %vm299, %v3338
      %3371 = vst.msk [vmem:[%s1760 + $0xb1] sm:$0xff] %vm299, %v3339
      %3372 = vst.msk [vmem:[%s1760 + $0xc1] sm:$0xff] %vm299, %v3340
      %3373 = vst.msk [vmem:[%s1760 + $0xc9] sm:$0xff] %vm299, %v3341
      %3374 = vst.msk [vmem:[%s1760 + $0xd9] sm:$0xff] %vm299, %v3342
      %3375 = vst.msk [vmem:[%s1760 + $0xe1] sm:$0xff] %vm299, %v3343
      %3376 = vst.msk [vmem:[%s1760 + $0xf1] sm:$0xff] %vm299, %v3344
      %3377 = vst.msk [vmem:[%s1760 + $0xf9] sm:$0xff] %vm299, %v3345
      %3378 = vst.msk [vmem:[%s1760 + $0x109] sm:$0xff] %vm299, %v3346
      %3379 = vst.msk [vmem:[%s1760 + $0x111] sm:$0xff] %vm299, %v3347
      %3380 = vst.msk [vmem:[%s1760 + $0x121] sm:$0xff] %vm299, %v3348
      %3381 = vst.msk [vmem:[%s1760 + $0x129] sm:$0xff] %vm299, %v3349
      %3382 = vst.msk [vmem:[%s1760 + $0x139] sm:$0xff] %vm299, %v3350
      %3383 = vst.msk [vmem:[%s1760 + $0x141] sm:$0xff] %vm299, %v3351
      %3384 = vst.msk [vmem:[%s1760 + $0x151] sm:$0xff] %vm299, %v3352
      %3385 = vst.msk [vmem:[%s1760 + $0x159] sm:$0xff] %vm299, %v3353
      %3386 = vst.msk [vmem:[%s1760 + $0x169] sm:$0xff] %vm299, %v3354
      %3387 = vst.msk [vmem:[%s1760 + $0x171] sm:$0xff] %vm299, %v3355
      %v3388 = vld [vmem:[#allocation3] sm:$0xff]
      %v3389 = vld [vmem:[#allocation3 + $0x8] sm:$0xff]
      %v3390 = vld [vmem:[#allocation3 + $0x18] sm:$0xff]
      %v3391 = vld [vmem:[#allocation3 + $0x20] sm:$0xff]
      %v3392 = vld [vmem:[#allocation3 + $0x30] sm:$0xff]
      %v3393 = vld [vmem:[#allocation3 + $0x38] sm:$0xff]
      %v3394 = vld [vmem:[#allocation3 + $0x48] sm:$0xff]
      %v3395 = vld [vmem:[#allocation3 + $0x50] sm:$0xff]
      %v3396 = vld [vmem:[#allocation3 + $0x60] sm:$0xff]
      %v3397 = vld [vmem:[#allocation3 + $0x68] sm:$0xff]
      %v3398 = vld [vmem:[#allocation3 + $0x78] sm:$0xff]
      %v3399 = vld [vmem:[#allocation3 + $0x80] sm:$0xff]
      %v3400 = vld [vmem:[#allocation3 + $0x90] sm:$0xff]
      %v3401 = vld [vmem:[#allocation3 + $0x98] sm:$0xff]
      %v3402 = vld [vmem:[#allocation3 + $0xa8] sm:$0xff]
      %v3403 = vld [vmem:[#allocation3 + $0xb0] sm:$0xff]
      %v3404 = vld [vmem:[#allocation3 + $0xc0] sm:$0xff]
      %v3405 = vld [vmem:[#allocation3 + $0xc8] sm:$0xff]
      %v3406 = vld [vmem:[#allocation3 + $0xd8] sm:$0xff]
      %v3407 = vld [vmem:[#allocation3 + $0xe0] sm:$0xff]
      %v3408 = vld [vmem:[#allocation3 + $0xf0] sm:$0xff]
      %v3409 = vld [vmem:[#allocation3 + $0xf8] sm:$0xff]
      %v3410 = vld [vmem:[#allocation3 + $0x108] sm:$0xff]
      %v3411 = vld [vmem:[#allocation3 + $0x110] sm:$0xff]
      %v3412 = vld [vmem:[#allocation3 + $0x120] sm:$0xff]
      %v3413 = vld [vmem:[#allocation3 + $0x128] sm:$0xff]
      %v3414 = vld [vmem:[#allocation3 + $0x138] sm:$0xff]
      %v3415 = vld [vmem:[#allocation3 + $0x140] sm:$0xff]
      %v3416 = vld [vmem:[#allocation3 + $0x150] sm:$0xff]
      %v3417 = vld [vmem:[#allocation3 + $0x158] sm:$0xff]
      %v3418 = vld [vmem:[#allocation3 + $0x168] sm:$0xff]
      %v3419 = vld [vmem:[#allocation3 + $0x170] sm:$0xff]
      %v3420 = vpack.c.bf16 %v3389, %v3388
      %v3421 = vpack.c.bf16 %v3391, %v3390
      %v3422 = vpack.c.bf16 %v3393, %v3392
      %v3423 = vpack.c.bf16 %v3395, %v3394
      %v3424 = vpack.c.bf16 %v3397, %v3396
      %v3425 = vpack.c.bf16 %v3399, %v3398
      %v3426 = vpack.c.bf16 %v3401, %v3400
      %v3427 = vpack.c.bf16 %v3403, %v3402
      %v3428 = vpack.c.bf16 %v3405, %v3404
      %v3429 = vpack.c.bf16 %v3407, %v3406
      %v3430 = vpack.c.bf16 %v3409, %v3408
      %v3431 = vpack.c.bf16 %v3411, %v3410
      %v3432 = vpack.c.bf16 %v3413, %v3412
      %v3433 = vpack.c.bf16 %v3415, %v3414
      %v3434 = vpack.c.bf16 %v3417, %v3416
      %v3435 = vpack.c.bf16 %v3419, %v3418
      %3436 = vst.msk [vmem:[#allocation4] sm:$0xff] %vm299, %v3420
      %3437 = vst.msk [vmem:[#allocation4 + $0x18] sm:$0xff] %vm299, %v3421
      %3438 = vst.msk [vmem:[#allocation4 + $0x30] sm:$0xff] %vm299, %v3422
      %3439 = vst.msk [vmem:[#allocation4 + $0x48] sm:$0xff] %vm299, %v3423
      %3440 = vst.msk [vmem:[#allocation4 + $0x60] sm:$0xff] %vm299, %v3424
      %3441 = vst.msk [vmem:[#allocation4 + $0x78] sm:$0xff] %vm299, %v3425
      %3442 = vst.msk [vmem:[#allocation4 + $0x90] sm:$0xff] %vm299, %v3426
      %3443 = vst.msk [vmem:[#allocation4 + $0xa8] sm:$0xff] %vm299, %v3427
      %3444 = vst.msk [vmem:[#allocation4 + $0xc0] sm:$0xff] %vm299, %v3428
      %3445 = vst.msk [vmem:[#allocation4 + $0xd8] sm:$0xff] %vm299, %v3429
      %3446 = vst.msk [vmem:[#allocation4 + $0xf0] sm:$0xff] %vm299, %v3430
      %3447 = vst.msk [vmem:[#allocation4 + $0x108] sm:$0xff] %vm299, %v3431
      %3448 = vst.msk [vmem:[#allocation4 + $0x120] sm:$0xff] %vm299, %v3432
      %3449 = vst.msk [vmem:[#allocation4 + $0x138] sm:$0xff] %vm299, %v3433
      %3450 = vst.msk [vmem:[#allocation4 + $0x150] sm:$0xff] %vm299, %v3434
      %3451 = vst.msk [vmem:[#allocation4 + $0x168] sm:$0xff] %vm299, %v3435
      %v3452 = vld [vmem:[#allocation3 + $0x1] sm:$0xff]
      %v3453 = vld [vmem:[#allocation3 + $0x9] sm:$0xff]
      %v3454 = vld [vmem:[#allocation3 + $0x19] sm:$0xff]
      %v3455 = vld [vmem:[#allocation3 + $0x21] sm:$0xff]
      %v3456 = vld [vmem:[#allocation3 + $0x31] sm:$0xff]
      %v3457 = vld [vmem:[#allocation3 + $0x39] sm:$0xff]
      %v3458 = vld [vmem:[#allocation3 + $0x49] sm:$0xff]
      %v3459 = vld [vmem:[#allocation3 + $0x51] sm:$0xff]
      %v3460 = vld [vmem:[#allocation3 + $0x61] sm:$0xff]
      %v3461 = vld [vmem:[#allocation3 + $0x69] sm:$0xff]
      %v3462 = vld [vmem:[#allocation3 + $0x79] sm:$0xff]
      %v3463 = vld [vmem:[#allocation3 + $0x81] sm:$0xff]
      %v3464 = vld [vmem:[#allocation3 + $0x91] sm:$0xff]
      %v3465 = vld [vmem:[#allocation3 + $0x99] sm:$0xff]
      %v3466 = vld [vmem:[#allocation3 + $0xa9] sm:$0xff]
      %v3467 = vld [vmem:[#allocation3 + $0xb1] sm:$0xff]
      %v3468 = vld [vmem:[#allocation3 + $0xc1] sm:$0xff]
      %v3469 = vld [vmem:[#allocation3 + $0xc9] sm:$0xff]
      %v3470 = vld [vmem:[#allocation3 + $0xd9] sm:$0xff]
      %v3471 = vld [vmem:[#allocation3 + $0xe1] sm:$0xff]
      %v3472 = vld [vmem:[#allocation3 + $0xf1] sm:$0xff]
      %v3473 = vld [vmem:[#allocation3 + $0xf9] sm:$0xff]
      %v3474 = vld [vmem:[#allocation3 + $0x109] sm:$0xff]
      %v3475 = vld [vmem:[#allocation3 + $0x111] sm:$0xff]
      %v3476 = vld [vmem:[#allocation3 + $0x121] sm:$0xff]
      %v3477 = vld [vmem:[#allocation3 + $0x129] sm:$0xff]
      %v3478 = vld [vmem:[#allocation3 + $0x139] sm:$0xff]
      %v3479 = vld [vmem:[#allocation3 + $0x141] sm:$0xff]
      %v3480 = vld [vmem:[#allocation3 + $0x151] sm:$0xff]
      %v3481 = vld [vmem:[#allocation3 + $0x159] sm:$0xff]
      %v3482 = vld [vmem:[#allocation3 + $0x169] sm:$0xff]
      %v3483 = vld [vmem:[#allocation3 + $0x171] sm:$0xff]
      %v3484 = vpack.c.bf16 %v3453, %v3452
      %v3485 = vpack.c.bf16 %v3455, %v3454
      %v3486 = vpack.c.bf16 %v3457, %v3456
      %v3487 = vpack.c.bf16 %v3459, %v3458
      %v3488 = vpack.c.bf16 %v3461, %v3460
      %v3489 = vpack.c.bf16 %v3463, %v3462
      %v3490 = vpack.c.bf16 %v3465, %v3464
      %v3491 = vpack.c.bf16 %v3467, %v3466
      %v3492 = vpack.c.bf16 %v3469, %v3468
      %v3493 = vpack.c.bf16 %v3471, %v3470
      %v3494 = vpack.c.bf16 %v3473, %v3472
      %v3495 = vpack.c.bf16 %v3475, %v3474
      %v3496 = vpack.c.bf16 %v3477, %v3476
      %v3497 = vpack.c.bf16 %v3479, %v3478
      %v3498 = vpack.c.bf16 %v3481, %v3480
      %v3499 = vpack.c.bf16 %v3483, %v3482
      %3516 = vrot.lane.b32.xlu0 %v3484, 32
      %v3517 = vpop.permute.xlu0 %3516
      %3518 = vrot.lane.b32.xlu0 %v3485, 32
      %v3519 = vpop.permute.xlu0 %3518
      %3520 = vrot.lane.b32.xlu0 %v3486, 32
      %v3521 = vpop.permute.xlu0 %3520
      %3522 = vrot.lane.b32.xlu0 %v3487, 32
      %v3523 = vpop.permute.xlu0 %3522
      %3524 = vrot.lane.b32.xlu0 %v3488, 32
      %v3525 = vpop.permute.xlu0 %3524
      %3526 = vrot.lane.b32.xlu0 %v3489, 32
      %v3527 = vpop.permute.xlu0 %3526
      %3528 = vrot.lane.b32.xlu0 %v3490, 32
      %v3529 = vpop.permute.xlu0 %3528
      %3530 = vrot.lane.b32.xlu0 %v3491, 32
      %v3531 = vpop.permute.xlu0 %3530
      %3532 = vrot.lane.b32.xlu0 %v3492, 32
      %v3533 = vpop.permute.xlu0 %3532
      %3534 = vrot.lane.b32.xlu0 %v3493, 32
      %v3535 = vpop.permute.xlu0 %3534
      %3536 = vrot.lane.b32.xlu0 %v3494, 32
      %v3537 = vpop.permute.xlu0 %3536
      %3538 = vrot.lane.b32.xlu0 %v3495, 32
      %v3539 = vpop.permute.xlu0 %3538
      %3540 = vrot.lane.b32.xlu0 %v3496, 32
      %v3541 = vpop.permute.xlu0 %3540
      %3542 = vrot.lane.b32.xlu0 %v3497, 32
      %v3543 = vpop.permute.xlu0 %3542
      %3544 = vrot.lane.b32.xlu0 %v3498, 32
      %v3545 = vpop.permute.xlu0 %3544
      %3546 = vrot.lane.b32.xlu0 %v3499, 32
      %v3547 = vpop.permute.xlu0 %3546
      %3564 = vst.msk [vmem:[#allocation4] sm:$0xff] %vm1969, %v3517
      %3565 = vst.msk [vmem:[#allocation4 + $0x18] sm:$0xff] %vm1969, %v3519
      %3566 = vst.msk [vmem:[#allocation4 + $0x30] sm:$0xff] %vm1969, %v3521
      %3567 = vst.msk [vmem:[#allocation4 + $0x48] sm:$0xff] %vm1969, %v3523
      %3568 = vst.msk [vmem:[#allocation4 + $0x60] sm:$0xff] %vm1969, %v3525
      %3569 = vst.msk [vmem:[#allocation4 + $0x78] sm:$0xff] %vm1969, %v3527
      %3570 = vst.msk [vmem:[#allocation4 + $0x90] sm:$0xff] %vm1969, %v3529
      %3571 = vst.msk [vmem:[#allocation4 + $0xa8] sm:$0xff] %vm1969, %v3531
      %3572 = vst.msk [vmem:[#allocation4 + $0xc0] sm:$0xff] %vm1969, %v3533
      %3573 = vst.msk [vmem:[#allocation4 + $0xd8] sm:$0xff] %vm1969, %v3535
      %3574 = vst.msk [vmem:[#allocation4 + $0xf0] sm:$0xff] %vm1969, %v3537
      %3575 = vst.msk [vmem:[#allocation4 + $0x108] sm:$0xff] %vm1969, %v3539
      %3576 = vst.msk [vmem:[#allocation4 + $0x120] sm:$0xff] %vm1969, %v3541
      %3577 = vst.msk [vmem:[#allocation4 + $0x138] sm:$0xff] %vm1969, %v3543
      %3578 = vst.msk [vmem:[#allocation4 + $0x150] sm:$0xff] %vm1969, %v3545
      %3579 = vst.msk [vmem:[#allocation4 + $0x168] sm:$0xff] %vm1969, %v3547
      %v3580 = vld [vmem:[#allocation3 + $0x2] sm:$0xff]
      %v3581 = vld [vmem:[#allocation3 + $0xa] sm:$0xff]
      %v3582 = vld [vmem:[#allocation3 + $0x1a] sm:$0xff]
      %v3583 = vld [vmem:[#allocation3 + $0x22] sm:$0xff]
      %v3584 = vld [vmem:[#allocation3 + $0x32] sm:$0xff]
      %v3585 = vld [vmem:[#allocation3 + $0x3a] sm:$0xff]
      %v3586 = vld [vmem:[#allocation3 + $0x4a] sm:$0xff]
      %v3587 = vld [vmem:[#allocation3 + $0x52] sm:$0xff]
      %v3588 = vld [vmem:[#allocation3 + $0x62] sm:$0xff]
      %v3589 = vld [vmem:[#allocation3 + $0x6a] sm:$0xff]
      %v3590 = vld [vmem:[#allocation3 + $0x7a] sm:$0xff]
      %v3591 = vld [vmem:[#allocation3 + $0x82] sm:$0xff]
      %v3592 = vld [vmem:[#allocation3 + $0x92] sm:$0xff]
      %v3593 = vld [vmem:[#allocation3 + $0x9a] sm:$0xff]
      %v3594 = vld [vmem:[#allocation3 + $0xaa] sm:$0xff]
      %v3595 = vld [vmem:[#allocation3 + $0xb2] sm:$0xff]
      %v3596 = vld [vmem:[#allocation3 + $0xc2] sm:$0xff]
      %v3597 = vld [vmem:[#allocation3 + $0xca] sm:$0xff]
      %v3598 = vld [vmem:[#allocation3 + $0xda] sm:$0xff]
      %v3599 = vld [vmem:[#allocation3 + $0xe2] sm:$0xff]
      %v3600 = vld [vmem:[#allocation3 + $0xf2] sm:$0xff]
      %v3601 = vld [vmem:[#allocation3 + $0xfa] sm:$0xff]
      %v3602 = vld [vmem:[#allocation3 + $0x10a] sm:$0xff]
      %v3603 = vld [vmem:[#allocation3 + $0x112] sm:$0xff]
      %v3604 = vld [vmem:[#allocation3 + $0x122] sm:$0xff]
      %v3605 = vld [vmem:[#allocation3 + $0x12a] sm:$0xff]
      %v3606 = vld [vmem:[#allocation3 + $0x13a] sm:$0xff]
      %v3607 = vld [vmem:[#allocation3 + $0x142] sm:$0xff]
      %v3608 = vld [vmem:[#allocation3 + $0x152] sm:$0xff]
      %v3609 = vld [vmem:[#allocation3 + $0x15a] sm:$0xff]
      %v3610 = vld [vmem:[#allocation3 + $0x16a] sm:$0xff]
      %v3611 = vld [vmem:[#allocation3 + $0x172] sm:$0xff]
      %v3612 = vpack.c.bf16 %v3581, %v3580
      %v3613 = vpack.c.bf16 %v3583, %v3582
      %v3614 = vpack.c.bf16 %v3585, %v3584
      %v3615 = vpack.c.bf16 %v3587, %v3586
      %v3616 = vpack.c.bf16 %v3589, %v3588
      %v3617 = vpack.c.bf16 %v3591, %v3590
      %v3618 = vpack.c.bf16 %v3593, %v3592
      %v3619 = vpack.c.bf16 %v3595, %v3594
      %v3620 = vpack.c.bf16 %v3597, %v3596
      %v3621 = vpack.c.bf16 %v3599, %v3598
      %v3622 = vpack.c.bf16 %v3601, %v3600
      %v3623 = vpack.c.bf16 %v3603, %v3602
      %v3624 = vpack.c.bf16 %v3605, %v3604
      %v3625 = vpack.c.bf16 %v3607, %v3606
      %v3626 = vpack.c.bf16 %v3609, %v3608
      %v3627 = vpack.c.bf16 %v3611, %v3610
      %3644 = vrot.lane.b32.xlu0 %v3612, 64
      %v3645 = vpop.permute.xlu0 %3644
      %3646 = vrot.lane.b32.xlu0 %v3613, 64
      %v3647 = vpop.permute.xlu0 %3646
      %3648 = vrot.lane.b32.xlu0 %v3614, 64
      %v3649 = vpop.permute.xlu0 %3648
      %3650 = vrot.lane.b32.xlu0 %v3615, 64
      %v3651 = vpop.permute.xlu0 %3650
      %3652 = vrot.lane.b32.xlu0 %v3616, 64
      %v3653 = vpop.permute.xlu0 %3652
      %3654 = vrot.lane.b32.xlu0 %v3617, 64
      %v3655 = vpop.permute.xlu0 %3654
      %3656 = vrot.lane.b32.xlu0 %v3618, 64
      %v3657 = vpop.permute.xlu0 %3656
      %3658 = vrot.lane.b32.xlu0 %v3619, 64
      %v3659 = vpop.permute.xlu0 %3658
      %3660 = vrot.lane.b32.xlu0 %v3620, 64
      %v3661 = vpop.permute.xlu0 %3660
      %3662 = vrot.lane.b32.xlu0 %v3621, 64
      %v3663 = vpop.permute.xlu0 %3662
      %3664 = vrot.lane.b32.xlu0 %v3622, 64
      %v3665 = vpop.permute.xlu0 %3664
      %3666 = vrot.lane.b32.xlu0 %v3623, 64
      %v3667 = vpop.permute.xlu0 %3666
      %3668 = vrot.lane.b32.xlu0 %v3624, 64
      %v3669 = vpop.permute.xlu0 %3668
      %3670 = vrot.lane.b32.xlu0 %v3625, 64
      %v3671 = vpop.permute.xlu0 %3670
      %3672 = vrot.lane.b32.xlu0 %v3626, 64
      %v3673 = vpop.permute.xlu0 %3672
      %3674 = vrot.lane.b32.xlu0 %v3627, 64
      %v3675 = vpop.permute.xlu0 %3674
      %3692 = vst.msk [vmem:[#allocation4] sm:$0xff] %vm2098, %v3645
      %3693 = vst.msk [vmem:[#allocation4 + $0x18] sm:$0xff] %vm2098, %v3647
      %3694 = vst.msk [vmem:[#allocation4 + $0x30] sm:$0xff] %vm2098, %v3649
      %3695 = vst.msk [vmem:[#allocation4 + $0x48] sm:$0xff] %vm2098, %v3651
      %3696 = vst.msk [vmem:[#allocation4 + $0x60] sm:$0xff] %vm2098, %v3653
      %3697 = vst.msk [vmem:[#allocation4 + $0x78] sm:$0xff] %vm2098, %v3655
      %3698 = vst.msk [vmem:[#allocation4 + $0x90] sm:$0xff] %vm2098, %v3657
      %3699 = vst.msk [vmem:[#allocation4 + $0xa8] sm:$0xff] %vm2098, %v3659
      %3700 = vst.msk [vmem:[#allocation4 + $0xc0] sm:$0xff] %vm2098, %v3661
      %3701 = vst.msk [vmem:[#allocation4 + $0xd8] sm:$0xff] %vm2098, %v3663
      %3702 = vst.msk [vmem:[#allocation4 + $0xf0] sm:$0xff] %vm2098, %v3665
      %3703 = vst.msk [vmem:[#allocation4 + $0x108] sm:$0xff] %vm2098, %v3667
      %3704 = vst.msk [vmem:[#allocation4 + $0x120] sm:$0xff] %vm2098, %v3669
      %3705 = vst.msk [vmem:[#allocation4 + $0x138] sm:$0xff] %vm2098, %v3671
      %3706 = vst.msk [vmem:[#allocation4 + $0x150] sm:$0xff] %vm2098, %v3673
      %3707 = vst.msk [vmem:[#allocation4 + $0x168] sm:$0xff] %vm2098, %v3675
      %v3708 = vld [vmem:[%s1760] sm:$0xff]
      %v3709 = vld [vmem:[%s1760 + $0x8] sm:$0xff]
      %v3710 = vld [vmem:[%s1760 + $0x18] sm:$0xff]
      %v3711 = vld [vmem:[%s1760 + $0x20] sm:$0xff]
      %v3712 = vld [vmem:[%s1760 + $0x30] sm:$0xff]
      %v3713 = vld [vmem:[%s1760 + $0x38] sm:$0xff]
      %v3714 = vld [vmem:[%s1760 + $0x48] sm:$0xff]
      %v3715 = vld [vmem:[%s1760 + $0x50] sm:$0xff]
      %v3716 = vld [vmem:[%s1760 + $0x60] sm:$0xff]
      %v3717 = vld [vmem:[%s1760 + $0x68] sm:$0xff]
      %v3718 = vld [vmem:[%s1760 + $0x78] sm:$0xff]
      %v3719 = vld [vmem:[%s1760 + $0x80] sm:$0xff]
      %v3720 = vld [vmem:[%s1760 + $0x90] sm:$0xff]
      %v3721 = vld [vmem:[%s1760 + $0x98] sm:$0xff]
      %v3722 = vld [vmem:[%s1760 + $0xa8] sm:$0xff]
      %v3723 = vld [vmem:[%s1760 + $0xb0] sm:$0xff]
      %v3724 = vld [vmem:[%s1760 + $0xc0] sm:$0xff]
      %v3725 = vld [vmem:[%s1760 + $0xc8] sm:$0xff]
      %v3726 = vld [vmem:[%s1760 + $0xd8] sm:$0xff]
      %v3727 = vld [vmem:[%s1760 + $0xe0] sm:$0xff]
      %v3728 = vld [vmem:[%s1760 + $0xf0] sm:$0xff]
      %v3729 = vld [vmem:[%s1760 + $0xf8] sm:$0xff]
      %v3730 = vld [vmem:[%s1760 + $0x108] sm:$0xff]
      %v3731 = vld [vmem:[%s1760 + $0x110] sm:$0xff]
      %v3732 = vld [vmem:[%s1760 + $0x120] sm:$0xff]
      %v3733 = vld [vmem:[%s1760 + $0x128] sm:$0xff]
      %v3734 = vld [vmem:[%s1760 + $0x138] sm:$0xff]
      %v3735 = vld [vmem:[%s1760 + $0x140] sm:$0xff]
      %v3736 = vld [vmem:[%s1760 + $0x150] sm:$0xff]
      %v3737 = vld [vmem:[%s1760 + $0x158] sm:$0xff]
      %v3738 = vld [vmem:[%s1760 + $0x168] sm:$0xff]
      %v3739 = vld [vmem:[%s1760 + $0x170] sm:$0xff]
      %v3740 = vpack.c.bf16 %v3709, %v3708
      %v3741 = vpack.c.bf16 %v3711, %v3710
      %v3742 = vpack.c.bf16 %v3713, %v3712
      %v3743 = vpack.c.bf16 %v3715, %v3714
      %v3744 = vpack.c.bf16 %v3717, %v3716
      %v3745 = vpack.c.bf16 %v3719, %v3718
      %v3746 = vpack.c.bf16 %v3721, %v3720
      %v3747 = vpack.c.bf16 %v3723, %v3722
      %v3748 = vpack.c.bf16 %v3725, %v3724
      %v3749 = vpack.c.bf16 %v3727, %v3726
      %v3750 = vpack.c.bf16 %v3729, %v3728
      %v3751 = vpack.c.bf16 %v3731, %v3730
      %v3752 = vpack.c.bf16 %v3733, %v3732
      %v3753 = vpack.c.bf16 %v3735, %v3734
      %v3754 = vpack.c.bf16 %v3737, %v3736
      %v3755 = vpack.c.bf16 %v3739, %v3738
      %3772 = vrot.lane.b32.xlu0 %v3740, 96
      %v3773 = vpop.permute.xlu0 %3772
      %3774 = vrot.lane.b32.xlu0 %v3741, 96
      %v3775 = vpop.permute.xlu0 %3774
      %3776 = vrot.lane.b32.xlu0 %v3742, 96
      %v3777 = vpop.permute.xlu0 %3776
      %3778 = vrot.lane.b32.xlu0 %v3743, 96
      %v3779 = vpop.permute.xlu0 %3778
      %3780 = vrot.lane.b32.xlu0 %v3744, 96
      %v3781 = vpop.permute.xlu0 %3780
      %3782 = vrot.lane.b32.xlu0 %v3745, 96
      %v3783 = vpop.permute.xlu0 %3782
      %3784 = vrot.lane.b32.xlu0 %v3746, 96
      %v3785 = vpop.permute.xlu0 %3784
      %3786 = vrot.lane.b32.xlu0 %v3747, 96
      %v3787 = vpop.permute.xlu0 %3786
      %3788 = vrot.lane.b32.xlu0 %v3748, 96
      %v3789 = vpop.permute.xlu0 %3788
      %3790 = vrot.lane.b32.xlu0 %v3749, 96
      %v3791 = vpop.permute.xlu0 %3790
      %3792 = vrot.lane.b32.xlu0 %v3750, 96
      %v3793 = vpop.permute.xlu0 %3792
      %3794 = vrot.lane.b32.xlu0 %v3751, 96
      %v3795 = vpop.permute.xlu0 %3794
      %3796 = vrot.lane.b32.xlu0 %v3752, 96
      %v3797 = vpop.permute.xlu0 %3796
      %3798 = vrot.lane.b32.xlu0 %v3753, 96
      %v3799 = vpop.permute.xlu0 %3798
      %3800 = vrot.lane.b32.xlu0 %v3754, 96
      %v3801 = vpop.permute.xlu0 %3800
      %3802 = vrot.lane.b32.xlu0 %v3755, 96
      %v3803 = vpop.permute.xlu0 %3802
      %3820 = vst.msk [vmem:[#allocation4] sm:$0xff] %vm2227, %v3773
      %3821 = vst.msk [vmem:[#allocation4 + $0x18] sm:$0xff] %vm2227, %v3775
      %3822 = vst.msk [vmem:[#allocation4 + $0x30] sm:$0xff] %vm2227, %v3777
      %3823 = vst.msk [vmem:[#allocation4 + $0x48] sm:$0xff] %vm2227, %v3779
      %3824 = vst.msk [vmem:[#allocation4 + $0x60] sm:$0xff] %vm2227, %v3781
      %3825 = vst.msk [vmem:[#allocation4 + $0x78] sm:$0xff] %vm2227, %v3783
      %3826 = vst.msk [vmem:[#allocation4 + $0x90] sm:$0xff] %vm2227, %v3785
      %3827 = vst.msk [vmem:[#allocation4 + $0xa8] sm:$0xff] %vm2227, %v3787
      %3828 = vst.msk [vmem:[#allocation4 + $0xc0] sm:$0xff] %vm2227, %v3789
      %3829 = vst.msk [vmem:[#allocation4 + $0xd8] sm:$0xff] %vm2227, %v3791
      %3830 = vst.msk [vmem:[#allocation4 + $0xf0] sm:$0xff] %vm2227, %v3793
      %3831 = vst.msk [vmem:[#allocation4 + $0x108] sm:$0xff] %vm2227, %v3795
      %3832 = vst.msk [vmem:[#allocation4 + $0x120] sm:$0xff] %vm2227, %v3797
      %3833 = vst.msk [vmem:[#allocation4 + $0x138] sm:$0xff] %vm2227, %v3799
      %3834 = vst.msk [vmem:[#allocation4 + $0x150] sm:$0xff] %vm2227, %v3801
      %3835 = vst.msk [vmem:[#allocation4 + $0x168] sm:$0xff] %vm2227, %v3803
      %v3836 = vld [vmem:[%s1760 + $0x1] sm:$0xff]
      %v3837 = vld [vmem:[%s1760 + $0x9] sm:$0xff]
      %v3838 = vld [vmem:[%s1760 + $0x19] sm:$0xff]
      %v3839 = vld [vmem:[%s1760 + $0x21] sm:$0xff]
      %v3840 = vld [vmem:[%s1760 + $0x31] sm:$0xff]
      %v3841 = vld [vmem:[%s1760 + $0x39] sm:$0xff]
      %v3842 = vld [vmem:[%s1760 + $0x49] sm:$0xff]
      %v3843 = vld [vmem:[%s1760 + $0x51] sm:$0xff]
      %v3844 = vld [vmem:[%s1760 + $0x61] sm:$0xff]
      %v3845 = vld [vmem:[%s1760 + $0x69] sm:$0xff]
      %v3846 = vld [vmem:[%s1760 + $0x79] sm:$0xff]
      %v3847 = vld [vmem:[%s1760 + $0x81] sm:$0xff]
      %v3848 = vld [vmem:[%s1760 + $0x91] sm:$0xff]
      %v3849 = vld [vmem:[%s1760 + $0x99] sm:$0xff]
      %v3850 = vld [vmem:[%s1760 + $0xa9] sm:$0xff]
      %v3851 = vld [vmem:[%s1760 + $0xb1] sm:$0xff]
      %v3852 = vld [vmem:[%s1760 + $0xc1] sm:$0xff]
      %v3853 = vld [vmem:[%s1760 + $0xc9] sm:$0xff]
      %v3854 = vld [vmem:[%s1760 + $0xd9] sm:$0xff]
      %v3855 = vld [vmem:[%s1760 + $0xe1] sm:$0xff]
      %v3856 = vld [vmem:[%s1760 + $0xf1] sm:$0xff]
      %v3857 = vld [vmem:[%s1760 + $0xf9] sm:$0xff]
      %v3858 = vld [vmem:[%s1760 + $0x109] sm:$0xff]
      %v3859 = vld [vmem:[%s1760 + $0x111] sm:$0xff]
      %v3860 = vld [vmem:[%s1760 + $0x121] sm:$0xff]
      %v3861 = vld [vmem:[%s1760 + $0x129] sm:$0xff]
      %v3862 = vld [vmem:[%s1760 + $0x139] sm:$0xff]
      %v3863 = vld [vmem:[%s1760 + $0x141] sm:$0xff]
      %v3864 = vld [vmem:[%s1760 + $0x151] sm:$0xff]
      %v3865 = vld [vmem:[%s1760 + $0x159] sm:$0xff]
      %v3866 = vld [vmem:[%s1760 + $0x169] sm:$0xff]
      %v3867 = vld [vmem:[%s1760 + $0x171] sm:$0xff]
      %v3868 = vpack.c.bf16 %v3837, %v3836
      %v3869 = vpack.c.bf16 %v3839, %v3838
      %v3870 = vpack.c.bf16 %v3841, %v3840
      %v3871 = vpack.c.bf16 %v3843, %v3842
      %v3872 = vpack.c.bf16 %v3845, %v3844
      %v3873 = vpack.c.bf16 %v3847, %v3846
      %v3874 = vpack.c.bf16 %v3849, %v3848
      %v3875 = vpack.c.bf16 %v3851, %v3850
      %v3876 = vpack.c.bf16 %v3853, %v3852
      %v3877 = vpack.c.bf16 %v3855, %v3854
      %v3878 = vpack.c.bf16 %v3857, %v3856
      %v3879 = vpack.c.bf16 %v3859, %v3858
      %v3880 = vpack.c.bf16 %v3861, %v3860
      %v3881 = vpack.c.bf16 %v3863, %v3862
      %v3882 = vpack.c.bf16 %v3865, %v3864
      %v3883 = vpack.c.bf16 %v3867, %v3866
      %3884 = vst.msk [vmem:[#allocation4 + $0x8] sm:$0xff] %vm299, %v3868
      %3885 = vst.msk [vmem:[#allocation4 + $0x20] sm:$0xff] %vm299, %v3869
      %3886 = vst.msk [vmem:[#allocation4 + $0x38] sm:$0xff] %vm299, %v3870
      %3887 = vst.msk [vmem:[#allocation4 + $0x50] sm:$0xff] %vm299, %v3871
      %3888 = vst.msk [vmem:[#allocation4 + $0x68] sm:$0xff] %vm299, %v3872
      %3889 = vst.msk [vmem:[#allocation4 + $0x80] sm:$0xff] %vm299, %v3873
      %3890 = vst.msk [vmem:[#allocation4 + $0x98] sm:$0xff] %vm299, %v3874
      %3891 = vst.msk [vmem:[#allocation4 + $0xb0] sm:$0xff] %vm299, %v3875
      %3892 = vst.msk [vmem:[#allocation4 + $0xc8] sm:$0xff] %vm299, %v3876
      %3893 = vst.msk [vmem:[#allocation4 + $0xe0] sm:$0xff] %vm299, %v3877
      %3894 = vst.msk [vmem:[#allocation4 + $0xf8] sm:$0xff] %vm299, %v3878
      %3895 = vst.msk [vmem:[#allocation4 + $0x110] sm:$0xff] %vm299, %v3879
      %3896 = vst.msk [vmem:[#allocation4 + $0x128] sm:$0xff] %vm299, %v3880
      %3897 = vst.msk [vmem:[#allocation4 + $0x140] sm:$0xff] %vm299, %v3881
      %3898 = vst.msk [vmem:[#allocation4 + $0x158] sm:$0xff] %vm299, %v3882
      %3899 = vst.msk [vmem:[#allocation4 + $0x170] sm:$0xff] %vm299, %v3883
      %v3900 = vld [vmem:[%s1760 + $0x2] sm:$0xff]
      %v3901 = vld [vmem:[%s1760 + $0xa] sm:$0xff]
      %v3902 = vld [vmem:[%s1760 + $0x1a] sm:$0xff]
      %v3903 = vld [vmem:[%s1760 + $0x22] sm:$0xff]
      %v3904 = vld [vmem:[%s1760 + $0x32] sm:$0xff]
      %v3905 = vld [vmem:[%s1760 + $0x3a] sm:$0xff]
      %v3906 = vld [vmem:[%s1760 + $0x4a] sm:$0xff]
      %v3907 = vld [vmem:[%s1760 + $0x52] sm:$0xff]
      %v3908 = vld [vmem:[%s1760 + $0x62] sm:$0xff]
      %v3909 = vld [vmem:[%s1760 + $0x6a] sm:$0xff]
      %v3910 = vld [vmem:[%s1760 + $0x7a] sm:$0xff]
      %v3911 = vld [vmem:[%s1760 + $0x82] sm:$0xff]
      %v3912 = vld [vmem:[%s1760 + $0x92] sm:$0xff]
      %v3913 = vld [vmem:[%s1760 + $0x9a] sm:$0xff]
      %v3914 = vld [vmem:[%s1760 + $0xaa] sm:$0xff]
      %v3915 = vld [vmem:[%s1760 + $0xb2] sm:$0xff]
      %v3916 = vld [vmem:[%s1760 + $0xc2] sm:$0xff]
      %v3917 = vld [vmem:[%s1760 + $0xca] sm:$0xff]
      %v3918 = vld [vmem:[%s1760 + $0xda] sm:$0xff]
      %v3919 = vld [vmem:[%s1760 + $0xe2] sm:$0xff]
      %v3920 = vld [vmem:[%s1760 + $0xf2] sm:$0xff]
      %v3921 = vld [vmem:[%s1760 + $0xfa] sm:$0xff]
      %v3922 = vld [vmem:[%s1760 + $0x10a] sm:$0xff]
      %v3923 = vld [vmem:[%s1760 + $0x112] sm:$0xff]
      %v3924 = vld [vmem:[%s1760 + $0x122] sm:$0xff]
      %v3925 = vld [vmem:[%s1760 + $0x12a] sm:$0xff]
      %v3926 = vld [vmem:[%s1760 + $0x13a] sm:$0xff]
      %v3927 = vld [vmem:[%s1760 + $0x142] sm:$0xff]
      %v3928 = vld [vmem:[%s1760 + $0x152] sm:$0xff]
      %v3929 = vld [vmem:[%s1760 + $0x15a] sm:$0xff]
      %v3930 = vld [vmem:[%s1760 + $0x16a] sm:$0xff]
      %v3931 = vld [vmem:[%s1760 + $0x172] sm:$0xff]
      %v3932 = vpack.c.bf16 %v3901, %v3900
      %v3933 = vpack.c.bf16 %v3903, %v3902
      %v3934 = vpack.c.bf16 %v3905, %v3904
      %v3935 = vpack.c.bf16 %v3907, %v3906
      %v3936 = vpack.c.bf16 %v3909, %v3908
      %v3937 = vpack.c.bf16 %v3911, %v3910
      %v3938 = vpack.c.bf16 %v3913, %v3912
      %v3939 = vpack.c.bf16 %v3915, %v3914
      %v3940 = vpack.c.bf16 %v3917, %v3916
      %v3941 = vpack.c.bf16 %v3919, %v3918
      %v3942 = vpack.c.bf16 %v3921, %v3920
      %v3943 = vpack.c.bf16 %v3923, %v3922
      %v3944 = vpack.c.bf16 %v3925, %v3924
      %v3945 = vpack.c.bf16 %v3927, %v3926
      %v3946 = vpack.c.bf16 %v3929, %v3928
      %v3947 = vpack.c.bf16 %v3931, %v3930
      %3964 = vrot.lane.b32.xlu0 %v3932, 32
      %v3965 = vpop.permute.xlu0 %3964
      %3966 = vrot.lane.b32.xlu0 %v3933, 32
      %v3967 = vpop.permute.xlu0 %3966
      %3968 = vrot.lane.b32.xlu0 %v3934, 32
      %v3969 = vpop.permute.xlu0 %3968
      %3970 = vrot.lane.b32.xlu0 %v3935, 32
      %v3971 = vpop.permute.xlu0 %3970
      %3972 = vrot.lane.b32.xlu0 %v3936, 32
      %v3973 = vpop.permute.xlu0 %3972
      %3974 = vrot.lane.b32.xlu0 %v3937, 32
      %v3975 = vpop.permute.xlu0 %3974
      %3976 = vrot.lane.b32.xlu0 %v3938, 32
      %v3977 = vpop.permute.xlu0 %3976
      %3978 = vrot.lane.b32.xlu0 %v3939, 32
      %v3979 = vpop.permute.xlu0 %3978
      %3980 = vrot.lane.b32.xlu0 %v3940, 32
      %v3981 = vpop.permute.xlu0 %3980
      %3982 = vrot.lane.b32.xlu0 %v3941, 32
      %v3983 = vpop.permute.xlu0 %3982
      %3984 = vrot.lane.b32.xlu0 %v3942, 32
      %v3985 = vpop.permute.xlu0 %3984
      %3986 = vrot.lane.b32.xlu0 %v3943, 32
      %v3987 = vpop.permute.xlu0 %3986
      %3988 = vrot.lane.b32.xlu0 %v3944, 32
      %v3989 = vpop.permute.xlu0 %3988
      %3990 = vrot.lane.b32.xlu0 %v3945, 32
      %v3991 = vpop.permute.xlu0 %3990
      %3992 = vrot.lane.b32.xlu0 %v3946, 32
      %v3993 = vpop.permute.xlu0 %3992
      %3994 = vrot.lane.b32.xlu0 %v3947, 32
      %v3995 = vpop.permute.xlu0 %3994
      %4012 = vst.msk [vmem:[#allocation4 + $0x8] sm:$0xff] %vm1969, %v3965
      %4013 = vst.msk [vmem:[#allocation4 + $0x20] sm:$0xff] %vm1969, %v3967
      %4014 = vst.msk [vmem:[#allocation4 + $0x38] sm:$0xff] %vm1969, %v3969
      %4015 = vst.msk [vmem:[#allocation4 + $0x50] sm:$0xff] %vm1969, %v3971
      %4016 = vst.msk [vmem:[#allocation4 + $0x68] sm:$0xff] %vm1969, %v3973
      %4017 = vst.msk [vmem:[#allocation4 + $0x80] sm:$0xff] %vm1969, %v3975
      %4018 = vst.msk [vmem:[#allocation4 + $0x98] sm:$0xff] %vm1969, %v3977
      %4019 = vst.msk [vmem:[#allocation4 + $0xb0] sm:$0xff] %vm1969, %v3979
      %4020 = vst.msk [vmem:[#allocation4 + $0xc8] sm:$0xff] %vm1969, %v3981
      %4021 = vst.msk [vmem:[#allocation4 + $0xe0] sm:$0xff] %vm1969, %v3983
      %4022 = vst.msk [vmem:[#allocation4 + $0xf8] sm:$0xff] %vm1969, %v3985
      %4023 = vst.msk [vmem:[#allocation4 + $0x110] sm:$0xff] %vm1969, %v3987
      %4024 = vst.msk [vmem:[#allocation4 + $0x128] sm:$0xff] %vm1969, %v3989
      %4025 = vst.msk [vmem:[#allocation4 + $0x140] sm:$0xff] %vm1969, %v3991
      %4026 = vst.msk [vmem:[#allocation4 + $0x158] sm:$0xff] %vm1969, %v3993
      %4027 = vst.msk [vmem:[#allocation4 + $0x170] sm:$0xff] %vm1969, %v3995
      %v4028 = vld [vmem:[%s2436] sm:$0xff]
      %v4029 = vld [vmem:[%s2436 + $0x8] sm:$0xff]
      %v4030 = vld [vmem:[%s2436 + $0x18] sm:$0xff]
      %v4031 = vld [vmem:[%s2436 + $0x20] sm:$0xff]
      %v4032 = vld [vmem:[%s2436 + $0x30] sm:$0xff]
      %v4033 = vld [vmem:[%s2436 + $0x38] sm:$0xff]
      %v4034 = vld [vmem:[%s2436 + $0x48] sm:$0xff]
      %v4035 = vld [vmem:[%s2436 + $0x50] sm:$0xff]
      %v4036 = vld [vmem:[%s2436 + $0x60] sm:$0xff]
      %v4037 = vld [vmem:[%s2436 + $0x68] sm:$0xff]
      %v4038 = vld [vmem:[%s2436 + $0x78] sm:$0xff]
      %v4039 = vld [vmem:[%s2436 + $0x80] sm:$0xff]
      %v4040 = vld [vmem:[%s2436 + $0x90] sm:$0xff]
      %v4041 = vld [vmem:[%s2436 + $0x98] sm:$0xff]
      %v4042 = vld [vmem:[%s2436 + $0xa8] sm:$0xff]
      %v4043 = vld [vmem:[%s2436 + $0xb0] sm:$0xff]
      %v4044 = vld [vmem:[%s2436 + $0xc0] sm:$0xff]
      %v4045 = vld [vmem:[%s2436 + $0xc8] sm:$0xff]
      %v4046 = vld [vmem:[%s2436 + $0xd8] sm:$0xff]
      %v4047 = vld [vmem:[%s2436 + $0xe0] sm:$0xff]
      %v4048 = vld [vmem:[%s2436 + $0xf0] sm:$0xff]
      %v4049 = vld [vmem:[%s2436 + $0xf8] sm:$0xff]
      %v4050 = vld [vmem:[%s2436 + $0x108] sm:$0xff]
      %v4051 = vld [vmem:[%s2436 + $0x110] sm:$0xff]
      %v4052 = vld [vmem:[%s2436 + $0x120] sm:$0xff]
      %v4053 = vld [vmem:[%s2436 + $0x128] sm:$0xff]
      %v4054 = vld [vmem:[%s2436 + $0x138] sm:$0xff]
      %v4055 = vld [vmem:[%s2436 + $0x140] sm:$0xff]
      %v4056 = vld [vmem:[%s2436 + $0x150] sm:$0xff]
      %v4057 = vld [vmem:[%s2436 + $0x158] sm:$0xff]
      %v4058 = vld [vmem:[%s2436 + $0x168] sm:$0xff]
      %v4059 = vld [vmem:[%s2436 + $0x170] sm:$0xff]
      %v4060 = vpack.c.bf16 %v4029, %v4028
      %v4061 = vpack.c.bf16 %v4031, %v4030
      %v4062 = vpack.c.bf16 %v4033, %v4032
      %v4063 = vpack.c.bf16 %v4035, %v4034
      %v4064 = vpack.c.bf16 %v4037, %v4036
      %v4065 = vpack.c.bf16 %v4039, %v4038
      %v4066 = vpack.c.bf16 %v4041, %v4040
      %v4067 = vpack.c.bf16 %v4043, %v4042
      %v4068 = vpack.c.bf16 %v4045, %v4044
      %v4069 = vpack.c.bf16 %v4047, %v4046
      %v4070 = vpack.c.bf16 %v4049, %v4048
      %v4071 = vpack.c.bf16 %v4051, %v4050
      %v4072 = vpack.c.bf16 %v4053, %v4052
      %v4073 = vpack.c.bf16 %v4055, %v4054
      %v4074 = vpack.c.bf16 %v4057, %v4056
      %v4075 = vpack.c.bf16 %v4059, %v4058
      %4092 = vrot.lane.b32.xlu0 %v4060, 64
      %v4093 = vpop.permute.xlu0 %4092
      %4094 = vrot.lane.b32.xlu0 %v4061, 64
      %v4095 = vpop.permute.xlu0 %4094
      %4096 = vrot.lane.b32.xlu0 %v4062, 64
      %v4097 = vpop.permute.xlu0 %4096
      %4098 = vrot.lane.b32.xlu0 %v4063, 64
      %v4099 = vpop.permute.xlu0 %4098
      %4100 = vrot.lane.b32.xlu0 %v4064, 64
      %v4101 = vpop.permute.xlu0 %4100
      %4102 = vrot.lane.b32.xlu0 %v4065, 64
      %v4103 = vpop.permute.xlu0 %4102
      %4104 = vrot.lane.b32.xlu0 %v4066, 64
      %v4105 = vpop.permute.xlu0 %4104
      %4106 = vrot.lane.b32.xlu0 %v4067, 64
      %v4107 = vpop.permute.xlu0 %4106
      %4108 = vrot.lane.b32.xlu0 %v4068, 64
      %v4109 = vpop.permute.xlu0 %4108
      %4110 = vrot.lane.b32.xlu0 %v4069, 64
      %v4111 = vpop.permute.xlu0 %4110
      %4112 = vrot.lane.b32.xlu0 %v4070, 64
      %v4113 = vpop.permute.xlu0 %4112
      %4114 = vrot.lane.b32.xlu0 %v4071, 64
      %v4115 = vpop.permute.xlu0 %4114
      %4116 = vrot.lane.b32.xlu0 %v4072, 64
      %v4117 = vpop.permute.xlu0 %4116
      %4118 = vrot.lane.b32.xlu0 %v4073, 64
      %v4119 = vpop.permute.xlu0 %4118
      %4120 = vrot.lane.b32.xlu0 %v4074, 64
      %v4121 = vpop.permute.xlu0 %4120
      %4122 = vrot.lane.b32.xlu0 %v4075, 64
      %v4123 = vpop.permute.xlu0 %4122
      %4140 = vst.msk [vmem:[#allocation4 + $0x8] sm:$0xff] %vm2098, %v4093
      %4141 = vst.msk [vmem:[#allocation4 + $0x20] sm:$0xff] %vm2098, %v4095
      %4142 = vst.msk [vmem:[#allocation4 + $0x38] sm:$0xff] %vm2098, %v4097
      %4143 = vst.msk [vmem:[#allocation4 + $0x50] sm:$0xff] %vm2098, %v4099
      %4144 = vst.msk [vmem:[#allocation4 + $0x68] sm:$0xff] %vm2098, %v4101
      %4145 = vst.msk [vmem:[#allocation4 + $0x80] sm:$0xff] %vm2098, %v4103
      %4146 = vst.msk [vmem:[#allocation4 + $0x98] sm:$0xff] %vm2098, %v4105
      %4147 = vst.msk [vmem:[#allocation4 + $0xb0] sm:$0xff] %vm2098, %v4107
      %4148 = vst.msk [vmem:[#allocation4 + $0xc8] sm:$0xff] %vm2098, %v4109
      %4149 = vst.msk [vmem:[#allocation4 + $0xe0] sm:$0xff] %vm2098, %v4111
      %4150 = vst.msk [vmem:[#allocation4 + $0xf8] sm:$0xff] %vm2098, %v4113
      %4151 = vst.msk [vmem:[#allocation4 + $0x110] sm:$0xff] %vm2098, %v4115
      %4152 = vst.msk [vmem:[#allocation4 + $0x128] sm:$0xff] %vm2098, %v4117
      %4153 = vst.msk [vmem:[#allocation4 + $0x140] sm:$0xff] %vm2098, %v4119
      %4154 = vst.msk [vmem:[#allocation4 + $0x158] sm:$0xff] %vm2098, %v4121
      %4155 = vst.msk [vmem:[#allocation4 + $0x170] sm:$0xff] %vm2098, %v4123
      %v4156 = vld [vmem:[%s2436 + $0x1] sm:$0xff]
      %v4157 = vld [vmem:[%s2436 + $0x9] sm:$0xff]
      %v4158 = vld [vmem:[%s2436 + $0x19] sm:$0xff]
      %v4159 = vld [vmem:[%s2436 + $0x21] sm:$0xff]
      %v4160 = vld [vmem:[%s2436 + $0x31] sm:$0xff]
      %v4161 = vld [vmem:[%s2436 + $0x39] sm:$0xff]
      %v4162 = vld [vmem:[%s2436 + $0x49] sm:$0xff]
      %v4163 = vld [vmem:[%s2436 + $0x51] sm:$0xff]
      %v4164 = vld [vmem:[%s2436 + $0x61] sm:$0xff]
      %v4165 = vld [vmem:[%s2436 + $0x69] sm:$0xff]
      %v4166 = vld [vmem:[%s2436 + $0x79] sm:$0xff]
      %v4167 = vld [vmem:[%s2436 + $0x81] sm:$0xff]
      %v4168 = vld [vmem:[%s2436 + $0x91] sm:$0xff]
      %v4169 = vld [vmem:[%s2436 + $0x99] sm:$0xff]
      %v4170 = vld [vmem:[%s2436 + $0xa9] sm:$0xff]
      %v4171 = vld [vmem:[%s2436 + $0xb1] sm:$0xff]
      %v4172 = vld [vmem:[%s2436 + $0xc1] sm:$0xff]
      %v4173 = vld [vmem:[%s2436 + $0xc9] sm:$0xff]
      %v4174 = vld [vmem:[%s2436 + $0xd9] sm:$0xff]
      %v4175 = vld [vmem:[%s2436 + $0xe1] sm:$0xff]
      %v4176 = vld [vmem:[%s2436 + $0xf1] sm:$0xff]
      %v4177 = vld [vmem:[%s2436 + $0xf9] sm:$0xff]
      %v4178 = vld [vmem:[%s2436 + $0x109] sm:$0xff]
      %v4179 = vld [vmem:[%s2436 + $0x111] sm:$0xff]
      %v4180 = vld [vmem:[%s2436 + $0x121] sm:$0xff]
      %v4181 = vld [vmem:[%s2436 + $0x129] sm:$0xff]
      %v4182 = vld [vmem:[%s2436 + $0x139] sm:$0xff]
      %v4183 = vld [vmem:[%s2436 + $0x141] sm:$0xff]
      %v4184 = vld [vmem:[%s2436 + $0x151] sm:$0xff]
      %v4185 = vld [vmem:[%s2436 + $0x159] sm:$0xff]
      %v4186 = vld [vmem:[%s2436 + $0x169] sm:$0xff]
      %v4187 = vld [vmem:[%s2436 + $0x171] sm:$0xff]
      %v4188 = vpack.c.bf16 %v4157, %v4156
      %v4189 = vpack.c.bf16 %v4159, %v4158
      %v4190 = vpack.c.bf16 %v4161, %v4160
      %v4191 = vpack.c.bf16 %v4163, %v4162
      %v4192 = vpack.c.bf16 %v4165, %v4164
      %v4193 = vpack.c.bf16 %v4167, %v4166
      %v4194 = vpack.c.bf16 %v4169, %v4168
      %v4195 = vpack.c.bf16 %v4171, %v4170
      %v4196 = vpack.c.bf16 %v4173, %v4172
      %v4197 = vpack.c.bf16 %v4175, %v4174
      %v4198 = vpack.c.bf16 %v4177, %v4176
      %v4199 = vpack.c.bf16 %v4179, %v4178
      %v4200 = vpack.c.bf16 %v4181, %v4180
      %v4201 = vpack.c.bf16 %v4183, %v4182
      %v4202 = vpack.c.bf16 %v4185, %v4184
      %v4203 = vpack.c.bf16 %v4187, %v4186
      %4220 = vrot.lane.b32.xlu0 %v4188, 96
      %v4221 = vpop.permute.xlu0 %4220
      %4222 = vrot.lane.b32.xlu0 %v4189, 96
      %v4223 = vpop.permute.xlu0 %4222
      %4224 = vrot.lane.b32.xlu0 %v4190, 96
      %v4225 = vpop.permute.xlu0 %4224
      %4226 = vrot.lane.b32.xlu0 %v4191, 96
      %v4227 = vpop.permute.xlu0 %4226
      %4228 = vrot.lane.b32.xlu0 %v4192, 96
      %v4229 = vpop.permute.xlu0 %4228
      %4230 = vrot.lane.b32.xlu0 %v4193, 96
      %v4231 = vpop.permute.xlu0 %4230
      %4232 = vrot.lane.b32.xlu0 %v4194, 96
      %v4233 = vpop.permute.xlu0 %4232
      %4234 = vrot.lane.b32.xlu0 %v4195, 96
      %v4235 = vpop.permute.xlu0 %4234
      %4236 = vrot.lane.b32.xlu0 %v4196, 96
      %v4237 = vpop.permute.xlu0 %4236
      %4238 = vrot.lane.b32.xlu0 %v4197, 96
      %v4239 = vpop.permute.xlu0 %4238
      %4240 = vrot.lane.b32.xlu0 %v4198, 96
      %v4241 = vpop.permute.xlu0 %4240
      %4242 = vrot.lane.b32.xlu0 %v4199, 96
      %v4243 = vpop.permute.xlu0 %4242
      %4244 = vrot.lane.b32.xlu0 %v4200, 96
      %v4245 = vpop.permute.xlu0 %4244
      %4246 = vrot.lane.b32.xlu0 %v4201, 96
      %v4247 = vpop.permute.xlu0 %4246
      %4248 = vrot.lane.b32.xlu0 %v4202, 96
      %v4249 = vpop.permute.xlu0 %4248
      %4250 = vrot.lane.b32.xlu0 %v4203, 96
      %v4251 = vpop.permute.xlu0 %4250
      %4268 = vst.msk [vmem:[#allocation4 + $0x8] sm:$0xff] %vm2227, %v4221
      %4269 = vst.msk [vmem:[#allocation4 + $0x20] sm:$0xff] %vm2227, %v4223
      %4270 = vst.msk [vmem:[#allocation4 + $0x38] sm:$0xff] %vm2227, %v4225
      %4271 = vst.msk [vmem:[#allocation4 + $0x50] sm:$0xff] %vm2227, %v4227
      %4272 = vst.msk [vmem:[#allocation4 + $0x68] sm:$0xff] %vm2227, %v4229
      %4273 = vst.msk [vmem:[#allocation4 + $0x80] sm:$0xff] %vm2227, %v4231
      %4274 = vst.msk [vmem:[#allocation4 + $0x98] sm:$0xff] %vm2227, %v4233
      %4275 = vst.msk [vmem:[#allocation4 + $0xb0] sm:$0xff] %vm2227, %v4235
      %4276 = vst.msk [vmem:[#allocation4 + $0xc8] sm:$0xff] %vm2227, %v4237
      %4277 = vst.msk [vmem:[#allocation4 + $0xe0] sm:$0xff] %vm2227, %v4239
      %4278 = vst.msk [vmem:[#allocation4 + $0xf8] sm:$0xff] %vm2227, %v4241
      %4279 = vst.msk [vmem:[#allocation4 + $0x110] sm:$0xff] %vm2227, %v4243
      %4280 = vst.msk [vmem:[#allocation4 + $0x128] sm:$0xff] %vm2227, %v4245
      %4281 = vst.msk [vmem:[#allocation4 + $0x140] sm:$0xff] %vm2227, %v4247
      %4282 = vst.msk [vmem:[#allocation4 + $0x158] sm:$0xff] %vm2227, %v4249
      %4283 = vst.msk [vmem:[#allocation4 + $0x170] sm:$0xff] %vm2227, %v4251
      %v4284 = vld [vmem:[%s2436 + $0x2] sm:$0xff]
      %v4285 = vld [vmem:[%s2436 + $0xa] sm:$0xff]
      %v4286 = vld [vmem:[%s2436 + $0x1a] sm:$0xff]
      %v4287 = vld [vmem:[%s2436 + $0x22] sm:$0xff]
      %v4288 = vld [vmem:[%s2436 + $0x32] sm:$0xff]
      %v4289 = vld [vmem:[%s2436 + $0x3a] sm:$0xff]
      %v4290 = vld [vmem:[%s2436 + $0x4a] sm:$0xff]
      %v4291 = vld [vmem:[%s2436 + $0x52] sm:$0xff]
      %v4292 = vld [vmem:[%s2436 + $0x62] sm:$0xff]
      %v4293 = vld [vmem:[%s2436 + $0x6a] sm:$0xff]
      %v4294 = vld [vmem:[%s2436 + $0x7a] sm:$0xff]
      %v4295 = vld [vmem:[%s2436 + $0x82] sm:$0xff]
      %v4296 = vld [vmem:[%s2436 + $0x92] sm:$0xff]
      %v4297 = vld [vmem:[%s2436 + $0x9a] sm:$0xff]
      %v4298 = vld [vmem:[%s2436 + $0xaa] sm:$0xff]
      %v4299 = vld [vmem:[%s2436 + $0xb2] sm:$0xff]
      %v4300 = vld [vmem:[%s2436 + $0xc2] sm:$0xff]
      %v4301 = vld [vmem:[%s2436 + $0xca] sm:$0xff]
      %v4302 = vld [vmem:[%s2436 + $0xda] sm:$0xff]
      %v4303 = vld [vmem:[%s2436 + $0xe2] sm:$0xff]
      %v4304 = vld [vmem:[%s2436 + $0xf2] sm:$0xff]
      %v4305 = vld [vmem:[%s2436 + $0xfa] sm:$0xff]
      %v4306 = vld [vmem:[%s2436 + $0x10a] sm:$0xff]
      %v4307 = vld [vmem:[%s2436 + $0x112] sm:$0xff]
      %v4308 = vld [vmem:[%s2436 + $0x122] sm:$0xff]
      %v4309 = vld [vmem:[%s2436 + $0x12a] sm:$0xff]
      %v4310 = vld [vmem:[%s2436 + $0x13a] sm:$0xff]
      %v4311 = vld [vmem:[%s2436 + $0x142] sm:$0xff]
      %v4312 = vld [vmem:[%s2436 + $0x152] sm:$0xff]
      %v4313 = vld [vmem:[%s2436 + $0x15a] sm:$0xff]
      %v4314 = vld [vmem:[%s2436 + $0x16a] sm:$0xff]
      %v4315 = vld [vmem:[%s2436 + $0x172] sm:$0xff]
      %v4316 = vpack.c.bf16 %v4285, %v4284
      %v4317 = vpack.c.bf16 %v4287, %v4286
      %v4318 = vpack.c.bf16 %v4289, %v4288
      %v4319 = vpack.c.bf16 %v4291, %v4290
      %v4320 = vpack.c.bf16 %v4293, %v4292
      %v4321 = vpack.c.bf16 %v4295, %v4294
      %v4322 = vpack.c.bf16 %v4297, %v4296
      %v4323 = vpack.c.bf16 %v4299, %v4298
      %v4324 = vpack.c.bf16 %v4301, %v4300
      %v4325 = vpack.c.bf16 %v4303, %v4302
      %v4326 = vpack.c.bf16 %v4305, %v4304
      %v4327 = vpack.c.bf16 %v4307, %v4306
      %v4328 = vpack.c.bf16 %v4309, %v4308
      %v4329 = vpack.c.bf16 %v4311, %v4310
      %v4330 = vpack.c.bf16 %v4313, %v4312
      %v4331 = vpack.c.bf16 %v4315, %v4314
      %4332 = vst.msk [vmem:[#allocation4 + $0x10] sm:$0xff] %vm299, %v4316
      %4333 = vst.msk [vmem:[#allocation4 + $0x28] sm:$0xff] %vm299, %v4317
      %4334 = vst.msk [vmem:[#allocation4 + $0x40] sm:$0xff] %vm299, %v4318
      %4335 = vst.msk [vmem:[#allocation4 + $0x58] sm:$0xff] %vm299, %v4319
      %4336 = vst.msk [vmem:[#allocation4 + $0x70] sm:$0xff] %vm299, %v4320
      %4337 = vst.msk [vmem:[#allocation4 + $0x88] sm:$0xff] %vm299, %v4321
      %4338 = vst.msk [vmem:[#allocation4 + $0xa0] sm:$0xff] %vm299, %v4322
      %4339 = vst.msk [vmem:[#allocation4 + $0xb8] sm:$0xff] %vm299, %v4323
      %4340 = vst.msk [vmem:[#allocation4 + $0xd0] sm:$0xff] %vm299, %v4324
      %4341 = vst.msk [vmem:[#allocation4 + $0xe8] sm:$0xff] %vm299, %v4325
      %4342 = vst.msk [vmem:[#allocation4 + $0x100] sm:$0xff] %vm299, %v4326
      %4343 = vst.msk [vmem:[#allocation4 + $0x118] sm:$0xff] %vm299, %v4327
      %4344 = vst.msk [vmem:[#allocation4 + $0x130] sm:$0xff] %vm299, %v4328
      %4345 = vst.msk [vmem:[#allocation4 + $0x148] sm:$0xff] %vm299, %v4329
      %4346 = vst.msk [vmem:[#allocation4 + $0x160] sm:$0xff] %vm299, %v4330
      %4347 = vst.msk [vmem:[#allocation4 + $0x178] sm:$0xff] %vm299, %v4331
      %v4348 = vld [vmem:[#allocation4] sm:$0xff]
      %v4349 = vld [vmem:[#allocation4 + $0x8] sm:$0xff]
      %v4350 = vld [vmem:[#allocation4 + $0x10] sm:$0xff]
      %v4351 = vld [vmem:[#allocation4 + $0x18] sm:$0xff]
      %v4352 = vld [vmem:[#allocation4 + $0x20] sm:$0xff]
      %v4353 = vld [vmem:[#allocation4 + $0x28] sm:$0xff]
      %v4354 = vld [vmem:[#allocation4 + $0x30] sm:$0xff]
      %v4355 = vld [vmem:[#allocation4 + $0x38] sm:$0xff]
      %v4356 = vld [vmem:[#allocation4 + $0x40] sm:$0xff]
      %v4357 = vld [vmem:[#allocation4 + $0x48] sm:$0xff]
      %v4358 = vld [vmem:[#allocation4 + $0x50] sm:$0xff]
      %v4359 = vld [vmem:[#allocation4 + $0x58] sm:$0xff]
      %v4360 = vld [vmem:[#allocation4 + $0x60] sm:$0xff]
      %v4361 = vld [vmem:[#allocation4 + $0x68] sm:$0xff]
      %v4362 = vld [vmem:[#allocation4 + $0x70] sm:$0xff]
      %v4363 = vld [vmem:[#allocation4 + $0x78] sm:$0xff]
      %v4364 = vld [vmem:[#allocation4 + $0x80] sm:$0xff]
      %v4365 = vld [vmem:[#allocation4 + $0x88] sm:$0xff]
      %v4366 = vld [vmem:[#allocation4 + $0x90] sm:$0xff]
      %v4367 = vld [vmem:[#allocation4 + $0x98] sm:$0xff]
      %v4368 = vld [vmem:[#allocation4 + $0xa0] sm:$0xff]
      %v4369 = vld [vmem:[#allocation4 + $0xa8] sm:$0xff]
      %v4370 = vld [vmem:[#allocation4 + $0xb0] sm:$0xff]
      %v4371 = vld [vmem:[#allocation4 + $0xb8] sm:$0xff]
      %v4372 = vld [vmem:[#allocation4 + $0xc0] sm:$0xff]
      %v4373 = vld [vmem:[#allocation4 + $0xc8] sm:$0xff]
      %v4374 = vld [vmem:[#allocation4 + $0xd0] sm:$0xff]
      %v4375 = vld [vmem:[#allocation4 + $0xd8] sm:$0xff]
      %v4376 = vld [vmem:[#allocation4 + $0xe0] sm:$0xff]
      %v4377 = vld [vmem:[#allocation4 + $0xe8] sm:$0xff]
      %v4378 = vld [vmem:[#allocation4 + $0xf0] sm:$0xff]
      %v4379 = vld [vmem:[#allocation4 + $0xf8] sm:$0xff]
      %v4380 = vld [vmem:[#allocation4 + $0x100] sm:$0xff]
      %v4381 = vld [vmem:[#allocation4 + $0x108] sm:$0xff]
      %v4382 = vld [vmem:[#allocation4 + $0x110] sm:$0xff]
      %v4383 = vld [vmem:[#allocation4 + $0x118] sm:$0xff]
      %v4384 = vld [vmem:[#allocation4 + $0x120] sm:$0xff]
      %v4385 = vld [vmem:[#allocation4 + $0x128] sm:$0xff]
      %v4386 = vld [vmem:[#allocation4 + $0x130] sm:$0xff]
      %v4387 = vld [vmem:[#allocation4 + $0x138] sm:$0xff]
      %v4388 = vld [vmem:[#allocation4 + $0x140] sm:$0xff]
      %v4389 = vld [vmem:[#allocation4 + $0x148] sm:$0xff]
      %v4390 = vld [vmem:[#allocation4 + $0x150] sm:$0xff]
      %v4391 = vld [vmem:[#allocation4 + $0x158] sm:$0xff]
      %v4392 = vld [vmem:[#allocation4 + $0x160] sm:$0xff]
      %v4393 = vld [vmem:[#allocation4 + $0x168] sm:$0xff]
      %v4394 = vld [vmem:[#allocation4 + $0x170] sm:$0xff]
      %v4395 = vld [vmem:[#allocation4 + $0x178] sm:$0xff]
      %s4396 = scalar_lea.vmem %s2, 144
      %v4397 = vld [vmem:[%s4396] sm:$0xf]
      %v4398 = vld [vmem:[%s4396 + $0x4] sm:$0xf]
      %v4399 = vld [vmem:[%s4396 + $0x8] sm:$0xf]
      %v4400 = vld [vmem:[%s4396 + $0xc] sm:$0xf]
      %v4401 = vld [vmem:[%s4396 + $0x10] sm:$0xf]
      %v4402 = vld [vmem:[%s4396 + $0x14] sm:$0xf]
      %v4403 = vld [vmem:[%s4396 + $0x18] sm:$0xf]
      %v4404 = vld [vmem:[%s4396 + $0x1c] sm:$0xf]
      %v4405 = vld [vmem:[%s4396 + $0x20] sm:$0xf]
      %v4406 = vld [vmem:[%s4396 + $0x24] sm:$0xf]
      %v4407 = vld [vmem:[%s4396 + $0x28] sm:$0xf]
      %v4408 = vld [vmem:[%s4396 + $0x2c] sm:$0xf]
      %v4409 = vld [vmem:[%s4396 + $0x30] sm:$0xf]
      %v4410 = vld [vmem:[%s4396 + $0x34] sm:$0xf]
      %v4411 = vld [vmem:[%s4396 + $0x38] sm:$0xf]
      %v4412 = vld [vmem:[%s4396 + $0x3c] sm:$0xf]
      %v4413 = vld [vmem:[%s4396 + $0x40] sm:$0xf]
      %v4414 = vld [vmem:[%s4396 + $0x44] sm:$0xf]
      %v4415 = vld [vmem:[%s4396 + $0x48] sm:$0xf]
      %v4416 = vld [vmem:[%s4396 + $0x4c] sm:$0xf]
      %v4417 = vld [vmem:[%s4396 + $0x50] sm:$0xf]
      %v4418 = vld [vmem:[%s4396 + $0x54] sm:$0xf]
      %v4419 = vld [vmem:[%s4396 + $0x58] sm:$0xf]
      %v4420 = vld [vmem:[%s4396 + $0x5c] sm:$0xf]
      %v4421 = vld [vmem:[%s4396 + $0x60] sm:$0xf]
      %v4422 = vld [vmem:[%s4396 + $0x64] sm:$0xf]
      %v4423 = vld [vmem:[%s4396 + $0x68] sm:$0xf]
      %v4424 = vld [vmem:[%s4396 + $0x6c] sm:$0xf]
      %v4425 = vld [vmem:[%s4396 + $0x70] sm:$0xf]
      %v4426 = vld [vmem:[%s4396 + $0x74] sm:$0xf]
      %v4427 = vld [vmem:[%s4396 + $0x78] sm:$0xf]
      %v4428 = vld [vmem:[%s4396 + $0x7c] sm:$0xf]
      %v4429 = vld [vmem:[%s4396 + $0x80] sm:$0xf]
      %v4430 = vld [vmem:[%s4396 + $0x84] sm:$0xf]
      %v4431 = vld [vmem:[%s4396 + $0x88] sm:$0xf]
      %v4432 = vld [vmem:[%s4396 + $0x8c] sm:$0xf]
      %v4433 = vld [vmem:[%s4 + $0x2] sm:$0x1]
      %v4434 = vlaneseq
      %v4435 = vshrl.u32 %v4434, 7
      %v4436 = vsub.s32 0, %v4435
      %v4437 = vrot.slane %v4433, %v4436
      %v4474 = vunpack.c.l.b16 %v4397
      %v4475 = vunpack.c.l.b16 %v4398
      %v4476 = vunpack.c.l.b16 %v4399
      %v4477 = vunpack.c.l.b16 %v4400
      %v4478 = vunpack.c.l.b16 %v4401
      %v4479 = vunpack.c.l.b16 %v4402
      %v4480 = vunpack.c.l.b16 %v4403
      %v4481 = vunpack.c.l.b16 %v4404
      %v4482 = vunpack.c.l.b16 %v4405
      %v4483 = vunpack.c.l.b16 %v4406
      %v4484 = vunpack.c.l.b16 %v4407
      %v4485 = vunpack.c.l.b16 %v4408
      %v4486 = vunpack.c.l.b16 %v4409
      %v4487 = vunpack.c.l.b16 %v4410
      %v4488 = vunpack.c.l.b16 %v4411
      %v4489 = vunpack.c.l.b16 %v4412
      %v4490 = vunpack.c.l.b16 %v4413
      %v4491 = vunpack.c.l.b16 %v4414
      %v4492 = vunpack.c.l.b16 %v4415
      %v4493 = vunpack.c.l.b16 %v4416
      %v4494 = vunpack.c.l.b16 %v4417
      %v4495 = vunpack.c.l.b16 %v4418
      %v4496 = vunpack.c.l.b16 %v4419
      %v4497 = vunpack.c.l.b16 %v4420
      %v4498 = vunpack.c.l.b16 %v4421
      %v4499 = vunpack.c.l.b16 %v4422
      %v4500 = vunpack.c.l.b16 %v4423
      %v4501 = vunpack.c.l.b16 %v4424
      %v4502 = vunpack.c.l.b16 %v4425
      %v4503 = vunpack.c.l.b16 %v4426
      %v4504 = vunpack.c.l.b16 %v4427
      %v4505 = vunpack.c.l.b16 %v4428
      %v4506 = vunpack.c.l.b16 %v4429
      %v4507 = vunpack.c.l.b16 %v4430
      %v4508 = vunpack.c.l.b16 %v4431
      %v4509 = vunpack.c.l.b16 %v4432
      %v4510 = vpack.c.b16 %v4475, %v4474
      %v4511 = vpack.c.b16 %v4477, %v4476
      %v4512 = vpack.c.b16 %v4479, %v4478
      %v4513 = vpack.c.b16 %v4481, %v4480
      %v4514 = vpack.c.b16 %v4483, %v4482
      %v4515 = vpack.c.b16 %v4485, %v4484
      %v4516 = vpack.c.b16 %v4487, %v4486
      %v4517 = vpack.c.b16 %v4489, %v4488
      %v4518 = vpack.c.b16 %v4491, %v4490
      %v4519 = vpack.c.b16 %v4493, %v4492
      %v4520 = vpack.c.b16 %v4495, %v4494
      %v4521 = vpack.c.b16 %v4497, %v4496
      %v4522 = vpack.c.b16 %v4499, %v4498
      %v4523 = vpack.c.b16 %v4501, %v4500
      %v4524 = vpack.c.b16 %v4503, %v4502
      %v4525 = vpack.c.b16 %v4505, %v4504
      %v4526 = vpack.c.b16 %v4507, %v4506
      %v4527 = vpack.c.b16 %v4509, %v4508
      %v4547 = vsel %vm299, %v4350, 0
      %v4550 = vsel %vm299, %v4353, 0
      %v4553 = vsel %vm299, %v4356, 0
      %v4556 = vsel %vm299, %v4359, 0
      %v4559 = vsel %vm299, %v4362, 0
      %v4562 = vsel %vm299, %v4365, 0
      %v4565 = vsel %vm299, %v4368, 0
      %v4568 = vsel %vm299, %v4371, 0
      %v4571 = vsel %vm299, %v4374, 0
      %v4574 = vsel %vm299, %v4377, 0
      %v4577 = vsel %vm299, %v4380, 0
      %v4580 = vsel %vm299, %v4383, 0
      %v4583 = vsel %vm299, %v4386, 0
      %v4586 = vsel %vm299, %v4389, 0
      %v4589 = vsel %vm299, %v4392, 0
      %v4592 = vsel %vm299, %v4395, 0
      %4594 = vmatprep.subr.bf16.mxu0 0
      %4595 = vmatpush1.bf16.msra.mxu0 %v4510
      %4596 = vmatprep.subr.bf16.mxu0 0
      %4597 = vmatpush1.bf16.msra.mxu0 %v4511
      %4598 = vmatprep.subr.bf16.mxu0 0
      %4599 = vmatpush1.bf16.msra.mxu0 %v4512
      %4600 = vmatprep.subr.bf16.mxu0 0
      %4601 = vmatpush1.bf16.msra.mxu0 %v4513
      %4602 = vmatprep.subr.bf16.mxu0 0
      %4603 = vmatpush1.bf16.msra.mxu0 %v4514
      %4604 = vmatprep.subr.bf16.mxu0 0
      %4605 = vmatpush1.bf16.msra.mxu0 %v4515
      %4606 = vmatprep.subr.bf16.mxu0 0
      %4607 = vmatpush1.bf16.msra.mxu0 %v4516
      %4608 = vmatprep.subr.bf16.mxu0 0
      %4609 = vmatpush1.bf16.msra.mxu0 %v4517
      %4610 = vmatprep.subr.bf16.mxu0 0
      %4611 = vmatpush1.bf16.msra.mxu0 %v4518
      %4612 = vmatprep.subr.bf16.mxu0 0
      %4613 = vmatpush1.bf16.msra.mxu0 %v4519
      %4614 = vmatprep.subr.bf16.mxu0 0
      %4615 = vmatpush1.bf16.msra.mxu0 %v4520
      %4616 = vmatprep.subr.bf16.mxu0 0
      %4617 = vmatpush1.bf16.msra.mxu0 %v4521
      %4618 = vmatprep.subr.bf16.mxu0 0
      %4619 = vmatpush1.bf16.msra.mxu0 %v4522
      %4620 = vmatprep.subr.bf16.mxu0 0
      %4621 = vmatpush1.bf16.msra.mxu0 %v4523
      %4622 = vmatprep.subr.bf16.mxu0 0
      %4623 = vmatpush1.bf16.msra.mxu0 %v4524
      %4624 = vmatprep.subr.bf16.mxu0 0
      %4625 = vmatpush1.bf16.msra.mxu0 %v4525
      %4626 = vmatprep.mubr.bf16.mxu0 %v4349
      %4627 = vmatmul.mubr.bf16.gmra.mrb[0].mxu0 %v4348
      %v4628 = vpop.f32.mrb[0].mxu0
      %v4629 = vadd.f32 %v4437, %v4628
      %v4630 = vpop.f32.mrb[0].mxu0
      %v4631 = vpop.f32.mrb[0].mxu0
      %v4632 = vadd.f32 %v4437, %v4631
      %v4633 = vpop.f32.mrb[0].mxu0
      %4634 = vmatprep.mubr.bf16.mxu0 %v4352
      %4635 = vmatmul.mubr.bf16.gmra.mrb[0].mxu0 %v4351
      %v4636 = vpop.f32.mrb[0].mxu0
      %v4637 = vadd.f32 %v4437, %v4636
      %v4638 = vpop.f32.mrb[0].mxu0
      %v4639 = vpop.f32.mrb[0].mxu0
      %v4640 = vadd.f32 %v4437, %v4639
      %v4641 = vpop.f32.mrb[0].mxu0
      %4642 = vmatprep.mubr.bf16.mxu0 %v4355
      %4643 = vmatmul.mubr.bf16.gmra.mrb[0].mxu0 %v4354
      %v4644 = vpop.f32.mrb[0].mxu0
      %v4645 = vadd.f32 %v4437, %v4644
      %v4646 = vpop.f32.mrb[0].mxu0
      %v4647 = vpop.f32.mrb[0].mxu0
      %v4648 = vadd.f32 %v4437, %v4647
      %v4649 = vpop.f32.mrb[0].mxu0
      %4650 = vmatprep.mubr.bf16.mxu0 %v4358
      %4651 = vmatmul.mubr.bf16.gmra.mrb[0].mxu0 %v4357
      %v4652 = vpop.f32.mrb[0].mxu0
      %v4653 = vadd.f32 %v4437, %v4652
      %v4654 = vpop.f32.mrb[0].mxu0
      %v4655 = vpop.f32.mrb[0].mxu0
      %v4656 = vadd.f32 %v4437, %v4655
      %v4657 = vpop.f32.mrb[0].mxu0
      %4658 = vmatprep.mubr.bf16.mxu0 %v4361
      %4659 = vmatmul.mubr.bf16.gmra.mrb[0].mxu0 %v4360
      %v4660 = vpop.f32.mrb[0].mxu0
      %v4661 = vadd.f32 %v4437, %v4660
      %v4662 = vpop.f32.mrb[0].mxu0
      %v4663 = vpop.f32.mrb[0].mxu0
      %v4664 = vadd.f32 %v4437, %v4663
      %v4665 = vpop.f32.mrb[0].mxu0
      %4666 = vmatprep.mubr.bf16.mxu0 %v4364
      %4667 = vmatmul.mubr.bf16.gmra.mrb[0].mxu0 %v4363
      %v4668 = vpop.f32.mrb[0].mxu0
      %v4669 = vadd.f32 %v4437, %v4668
      %v4670 = vpop.f32.mrb[0].mxu0
      %v4671 = vpop.f32.mrb[0].mxu0
      %v4672 = vadd.f32 %v4437, %v4671
      %v4673 = vpop.f32.mrb[0].mxu0
      %4674 = vmatprep.mubr.bf16.mxu0 %v4367
      %4675 = vmatmul.mubr.bf16.gmra.mrb[0].mxu0 %v4366
      %v4676 = vpop.f32.mrb[0].mxu0
      %v4677 = vadd.f32 %v4437, %v4676
      %v4678 = vpop.f32.mrb[0].mxu0
      %v4679 = vpop.f32.mrb[0].mxu0
      %v4680 = vadd.f32 %v4437, %v4679
      %v4681 = vpop.f32.mrb[0].mxu0
      %4682 = vmatprep.mubr.bf16.mxu0 %v4370
      %4683 = vmatmul.mubr.bf16.gmra.mrb[0].mxu0 %v4369
      %v4684 = vpop.f32.mrb[0].mxu0
      %v4685 = vadd.f32 %v4437, %v4684
      %v4686 = vpop.f32.mrb[0].mxu0
      %v4687 = vpop.f32.mrb[0].mxu0
      %v4688 = vadd.f32 %v4437, %v4687
      %v4689 = vpop.f32.mrb[0].mxu0
      %4690 = vmatprep.mubr.bf16.mxu0 %v4373
      %4691 = vmatmul.mubr.bf16.gmra.mrb[0].mxu0 %v4372
      %v4692 = vpop.f32.mrb[0].mxu0
      %v4693 = vadd.f32 %v4437, %v4692
      %v4694 = vpop.f32.mrb[0].mxu0
      %v4695 = vpop.f32.mrb[0].mxu0
      %v4696 = vadd.f32 %v4437, %v4695
      %v4697 = vpop.f32.mrb[0].mxu0
      %4698 = vmatprep.mubr.bf16.mxu0 %v4376
      %4699 = vmatmul.mubr.bf16.gmra.mrb[0].mxu0 %v4375
      %v4700 = vpop.f32.mrb[0].mxu0
      %v4701 = vadd.f32 %v4437, %v4700
      %v4702 = vpop.f32.mrb[0].mxu0
      %v4703 = vpop.f32.mrb[0].mxu0
      %v4704 = vadd.f32 %v4437, %v4703
      %v4705 = vpop.f32.mrb[0].mxu0
      %4706 = vmatprep.mubr.bf16.mxu0 %v4379
      %4707 = vmatmul.mubr.bf16.gmra.mrb[0].mxu0 %v4378
      %v4708 = vpop.f32.mrb[0].mxu0
      %v4709 = vadd.f32 %v4437, %v4708
      %v4710 = vpop.f32.mrb[0].mxu0
      %v4711 = vpop.f32.mrb[0].mxu0
      %v4712 = vadd.f32 %v4437, %v4711
      %v4713 = vpop.f32.mrb[0].mxu0
      %4714 = vmatprep.mubr.bf16.mxu0 %v4382
      %4715 = vmatmul.mubr.bf16.gmra.mrb[0].mxu0 %v4381
      %v4716 = vpop.f32.mrb[0].mxu0
      %v4717 = vadd.f32 %v4437, %v4716
      %v4718 = vpop.f32.mrb[0].mxu0
      %v4719 = vpop.f32.mrb[0].mxu0
      %v4720 = vadd.f32 %v4437, %v4719
      %v4721 = vpop.f32.mrb[0].mxu0
      %4722 = vmatprep.mubr.bf16.mxu0 %v4385
      %4723 = vmatmul.mubr.bf16.gmra.mrb[0].mxu0 %v4384
      %v4724 = vpop.f32.mrb[0].mxu0
      %v4725 = vadd.f32 %v4437, %v4724
      %v4726 = vpop.f32.mrb[0].mxu0
      %v4727 = vpop.f32.mrb[0].mxu0
      %v4728 = vadd.f32 %v4437, %v4727
      %v4729 = vpop.f32.mrb[0].mxu0
      %4730 = vmatprep.mubr.bf16.mxu0 %v4388
      %4731 = vmatmul.mubr.bf16.gmra.mrb[0].mxu0 %v4387
      %v4732 = vpop.f32.mrb[0].mxu0
      %v4733 = vadd.f32 %v4437, %v4732
      %v4734 = vpop.f32.mrb[0].mxu0
      %v4735 = vpop.f32.mrb[0].mxu0
      %v4736 = vadd.f32 %v4437, %v4735
      %v4737 = vpop.f32.mrb[0].mxu0
      %4738 = vmatprep.mubr.bf16.mxu0 %v4391
      %4739 = vmatmul.mubr.bf16.gmra.mrb[0].mxu0 %v4390
      %v4740 = vpop.f32.mrb[0].mxu0
      %v4741 = vadd.f32 %v4437, %v4740
      %v4742 = vpop.f32.mrb[0].mxu0
      %v4743 = vpop.f32.mrb[0].mxu0
      %v4744 = vadd.f32 %v4437, %v4743
      %v4745 = vpop.f32.mrb[0].mxu0
      %4746 = vmatprep.mubr.bf16.mxu0 %v4394
      %4747 = vmatmul.mubr.bf16.gmra.mrb[0].mxu0 %v4393
      %v4748 = vpop.f32.mrb[0].mxu0
      %v4749 = vadd.f32 %v4437, %v4748
      %v4750 = vpop.f32.mrb[0].mxu0
      %v4751 = vpop.f32.mrb[0].mxu0
      %v4752 = vadd.f32 %v4437, %v4751
      %v4753 = vpop.f32.mrb[0].mxu0
      %4754 = vdwg.mxu0
      %4755 = vmatprep.subr.bf16.mxu0 0
      %4756 = vmatpush1.bf16.msra.mxu0 %v4526
      %4757 = vmatprep.subr.bf16.mxu0 0
      %4758 = vmatpush1.bf16.msra.mxu0 %v4527
      %4759 = vmatprep.subr.bf16.mxu0 0
      %4760 = vmatpush1.bf16.msra.mxu0 0
      %4761 = vmatprep.subr.bf16.mxu0 0
      %4762 = vmatpush1.bf16.msra.mxu0 0
      %4763 = vmatprep.subr.bf16.mxu0 0
      %4764 = vmatpush1.bf16.msra.mxu0 0
      %4765 = vmatprep.subr.bf16.mxu0 0
      %4766 = vmatpush1.bf16.msra.mxu0 0
      %4767 = vmatprep.subr.bf16.mxu0 0
      %4768 = vmatpush1.bf16.msra.mxu0 0
      %4769 = vmatprep.subr.bf16.mxu0 0
      %4770 = vmatpush1.bf16.msra.mxu0 0
      %4771 = vmatprep.subr.bf16.mxu0 0
      %4772 = vmatpush1.bf16.msra.mxu0 0
      %4773 = vmatprep.subr.bf16.mxu0 0
      %4774 = vmatpush1.bf16.msra.mxu0 0
      %4775 = vmatprep.subr.bf16.mxu0 0
      %4776 = vmatpush1.bf16.msra.mxu0 0
      %4777 = vmatprep.subr.bf16.mxu0 0
      %4778 = vmatpush1.bf16.msra.mxu0 0
      %4779 = vmatprep.subr.bf16.mxu0 0
      %4780 = vmatpush1.bf16.msra.mxu0 0
      %4781 = vmatprep.subr.bf16.mxu0 0
      %4782 = vmatpush1.bf16.msra.mxu0 0
      %4783 = vmatprep.subr.bf16.mxu0 0
      %4784 = vmatpush1.bf16.msra.mxu0 0
      %4785 = vmatprep.subr.bf16.mxu0 0
      %4786 = vmatpush1.bf16.msra.mxu0 0
      %4787 = vmatprep.mubr.bf16.mxu0 0
      %4788 = vmatmul.mubr.bf16.gmra.mrb[0].mxu0 %v4547
      %v4789 = vpop.f32.mrb[0].mxu0
      %v4790 = vadd.f32 %v4629, %v4789
      %v4791 = vpop.f32.mrb[0].mxu0
      %v4792 = vpop.f32.mrb[0].mxu0
      %v4793 = vadd.f32 %v4632, %v4792
      %v4794 = vpop.f32.mrb[0].mxu0
      %4795 = vmatprep.mubr.bf16.mxu0 0
      %4796 = vmatmul.mubr.bf16.gmra.mrb[0].mxu0 %v4550
      %v4797 = vpop.f32.mrb[0].mxu0
      %v4798 = vadd.f32 %v4637, %v4797
      %v4799 = vpop.f32.mrb[0].mxu0
      %v4800 = vpop.f32.mrb[0].mxu0
      %v4801 = vadd.f32 %v4640, %v4800
      %v4802 = vpop.f32.mrb[0].mxu0
      %4803 = vmatprep.mubr.bf16.mxu0 0
      %4804 = vmatmul.mubr.bf16.gmra.mrb[0].mxu0 %v4553
      %v4805 = vpop.f32.mrb[0].mxu0
      %v4806 = vadd.f32 %v4645, %v4805
      %v4807 = vpop.f32.mrb[0].mxu0
      %v4808 = vpop.f32.mrb[0].mxu0
      %v4809 = vadd.f32 %v4648, %v4808
      %v4810 = vpop.f32.mrb[0].mxu0
      %4811 = vmatprep.mubr.bf16.mxu0 0
      %4812 = vmatmul.mubr.bf16.gmra.mrb[0].mxu0 %v4556
      %v4813 = vpop.f32.mrb[0].mxu0
      %v4814 = vadd.f32 %v4653, %v4813
      %v4815 = vpop.f32.mrb[0].mxu0
      %v4816 = vpop.f32.mrb[0].mxu0
      %v4817 = vadd.f32 %v4656, %v4816
      %v4818 = vpop.f32.mrb[0].mxu0
      %4819 = vmatprep.mubr.bf16.mxu0 0
      %4820 = vmatmul.mubr.bf16.gmra.mrb[0].mxu0 %v4559
      %v4821 = vpop.f32.mrb[0].mxu0
      %v4822 = vadd.f32 %v4661, %v4821
      %v4823 = vpop.f32.mrb[0].mxu0
      %v4824 = vpop.f32.mrb[0].mxu0
      %v4825 = vadd.f32 %v4664, %v4824
      %v4826 = vpop.f32.mrb[0].mxu0
      %4827 = vmatprep.mubr.bf16.mxu0 0
      %4828 = vmatmul.mubr.bf16.gmra.mrb[0].mxu0 %v4562
      %v4829 = vpop.f32.mrb[0].mxu0
      %v4830 = vadd.f32 %v4669, %v4829
      %v4831 = vpop.f32.mrb[0].mxu0
      %v4832 = vpop.f32.mrb[0].mxu0
      %v4833 = vadd.f32 %v4672, %v4832
      %v4834 = vpop.f32.mrb[0].mxu0
      %4835 = vmatprep.mubr.bf16.mxu0 0
      %4836 = vmatmul.mubr.bf16.gmra.mrb[0].mxu0 %v4565
      %v4837 = vpop.f32.mrb[0].mxu0
      %v4838 = vadd.f32 %v4677, %v4837
      %v4839 = vpop.f32.mrb[0].mxu0
      %v4840 = vpop.f32.mrb[0].mxu0
      %v4841 = vadd.f32 %v4680, %v4840
      %v4842 = vpop.f32.mrb[0].mxu0
      %4843 = vmatprep.mubr.bf16.mxu0 0
      %4844 = vmatmul.mubr.bf16.gmra.mrb[0].mxu0 %v4568
      %v4845 = vpop.f32.mrb[0].mxu0
      %v4846 = vadd.f32 %v4685, %v4845
      %v4847 = vpop.f32.mrb[0].mxu0
      %v4848 = vpop.f32.mrb[0].mxu0
      %v4849 = vadd.f32 %v4688, %v4848
      %v4850 = vpop.f32.mrb[0].mxu0
      %4851 = vmatprep.mubr.bf16.mxu0 0
      %4852 = vmatmul.mubr.bf16.gmra.mrb[0].mxu0 %v4571
      %v4853 = vpop.f32.mrb[0].mxu0
      %v4854 = vadd.f32 %v4693, %v4853
      %v4855 = vpop.f32.mrb[0].mxu0
      %v4856 = vpop.f32.mrb[0].mxu0
      %v4857 = vadd.f32 %v4696, %v4856
      %v4858 = vpop.f32.mrb[0].mxu0
      %4859 = vmatprep.mubr.bf16.mxu0 0
      %4860 = vmatmul.mubr.bf16.gmra.mrb[0].mxu0 %v4574
      %v4861 = vpop.f32.mrb[0].mxu0
      %v4862 = vadd.f32 %v4701, %v4861
      %v4863 = vpop.f32.mrb[0].mxu0
      %v4864 = vpop.f32.mrb[0].mxu0
      %v4865 = vadd.f32 %v4704, %v4864
      %v4866 = vpop.f32.mrb[0].mxu0
      %4867 = vmatprep.mubr.bf16.mxu0 0
      %4868 = vmatmul.mubr.bf16.gmra.mrb[0].mxu0 %v4577
      %v4869 = vpop.f32.mrb[0].mxu0
      %v4870 = vadd.f32 %v4709, %v4869
      %v4871 = vpop.f32.mrb[0].mxu0
      %v4872 = vpop.f32.mrb[0].mxu0
      %v4873 = vadd.f32 %v4712, %v4872
      %v4874 = vpop.f32.mrb[0].mxu0
      %4875 = vmatprep.mubr.bf16.mxu0 0
      %4876 = vmatmul.mubr.bf16.gmra.mrb[0].mxu0 %v4580
      %v4877 = vpop.f32.mrb[0].mxu0
      %v4878 = vadd.f32 %v4717, %v4877
      %v4879 = vpop.f32.mrb[0].mxu0
      %v4880 = vpop.f32.mrb[0].mxu0
      %v4881 = vadd.f32 %v4720, %v4880
      %v4882 = vpop.f32.mrb[0].mxu0
      %4883 = vmatprep.mubr.bf16.mxu0 0
      %4884 = vmatmul.mubr.bf16.gmra.mrb[0].mxu0 %v4583
      %v4885 = vpop.f32.mrb[0].mxu0
      %v4886 = vadd.f32 %v4725, %v4885
      %v4887 = vpop.f32.mrb[0].mxu0
      %v4888 = vpop.f32.mrb[0].mxu0
      %v4889 = vadd.f32 %v4728, %v4888
      %v4890 = vpop.f32.mrb[0].mxu0
      %4891 = vmatprep.mubr.bf16.mxu0 0
      %4892 = vmatmul.mubr.bf16.gmra.mrb[0].mxu0 %v4586
      %v4893 = vpop.f32.mrb[0].mxu0
      %v4894 = vadd.f32 %v4733, %v4893
      %v4895 = vpop.f32.mrb[0].mxu0
      %v4896 = vpop.f32.mrb[0].mxu0
      %v4897 = vadd.f32 %v4736, %v4896
      %v4898 = vpop.f32.mrb[0].mxu0
      %4899 = vmatprep.mubr.bf16.mxu0 0
      %4900 = vmatmul.mubr.bf16.gmra.mrb[0].mxu0 %v4589
      %v4901 = vpop.f32.mrb[0].mxu0
      %v4902 = vadd.f32 %v4741, %v4901
      %v4903 = vpop.f32.mrb[0].mxu0
      %v4904 = vpop.f32.mrb[0].mxu0
      %v4905 = vadd.f32 %v4744, %v4904
      %v4906 = vpop.f32.mrb[0].mxu0
      %4907 = vmatprep.mubr.bf16.mxu0 0
      %4908 = vmatmul.mubr.bf16.gmra.mrb[0].mxu0 %v4592
      %v4909 = vpop.f32.mrb[0].mxu0
      %v4910 = vadd.f32 %v4749, %v4909
      %v4911 = vpop.f32.mrb[0].mxu0
      %v4912 = vpop.f32.mrb[0].mxu0
      %v4913 = vadd.f32 %v4752, %v4912
      %v4914 = vpop.f32.mrb[0].mxu0
      %4915 = vdwg.mxu0
      %v4916 = vmax.f32 %v4790, 0.0
      %v4917 = vmax.f32 %v4793, 0.0
      %v4918 = vmax.f32 %v4798, 0.0
      %v4919 = vmax.f32 %v4801, 0.0
      %v4920 = vmax.f32 %v4806, 0.0
      %v4921 = vmax.f32 %v4809, 0.0
      %v4922 = vmax.f32 %v4814, 0.0
      %v4923 = vmax.f32 %v4817, 0.0
      %v4924 = vmax.f32 %v4822, 0.0
      %v4925 = vmax.f32 %v4825, 0.0
      %v4926 = vmax.f32 %v4830, 0.0
      %v4927 = vmax.f32 %v4833, 0.0
      %v4928 = vmax.f32 %v4838, 0.0
      %v4929 = vmax.f32 %v4841, 0.0
      %v4930 = vmax.f32 %v4846, 0.0
      %v4931 = vmax.f32 %v4849, 0.0
      %v4932 = vmax.f32 %v4854, 0.0
      %v4933 = vmax.f32 %v4857, 0.0
      %v4934 = vmax.f32 %v4862, 0.0
      %v4935 = vmax.f32 %v4865, 0.0
      %v4936 = vmax.f32 %v4870, 0.0
      %v4937 = vmax.f32 %v4873, 0.0
      %v4938 = vmax.f32 %v4878, 0.0
      %v4939 = vmax.f32 %v4881, 0.0
      %v4940 = vmax.f32 %v4886, 0.0
      %v4941 = vmax.f32 %v4889, 0.0
      %v4942 = vmax.f32 %v4894, 0.0
      %v4943 = vmax.f32 %v4897, 0.0
      %v4944 = vmax.f32 %v4902, 0.0
      %v4945 = vmax.f32 %v4905, 0.0
      %v4946 = vmax.f32 %v4910, 0.0
      %v4947 = vmax.f32 %v4913, 0.0
      %4948 = vst.msk [vmem:[%s1760 + $0x1] sm:$0xff] %vm299, %v4916
      %4949 = vst.msk [vmem:[%s1760 + $0x9] sm:$0xff] %vm299, %v4917
      %4950 = vst.msk [vmem:[%s1760 + $0x19] sm:$0xff] %vm299, %v4918
      %4951 = vst.msk [vmem:[%s1760 + $0x21] sm:$0xff] %vm299, %v4919
      %4952 = vst.msk [vmem:[%s1760 + $0x31] sm:$0xff] %vm299, %v4920
      %4953 = vst.msk [vmem:[%s1760 + $0x39] sm:$0xff] %vm299, %v4921
      %4954 = vst.msk [vmem:[%s1760 + $0x49] sm:$0xff] %vm299, %v4922
      %4955 = vst.msk [vmem:[%s1760 + $0x51] sm:$0xff] %vm299, %v4923
      %4956 = vst.msk [vmem:[%s1760 + $0x61] sm:$0xff] %vm299, %v4924
      %4957 = vst.msk [vmem:[%s1760 + $0x69] sm:$0xff] %vm299, %v4925
      %4958 = vst.msk [vmem:[%s1760 + $0x79] sm:$0xff] %vm299, %v4926
      %4959 = vst.msk [vmem:[%s1760 + $0x81] sm:$0xff] %vm299, %v4927
      %4960 = vst.msk [vmem:[%s1760 + $0x91] sm:$0xff] %vm299, %v4928
      %4961 = vst.msk [vmem:[%s1760 + $0x99] sm:$0xff] %vm299, %v4929
      %4962 = vst.msk [vmem:[%s1760 + $0xa9] sm:$0xff] %vm299, %v4930
      %4963 = vst.msk [vmem:[%s1760 + $0xb1] sm:$0xff] %vm299, %v4931
      %4964 = vst.msk [vmem:[%s1760 + $0xc1] sm:$0xff] %vm299, %v4932
      %4965 = vst.msk [vmem:[%s1760 + $0xc9] sm:$0xff] %vm299, %v4933
      %4966 = vst.msk [vmem:[%s1760 + $0xd9] sm:$0xff] %vm299, %v4934
      %4967 = vst.msk [vmem:[%s1760 + $0xe1] sm:$0xff] %vm299, %v4935
      %4968 = vst.msk [vmem:[%s1760 + $0xf1] sm:$0xff] %vm299, %v4936
      %4969 = vst.msk [vmem:[%s1760 + $0xf9] sm:$0xff] %vm299, %v4937
      %4970 = vst.msk [vmem:[%s1760 + $0x109] sm:$0xff] %vm299, %v4938
      %4971 = vst.msk [vmem:[%s1760 + $0x111] sm:$0xff] %vm299, %v4939
      %4972 = vst.msk [vmem:[%s1760 + $0x121] sm:$0xff] %vm299, %v4940
      %4973 = vst.msk [vmem:[%s1760 + $0x129] sm:$0xff] %vm299, %v4941
      %4974 = vst.msk [vmem:[%s1760 + $0x139] sm:$0xff] %vm299, %v4942
      %4975 = vst.msk [vmem:[%s1760 + $0x141] sm:$0xff] %vm299, %v4943
      %4976 = vst.msk [vmem:[%s1760 + $0x151] sm:$0xff] %vm299, %v4944
      %4977 = vst.msk [vmem:[%s1760 + $0x159] sm:$0xff] %vm299, %v4945
      %4978 = vst.msk [vmem:[%s1760 + $0x169] sm:$0xff] %vm299, %v4946
      %4979 = vst.msk [vmem:[%s1760 + $0x171] sm:$0xff] %vm299, %v4947
      %v4980 = vld [vmem:[#allocation3] sm:$0xff]
      %v4981 = vld [vmem:[#allocation3 + $0x8] sm:$0xff]
      %v4982 = vld [vmem:[#allocation3 + $0x18] sm:$0xff]
      %v4983 = vld [vmem:[#allocation3 + $0x20] sm:$0xff]
      %v4984 = vld [vmem:[#allocation3 + $0x30] sm:$0xff]
      %v4985 = vld [vmem:[#allocation3 + $0x38] sm:$0xff]
      %v4986 = vld [vmem:[#allocation3 + $0x48] sm:$0xff]
      %v4987 = vld [vmem:[#allocation3 + $0x50] sm:$0xff]
      %v4988 = vld [vmem:[#allocation3 + $0x60] sm:$0xff]
      %v4989 = vld [vmem:[#allocation3 + $0x68] sm:$0xff]
      %v4990 = vld [vmem:[#allocation3 + $0x78] sm:$0xff]
      %v4991 = vld [vmem:[#allocation3 + $0x80] sm:$0xff]
      %v4992 = vld [vmem:[#allocation3 + $0x90] sm:$0xff]
      %v4993 = vld [vmem:[#allocation3 + $0x98] sm:$0xff]
      %v4994 = vld [vmem:[#allocation3 + $0xa8] sm:$0xff]
      %v4995 = vld [vmem:[#allocation3 + $0xb0] sm:$0xff]
      %v4996 = vld [vmem:[#allocation3 + $0xc0] sm:$0xff]
      %v4997 = vld [vmem:[#allocation3 + $0xc8] sm:$0xff]
      %v4998 = vld [vmem:[#allocation3 + $0xd8] sm:$0xff]
      %v4999 = vld [vmem:[#allocation3 + $0xe0] sm:$0xff]
      %v5000 = vld [vmem:[#allocation3 + $0xf0] sm:$0xff]
      %v5001 = vld [vmem:[#allocation3 + $0xf8] sm:$0xff]
      %v5002 = vld [vmem:[#allocation3 + $0x108] sm:$0xff]
      %v5003 = vld [vmem:[#allocation3 + $0x110] sm:$0xff]
      %v5004 = vld [vmem:[#allocation3 + $0x120] sm:$0xff]
      %v5005 = vld [vmem:[#allocation3 + $0x128] sm:$0xff]
      %v5006 = vld [vmem:[#allocation3 + $0x138] sm:$0xff]
      %v5007 = vld [vmem:[#allocation3 + $0x140] sm:$0xff]
      %v5008 = vld [vmem:[#allocation3 + $0x150] sm:$0xff]
      %v5009 = vld [vmem:[#allocation3 + $0x158] sm:$0xff]
      %v5010 = vld [vmem:[#allocation3 + $0x168] sm:$0xff]
      %v5011 = vld [vmem:[#allocation3 + $0x170] sm:$0xff]
      %v5012 = vpack.c.bf16 %v4981, %v4980
      %v5013 = vpack.c.bf16 %v4983, %v4982
      %v5014 = vpack.c.bf16 %v4985, %v4984
      %v5015 = vpack.c.bf16 %v4987, %v4986
      %v5016 = vpack.c.bf16 %v4989, %v4988
      %v5017 = vpack.c.bf16 %v4991, %v4990
      %v5018 = vpack.c.bf16 %v4993, %v4992
      %v5019 = vpack.c.bf16 %v4995, %v4994
      %v5020 = vpack.c.bf16 %v4997, %v4996
      %v5021 = vpack.c.bf16 %v4999, %v4998
      %v5022 = vpack.c.bf16 %v5001, %v5000
      %v5023 = vpack.c.bf16 %v5003, %v5002
      %v5024 = vpack.c.bf16 %v5005, %v5004
      %v5025 = vpack.c.bf16 %v5007, %v5006
      %v5026 = vpack.c.bf16 %v5009, %v5008
      %v5027 = vpack.c.bf16 %v5011, %v5010
      %5028 = vst.msk [vmem:[#allocation4] sm:$0xff] %vm299, %v5012
      %5029 = vst.msk [vmem:[#allocation4 + $0x18] sm:$0xff] %vm299, %v5013
      %5030 = vst.msk [vmem:[#allocation4 + $0x30] sm:$0xff] %vm299, %v5014
      %5031 = vst.msk [vmem:[#allocation4 + $0x48] sm:$0xff] %vm299, %v5015
      %5032 = vst.msk [vmem:[#allocation4 + $0x60] sm:$0xff] %vm299, %v5016
      %5033 = vst.msk [vmem:[#allocation4 + $0x78] sm:$0xff] %vm299, %v5017
      %5034 = vst.msk [vmem:[#allocation4 + $0x90] sm:$0xff] %vm299, %v5018
      %5035 = vst.msk [vmem:[#allocation4 + $0xa8] sm:$0xff] %vm299, %v5019
      %5036 = vst.msk [vmem:[#allocation4 + $0xc0] sm:$0xff] %vm299, %v5020
      %5037 = vst.msk [vmem:[#allocation4 + $0xd8] sm:$0xff] %vm299, %v5021
      %5038 = vst.msk [vmem:[#allocation4 + $0xf0] sm:$0xff] %vm299, %v5022
      %5039 = vst.msk [vmem:[#allocation4 + $0x108] sm:$0xff] %vm299, %v5023
      %5040 = vst.msk [vmem:[#allocation4 + $0x120] sm:$0xff] %vm299, %v5024
      %5041 = vst.msk [vmem:[#allocation4 + $0x138] sm:$0xff] %vm299, %v5025
      %5042 = vst.msk [vmem:[#allocation4 + $0x150] sm:$0xff] %vm299, %v5026
      %5043 = vst.msk [vmem:[#allocation4 + $0x168] sm:$0xff] %vm299, %v5027
      %v5044 = vld [vmem:[#allocation3 + $0x1] sm:$0xff]
      %v5045 = vld [vmem:[#allocation3 + $0x9] sm:$0xff]
      %v5046 = vld [vmem:[#allocation3 + $0x19] sm:$0xff]
      %v5047 = vld [vmem:[#allocation3 + $0x21] sm:$0xff]
      %v5048 = vld [vmem:[#allocation3 + $0x31] sm:$0xff]
      %v5049 = vld [vmem:[#allocation3 + $0x39] sm:$0xff]
      %v5050 = vld [vmem:[#allocation3 + $0x49] sm:$0xff]
      %v5051 = vld [vmem:[#allocation3 + $0x51] sm:$0xff]
      %v5052 = vld [vmem:[#allocation3 + $0x61] sm:$0xff]
      %v5053 = vld [vmem:[#allocation3 + $0x69] sm:$0xff]
      %v5054 = vld [vmem:[#allocation3 + $0x79] sm:$0xff]
      %v5055 = vld [vmem:[#allocation3 + $0x81] sm:$0xff]
      %v5056 = vld [vmem:[#allocation3 + $0x91] sm:$0xff]
      %v5057 = vld [vmem:[#allocation3 + $0x99] sm:$0xff]
      %v5058 = vld [vmem:[#allocation3 + $0xa9] sm:$0xff]
      %v5059 = vld [vmem:[#allocation3 + $0xb1] sm:$0xff]
      %v5060 = vld [vmem:[#allocation3 + $0xc1] sm:$0xff]
      %v5061 = vld [vmem:[#allocation3 + $0xc9] sm:$0xff]
      %v5062 = vld [vmem:[#allocation3 + $0xd9] sm:$0xff]
      %v5063 = vld [vmem:[#allocation3 + $0xe1] sm:$0xff]
      %v5064 = vld [vmem:[#allocation3 + $0xf1] sm:$0xff]
      %v5065 = vld [vmem:[#allocation3 + $0xf9] sm:$0xff]
      %v5066 = vld [vmem:[#allocation3 + $0x109] sm:$0xff]
      %v5067 = vld [vmem:[#allocation3 + $0x111] sm:$0xff]
      %v5068 = vld [vmem:[#allocation3 + $0x121] sm:$0xff]
      %v5069 = vld [vmem:[#allocation3 + $0x129] sm:$0xff]
      %v5070 = vld [vmem:[#allocation3 + $0x139] sm:$0xff]
      %v5071 = vld [vmem:[#allocation3 + $0x141] sm:$0xff]
      %v5072 = vld [vmem:[#allocation3 + $0x151] sm:$0xff]
      %v5073 = vld [vmem:[#allocation3 + $0x159] sm:$0xff]
      %v5074 = vld [vmem:[#allocation3 + $0x169] sm:$0xff]
      %v5075 = vld [vmem:[#allocation3 + $0x171] sm:$0xff]
      %v5076 = vpack.c.bf16 %v5045, %v5044
      %v5077 = vpack.c.bf16 %v5047, %v5046
      %v5078 = vpack.c.bf16 %v5049, %v5048
      %v5079 = vpack.c.bf16 %v5051, %v5050
      %v5080 = vpack.c.bf16 %v5053, %v5052
      %v5081 = vpack.c.bf16 %v5055, %v5054
      %v5082 = vpack.c.bf16 %v5057, %v5056
      %v5083 = vpack.c.bf16 %v5059, %v5058
      %v5084 = vpack.c.bf16 %v5061, %v5060
      %v5085 = vpack.c.bf16 %v5063, %v5062
      %v5086 = vpack.c.bf16 %v5065, %v5064
      %v5087 = vpack.c.bf16 %v5067, %v5066
      %v5088 = vpack.c.bf16 %v5069, %v5068
      %v5089 = vpack.c.bf16 %v5071, %v5070
      %v5090 = vpack.c.bf16 %v5073, %v5072
      %v5091 = vpack.c.bf16 %v5075, %v5074
      %5108 = vrot.lane.b32.xlu0 %v5076, 32
      %v5109 = vpop.permute.xlu0 %5108
      %5110 = vrot.lane.b32.xlu0 %v5077, 32
      %v5111 = vpop.permute.xlu0 %5110
      %5112 = vrot.lane.b32.xlu0 %v5078, 32
      %v5113 = vpop.permute.xlu0 %5112
      %5114 = vrot.lane.b32.xlu0 %v5079, 32
      %v5115 = vpop.permute.xlu0 %5114
      %5116 = vrot.lane.b32.xlu0 %v5080, 32
      %v5117 = vpop.permute.xlu0 %5116
      %5118 = vrot.lane.b32.xlu0 %v5081, 32
      %v5119 = vpop.permute.xlu0 %5118
      %5120 = vrot.lane.b32.xlu0 %v5082, 32
      %v5121 = vpop.permute.xlu0 %5120
      %5122 = vrot.lane.b32.xlu0 %v5083, 32
      %v5123 = vpop.permute.xlu0 %5122
      %5124 = vrot.lane.b32.xlu0 %v5084, 32
      %v5125 = vpop.permute.xlu0 %5124
      %5126 = vrot.lane.b32.xlu0 %v5085, 32
      %v5127 = vpop.permute.xlu0 %5126
      %5128 = vrot.lane.b32.xlu0 %v5086, 32
      %v5129 = vpop.permute.xlu0 %5128
      %5130 = vrot.lane.b32.xlu0 %v5087, 32
      %v5131 = vpop.permute.xlu0 %5130
      %5132 = vrot.lane.b32.xlu0 %v5088, 32
      %v5133 = vpop.permute.xlu0 %5132
      %5134 = vrot.lane.b32.xlu0 %v5089, 32
      %v5135 = vpop.permute.xlu0 %5134
      %5136 = vrot.lane.b32.xlu0 %v5090, 32
      %v5137 = vpop.permute.xlu0 %5136
      %5138 = vrot.lane.b32.xlu0 %v5091, 32
      %v5139 = vpop.permute.xlu0 %5138
      %5156 = vst.msk [vmem:[#allocation4] sm:$0xff] %vm1969, %v5109
      %5157 = vst.msk [vmem:[#allocation4 + $0x18] sm:$0xff] %vm1969, %v5111
      %5158 = vst.msk [vmem:[#allocation4 + $0x30] sm:$0xff] %vm1969, %v5113
      %5159 = vst.msk [vmem:[#allocation4 + $0x48] sm:$0xff] %vm1969, %v5115
      %5160 = vst.msk [vmem:[#allocation4 + $0x60] sm:$0xff] %vm1969, %v5117
      %5161 = vst.msk [vmem:[#allocation4 + $0x78] sm:$0xff] %vm1969, %v5119
      %5162 = vst.msk [vmem:[#allocation4 + $0x90] sm:$0xff] %vm1969, %v5121
      %5163 = vst.msk [vmem:[#allocation4 + $0xa8] sm:$0xff] %vm1969, %v5123
      %5164 = vst.msk [vmem:[#allocation4 + $0xc0] sm:$0xff] %vm1969, %v5125
      %5165 = vst.msk [vmem:[#allocation4 + $0xd8] sm:$0xff] %vm1969, %v5127
      %5166 = vst.msk [vmem:[#allocation4 + $0xf0] sm:$0xff] %vm1969, %v5129
      %5167 = vst.msk [vmem:[#allocation4 + $0x108] sm:$0xff] %vm1969, %v5131
      %5168 = vst.msk [vmem:[#allocation4 + $0x120] sm:$0xff] %vm1969, %v5133
      %5169 = vst.msk [vmem:[#allocation4 + $0x138] sm:$0xff] %vm1969, %v5135
      %5170 = vst.msk [vmem:[#allocation4 + $0x150] sm:$0xff] %vm1969, %v5137
      %5171 = vst.msk [vmem:[#allocation4 + $0x168] sm:$0xff] %vm1969, %v5139
      %v5172 = vld [vmem:[#allocation3 + $0x2] sm:$0xff]
      %v5173 = vld [vmem:[#allocation3 + $0xa] sm:$0xff]
      %v5174 = vld [vmem:[#allocation3 + $0x1a] sm:$0xff]
      %v5175 = vld [vmem:[#allocation3 + $0x22] sm:$0xff]
      %v5176 = vld [vmem:[#allocation3 + $0x32] sm:$0xff]
      %v5177 = vld [vmem:[#allocation3 + $0x3a] sm:$0xff]
      %v5178 = vld [vmem:[#allocation3 + $0x4a] sm:$0xff]
      %v5179 = vld [vmem:[#allocation3 + $0x52] sm:$0xff]
      %v5180 = vld [vmem:[#allocation3 + $0x62] sm:$0xff]
      %v5181 = vld [vmem:[#allocation3 + $0x6a] sm:$0xff]
      %v5182 = vld [vmem:[#allocation3 + $0x7a] sm:$0xff]
      %v5183 = vld [vmem:[#allocation3 + $0x82] sm:$0xff]
      %v5184 = vld [vmem:[#allocation3 + $0x92] sm:$0xff]
      %v5185 = vld [vmem:[#allocation3 + $0x9a] sm:$0xff]
      %v5186 = vld [vmem:[#allocation3 + $0xaa] sm:$0xff]
      %v5187 = vld [vmem:[#allocation3 + $0xb2] sm:$0xff]
      %v5188 = vld [vmem:[#allocation3 + $0xc2] sm:$0xff]
      %v5189 = vld [vmem:[#allocation3 + $0xca] sm:$0xff]
      %v5190 = vld [vmem:[#allocation3 + $0xda] sm:$0xff]
      %v5191 = vld [vmem:[#allocation3 + $0xe2] sm:$0xff]
      %v5192 = vld [vmem:[#allocation3 + $0xf2] sm:$0xff]
      %v5193 = vld [vmem:[#allocation3 + $0xfa] sm:$0xff]
      %v5194 = vld [vmem:[#allocation3 + $0x10a] sm:$0xff]
      %v5195 = vld [vmem:[#allocation3 + $0x112] sm:$0xff]
      %v5196 = vld [vmem:[#allocation3 + $0x122] sm:$0xff]
      %v5197 = vld [vmem:[#allocation3 + $0x12a] sm:$0xff]
      %v5198 = vld [vmem:[#allocation3 + $0x13a] sm:$0xff]
      %v5199 = vld [vmem:[#allocation3 + $0x142] sm:$0xff]
      %v5200 = vld [vmem:[#allocation3 + $0x152] sm:$0xff]
      %v5201 = vld [vmem:[#allocation3 + $0x15a] sm:$0xff]
      %v5202 = vld [vmem:[#allocation3 + $0x16a] sm:$0xff]
      %v5203 = vld [vmem:[#allocation3 + $0x172] sm:$0xff]
      %v5204 = vpack.c.bf16 %v5173, %v5172
      %v5205 = vpack.c.bf16 %v5175, %v5174
      %v5206 = vpack.c.bf16 %v5177, %v5176
      %v5207 = vpack.c.bf16 %v5179, %v5178
      %v5208 = vpack.c.bf16 %v5181, %v5180
      %v5209 = vpack.c.bf16 %v5183, %v5182
      %v5210 = vpack.c.bf16 %v5185, %v5184
      %v5211 = vpack.c.bf16 %v5187, %v5186
      %v5212 = vpack.c.bf16 %v5189, %v5188
      %v5213 = vpack.c.bf16 %v5191, %v5190
      %v5214 = vpack.c.bf16 %v5193, %v5192
      %v5215 = vpack.c.bf16 %v5195, %v5194
      %v5216 = vpack.c.bf16 %v5197, %v5196
      %v5217 = vpack.c.bf16 %v5199, %v5198
      %v5218 = vpack.c.bf16 %v5201, %v5200
      %v5219 = vpack.c.bf16 %v5203, %v5202
      %5236 = vrot.lane.b32.xlu0 %v5204, 64
      %v5237 = vpop.permute.xlu0 %5236
      %5238 = vrot.lane.b32.xlu0 %v5205, 64
      %v5239 = vpop.permute.xlu0 %5238
      %5240 = vrot.lane.b32.xlu0 %v5206, 64
      %v5241 = vpop.permute.xlu0 %5240
      %5242 = vrot.lane.b32.xlu0 %v5207, 64
      %v5243 = vpop.permute.xlu0 %5242
      %5244 = vrot.lane.b32.xlu0 %v5208, 64
      %v5245 = vpop.permute.xlu0 %5244
      %5246 = vrot.lane.b32.xlu0 %v5209, 64
      %v5247 = vpop.permute.xlu0 %5246
      %5248 = vrot.lane.b32.xlu0 %v5210, 64
      %v5249 = vpop.permute.xlu0 %5248
      %5250 = vrot.lane.b32.xlu0 %v5211, 64
      %v5251 = vpop.permute.xlu0 %5250
      %5252 = vrot.lane.b32.xlu0 %v5212, 64
      %v5253 = vpop.permute.xlu0 %5252
      %5254 = vrot.lane.b32.xlu0 %v5213, 64
      %v5255 = vpop.permute.xlu0 %5254
      %5256 = vrot.lane.b32.xlu0 %v5214, 64
      %v5257 = vpop.permute.xlu0 %5256
      %5258 = vrot.lane.b32.xlu0 %v5215, 64
      %v5259 = vpop.permute.xlu0 %5258
      %5260 = vrot.lane.b32.xlu0 %v5216, 64
      %v5261 = vpop.permute.xlu0 %5260
      %5262 = vrot.lane.b32.xlu0 %v5217, 64
      %v5263 = vpop.permute.xlu0 %5262
      %5264 = vrot.lane.b32.xlu0 %v5218, 64
      %v5265 = vpop.permute.xlu0 %5264
      %5266 = vrot.lane.b32.xlu0 %v5219, 64
      %v5267 = vpop.permute.xlu0 %5266
      %5284 = vst.msk [vmem:[#allocation4] sm:$0xff] %vm2098, %v5237
      %5285 = vst.msk [vmem:[#allocation4 + $0x18] sm:$0xff] %vm2098, %v5239
      %5286 = vst.msk [vmem:[#allocation4 + $0x30] sm:$0xff] %vm2098, %v5241
      %5287 = vst.msk [vmem:[#allocation4 + $0x48] sm:$0xff] %vm2098, %v5243
      %5288 = vst.msk [vmem:[#allocation4 + $0x60] sm:$0xff] %vm2098, %v5245
      %5289 = vst.msk [vmem:[#allocation4 + $0x78] sm:$0xff] %vm2098, %v5247
      %5290 = vst.msk [vmem:[#allocation4 + $0x90] sm:$0xff] %vm2098, %v5249
      %5291 = vst.msk [vmem:[#allocation4 + $0xa8] sm:$0xff] %vm2098, %v5251
      %5292 = vst.msk [vmem:[#allocation4 + $0xc0] sm:$0xff] %vm2098, %v5253
      %5293 = vst.msk [vmem:[#allocation4 + $0xd8] sm:$0xff] %vm2098, %v5255
      %5294 = vst.msk [vmem:[#allocation4 + $0xf0] sm:$0xff] %vm2098, %v5257
      %5295 = vst.msk [vmem:[#allocation4 + $0x108] sm:$0xff] %vm2098, %v5259
      %5296 = vst.msk [vmem:[#allocation4 + $0x120] sm:$0xff] %vm2098, %v5261
      %5297 = vst.msk [vmem:[#allocation4 + $0x138] sm:$0xff] %vm2098, %v5263
      %5298 = vst.msk [vmem:[#allocation4 + $0x150] sm:$0xff] %vm2098, %v5265
      %5299 = vst.msk [vmem:[#allocation4 + $0x168] sm:$0xff] %vm2098, %v5267
      %v5300 = vld [vmem:[%s1760] sm:$0xff]
      %v5301 = vld [vmem:[%s1760 + $0x8] sm:$0xff]
      %v5302 = vld [vmem:[%s1760 + $0x18] sm:$0xff]
      %v5303 = vld [vmem:[%s1760 + $0x20] sm:$0xff]
      %v5304 = vld [vmem:[%s1760 + $0x30] sm:$0xff]
      %v5305 = vld [vmem:[%s1760 + $0x38] sm:$0xff]
      %v5306 = vld [vmem:[%s1760 + $0x48] sm:$0xff]
      %v5307 = vld [vmem:[%s1760 + $0x50] sm:$0xff]
      %v5308 = vld [vmem:[%s1760 + $0x60] sm:$0xff]
      %v5309 = vld [vmem:[%s1760 + $0x68] sm:$0xff]
      %v5310 = vld [vmem:[%s1760 + $0x78] sm:$0xff]
      %v5311 = vld [vmem:[%s1760 + $0x80] sm:$0xff]
      %v5312 = vld [vmem:[%s1760 + $0x90] sm:$0xff]
      %v5313 = vld [vmem:[%s1760 + $0x98] sm:$0xff]
      %v5314 = vld [vmem:[%s1760 + $0xa8] sm:$0xff]
      %v5315 = vld [vmem:[%s1760 + $0xb0] sm:$0xff]
      %v5316 = vld [vmem:[%s1760 + $0xc0] sm:$0xff]
      %v5317 = vld [vmem:[%s1760 + $0xc8] sm:$0xff]
      %v5318 = vld [vmem:[%s1760 + $0xd8] sm:$0xff]
      %v5319 = vld [vmem:[%s1760 + $0xe0] sm:$0xff]
      %v5320 = vld [vmem:[%s1760 + $0xf0] sm:$0xff]
      %v5321 = vld [vmem:[%s1760 + $0xf8] sm:$0xff]
      %v5322 = vld [vmem:[%s1760 + $0x108] sm:$0xff]
      %v5323 = vld [vmem:[%s1760 + $0x110] sm:$0xff]
      %v5324 = vld [vmem:[%s1760 + $0x120] sm:$0xff]
      %v5325 = vld [vmem:[%s1760 + $0x128] sm:$0xff]
      %v5326 = vld [vmem:[%s1760 + $0x138] sm:$0xff]
      %v5327 = vld [vmem:[%s1760 + $0x140] sm:$0xff]
      %v5328 = vld [vmem:[%s1760 + $0x150] sm:$0xff]
      %v5329 = vld [vmem:[%s1760 + $0x158] sm:$0xff]
      %v5330 = vld [vmem:[%s1760 + $0x168] sm:$0xff]
      %v5331 = vld [vmem:[%s1760 + $0x170] sm:$0xff]
      %v5332 = vpack.c.bf16 %v5301, %v5300
      %v5333 = vpack.c.bf16 %v5303, %v5302
      %v5334 = vpack.c.bf16 %v5305, %v5304
      %v5335 = vpack.c.bf16 %v5307, %v5306
      %v5336 = vpack.c.bf16 %v5309, %v5308
      %v5337 = vpack.c.bf16 %v5311, %v5310
      %v5338 = vpack.c.bf16 %v5313, %v5312
      %v5339 = vpack.c.bf16 %v5315, %v5314
      %v5340 = vpack.c.bf16 %v5317, %v5316
      %v5341 = vpack.c.bf16 %v5319, %v5318
      %v5342 = vpack.c.bf16 %v5321, %v5320
      %v5343 = vpack.c.bf16 %v5323, %v5322
      %v5344 = vpack.c.bf16 %v5325, %v5324
      %v5345 = vpack.c.bf16 %v5327, %v5326
      %v5346 = vpack.c.bf16 %v5329, %v5328
      %v5347 = vpack.c.bf16 %v5331, %v5330
      %5364 = vrot.lane.b32.xlu0 %v5332, 96
      %v5365 = vpop.permute.xlu0 %5364
      %5366 = vrot.lane.b32.xlu0 %v5333, 96
      %v5367 = vpop.permute.xlu0 %5366
      %5368 = vrot.lane.b32.xlu0 %v5334, 96
      %v5369 = vpop.permute.xlu0 %5368
      %5370 = vrot.lane.b32.xlu0 %v5335, 96
      %v5371 = vpop.permute.xlu0 %5370
      %5372 = vrot.lane.b32.xlu0 %v5336, 96
      %v5373 = vpop.permute.xlu0 %5372
      %5374 = vrot.lane.b32.xlu0 %v5337, 96
      %v5375 = vpop.permute.xlu0 %5374
      %5376 = vrot.lane.b32.xlu0 %v5338, 96
      %v5377 = vpop.permute.xlu0 %5376
      %5378 = vrot.lane.b32.xlu0 %v5339, 96
      %v5379 = vpop.permute.xlu0 %5378
      %5380 = vrot.lane.b32.xlu0 %v5340, 96
      %v5381 = vpop.permute.xlu0 %5380
      %5382 = vrot.lane.b32.xlu0 %v5341, 96
      %v5383 = vpop.permute.xlu0 %5382
      %5384 = vrot.lane.b32.xlu0 %v5342, 96
      %v5385 = vpop.permute.xlu0 %5384
      %5386 = vrot.lane.b32.xlu0 %v5343, 96
      %v5387 = vpop.permute.xlu0 %5386
      %5388 = vrot.lane.b32.xlu0 %v5344, 96
      %v5389 = vpop.permute.xlu0 %5388
      %5390 = vrot.lane.b32.xlu0 %v5345, 96
      %v5391 = vpop.permute.xlu0 %5390
      %5392 = vrot.lane.b32.xlu0 %v5346, 96
      %v5393 = vpop.permute.xlu0 %5392
      %5394 = vrot.lane.b32.xlu0 %v5347, 96
      %v5395 = vpop.permute.xlu0 %5394
      %5412 = vst.msk [vmem:[#allocation4] sm:$0xff] %vm2227, %v5365
      %5413 = vst.msk [vmem:[#allocation4 + $0x18] sm:$0xff] %vm2227, %v5367
      %5414 = vst.msk [vmem:[#allocation4 + $0x30] sm:$0xff] %vm2227, %v5369
      %5415 = vst.msk [vmem:[#allocation4 + $0x48] sm:$0xff] %vm2227, %v5371
      %5416 = vst.msk [vmem:[#allocation4 + $0x60] sm:$0xff] %vm2227, %v5373
      %5417 = vst.msk [vmem:[#allocation4 + $0x78] sm:$0xff] %vm2227, %v5375
      %5418 = vst.msk [vmem:[#allocation4 + $0x90] sm:$0xff] %vm2227, %v5377
      %5419 = vst.msk [vmem:[#allocation4 + $0xa8] sm:$0xff] %vm2227, %v5379
      %5420 = vst.msk [vmem:[#allocation4 + $0xc0] sm:$0xff] %vm2227, %v5381
      %5421 = vst.msk [vmem:[#allocation4 + $0xd8] sm:$0xff] %vm2227, %v5383
      %5422 = vst.msk [vmem:[#allocation4 + $0xf0] sm:$0xff] %vm2227, %v5385
      %5423 = vst.msk [vmem:[#allocation4 + $0x108] sm:$0xff] %vm2227, %v5387
      %5424 = vst.msk [vmem:[#allocation4 + $0x120] sm:$0xff] %vm2227, %v5389
      %5425 = vst.msk [vmem:[#allocation4 + $0x138] sm:$0xff] %vm2227, %v5391
      %5426 = vst.msk [vmem:[#allocation4 + $0x150] sm:$0xff] %vm2227, %v5393
      %5427 = vst.msk [vmem:[#allocation4 + $0x168] sm:$0xff] %vm2227, %v5395
      %v5428 = vld [vmem:[%s1760 + $0x1] sm:$0xff]
      %v5429 = vld [vmem:[%s1760 + $0x9] sm:$0xff]
      %v5430 = vld [vmem:[%s1760 + $0x19] sm:$0xff]
      %v5431 = vld [vmem:[%s1760 + $0x21] sm:$0xff]
      %v5432 = vld [vmem:[%s1760 + $0x31] sm:$0xff]
      %v5433 = vld [vmem:[%s1760 + $0x39] sm:$0xff]
      %v5434 = vld [vmem:[%s1760 + $0x49] sm:$0xff]
      %v5435 = vld [vmem:[%s1760 + $0x51] sm:$0xff]
      %v5436 = vld [vmem:[%s1760 + $0x61] sm:$0xff]
      %v5437 = vld [vmem:[%s1760 + $0x69] sm:$0xff]
      %v5438 = vld [vmem:[%s1760 + $0x79] sm:$0xff]
      %v5439 = vld [vmem:[%s1760 + $0x81] sm:$0xff]
      %v5440 = vld [vmem:[%s1760 + $0x91] sm:$0xff]
      %v5441 = vld [vmem:[%s1760 + $0x99] sm:$0xff]
      %v5442 = vld [vmem:[%s1760 + $0xa9] sm:$0xff]
      %v5443 = vld [vmem:[%s1760 + $0xb1] sm:$0xff]
      %v5444 = vld [vmem:[%s1760 + $0xc1] sm:$0xff]
      %v5445 = vld [vmem:[%s1760 + $0xc9] sm:$0xff]
      %v5446 = vld [vmem:[%s1760 + $0xd9] sm:$0xff]
      %v5447 = vld [vmem:[%s1760 + $0xe1] sm:$0xff]
      %v5448 = vld [vmem:[%s1760 + $0xf1] sm:$0xff]
      %v5449 = vld [vmem:[%s1760 + $0xf9] sm:$0xff]
      %v5450 = vld [vmem:[%s1760 + $0x109] sm:$0xff]
      %v5451 = vld [vmem:[%s1760 + $0x111] sm:$0xff]
      %v5452 = vld [vmem:[%s1760 + $0x121] sm:$0xff]
      %v5453 = vld [vmem:[%s1760 + $0x129] sm:$0xff]
      %v5454 = vld [vmem:[%s1760 + $0x139] sm:$0xff]
      %v5455 = vld [vmem:[%s1760 + $0x141] sm:$0xff]
      %v5456 = vld [vmem:[%s1760 + $0x151] sm:$0xff]
      %v5457 = vld [vmem:[%s1760 + $0x159] sm:$0xff]
      %v5458 = vld [vmem:[%s1760 + $0x169] sm:$0xff]
      %v5459 = vld [vmem:[%s1760 + $0x171] sm:$0xff]
      %v5460 = vpack.c.bf16 %v5429, %v5428
      %v5461 = vpack.c.bf16 %v5431, %v5430
      %v5462 = vpack.c.bf16 %v5433, %v5432
      %v5463 = vpack.c.bf16 %v5435, %v5434
      %v5464 = vpack.c.bf16 %v5437, %v5436
      %v5465 = vpack.c.bf16 %v5439, %v5438
      %v5466 = vpack.c.bf16 %v5441, %v5440
      %v5467 = vpack.c.bf16 %v5443, %v5442
      %v5468 = vpack.c.bf16 %v5445, %v5444
      %v5469 = vpack.c.bf16 %v5447, %v5446
      %v5470 = vpack.c.bf16 %v5449, %v5448
      %v5471 = vpack.c.bf16 %v5451, %v5450
      %v5472 = vpack.c.bf16 %v5453, %v5452
      %v5473 = vpack.c.bf16 %v5455, %v5454
      %v5474 = vpack.c.bf16 %v5457, %v5456
      %v5475 = vpack.c.bf16 %v5459, %v5458
      %5476 = vst.msk [vmem:[#allocation4 + $0x8] sm:$0xff] %vm299, %v5460
      %5477 = vst.msk [vmem:[#allocation4 + $0x20] sm:$0xff] %vm299, %v5461
      %5478 = vst.msk [vmem:[#allocation4 + $0x38] sm:$0xff] %vm299, %v5462
      %5479 = vst.msk [vmem:[#allocation4 + $0x50] sm:$0xff] %vm299, %v5463
      %5480 = vst.msk [vmem:[#allocation4 + $0x68] sm:$0xff] %vm299, %v5464
      %5481 = vst.msk [vmem:[#allocation4 + $0x80] sm:$0xff] %vm299, %v5465
      %5482 = vst.msk [vmem:[#allocation4 + $0x98] sm:$0xff] %vm299, %v5466
      %5483 = vst.msk [vmem:[#allocation4 + $0xb0] sm:$0xff] %vm299, %v5467
      %5484 = vst.msk [vmem:[#allocation4 + $0xc8] sm:$0xff] %vm299, %v5468
      %5485 = vst.msk [vmem:[#allocation4 + $0xe0] sm:$0xff] %vm299, %v5469
      %5486 = vst.msk [vmem:[#allocation4 + $0xf8] sm:$0xff] %vm299, %v5470
      %5487 = vst.msk [vmem:[#allocation4 + $0x110] sm:$0xff] %vm299, %v5471
      %5488 = vst.msk [vmem:[#allocation4 + $0x128] sm:$0xff] %vm299, %v5472
      %5489 = vst.msk [vmem:[#allocation4 + $0x140] sm:$0xff] %vm299, %v5473
      %5490 = vst.msk [vmem:[#allocation4 + $0x158] sm:$0xff] %vm299, %v5474
      %5491 = vst.msk [vmem:[#allocation4 + $0x170] sm:$0xff] %vm299, %v5475
      %v5492 = vld [vmem:[%s1760 + $0x2] sm:$0xff]
      %v5493 = vld [vmem:[%s1760 + $0xa] sm:$0xff]
      %v5494 = vld [vmem:[%s1760 + $0x1a] sm:$0xff]
      %v5495 = vld [vmem:[%s1760 + $0x22] sm:$0xff]
      %v5496 = vld [vmem:[%s1760 + $0x32] sm:$0xff]
      %v5497 = vld [vmem:[%s1760 + $0x3a] sm:$0xff]
      %v5498 = vld [vmem:[%s1760 + $0x4a] sm:$0xff]
      %v5499 = vld [vmem:[%s1760 + $0x52] sm:$0xff]
      %v5500 = vld [vmem:[%s1760 + $0x62] sm:$0xff]
      %v5501 = vld [vmem:[%s1760 + $0x6a] sm:$0xff]
      %v5502 = vld [vmem:[%s1760 + $0x7a] sm:$0xff]
      %v5503 = vld [vmem:[%s1760 + $0x82] sm:$0xff]
      %v5504 = vld [vmem:[%s1760 + $0x92] sm:$0xff]
      %v5505 = vld [vmem:[%s1760 + $0x9a] sm:$0xff]
      %v5506 = vld [vmem:[%s1760 + $0xaa] sm:$0xff]
      %v5507 = vld [vmem:[%s1760 + $0xb2] sm:$0xff]
      %v5508 = vld [vmem:[%s1760 + $0xc2] sm:$0xff]
      %v5509 = vld [vmem:[%s1760 + $0xca] sm:$0xff]
      %v5510 = vld [vmem:[%s1760 + $0xda] sm:$0xff]
      %v5511 = vld [vmem:[%s1760 + $0xe2] sm:$0xff]
      %v5512 = vld [vmem:[%s1760 + $0xf2] sm:$0xff]
      %v5513 = vld [vmem:[%s1760 + $0xfa] sm:$0xff]
      %v5514 = vld [vmem:[%s1760 + $0x10a] sm:$0xff]
      %v5515 = vld [vmem:[%s1760 + $0x112] sm:$0xff]
      %v5516 = vld [vmem:[%s1760 + $0x122] sm:$0xff]
      %v5517 = vld [vmem:[%s1760 + $0x12a] sm:$0xff]
      %v5518 = vld [vmem:[%s1760 + $0x13a] sm:$0xff]
      %v5519 = vld [vmem:[%s1760 + $0x142] sm:$0xff]
      %v5520 = vld [vmem:[%s1760 + $0x152] sm:$0xff]
      %v5521 = vld [vmem:[%s1760 + $0x15a] sm:$0xff]
      %v5522 = vld [vmem:[%s1760 + $0x16a] sm:$0xff]
      %v5523 = vld [vmem:[%s1760 + $0x172] sm:$0xff]
      %v5524 = vpack.c.bf16 %v5493, %v5492
      %v5525 = vpack.c.bf16 %v5495, %v5494
      %v5526 = vpack.c.bf16 %v5497, %v5496
      %v5527 = vpack.c.bf16 %v5499, %v5498
      %v5528 = vpack.c.bf16 %v5501, %v5500
      %v5529 = vpack.c.bf16 %v5503, %v5502
      %v5530 = vpack.c.bf16 %v5505, %v5504
      %v5531 = vpack.c.bf16 %v5507, %v5506
      %v5532 = vpack.c.bf16 %v5509, %v5508
      %v5533 = vpack.c.bf16 %v5511, %v5510
      %v5534 = vpack.c.bf16 %v5513, %v5512
      %v5535 = vpack.c.bf16 %v5515, %v5514
      %v5536 = vpack.c.bf16 %v5517, %v5516
      %v5537 = vpack.c.bf16 %v5519, %v5518
      %v5538 = vpack.c.bf16 %v5521, %v5520
      %v5539 = vpack.c.bf16 %v5523, %v5522
      %5556 = vrot.lane.b32.xlu0 %v5524, 32
      %v5557 = vpop.permute.xlu0 %5556
      %5558 = vrot.lane.b32.xlu0 %v5525, 32
      %v5559 = vpop.permute.xlu0 %5558
      %5560 = vrot.lane.b32.xlu0 %v5526, 32
      %v5561 = vpop.permute.xlu0 %5560
      %5562 = vrot.lane.b32.xlu0 %v5527, 32
      %v5563 = vpop.permute.xlu0 %5562
      %5564 = vrot.lane.b32.xlu0 %v5528, 32
      %v5565 = vpop.permute.xlu0 %5564
      %5566 = vrot.lane.b32.xlu0 %v5529, 32
      %v5567 = vpop.permute.xlu0 %5566
      %5568 = vrot.lane.b32.xlu0 %v5530, 32
      %v5569 = vpop.permute.xlu0 %5568
      %5570 = vrot.lane.b32.xlu0 %v5531, 32
      %v5571 = vpop.permute.xlu0 %5570
      %5572 = vrot.lane.b32.xlu0 %v5532, 32
      %v5573 = vpop.permute.xlu0 %5572
      %5574 = vrot.lane.b32.xlu0 %v5533, 32
      %v5575 = vpop.permute.xlu0 %5574
      %5576 = vrot.lane.b32.xlu0 %v5534, 32
      %v5577 = vpop.permute.xlu0 %5576
      %5578 = vrot.lane.b32.xlu0 %v5535, 32
      %v5579 = vpop.permute.xlu0 %5578
      %5580 = vrot.lane.b32.xlu0 %v5536, 32
      %v5581 = vpop.permute.xlu0 %5580
      %5582 = vrot.lane.b32.xlu0 %v5537, 32
      %v5583 = vpop.permute.xlu0 %5582
      %5584 = vrot.lane.b32.xlu0 %v5538, 32
      %v5585 = vpop.permute.xlu0 %5584
      %5586 = vrot.lane.b32.xlu0 %v5539, 32
      %v5587 = vpop.permute.xlu0 %5586
      %5604 = vst.msk [vmem:[#allocation4 + $0x8] sm:$0xff] %vm1969, %v5557
      %5605 = vst.msk [vmem:[#allocation4 + $0x20] sm:$0xff] %vm1969, %v5559
      %5606 = vst.msk [vmem:[#allocation4 + $0x38] sm:$0xff] %vm1969, %v5561
      %5607 = vst.msk [vmem:[#allocation4 + $0x50] sm:$0xff] %vm1969, %v5563
      %5608 = vst.msk [vmem:[#allocation4 + $0x68] sm:$0xff] %vm1969, %v5565
      %5609 = vst.msk [vmem:[#allocation4 + $0x80] sm:$0xff] %vm1969, %v5567
      %5610 = vst.msk [vmem:[#allocation4 + $0x98] sm:$0xff] %vm1969, %v5569
      %5611 = vst.msk [vmem:[#allocation4 + $0xb0] sm:$0xff] %vm1969, %v5571
      %5612 = vst.msk [vmem:[#allocation4 + $0xc8] sm:$0xff] %vm1969, %v5573
      %5613 = vst.msk [vmem:[#allocation4 + $0xe0] sm:$0xff] %vm1969, %v5575
      %5614 = vst.msk [vmem:[#allocation4 + $0xf8] sm:$0xff] %vm1969, %v5577
      %5615 = vst.msk [vmem:[#allocation4 + $0x110] sm:$0xff] %vm1969, %v5579
      %5616 = vst.msk [vmem:[#allocation4 + $0x128] sm:$0xff] %vm1969, %v5581
      %5617 = vst.msk [vmem:[#allocation4 + $0x140] sm:$0xff] %vm1969, %v5583
      %5618 = vst.msk [vmem:[#allocation4 + $0x158] sm:$0xff] %vm1969, %v5585
      %5619 = vst.msk [vmem:[#allocation4 + $0x170] sm:$0xff] %vm1969, %v5587
      %v5620 = vld [vmem:[%s2436] sm:$0xff]
      %v5621 = vld [vmem:[%s2436 + $0x8] sm:$0xff]
      %v5622 = vld [vmem:[%s2436 + $0x18] sm:$0xff]
      %v5623 = vld [vmem:[%s2436 + $0x20] sm:$0xff]
      %v5624 = vld [vmem:[%s2436 + $0x30] sm:$0xff]
      %v5625 = vld [vmem:[%s2436 + $0x38] sm:$0xff]
      %v5626 = vld [vmem:[%s2436 + $0x48] sm:$0xff]
      %v5627 = vld [vmem:[%s2436 + $0x50] sm:$0xff]
      %v5628 = vld [vmem:[%s2436 + $0x60] sm:$0xff]
      %v5629 = vld [vmem:[%s2436 + $0x68] sm:$0xff]
      %v5630 = vld [vmem:[%s2436 + $0x78] sm:$0xff]
      %v5631 = vld [vmem:[%s2436 + $0x80] sm:$0xff]
      %v5632 = vld [vmem:[%s2436 + $0x90] sm:$0xff]
      %v5633 = vld [vmem:[%s2436 + $0x98] sm:$0xff]
      %v5634 = vld [vmem:[%s2436 + $0xa8] sm:$0xff]
      %v5635 = vld [vmem:[%s2436 + $0xb0] sm:$0xff]
      %v5636 = vld [vmem:[%s2436 + $0xc0] sm:$0xff]
      %v5637 = vld [vmem:[%s2436 + $0xc8] sm:$0xff]
      %v5638 = vld [vmem:[%s2436 + $0xd8] sm:$0xff]
      %v5639 = vld [vmem:[%s2436 + $0xe0] sm:$0xff]
      %v5640 = vld [vmem:[%s2436 + $0xf0] sm:$0xff]
      %v5641 = vld [vmem:[%s2436 + $0xf8] sm:$0xff]
      %v5642 = vld [vmem:[%s2436 + $0x108] sm:$0xff]
      %v5643 = vld [vmem:[%s2436 + $0x110] sm:$0xff]
      %v5644 = vld [vmem:[%s2436 + $0x120] sm:$0xff]
      %v5645 = vld [vmem:[%s2436 + $0x128] sm:$0xff]
      %v5646 = vld [vmem:[%s2436 + $0x138] sm:$0xff]
      %v5647 = vld [vmem:[%s2436 + $0x140] sm:$0xff]
      %v5648 = vld [vmem:[%s2436 + $0x150] sm:$0xff]
      %v5649 = vld [vmem:[%s2436 + $0x158] sm:$0xff]
      %v5650 = vld [vmem:[%s2436 + $0x168] sm:$0xff]
      %v5651 = vld [vmem:[%s2436 + $0x170] sm:$0xff]
      %v5652 = vpack.c.bf16 %v5621, %v5620
      %v5653 = vpack.c.bf16 %v5623, %v5622
      %v5654 = vpack.c.bf16 %v5625, %v5624
      %v5655 = vpack.c.bf16 %v5627, %v5626
      %v5656 = vpack.c.bf16 %v5629, %v5628
      %v5657 = vpack.c.bf16 %v5631, %v5630
      %v5658 = vpack.c.bf16 %v5633, %v5632
      %v5659 = vpack.c.bf16 %v5635, %v5634
      %v5660 = vpack.c.bf16 %v5637, %v5636
      %v5661 = vpack.c.bf16 %v5639, %v5638
      %v5662 = vpack.c.bf16 %v5641, %v5640
      %v5663 = vpack.c.bf16 %v5643, %v5642
      %v5664 = vpack.c.bf16 %v5645, %v5644
      %v5665 = vpack.c.bf16 %v5647, %v5646
      %v5666 = vpack.c.bf16 %v5649, %v5648
      %v5667 = vpack.c.bf16 %v5651, %v5650
      %5684 = vrot.lane.b32.xlu0 %v5652, 64
      %v5685 = vpop.permute.xlu0 %5684
      %5686 = vrot.lane.b32.xlu0 %v5653, 64
      %v5687 = vpop.permute.xlu0 %5686
      %5688 = vrot.lane.b32.xlu0 %v5654, 64
      %v5689 = vpop.permute.xlu0 %5688
      %5690 = vrot.lane.b32.xlu0 %v5655, 64
      %v5691 = vpop.permute.xlu0 %5690
      %5692 = vrot.lane.b32.xlu0 %v5656, 64
      %v5693 = vpop.permute.xlu0 %5692
      %5694 = vrot.lane.b32.xlu0 %v5657, 64
      %v5695 = vpop.permute.xlu0 %5694
      %5696 = vrot.lane.b32.xlu0 %v5658, 64
      %v5697 = vpop.permute.xlu0 %5696
      %5698 = vrot.lane.b32.xlu0 %v5659, 64
      %v5699 = vpop.permute.xlu0 %5698
      %5700 = vrot.lane.b32.xlu0 %v5660, 64
      %v5701 = vpop.permute.xlu0 %5700
      %5702 = vrot.lane.b32.xlu0 %v5661, 64
      %v5703 = vpop.permute.xlu0 %5702
      %5704 = vrot.lane.b32.xlu0 %v5662, 64
      %v5705 = vpop.permute.xlu0 %5704
      %5706 = vrot.lane.b32.xlu0 %v5663, 64
      %v5707 = vpop.permute.xlu0 %5706
      %5708 = vrot.lane.b32.xlu0 %v5664, 64
      %v5709 = vpop.permute.xlu0 %5708
      %5710 = vrot.lane.b32.xlu0 %v5665, 64
      %v5711 = vpop.permute.xlu0 %5710
      %5712 = vrot.lane.b32.xlu0 %v5666, 64
      %v5713 = vpop.permute.xlu0 %5712
      %5714 = vrot.lane.b32.xlu0 %v5667, 64
      %v5715 = vpop.permute.xlu0 %5714
      %5732 = vst.msk [vmem:[#allocation4 + $0x8] sm:$0xff] %vm2098, %v5685
      %5733 = vst.msk [vmem:[#allocation4 + $0x20] sm:$0xff] %vm2098, %v5687
      %5734 = vst.msk [vmem:[#allocation4 + $0x38] sm:$0xff] %vm2098, %v5689
      %5735 = vst.msk [vmem:[#allocation4 + $0x50] sm:$0xff] %vm2098, %v5691
      %5736 = vst.msk [vmem:[#allocation4 + $0x68] sm:$0xff] %vm2098, %v5693
      %5737 = vst.msk [vmem:[#allocation4 + $0x80] sm:$0xff] %vm2098, %v5695
      %5738 = vst.msk [vmem:[#allocation4 + $0x98] sm:$0xff] %vm2098, %v5697
      %5739 = vst.msk [vmem:[#allocation4 + $0xb0] sm:$0xff] %vm2098, %v5699
      %5740 = vst.msk [vmem:[#allocation4 + $0xc8] sm:$0xff] %vm2098, %v5701
      %5741 = vst.msk [vmem:[#allocation4 + $0xe0] sm:$0xff] %vm2098, %v5703
      %5742 = vst.msk [vmem:[#allocation4 + $0xf8] sm:$0xff] %vm2098, %v5705
      %5743 = vst.msk [vmem:[#allocation4 + $0x110] sm:$0xff] %vm2098, %v5707
      %5744 = vst.msk [vmem:[#allocation4 + $0x128] sm:$0xff] %vm2098, %v5709
      %5745 = vst.msk [vmem:[#allocation4 + $0x140] sm:$0xff] %vm2098, %v5711
      %5746 = vst.msk [vmem:[#allocation4 + $0x158] sm:$0xff] %vm2098, %v5713
      %5747 = vst.msk [vmem:[#allocation4 + $0x170] sm:$0xff] %vm2098, %v5715
      %v5748 = vld [vmem:[%s2436 + $0x1] sm:$0xff]
      %v5749 = vld [vmem:[%s2436 + $0x9] sm:$0xff]
      %v5750 = vld [vmem:[%s2436 + $0x19] sm:$0xff]
      %v5751 = vld [vmem:[%s2436 + $0x21] sm:$0xff]
      %v5752 = vld [vmem:[%s2436 + $0x31] sm:$0xff]
      %v5753 = vld [vmem:[%s2436 + $0x39] sm:$0xff]
      %v5754 = vld [vmem:[%s2436 + $0x49] sm:$0xff]
      %v5755 = vld [vmem:[%s2436 + $0x51] sm:$0xff]
      %v5756 = vld [vmem:[%s2436 + $0x61] sm:$0xff]
      %v5757 = vld [vmem:[%s2436 + $0x69] sm:$0xff]
      %v5758 = vld [vmem:[%s2436 + $0x79] sm:$0xff]
      %v5759 = vld [vmem:[%s2436 + $0x81] sm:$0xff]
      %v5760 = vld [vmem:[%s2436 + $0x91] sm:$0xff]
      %v5761 = vld [vmem:[%s2436 + $0x99] sm:$0xff]
      %v5762 = vld [vmem:[%s2436 + $0xa9] sm:$0xff]
      %v5763 = vld [vmem:[%s2436 + $0xb1] sm:$0xff]
      %v5764 = vld [vmem:[%s2436 + $0xc1] sm:$0xff]
      %v5765 = vld [vmem:[%s2436 + $0xc9] sm:$0xff]
      %v5766 = vld [vmem:[%s2436 + $0xd9] sm:$0xff]
      %v5767 = vld [vmem:[%s2436 + $0xe1] sm:$0xff]
      %v5768 = vld [vmem:[%s2436 + $0xf1] sm:$0xff]
      %v5769 = vld [vmem:[%s2436 + $0xf9] sm:$0xff]
      %v5770 = vld [vmem:[%s2436 + $0x109] sm:$0xff]
      %v5771 = vld [vmem:[%s2436 + $0x111] sm:$0xff]
      %v5772 = vld [vmem:[%s2436 + $0x121] sm:$0xff]
      %v5773 = vld [vmem:[%s2436 + $0x129] sm:$0xff]
      %v5774 = vld [vmem:[%s2436 + $0x139] sm:$0xff]
      %v5775 = vld [vmem:[%s2436 + $0x141] sm:$0xff]
      %v5776 = vld [vmem:[%s2436 + $0x151] sm:$0xff]
      %v5777 = vld [vmem:[%s2436 + $0x159] sm:$0xff]
      %v5778 = vld [vmem:[%s2436 + $0x169] sm:$0xff]
      %v5779 = vld [vmem:[%s2436 + $0x171] sm:$0xff]
      %v5780 = vpack.c.bf16 %v5749, %v5748
      %v5781 = vpack.c.bf16 %v5751, %v5750
      %v5782 = vpack.c.bf16 %v5753, %v5752
      %v5783 = vpack.c.bf16 %v5755, %v5754
      %v5784 = vpack.c.bf16 %v5757, %v5756
      %v5785 = vpack.c.bf16 %v5759, %v5758
      %v5786 = vpack.c.bf16 %v5761, %v5760
      %v5787 = vpack.c.bf16 %v5763, %v5762
      %v5788 = vpack.c.bf16 %v5765, %v5764
      %v5789 = vpack.c.bf16 %v5767, %v5766
      %v5790 = vpack.c.bf16 %v5769, %v5768
      %v5791 = vpack.c.bf16 %v5771, %v5770
      %v5792 = vpack.c.bf16 %v5773, %v5772
      %v5793 = vpack.c.bf16 %v5775, %v5774
      %v5794 = vpack.c.bf16 %v5777, %v5776
      %v5795 = vpack.c.bf16 %v5779, %v5778
      %5812 = vrot.lane.b32.xlu0 %v5780, 96
      %v5813 = vpop.permute.xlu0 %5812
      %5814 = vrot.lane.b32.xlu0 %v5781, 96
      %v5815 = vpop.permute.xlu0 %5814
      %5816 = vrot.lane.b32.xlu0 %v5782, 96
      %v5817 = vpop.permute.xlu0 %5816
      %5818 = vrot.lane.b32.xlu0 %v5783, 96
      %v5819 = vpop.permute.xlu0 %5818
      %5820 = vrot.lane.b32.xlu0 %v5784, 96
      %v5821 = vpop.permute.xlu0 %5820
      %5822 = vrot.lane.b32.xlu0 %v5785, 96
      %v5823 = vpop.permute.xlu0 %5822
      %5824 = vrot.lane.b32.xlu0 %v5786, 96
      %v5825 = vpop.permute.xlu0 %5824
      %5826 = vrot.lane.b32.xlu0 %v5787, 96
      %v5827 = vpop.permute.xlu0 %5826
      %5828 = vrot.lane.b32.xlu0 %v5788, 96
      %v5829 = vpop.permute.xlu0 %5828
      %5830 = vrot.lane.b32.xlu0 %v5789, 96
      %v5831 = vpop.permute.xlu0 %5830
      %5832 = vrot.lane.b32.xlu0 %v5790, 96
      %v5833 = vpop.permute.xlu0 %5832
      %5834 = vrot.lane.b32.xlu0 %v5791, 96
      %v5835 = vpop.permute.xlu0 %5834
      %5836 = vrot.lane.b32.xlu0 %v5792, 96
      %v5837 = vpop.permute.xlu0 %5836
      %5838 = vrot.lane.b32.xlu0 %v5793, 96
      %v5839 = vpop.permute.xlu0 %5838
      %5840 = vrot.lane.b32.xlu0 %v5794, 96
      %v5841 = vpop.permute.xlu0 %5840
      %5842 = vrot.lane.b32.xlu0 %v5795, 96
      %v5843 = vpop.permute.xlu0 %5842
      %5860 = vst.msk [vmem:[#allocation4 + $0x8] sm:$0xff] %vm2227, %v5813
      %5861 = vst.msk [vmem:[#allocation4 + $0x20] sm:$0xff] %vm2227, %v5815
      %5862 = vst.msk [vmem:[#allocation4 + $0x38] sm:$0xff] %vm2227, %v5817
      %5863 = vst.msk [vmem:[#allocation4 + $0x50] sm:$0xff] %vm2227, %v5819
      %5864 = vst.msk [vmem:[#allocation4 + $0x68] sm:$0xff] %vm2227, %v5821
      %5865 = vst.msk [vmem:[#allocation4 + $0x80] sm:$0xff] %vm2227, %v5823
      %5866 = vst.msk [vmem:[#allocation4 + $0x98] sm:$0xff] %vm2227, %v5825
      %5867 = vst.msk [vmem:[#allocation4 + $0xb0] sm:$0xff] %vm2227, %v5827
      %5868 = vst.msk [vmem:[#allocation4 + $0xc8] sm:$0xff] %vm2227, %v5829
      %5869 = vst.msk [vmem:[#allocation4 + $0xe0] sm:$0xff] %vm2227, %v5831
      %5870 = vst.msk [vmem:[#allocation4 + $0xf8] sm:$0xff] %vm2227, %v5833
      %5871 = vst.msk [vmem:[#allocation4 + $0x110] sm:$0xff] %vm2227, %v5835
      %5872 = vst.msk [vmem:[#allocation4 + $0x128] sm:$0xff] %vm2227, %v5837
      %5873 = vst.msk [vmem:[#allocation4 + $0x140] sm:$0xff] %vm2227, %v5839
      %5874 = vst.msk [vmem:[#allocation4 + $0x158] sm:$0xff] %vm2227, %v5841
      %5875 = vst.msk [vmem:[#allocation4 + $0x170] sm:$0xff] %vm2227, %v5843
      %v5876 = vld [vmem:[%s2436 + $0x2] sm:$0xff]
      %v5877 = vld [vmem:[%s2436 + $0xa] sm:$0xff]
      %v5878 = vld [vmem:[%s2436 + $0x1a] sm:$0xff]
      %v5879 = vld [vmem:[%s2436 + $0x22] sm:$0xff]
      %v5880 = vld [vmem:[%s2436 + $0x32] sm:$0xff]
      %v5881 = vld [vmem:[%s2436 + $0x3a] sm:$0xff]
      %v5882 = vld [vmem:[%s2436 + $0x4a] sm:$0xff]
      %v5883 = vld [vmem:[%s2436 + $0x52] sm:$0xff]
      %v5884 = vld [vmem:[%s2436 + $0x62] sm:$0xff]
      %v5885 = vld [vmem:[%s2436 + $0x6a] sm:$0xff]
      %v5886 = vld [vmem:[%s2436 + $0x7a] sm:$0xff]
      %v5887 = vld [vmem:[%s2436 + $0x82] sm:$0xff]
      %v5888 = vld [vmem:[%s2436 + $0x92] sm:$0xff]
      %v5889 = vld [vmem:[%s2436 + $0x9a] sm:$0xff]
      %v5890 = vld [vmem:[%s2436 + $0xaa] sm:$0xff]
      %v5891 = vld [vmem:[%s2436 + $0xb2] sm:$0xff]
      %v5892 = vld [vmem:[%s2436 + $0xc2] sm:$0xff]
      %v5893 = vld [vmem:[%s2436 + $0xca] sm:$0xff]
      %v5894 = vld [vmem:[%s2436 + $0xda] sm:$0xff]
      %v5895 = vld [vmem:[%s2436 + $0xe2] sm:$0xff]
      %v5896 = vld [vmem:[%s2436 + $0xf2] sm:$0xff]
      %v5897 = vld [vmem:[%s2436 + $0xfa] sm:$0xff]
      %v5898 = vld [vmem:[%s2436 + $0x10a] sm:$0xff]
      %v5899 = vld [vmem:[%s2436 + $0x112] sm:$0xff]
      %v5900 = vld [vmem:[%s2436 + $0x122] sm:$0xff]
      %v5901 = vld [vmem:[%s2436 + $0x12a] sm:$0xff]
      %v5902 = vld [vmem:[%s2436 + $0x13a] sm:$0xff]
      %v5903 = vld [vmem:[%s2436 + $0x142] sm:$0xff]
      %v5904 = vld [vmem:[%s2436 + $0x152] sm:$0xff]
      %v5905 = vld [vmem:[%s2436 + $0x15a] sm:$0xff]
      %v5906 = vld [vmem:[%s2436 + $0x16a] sm:$0xff]
      %v5907 = vld [vmem:[%s2436 + $0x172] sm:$0xff]
      %v5908 = vpack.c.bf16 %v5877, %v5876
      %v5909 = vpack.c.bf16 %v5879, %v5878
      %v5910 = vpack.c.bf16 %v5881, %v5880
      %v5911 = vpack.c.bf16 %v5883, %v5882
      %v5912 = vpack.c.bf16 %v5885, %v5884
      %v5913 = vpack.c.bf16 %v5887, %v5886
      %v5914 = vpack.c.bf16 %v5889, %v5888
      %v5915 = vpack.c.bf16 %v5891, %v5890
      %v5916 = vpack.c.bf16 %v5893, %v5892
      %v5917 = vpack.c.bf16 %v5895, %v5894
      %v5918 = vpack.c.bf16 %v5897, %v5896
      %v5919 = vpack.c.bf16 %v5899, %v5898
      %v5920 = vpack.c.bf16 %v5901, %v5900
      %v5921 = vpack.c.bf16 %v5903, %v5902
      %v5922 = vpack.c.bf16 %v5905, %v5904
      %v5923 = vpack.c.bf16 %v5907, %v5906
      %5924 = vst.msk [vmem:[#allocation4 + $0x10] sm:$0xff] %vm299, %v5908
      %5925 = vst.msk [vmem:[#allocation4 + $0x28] sm:$0xff] %vm299, %v5909
      %5926 = vst.msk [vmem:[#allocation4 + $0x40] sm:$0xff] %vm299, %v5910
      %5927 = vst.msk [vmem:[#allocation4 + $0x58] sm:$0xff] %vm299, %v5911
      %5928 = vst.msk [vmem:[#allocation4 + $0x70] sm:$0xff] %vm299, %v5912
      %5929 = vst.msk [vmem:[#allocation4 + $0x88] sm:$0xff] %vm299, %v5913
      %5930 = vst.msk [vmem:[#allocation4 + $0xa0] sm:$0xff] %vm299, %v5914
      %5931 = vst.msk [vmem:[#allocation4 + $0xb8] sm:$0xff] %vm299, %v5915
      %5932 = vst.msk [vmem:[#allocation4 + $0xd0] sm:$0xff] %vm299, %v5916
      %5933 = vst.msk [vmem:[#allocation4 + $0xe8] sm:$0xff] %vm299, %v5917
      %5934 = vst.msk [vmem:[#allocation4 + $0x100] sm:$0xff] %vm299, %v5918
      %5935 = vst.msk [vmem:[#allocation4 + $0x118] sm:$0xff] %vm299, %v5919
      %5936 = vst.msk [vmem:[#allocation4 + $0x130] sm:$0xff] %vm299, %v5920
      %5937 = vst.msk [vmem:[#allocation4 + $0x148] sm:$0xff] %vm299, %v5921
      %5938 = vst.msk [vmem:[#allocation4 + $0x160] sm:$0xff] %vm299, %v5922
      %5939 = vst.msk [vmem:[#allocation4 + $0x178] sm:$0xff] %vm299, %v5923
      %v5940 = vld [vmem:[#allocation4] sm:$0xff]
      %v5941 = vld [vmem:[#allocation4 + $0x8] sm:$0xff]
      %v5942 = vld [vmem:[#allocation4 + $0x10] sm:$0xff]
      %v5943 = vld [vmem:[#allocation4 + $0x18] sm:$0xff]
      %v5944 = vld [vmem:[#allocation4 + $0x20] sm:$0xff]
      %v5945 = vld [vmem:[#allocation4 + $0x28] sm:$0xff]
      %v5946 = vld [vmem:[#allocation4 + $0x30] sm:$0xff]
      %v5947 = vld [vmem:[#allocation4 + $0x38] sm:$0xff]
      %v5948 = vld [vmem:[#allocation4 + $0x40] sm:$0xff]
      %v5949 = vld [vmem:[#allocation4 + $0x48] sm:$0xff]
      %v5950 = vld [vmem:[#allocation4 + $0x50] sm:$0xff]
      %v5951 = vld [vmem:[#allocation4 + $0x58] sm:$0xff]
      %v5952 = vld [vmem:[#allocation4 + $0x60] sm:$0xff]
      %v5953 = vld [vmem:[#allocation4 + $0x68] sm:$0xff]
      %v5954 = vld [vmem:[#allocation4 + $0x70] sm:$0xff]
      %v5955 = vld [vmem:[#allocation4 + $0x78] sm:$0xff]
      %v5956 = vld [vmem:[#allocation4 + $0x80] sm:$0xff]
      %v5957 = vld [vmem:[#allocation4 + $0x88] sm:$0xff]
      %v5958 = vld [vmem:[#allocation4 + $0x90] sm:$0xff]
      %v5959 = vld [vmem:[#allocation4 + $0x98] sm:$0xff]
      %v5960 = vld [vmem:[#allocation4 + $0xa0] sm:$0xff]
      %v5961 = vld [vmem:[#allocation4 + $0xa8] sm:$0xff]
      %v5962 = vld [vmem:[#allocation4 + $0xb0] sm:$0xff]
      %v5963 = vld [vmem:[#allocation4 + $0xb8] sm:$0xff]
      %v5964 = vld [vmem:[#allocation4 + $0xc0] sm:$0xff]
      %v5965 = vld [vmem:[#allocation4 + $0xc8] sm:$0xff]
      %v5966 = vld [vmem:[#allocation4 + $0xd0] sm:$0xff]
      %v5967 = vld [vmem:[#allocation4 + $0xd8] sm:$0xff]
      %v5968 = vld [vmem:[#allocation4 + $0xe0] sm:$0xff]
      %v5969 = vld [vmem:[#allocation4 + $0xe8] sm:$0xff]
      %v5970 = vld [vmem:[#allocation4 + $0xf0] sm:$0xff]
      %v5971 = vld [vmem:[#allocation4 + $0xf8] sm:$0xff]
      %v5972 = vld [vmem:[#allocation4 + $0x100] sm:$0xff]
      %v5973 = vld [vmem:[#allocation4 + $0x108] sm:$0xff]
      %v5974 = vld [vmem:[#allocation4 + $0x110] sm:$0xff]
      %v5975 = vld [vmem:[#allocation4 + $0x118] sm:$0xff]
      %v5976 = vld [vmem:[#allocation4 + $0x120] sm:$0xff]
      %v5977 = vld [vmem:[#allocation4 + $0x128] sm:$0xff]
      %v5978 = vld [vmem:[#allocation4 + $0x130] sm:$0xff]
      %v5979 = vld [vmem:[#allocation4 + $0x138] sm:$0xff]
      %v5980 = vld [vmem:[#allocation4 + $0x140] sm:$0xff]
      %v5981 = vld [vmem:[#allocation4 + $0x148] sm:$0xff]
      %v5982 = vld [vmem:[#allocation4 + $0x150] sm:$0xff]
      %v5983 = vld [vmem:[#allocation4 + $0x158] sm:$0xff]
      %v5984 = vld [vmem:[#allocation4 + $0x160] sm:$0xff]
      %v5985 = vld [vmem:[#allocation4 + $0x168] sm:$0xff]
      %v5986 = vld [vmem:[#allocation4 + $0x170] sm:$0xff]
      %v5987 = vld [vmem:[#allocation4 + $0x178] sm:$0xff]
      %v5988 = vld [vmem:[%s3] sm:$0xf]
      %v5989 = vld [vmem:[%s3 + $0x4] sm:$0xf]
      %v5990 = vld [vmem:[%s3 + $0x8] sm:$0xf]
      %v5991 = vld [vmem:[%s3 + $0xc] sm:$0xf]
      %v5992 = vld [vmem:[%s3 + $0x10] sm:$0xf]
      %v5993 = vld [vmem:[%s3 + $0x14] sm:$0xf]
      %v5994 = vld [vmem:[%s3 + $0x18] sm:$0xf]
      %v5995 = vld [vmem:[%s3 + $0x1c] sm:$0xf]
      %v5996 = vld [vmem:[%s3 + $0x20] sm:$0xf]
      %v5997 = vld [vmem:[%s3 + $0x24] sm:$0xf]
      %v5998 = vld [vmem:[%s3 + $0x28] sm:$0xf]
      %v5999 = vld [vmem:[%s3 + $0x2c] sm:$0xf]
      %v6000 = vld [vmem:[%s3 + $0x30] sm:$0xf]
      %v6001 = vld [vmem:[%s3 + $0x34] sm:$0xf]
      %v6002 = vld [vmem:[%s3 + $0x38] sm:$0xf]
      %v6003 = vld [vmem:[%s3 + $0x3c] sm:$0xf]
      %v6004 = vld [vmem:[%s3 + $0x40] sm:$0xf]
      %v6005 = vld [vmem:[%s3 + $0x44] sm:$0xf]
      %v6006 = vld [vmem:[%s3 + $0x48] sm:$0xf]
      %v6007 = vld [vmem:[%s3 + $0x4c] sm:$0xf]
      %v6008 = vld [vmem:[%s3 + $0x50] sm:$0xf]
      %v6009 = vld [vmem:[%s3 + $0x54] sm:$0xf]
      %v6010 = vld [vmem:[%s3 + $0x58] sm:$0xf]
      %v6011 = vld [vmem:[%s3 + $0x5c] sm:$0xf]
      %v6012 = vld [vmem:[%s3 + $0x60] sm:$0xf]
      %v6013 = vld [vmem:[%s3 + $0x64] sm:$0xf]
      %v6014 = vld [vmem:[%s3 + $0x68] sm:$0xf]
      %v6015 = vld [vmem:[%s3 + $0x6c] sm:$0xf]
      %v6016 = vld [vmem:[%s3 + $0x70] sm:$0xf]
      %v6017 = vld [vmem:[%s3 + $0x74] sm:$0xf]
      %v6018 = vld [vmem:[%s3 + $0x78] sm:$0xf]
      %v6019 = vld [vmem:[%s3 + $0x7c] sm:$0xf]
      %v6020 = vld [vmem:[%s3 + $0x80] sm:$0xf]
      %v6021 = vld [vmem:[%s3 + $0x84] sm:$0xf]
      %v6022 = vld [vmem:[%s3 + $0x88] sm:$0xf]
      %v6023 = vld [vmem:[%s3 + $0x8c] sm:$0xf]
      %v6024 = vld [vmem:[%s5] sm:$0x1]
      %v6026 = vlaneseq
      %v6027 = vshrl.u32 %v6026, 7
      %v6028 = vsub.s32 0, %v6027
      %v6029 = vrot.slane %v6024, %v6028
      %v6067 = vunpack.c.l.b16 %v5988
      %v6068 = vunpack.c.l.b16 %v5989
      %v6069 = vunpack.c.l.b16 %v5990
      %v6070 = vunpack.c.l.b16 %v5991
      %v6071 = vunpack.c.l.b16 %v5992
      %v6072 = vunpack.c.l.b16 %v5993
      %v6073 = vunpack.c.l.b16 %v5994
      %v6074 = vunpack.c.l.b16 %v5995
      %v6075 = vunpack.c.l.b16 %v5996
      %v6076 = vunpack.c.l.b16 %v5997
      %v6077 = vunpack.c.l.b16 %v5998
      %v6078 = vunpack.c.l.b16 %v5999
      %v6079 = vunpack.c.l.b16 %v6000
      %v6080 = vunpack.c.l.b16 %v6001
      %v6081 = vunpack.c.l.b16 %v6002
      %v6082 = vunpack.c.l.b16 %v6003
      %v6083 = vunpack.c.l.b16 %v6004
      %v6084 = vunpack.c.l.b16 %v6005
      %v6085 = vunpack.c.l.b16 %v6006
      %v6086 = vunpack.c.l.b16 %v6007
      %v6087 = vunpack.c.l.b16 %v6008
      %v6088 = vunpack.c.l.b16 %v6009
      %v6089 = vunpack.c.l.b16 %v6010
      %v6090 = vunpack.c.l.b16 %v6011
      %v6091 = vunpack.c.l.b16 %v6012
      %v6092 = vunpack.c.l.b16 %v6013
      %v6093 = vunpack.c.l.b16 %v6014
      %v6094 = vunpack.c.l.b16 %v6015
      %v6095 = vunpack.c.l.b16 %v6016
      %v6096 = vunpack.c.l.b16 %v6017
      %v6097 = vunpack.c.l.b16 %v6018
      %v6098 = vunpack.c.l.b16 %v6019
      %v6099 = vunpack.c.l.b16 %v6020
      %v6100 = vunpack.c.l.b16 %v6021
      %v6101 = vunpack.c.l.b16 %v6022
      %v6102 = vunpack.c.l.b16 %v6023
      %v6103 = vpack.c.b16 %v6068, %v6067
      %v6104 = vpack.c.b16 %v6070, %v6069
      %v6105 = vpack.c.b16 %v6072, %v6071
      %v6106 = vpack.c.b16 %v6074, %v6073
      %v6107 = vpack.c.b16 %v6076, %v6075
      %v6108 = vpack.c.b16 %v6078, %v6077
      %v6109 = vpack.c.b16 %v6080, %v6079
      %v6110 = vpack.c.b16 %v6082, %v6081
      %v6111 = vpack.c.b16 %v6084, %v6083
      %v6112 = vpack.c.b16 %v6086, %v6085
      %v6113 = vpack.c.b16 %v6088, %v6087
      %v6114 = vpack.c.b16 %v6090, %v6089
      %v6115 = vpack.c.b16 %v6092, %v6091
      %v6116 = vpack.c.b16 %v6094, %v6093
      %v6117 = vpack.c.b16 %v6096, %v6095
      %v6118 = vpack.c.b16 %v6098, %v6097
      %v6119 = vpack.c.b16 %v6100, %v6099
      %v6120 = vpack.c.b16 %v6102, %v6101
      %v6140 = vsel %vm299, %v5942, 0
      %v6143 = vsel %vm299, %v5945, 0
      %v6146 = vsel %vm299, %v5948, 0
      %v6149 = vsel %vm299, %v5951, 0
      %v6152 = vsel %vm299, %v5954, 0
      %v6155 = vsel %vm299, %v5957, 0
      %v6158 = vsel %vm299, %v5960, 0
      %v6161 = vsel %vm299, %v5963, 0
      %v6164 = vsel %vm299, %v5966, 0
      %v6167 = vsel %vm299, %v5969, 0
      %v6170 = vsel %vm299, %v5972, 0
      %v6173 = vsel %vm299, %v5975, 0
      %v6176 = vsel %vm299, %v5978, 0
      %v6179 = vsel %vm299, %v5981, 0
      %v6182 = vsel %vm299, %v5984, 0
      %v6185 = vsel %vm299, %v5987, 0
      %6187 = vmatprep.subr.bf16.mxu0 0
      %6188 = vmatpush1.bf16.msra.mxu0 %v6103
      %6189 = vmatprep.subr.bf16.mxu0 0
      %6190 = vmatpush1.bf16.msra.mxu0 %v6104
      %6191 = vmatprep.subr.bf16.mxu0 0
      %6192 = vmatpush1.bf16.msra.mxu0 %v6105
      %6193 = vmatprep.subr.bf16.mxu0 0
      %6194 = vmatpush1.bf16.msra.mxu0 %v6106
      %6195 = vmatprep.subr.bf16.mxu0 0
      %6196 = vmatpush1.bf16.msra.mxu0 %v6107
      %6197 = vmatprep.subr.bf16.mxu0 0
      %6198 = vmatpush1.bf16.msra.mxu0 %v6108
      %6199 = vmatprep.subr.bf16.mxu0 0
      %6200 = vmatpush1.bf16.msra.mxu0 %v6109
      %6201 = vmatprep.subr.bf16.mxu0 0
      %6202 = vmatpush1.bf16.msra.mxu0 %v6110
      %6203 = vmatprep.subr.bf16.mxu0 0
      %6204 = vmatpush1.bf16.msra.mxu0 %v6111
      %6205 = vmatprep.subr.bf16.mxu0 0
      %6206 = vmatpush1.bf16.msra.mxu0 %v6112
      %6207 = vmatprep.subr.bf16.mxu0 0
      %6208 = vmatpush1.bf16.msra.mxu0 %v6113
      %6209 = vmatprep.subr.bf16.mxu0 0
      %6210 = vmatpush1.bf16.msra.mxu0 %v6114
      %6211 = vmatprep.subr.bf16.mxu0 0
      %6212 = vmatpush1.bf16.msra.mxu0 %v6115
      %6213 = vmatprep.subr.bf16.mxu0 0
      %6214 = vmatpush1.bf16.msra.mxu0 %v6116
      %6215 = vmatprep.subr.bf16.mxu0 0
      %6216 = vmatpush1.bf16.msra.mxu0 %v6117
      %6217 = vmatprep.subr.bf16.mxu0 0
      %6218 = vmatpush1.bf16.msra.mxu0 %v6118
      %6219 = vmatprep.mubr.bf16.mxu0 %v5941
      %6220 = vmatmul.mubr.bf16.gmra.mrb[0].mxu0 %v5940
      %v6221 = vpop.f32.mrb[0].mxu0
      %v6222 = vadd.f32 %v6029, %v6221
      %v6223 = vpop.f32.mrb[0].mxu0
      %v6224 = vpop.f32.mrb[0].mxu0
      %v6225 = vadd.f32 %v6029, %v6224
      %v6226 = vpop.f32.mrb[0].mxu0
      %6227 = vmatprep.mubr.bf16.mxu0 %v5944
      %6228 = vmatmul.mubr.bf16.gmra.mrb[0].mxu0 %v5943
      %v6229 = vpop.f32.mrb[0].mxu0
      %v6230 = vadd.f32 %v6029, %v6229
      %v6231 = vpop.f32.mrb[0].mxu0
      %v6232 = vpop.f32.mrb[0].mxu0
      %v6233 = vadd.f32 %v6029, %v6232
      %v6234 = vpop.f32.mrb[0].mxu0
      %6235 = vmatprep.mubr.bf16.mxu0 %v5947
      %6236 = vmatmul.mubr.bf16.gmra.mrb[0].mxu0 %v5946
      %v6237 = vpop.f32.mrb[0].mxu0
      %v6238 = vadd.f32 %v6029, %v6237
      %v6239 = vpop.f32.mrb[0].mxu0
      %v6240 = vpop.f32.mrb[0].mxu0
      %v6241 = vadd.f32 %v6029, %v6240
      %v6242 = vpop.f32.mrb[0].mxu0
      %6243 = vmatprep.mubr.bf16.mxu0 %v5950
      %6244 = vmatmul.mubr.bf16.gmra.mrb[0].mxu0 %v5949
      %v6245 = vpop.f32.mrb[0].mxu0
      %v6246 = vadd.f32 %v6029, %v6245
      %v6247 = vpop.f32.mrb[0].mxu0
      %v6248 = vpop.f32.mrb[0].mxu0
      %v6249 = vadd.f32 %v6029, %v6248
      %v6250 = vpop.f32.mrb[0].mxu0
      %6251 = vmatprep.mubr.bf16.mxu0 %v5953
      %6252 = vmatmul.mubr.bf16.gmra.mrb[0].mxu0 %v5952
      %v6253 = vpop.f32.mrb[0].mxu0
      %v6254 = vadd.f32 %v6029, %v6253
      %v6255 = vpop.f32.mrb[0].mxu0
      %v6256 = vpop.f32.mrb[0].mxu0
      %v6257 = vadd.f32 %v6029, %v6256
      %v6258 = vpop.f32.mrb[0].mxu0
      %6259 = vmatprep.mubr.bf16.mxu0 %v5956
      %6260 = vmatmul.mubr.bf16.gmra.mrb[0].mxu0 %v5955
      %v6261 = vpop.f32.mrb[0].mxu0
      %v6262 = vadd.f32 %v6029, %v6261
      %v6263 = vpop.f32.mrb[0].mxu0
      %v6264 = vpop.f32.mrb[0].mxu0
      %v6265 = vadd.f32 %v6029, %v6264
      %v6266 = vpop.f32.mrb[0].mxu0
      %6267 = vmatprep.mubr.bf16.mxu0 %v5959
      %6268 = vmatmul.mubr.bf16.gmra.mrb[0].mxu0 %v5958
      %v6269 = vpop.f32.mrb[0].mxu0
      %v6270 = vadd.f32 %v6029, %v6269
      %v6271 = vpop.f32.mrb[0].mxu0
      %v6272 = vpop.f32.mrb[0].mxu0
      %v6273 = vadd.f32 %v6029, %v6272
      %v6274 = vpop.f32.mrb[0].mxu0
      %6275 = vmatprep.mubr.bf16.mxu0 %v5962
      %6276 = vmatmul.mubr.bf16.gmra.mrb[0].mxu0 %v5961
      %v6277 = vpop.f32.mrb[0].mxu0
      %v6278 = vadd.f32 %v6029, %v6277
      %v6279 = vpop.f32.mrb[0].mxu0
      %v6280 = vpop.f32.mrb[0].mxu0
      %v6281 = vadd.f32 %v6029, %v6280
      %v6282 = vpop.f32.mrb[0].mxu0
      %6283 = vmatprep.mubr.bf16.mxu0 %v5965
      %6284 = vmatmul.mubr.bf16.gmra.mrb[0].mxu0 %v5964
      %v6285 = vpop.f32.mrb[0].mxu0
      %v6286 = vadd.f32 %v6029, %v6285
      %v6287 = vpop.f32.mrb[0].mxu0
      %v6288 = vpop.f32.mrb[0].mxu0
      %v6289 = vadd.f32 %v6029, %v6288
      %v6290 = vpop.f32.mrb[0].mxu0
      %6291 = vmatprep.mubr.bf16.mxu0 %v5968
      %6292 = vmatmul.mubr.bf16.gmra.mrb[0].mxu0 %v5967
      %v6293 = vpop.f32.mrb[0].mxu0
      %v6294 = vadd.f32 %v6029, %v6293
      %v6295 = vpop.f32.mrb[0].mxu0
      %v6296 = vpop.f32.mrb[0].mxu0
      %v6297 = vadd.f32 %v6029, %v6296
      %v6298 = vpop.f32.mrb[0].mxu0
      %6299 = vmatprep.mubr.bf16.mxu0 %v5971
      %6300 = vmatmul.mubr.bf16.gmra.mrb[0].mxu0 %v5970
      %v6301 = vpop.f32.mrb[0].mxu0
      %v6302 = vadd.f32 %v6029, %v6301
      %v6303 = vpop.f32.mrb[0].mxu0
      %v6304 = vpop.f32.mrb[0].mxu0
      %v6305 = vadd.f32 %v6029, %v6304
      %v6306 = vpop.f32.mrb[0].mxu0
      %6307 = vmatprep.mubr.bf16.mxu0 %v5974
      %6308 = vmatmul.mubr.bf16.gmra.mrb[0].mxu0 %v5973
      %v6309 = vpop.f32.mrb[0].mxu0
      %v6310 = vadd.f32 %v6029, %v6309
      %v6311 = vpop.f32.mrb[0].mxu0
      %v6312 = vpop.f32.mrb[0].mxu0
      %v6313 = vadd.f32 %v6029, %v6312
      %v6314 = vpop.f32.mrb[0].mxu0
      %6315 = vmatprep.mubr.bf16.mxu0 %v5977
      %6316 = vmatmul.mubr.bf16.gmra.mrb[0].mxu0 %v5976
      %v6317 = vpop.f32.mrb[0].mxu0
      %v6318 = vadd.f32 %v6029, %v6317
      %v6319 = vpop.f32.mrb[0].mxu0
      %v6320 = vpop.f32.mrb[0].mxu0
      %v6321 = vadd.f32 %v6029, %v6320
      %v6322 = vpop.f32.mrb[0].mxu0
      %6323 = vmatprep.mubr.bf16.mxu0 %v5980
      %6324 = vmatmul.mubr.bf16.gmra.mrb[0].mxu0 %v5979
      %v6325 = vpop.f32.mrb[0].mxu0
      %v6326 = vadd.f32 %v6029, %v6325
      %v6327 = vpop.f32.mrb[0].mxu0
      %v6328 = vpop.f32.mrb[0].mxu0
      %v6329 = vadd.f32 %v6029, %v6328
      %v6330 = vpop.f32.mrb[0].mxu0
      %6331 = vmatprep.mubr.bf16.mxu0 %v5983
      %6332 = vmatmul.mubr.bf16.gmra.mrb[0].mxu0 %v5982
      %v6333 = vpop.f32.mrb[0].mxu0
      %v6334 = vadd.f32 %v6029, %v6333
      %v6335 = vpop.f32.mrb[0].mxu0
      %v6336 = vpop.f32.mrb[0].mxu0
      %v6337 = vadd.f32 %v6029, %v6336
      %v6338 = vpop.f32.mrb[0].mxu0
      %6339 = vmatprep.mubr.bf16.mxu0 %v5986
      %6340 = vmatmul.mubr.bf16.gmra.mrb[0].mxu0 %v5985
      %v6341 = vpop.f32.mrb[0].mxu0
      %v6342 = vadd.f32 %v6029, %v6341
      %v6343 = vpop.f32.mrb[0].mxu0
      %v6344 = vpop.f32.mrb[0].mxu0
      %v6345 = vadd.f32 %v6029, %v6344
      %v6346 = vpop.f32.mrb[0].mxu0
      %6347 = vdwg.mxu0
      %6348 = vmatprep.subr.bf16.mxu0 0
      %6349 = vmatpush1.bf16.msra.mxu0 %v6119
      %6350 = vmatprep.subr.bf16.mxu0 0
      %6351 = vmatpush1.bf16.msra.mxu0 %v6120
      %6352 = vmatprep.subr.bf16.mxu0 0
      %6353 = vmatpush1.bf16.msra.mxu0 0
      %6354 = vmatprep.subr.bf16.mxu0 0
      %6355 = vmatpush1.bf16.msra.mxu0 0
      %6356 = vmatprep.subr.bf16.mxu0 0
      %6357 = vmatpush1.bf16.msra.mxu0 0
      %6358 = vmatprep.subr.bf16.mxu0 0
      %6359 = vmatpush1.bf16.msra.mxu0 0
      %6360 = vmatprep.subr.bf16.mxu0 0
      %6361 = vmatpush1.bf16.msra.mxu0 0
      %6362 = vmatprep.subr.bf16.mxu0 0
      %6363 = vmatpush1.bf16.msra.mxu0 0
      %6364 = vmatprep.subr.bf16.mxu0 0
      %6365 = vmatpush1.bf16.msra.mxu0 0
      %6366 = vmatprep.subr.bf16.mxu0 0
      %6367 = vmatpush1.bf16.msra.mxu0 0
      %6368 = vmatprep.subr.bf16.mxu0 0
      %6369 = vmatpush1.bf16.msra.mxu0 0
      %6370 = vmatprep.subr.bf16.mxu0 0
      %6371 = vmatpush1.bf16.msra.mxu0 0
      %6372 = vmatprep.subr.bf16.mxu0 0
      %6373 = vmatpush1.bf16.msra.mxu0 0
      %6374 = vmatprep.subr.bf16.mxu0 0
      %6375 = vmatpush1.bf16.msra.mxu0 0
      %6376 = vmatprep.subr.bf16.mxu0 0
      %6377 = vmatpush1.bf16.msra.mxu0 0
      %6378 = vmatprep.subr.bf16.mxu0 0
      %6379 = vmatpush1.bf16.msra.mxu0 0
      %6380 = vmatprep.mubr.bf16.mxu0 0
      %6381 = vmatmul.mubr.bf16.gmra.mrb[0].mxu0 %v6140
      %v6382 = vpop.f32.mrb[0].mxu0
      %v6383 = vadd.f32 %v6222, %v6382
      %v6384 = vpop.f32.mrb[0].mxu0
      %v6385 = vpop.f32.mrb[0].mxu0
      %v6386 = vadd.f32 %v6225, %v6385
      %v6387 = vpop.f32.mrb[0].mxu0
      %6388 = vmatprep.mubr.bf16.mxu0 0
      %6389 = vmatmul.mubr.bf16.gmra.mrb[0].mxu0 %v6143
      %v6390 = vpop.f32.mrb[0].mxu0
      %v6391 = vadd.f32 %v6230, %v6390
      %v6392 = vpop.f32.mrb[0].mxu0
      %v6393 = vpop.f32.mrb[0].mxu0
      %v6394 = vadd.f32 %v6233, %v6393
      %v6395 = vpop.f32.mrb[0].mxu0
      %6396 = vmatprep.mubr.bf16.mxu0 0
      %6397 = vmatmul.mubr.bf16.gmra.mrb[0].mxu0 %v6146
      %v6398 = vpop.f32.mrb[0].mxu0
      %v6399 = vadd.f32 %v6238, %v6398
      %v6400 = vpop.f32.mrb[0].mxu0
      %v6401 = vpop.f32.mrb[0].mxu0
      %v6402 = vadd.f32 %v6241, %v6401
      %v6403 = vpop.f32.mrb[0].mxu0
      %6404 = vmatprep.mubr.bf16.mxu0 0
      %6405 = vmatmul.mubr.bf16.gmra.mrb[0].mxu0 %v6149
      %v6406 = vpop.f32.mrb[0].mxu0
      %v6407 = vadd.f32 %v6246, %v6406
      %v6408 = vpop.f32.mrb[0].mxu0
      %v6409 = vpop.f32.mrb[0].mxu0
      %v6410 = vadd.f32 %v6249, %v6409
      %v6411 = vpop.f32.mrb[0].mxu0
      %6412 = vmatprep.mubr.bf16.mxu0 0
      %6413 = vmatmul.mubr.bf16.gmra.mrb[0].mxu0 %v6152
      %v6414 = vpop.f32.mrb[0].mxu0
      %v6415 = vadd.f32 %v6254, %v6414
      %v6416 = vpop.f32.mrb[0].mxu0
      %v6417 = vpop.f32.mrb[0].mxu0
      %v6418 = vadd.f32 %v6257, %v6417
      %v6419 = vpop.f32.mrb[0].mxu0
      %6420 = vmatprep.mubr.bf16.mxu0 0
      %6421 = vmatmul.mubr.bf16.gmra.mrb[0].mxu0 %v6155
      %v6422 = vpop.f32.mrb[0].mxu0
      %v6423 = vadd.f32 %v6262, %v6422
      %v6424 = vpop.f32.mrb[0].mxu0
      %v6425 = vpop.f32.mrb[0].mxu0
      %v6426 = vadd.f32 %v6265, %v6425
      %v6427 = vpop.f32.mrb[0].mxu0
      %6428 = vmatprep.mubr.bf16.mxu0 0
      %6429 = vmatmul.mubr.bf16.gmra.mrb[0].mxu0 %v6158
      %v6430 = vpop.f32.mrb[0].mxu0
      %v6431 = vadd.f32 %v6270, %v6430
      %v6432 = vpop.f32.mrb[0].mxu0
      %v6433 = vpop.f32.mrb[0].mxu0
      %v6434 = vadd.f32 %v6273, %v6433
      %v6435 = vpop.f32.mrb[0].mxu0
      %6436 = vmatprep.mubr.bf16.mxu0 0
      %6437 = vmatmul.mubr.bf16.gmra.mrb[0].mxu0 %v6161
      %v6438 = vpop.f32.mrb[0].mxu0
      %v6439 = vadd.f32 %v6278, %v6438
      %v6440 = vpop.f32.mrb[0].mxu0
      %v6441 = vpop.f32.mrb[0].mxu0
      %v6442 = vadd.f32 %v6281, %v6441
      %v6443 = vpop.f32.mrb[0].mxu0
      %6444 = vmatprep.mubr.bf16.mxu0 0
      %6445 = vmatmul.mubr.bf16.gmra.mrb[0].mxu0 %v6164
      %v6446 = vpop.f32.mrb[0].mxu0
      %v6447 = vadd.f32 %v6286, %v6446
      %v6448 = vpop.f32.mrb[0].mxu0
      %v6449 = vpop.f32.mrb[0].mxu0
      %v6450 = vadd.f32 %v6289, %v6449
      %v6451 = vpop.f32.mrb[0].mxu0
      %6452 = vmatprep.mubr.bf16.mxu0 0
      %6453 = vmatmul.mubr.bf16.gmra.mrb[0].mxu0 %v6167
      %v6454 = vpop.f32.mrb[0].mxu0
      %v6455 = vadd.f32 %v6294, %v6454
      %v6456 = vpop.f32.mrb[0].mxu0
      %v6457 = vpop.f32.mrb[0].mxu0
      %v6458 = vadd.f32 %v6297, %v6457
      %v6459 = vpop.f32.mrb[0].mxu0
      %6460 = vmatprep.mubr.bf16.mxu0 0
      %6461 = vmatmul.mubr.bf16.gmra.mrb[0].mxu0 %v6170
      %v6462 = vpop.f32.mrb[0].mxu0
      %v6463 = vadd.f32 %v6302, %v6462
      %v6464 = vpop.f32.mrb[0].mxu0
      %v6465 = vpop.f32.mrb[0].mxu0
      %v6466 = vadd.f32 %v6305, %v6465
      %v6467 = vpop.f32.mrb[0].mxu0
      %6468 = vmatprep.mubr.bf16.mxu0 0
      %6469 = vmatmul.mubr.bf16.gmra.mrb[0].mxu0 %v6173
      %v6470 = vpop.f32.mrb[0].mxu0
      %v6471 = vadd.f32 %v6310, %v6470
      %v6472 = vpop.f32.mrb[0].mxu0
      %v6473 = vpop.f32.mrb[0].mxu0
      %v6474 = vadd.f32 %v6313, %v6473
      %v6475 = vpop.f32.mrb[0].mxu0
      %6476 = vmatprep.mubr.bf16.mxu0 0
      %6477 = vmatmul.mubr.bf16.gmra.mrb[0].mxu0 %v6176
      %v6478 = vpop.f32.mrb[0].mxu0
      %v6479 = vadd.f32 %v6318, %v6478
      %v6480 = vpop.f32.mrb[0].mxu0
      %v6481 = vpop.f32.mrb[0].mxu0
      %v6482 = vadd.f32 %v6321, %v6481
      %v6483 = vpop.f32.mrb[0].mxu0
      %6484 = vmatprep.mubr.bf16.mxu0 0
      %6485 = vmatmul.mubr.bf16.gmra.mrb[0].mxu0 %v6179
      %v6486 = vpop.f32.mrb[0].mxu0
      %v6487 = vadd.f32 %v6326, %v6486
      %v6488 = vpop.f32.mrb[0].mxu0
      %v6489 = vpop.f32.mrb[0].mxu0
      %v6490 = vadd.f32 %v6329, %v6489
      %v6491 = vpop.f32.mrb[0].mxu0
      %6492 = vmatprep.mubr.bf16.mxu0 0
      %6493 = vmatmul.mubr.bf16.gmra.mrb[0].mxu0 %v6182
      %v6494 = vpop.f32.mrb[0].mxu0
      %v6495 = vadd.f32 %v6334, %v6494
      %v6496 = vpop.f32.mrb[0].mxu0
      %v6497 = vpop.f32.mrb[0].mxu0
      %v6498 = vadd.f32 %v6337, %v6497
      %v6499 = vpop.f32.mrb[0].mxu0
      %6500 = vmatprep.mubr.bf16.mxu0 0
      %6501 = vmatmul.mubr.bf16.gmra.mrb[0].mxu0 %v6185
      %v6502 = vpop.f32.mrb[0].mxu0
      %v6503 = vadd.f32 %v6342, %v6502
      %v6504 = vpop.f32.mrb[0].mxu0
      %v6505 = vpop.f32.mrb[0].mxu0
      %v6506 = vadd.f32 %v6345, %v6505
      %v6507 = vpop.f32.mrb[0].mxu0
      %6508 = vdwg.mxu0
      %v6509 = vld [vmem:[%s246] sm:$0xff]
      %v6510 = vld [vmem:[%s246 + $0x8] sm:$0xff]
      %v6511 = vld [vmem:[%s246 + $0x10] sm:$0xff]
      %v6512 = vld [vmem:[%s246 + $0x18] sm:$0xff]
      %v6513 = vld [vmem:[%s246 + $0x20] sm:$0xff]
      %v6514 = vld [vmem:[%s246 + $0x28] sm:$0xff]
      %v6515 = vld [vmem:[%s246 + $0x30] sm:$0xff]
      %v6516 = vld [vmem:[%s246 + $0x38] sm:$0xff]
      %v6517 = vld [vmem:[%s246 + $0x40] sm:$0xff]
      %v6518 = vld [vmem:[%s246 + $0x48] sm:$0xff]
      %v6519 = vld [vmem:[%s246 + $0x50] sm:$0xff]
      %v6520 = vld [vmem:[%s246 + $0x58] sm:$0xff]
      %v6521 = vld [vmem:[%s246 + $0x60] sm:$0xff]
      %v6522 = vld [vmem:[%s246 + $0x68] sm:$0xff]
      %v6523 = vld [vmem:[%s246 + $0x70] sm:$0xff]
      %v6524 = vld [vmem:[%s246 + $0x78] sm:$0xff]
      %v6525 = vld [vmem:[%s246 + $0x80] sm:$0xff]
      %v6526 = vld [vmem:[%s246 + $0x88] sm:$0xff]
      %v6527 = vld [vmem:[%s246 + $0x90] sm:$0xff]
      %v6528 = vld [vmem:[%s246 + $0x98] sm:$0xff]
      %v6529 = vld [vmem:[%s246 + $0xa0] sm:$0xff]
      %v6530 = vld [vmem:[%s246 + $0xa8] sm:$0xff]
      %v6531 = vld [vmem:[%s246 + $0xb0] sm:$0xff]
      %v6532 = vld [vmem:[%s246 + $0xb8] sm:$0xff]
      %v6533 = vld [vmem:[%s246 + $0xc0] sm:$0xff]
      %v6534 = vld [vmem:[%s246 + $0xc8] sm:$0xff]
      %v6535 = vld [vmem:[%s246 + $0xd0] sm:$0xff]
      %v6536 = vld [vmem:[%s246 + $0xd8] sm:$0xff]
      %v6537 = vld [vmem:[%s246 + $0xe0] sm:$0xff]
      %v6538 = vld [vmem:[%s246 + $0xe8] sm:$0xff]
      %v6539 = vld [vmem:[%s246 + $0xf0] sm:$0xff]
      %v6540 = vld [vmem:[%s246 + $0xf8] sm:$0xff]
      %v6541 = vsub.f32 %v6509, %v6383
      %v6542 = vsub.f32 %v6510, %v6386
      %v6543 = vsub.f32 %v6511, %v6391
      %v6544 = vsub.f32 %v6512, %v6394
      %v6545 = vsub.f32 %v6513, %v6399
      %v6546 = vsub.f32 %v6514, %v6402
      %v6547 = vsub.f32 %v6515, %v6407
      %v6548 = vsub.f32 %v6516, %v6410
      %v6549 = vsub.f32 %v6517, %v6415
      %v6550 = vsub.f32 %v6518, %v6418
      %v6551 = vsub.f32 %v6519, %v6423
      %v6552 = vsub.f32 %v6520, %v6426
      %v6553 = vsub.f32 %v6521, %v6431
      %v6554 = vsub.f32 %v6522, %v6434
      %v6555 = vsub.f32 %v6523, %v6439
      %v6556 = vsub.f32 %v6524, %v6442
      %v6557 = vsub.f32 %v6525, %v6447
      %v6558 = vsub.f32 %v6526, %v6450
      %v6559 = vsub.f32 %v6527, %v6455
      %v6560 = vsub.f32 %v6528, %v6458
      %v6561 = vsub.f32 %v6529, %v6463
      %v6562 = vsub.f32 %v6530, %v6466
      %v6563 = vsub.f32 %v6531, %v6471
      %v6564 = vsub.f32 %v6532, %v6474
      %v6565 = vsub.f32 %v6533, %v6479
      %v6566 = vsub.f32 %v6534, %v6482
      %v6567 = vsub.f32 %v6535, %v6487
      %v6568 = vsub.f32 %v6536, %v6490
      %v6569 = vsub.f32 %v6537, %v6495
      %v6570 = vsub.f32 %v6538, %v6498
      %v6571 = vsub.f32 %v6539, %v6503
      %v6572 = vsub.f32 %v6540, %v6506
      %6573 = vst.msk [vmem:[%s251] sm:$0xff] %vm253, %v6541
      %6574 = vst.msk [vmem:[%s251 + $0x8] sm:$0xff] %vm253, %v6542
      %6575 = vst.msk [vmem:[%s251 + $0x10] sm:$0xff] %vm253, %v6543
      %6576 = vst.msk [vmem:[%s251 + $0x18] sm:$0xff] %vm253, %v6544
      %6577 = vst.msk [vmem:[%s251 + $0x20] sm:$0xff] %vm253, %v6545
      %6578 = vst.msk [vmem:[%s251 + $0x28] sm:$0xff] %vm253, %v6546
      %6579 = vst.msk [vmem:[%s251 + $0x30] sm:$0xff] %vm253, %v6547
      %6580 = vst.msk [vmem:[%s251 + $0x38] sm:$0xff] %vm253, %v6548
      %6581 = vst.msk [vmem:[%s251 + $0x40] sm:$0xff] %vm253, %v6549
      %6582 = vst.msk [vmem:[%s251 + $0x48] sm:$0xff] %vm253, %v6550
      %6583 = vst.msk [vmem:[%s251 + $0x50] sm:$0xff] %vm253, %v6551
      %6584 = vst.msk [vmem:[%s251 + $0x58] sm:$0xff] %vm253, %v6552
      %6585 = vst.msk [vmem:[%s251 + $0x60] sm:$0xff] %vm253, %v6553
      %6586 = vst.msk [vmem:[%s251 + $0x68] sm:$0xff] %vm253, %v6554
      %6587 = vst.msk [vmem:[%s251 + $0x70] sm:$0xff] %vm253, %v6555
      %6588 = vst.msk [vmem:[%s251 + $0x78] sm:$0xff] %vm253, %v6556
      %6589 = vst.msk [vmem:[%s251 + $0x80] sm:$0xff] %vm253, %v6557
      %6590 = vst.msk [vmem:[%s251 + $0x88] sm:$0xff] %vm253, %v6558
      %6591 = vst.msk [vmem:[%s251 + $0x90] sm:$0xff] %vm253, %v6559
      %6592 = vst.msk [vmem:[%s251 + $0x98] sm:$0xff] %vm253, %v6560
      %6593 = vst.msk [vmem:[%s251 + $0xa0] sm:$0xff] %vm253, %v6561
      %6594 = vst.msk [vmem:[%s251 + $0xa8] sm:$0xff] %vm253, %v6562
      %6595 = vst.msk [vmem:[%s251 + $0xb0] sm:$0xff] %vm253, %v6563
      %6596 = vst.msk [vmem:[%s251 + $0xb8] sm:$0xff] %vm253, %v6564
      %6597 = vst.msk [vmem:[%s251 + $0xc0] sm:$0xff] %vm253, %v6565
      %6598 = vst.msk [vmem:[%s251 + $0xc8] sm:$0xff] %vm253, %v6566
      %6599 = vst.msk [vmem:[%s251 + $0xd0] sm:$0xff] %vm253, %v6567
      %6600 = vst.msk [vmem:[%s251 + $0xd8] sm:$0xff] %vm253, %v6568
      %6601 = vst.msk [vmem:[%s251 + $0xe0] sm:$0xff] %vm253, %v6569
      %6602 = vst.msk [vmem:[%s251 + $0xe8] sm:$0xff] %vm253, %v6570
      %6603 = vst.msk [vmem:[%s251 + $0xf0] sm:$0xff] %vm253, %v6571
      %6604 = vst.msk [vmem:[%s251 + $0xf8] sm:$0xff] %vm253, %v6572
      %p6605 = scmp.lt.s32.totalorder %s17, 1
      %s6606 = scalar_select %p6605, %s17, 1
      %s6607 = smul.addr %s6606, 32
      %s6608 = smul.addr %s6607, 8
      %s6609 = scalar_lea.vmem %s6, %s6608
      // Predicated region
      $region45: #{tpu_custom_call.1} parent=43 // pred_check
        %p6610 = pneg %p166
      $region46: #{tpu_custom_call.1} parent=43 // pred_check_branch
        %6612 = sbr.rel (%p6610) target = $region48
      $region47: #{tpu_custom_call.1} parent=43 // pred_region
        _
      $region48: #{tpu_custom_call.1} parent=43 // pred_fallthru
        _
    $region44: #{tpu_custom_call.1} parent=5 // pred_fallthru
      _
    %p6613 = scmp.le.s32.totalorder 2, %s12
    // Predicated region
    $region49: #{tpu_custom_call.1} parent=5 // pred_check
      %p6614 = pneg %p6613
    $region50: #{tpu_custom_call.1} parent=5 // pred_check_branch
      %6616 = sbr.rel (%p6614) target = $region52
    $region51: #{tpu_custom_call.1} parent=5 // pred_region
      %s6617 = ssub.s32 %s12, 2
      // Predicated region
      $region53: #{tpu_custom_call.1} parent=51 // pred_check
        %p6618 = pneg %p172
      $region54: #{tpu_custom_call.1} parent=51 // pred_check_branch
        %6620 = sbr.rel (%p6618) target = $region56
      $region55: #{tpu_custom_call.1} parent=51 // pred_region
        %p6621 = scmp.lt.s32.totalorder %s18, 1
        %s6622 = scalar_select %p6621, %s18, 1
        %s6623 = smul.addr %s6622, 32
        %s6624 = smul.addr %s6623, 8
        %s6625 = scalar_lea.vmem %s6, %s6624
      $region56: #{tpu_custom_call.1} parent=51 // pred_fallthru
        _
    $region52: #{tpu_custom_call.1} parent=5 // pred_fallthru
      _
  $region6: #{tpu_custom_call.1} parent=0 // loop_footer
    %s16 = sadd.s32 1, %s12
  $region7: #{tpu_custom_call.1} parent=0 // loop_footer_branch
    %11 = sbr.rel target = $region3
  $region8: #{tpu_custom_call.1} parent=0 // loop_exit
    _

</llo_original>
